<compile_context>
chip_gen: v7x
topology: tpu7x:2x2x1
jax: 0.10.0
libtpu: 0.0.40
codegen_flags: <defaults>
</compile_context>

<pallas_src>
import math
import functools

import jax
import jax.numpy as jnp
from jax import lax
from jax.experimental import pallas as pl
from jax.experimental.pallas import tpu as pltpu

_LN_EPS = 1e-5
_NEG_BIG = -1e32
_LOG_CLIP_MIN = math.log(1e-5)
_LOG_CLIP_MAX = math.log(1e5)


def _layernorm(x, w, b):
    # Two-pass (numerically stable) LayerNorm, matching nn.LayerNorm (biased variance).
    mu = jnp.mean(x, axis=-1, keepdims=True)
    xc = x - mu
    var = jnp.mean(xc * xc, axis=-1, keepdims=True)
    return xc * lax.rsqrt(var + _LN_EPS) * w + b


def _softmax_last(x):
    # Max-subtracted softmax over the last axis; normalization via approx reciprocal
    # (EUP slot) instead of a divide.
    m = jnp.max(x, axis=-1, keepdims=True)
    e = jnp.exp(x - m)
    return e * pl.reciprocal(jnp.sum(e, axis=-1, keepdims=True), approx=True)


def transformer_layer_kernel(
    gam_ref,                                           # SMEM (1, H) f32: -softplus(gammas)
    q_ref, k_ref, v_ref,                               # (Bt, S, D): q f32, k/v bf16
    wq_ref, bq_ref, wk_ref, bk_ref, wv_ref, bv_ref,    # (D, D) bf16 / (1, D) f32
    wo_ref, bo_ref,                                    # (D, D) bf16 / (1, D) f32
    ln1w_ref, ln1b_ref,                                # (1, D) f32
    w1_ref, b1_ref, w2_ref, b2_ref,                    # (D, F) bf16 /(1, F)/(F, D) bf16/(1, D)
    ln2w_ref, ln2b_ref,                                # (1, D) f32
    o_ref,                                             # (Bt, S, D) f32
    *, n_heads, d_k, mask_flag, zero_pad):
    Bt, S, D = q_ref.shape
    N = Bt * S
    f32, bf16 = jnp.float32, jnp.bfloat16

    # Flatten the Bt sequences into one (Bt*S, D) slab: projections / FFN / LayerNorms
    # are position-wise, so one big MXU matmul serves all sequences.
    xq = q_ref[...].reshape(N, D)                      # f32, kept for the residual
    xq_b = xq.astype(bf16)
    xk_b = k_ref[...].reshape(N, D)                    # already bf16
    xv_b = v_ref[...].reshape(N, D)

    # ---- fused Q/K/V projections: one full-width matmul per stream ----
    qp = jnp.dot(xq_b, wq_ref[...], preferred_element_type=f32) + bq_ref[...]
    kp = jnp.dot(xk_b, wk_ref[...], preferred_element_type=f32) + bk_ref[...]
    vp = jnp.dot(xv_b, wv_ref[...], preferred_element_type=f32) + bv_ref[...]

    # ---- mask / distance constants, built once and shared by every head ----
    row = lax.broadcasted_iota(jnp.int32, (S, S), 0)   # query position i
    col = lax.broadcasted_iota(jnp.int32, (S, S), 1)   # key position j
    valid = col < (row + mask_flag)                    # j < i + mask_flag
    mask_f = valid.astype(f32)
    pos_eff = jnp.abs(col - row).astype(f32)
    # suffix-sum-over-keys matrix:  (s_ @ M)[i, k] = sum_{j > k} s_[i, j]
    suffix_mat = (row > col).astype(f32)               # f32 operand (accuracy at large S)

    inv_sqrt_dk = f32(1.0 / math.sqrt(d_k))
    neg_big = f32(_NEG_BIG)

    head_outs = []
    # Small H -> static unroll; per-head data comes from cheap static lane slices.
    for h in range(n_heads):
        lo = h * d_k
        qh = qp[:, lo:lo + d_k].reshape(Bt, S, d_k).astype(bf16)
        kh = kp[:, lo:lo + d_k].reshape(Bt, S, d_k).astype(bf16)
        vh = vp[:, lo:lo + d_k].reshape(Bt, S, d_k).astype(bf16)

        # scores[b,i,j] = <q_i, k_j> / sqrt(d_k)   (contract last dims: no transpose)
        scores = jnp.einsum("bik,bjk->bij", qh, kh,
                            preferred_element_type=f32) * inv_sqrt_dk

        # ---- distance weighting (the torch.no_grad block) ----
        s_ = _softmax_last(jnp.where(valid, scores, neg_big)) * mask_f
        # (disttotal - distcum) in a single matmul with the strict lower-tri ones matrix.
        suffix = jnp.dot(s_.reshape(N, S), suffix_mat,
                         preferred_element_type=f32).reshape(Bt, S, S)
        dist = jnp.sqrt(jnp.maximum(suffix * pos_eff, 0.0))

        gamma_h = gam_ref[0, h]                        # scalar, = -softplus(gamma) <= 0
        # clamp folded into the exponent: exp(clip(x)) == clip(exp(x)) (monotone)
        total_effect = jnp.exp(jnp.clip(dist * gamma_h, _LOG_CLIP_MIN, _LOG_CLIP_MAX))

        p = _softmax_last(jnp.where(valid, scores * total_effect, neg_big))
        if zero_pad:
            p = jnp.where(row == 0, 0.0, p)            # zero the first query row

        head_outs.append(jnp.einsum("bij,bjk->bik", p.astype(bf16), vh,
                                    preferred_element_type=f32))   # (Bt, S, d_k)

    # ---- fused output projection: concat heads (layout-only) -> one full-K matmul ----
    attn = jnp.concatenate(head_outs, axis=-1).reshape(N, D).astype(bf16)
    x = xq + bo_ref[...] + jnp.dot(attn, wo_ref[...], preferred_element_type=f32)

    # residual + LayerNorm 1  (dropout1 = identity)
    x = _layernorm(x, ln1w_ref[...], ln1b_ref[...])

    # position-wise FFN, residual + LayerNorm 2  (dropout, dropout2 = identity)
    h1 = jnp.maximum(
        jnp.dot(x.astype(bf16), w1_ref[...], preferred_element_type=f32) + b1_ref[...], 0.0)
    ff = jnp.dot(h1.astype(bf16), w2_ref[...], preferred_element_type=f32) + b2_ref[...]
    x = _layernorm(x + ff, ln2w_ref[...], ln2b_ref[...])

    o_ref[...] = x.reshape(Bt, S, D).astype(o_ref.dtype)


def _step_activation_bytes(bt, S, D, F):
    n = bt * S
    act = n * D * (4 + 2 + 2 + 4) * 2        # q(f32), k/v(bf16) in + f32 out, double-buffered
    proj = 3 * n * D * 4                     # fused projection results
    head_tmp = 8 * bt * S * S * 4            # live (Bt,S,S) f32 score-sized temporaries
    ffn = 2 * n * F * 4                      # FFN activations
    return act + proj + head_tmp + ffn


def _auto_batch_tile(B, S, D, F, budget_bytes=24 * 2**20):
    # On v7x (2 TensorCores/chip) keep >= 2 grid steps so both TCs get work; on v5e/v6e
    # (single TC) grow Bt to the activation budget -- extra steps only add overhead.
    try:
        kind = jax.devices()[0].device_kind.lower()
    except Exception:
        kind = ""
    min_steps = 2 if "v7" in kind else 1
    for bt in range(B, 0, -1):
        if B % bt == 0 and (B // bt) >= min_steps and \
                _step_activation_bytes(bt, S, D, F) <= budget_bytes:
            return bt
    return 1


def _vmem_limit_bytes(Bt, S, D, F, H):
    weights = (4 * D * D + 2 * D * F) * 2 + (8 * D + F) * 4     # bf16 matrices + f32 vectors
    # Static head unroll may keep more than one head's temporaries live -> be conservative.
    est = weights + _step_activation_bytes(Bt, S, D, F) + (H - 1) * 8 * Bt * S * S * 4
    return int(min(64 * 2**20, max(16 * 2**20, 2 * est)))


def transformer_layer(params, mask_flag, query, key, values, batch_tile=None):
    """AKT TransformerLayer.forward(mask, query, key, values, apply_pos=True).

    nn.Linear weights are pre-transposed to (in, out) so y = x @ W + b.
    For kq_same=True, pass params["wq"] = params["wk"], params["bq"] = params["bk"].
    """
    B, S, D = query.shape
    H = params["n_heads"]
    d_k = D // H
    F = params["w1"].shape[1]
    zero_pad = (mask_flag == 0)
    f32, bf16 = jnp.float32, jnp.bfloat16

    Bt = batch_tile if batch_tile is not None else _auto_batch_tile(B, S, D, F)
    assert B % Bt == 0

    # Weight matrices are only MXU operands -> bf16; biases / LN params stay f32.
    wq = params["wq"].astype(bf16); bq = params["bq"].astype(f32)
    wk = params["wk"].astype(bf16); bk = params["bk"].astype(f32)
    wv = params["wv"].astype(bf16); bv = params["bv"].astype(f32)
    wo = params["wo"].astype(bf16); bo = params["bo"].astype(f32)
    ln1w = params["ln1w"].astype(f32); ln1b = params["ln1b"].astype(f32)
    w1 = params["w1"].astype(bf16); b1 = params["b1"].astype(f32)
    w2 = params["w2"].astype(bf16); b2 = params["b2"].astype(f32)
    ln2w = params["ln2w"].astype(f32); ln2b = params["ln2b"].astype(f32)
    # Numerically-stable -softplus(gamma), computed once and placed in SMEM.
    neg_gamma = (-jax.nn.softplus(params["gammas"].astype(f32))).reshape(1, H)

    # No lane padding of activations (true-D streams / stores); k & v stream as bf16
    # since they only ever feed the MXU. q stays f32 for the residual path.
    q32 = query.astype(f32)
    k16 = key.astype(bf16)
    v16 = values.astype(bf16)

    kernel = functools.partial(
        transformer_layer_kernel,
        n_heads=H, d_k=d_k, mask_flag=int(mask_flag), zero_pad=zero_pad)

    seq_spec = pl.BlockSpec((Bt, S, D), lambda b: (b, 0, 0))
    vmem_limit = _vmem_limit_bytes(Bt, S, D, F, H)
    can_single_buffer = hasattr(pl, "Buffered")

    def const_spec(shape, single_buffer):
        idx = lambda b: (0,) * len(shape)
        if single_buffer:
            try:
                # Constant index map -> single-buffer the weight (halves its VMEM).
                return pl.BlockSpec(shape, idx, pipeline_mode=pl.Buffered(1))
            except TypeError:
                pass
        return pl.BlockSpec(shape, idx)

    def run(single_buffer_weights):
        ws = lambda shape: const_spec(shape, single_buffer_weights)
        in_specs = [
            pl.BlockSpec(memory_space=pltpu.MemorySpace.SMEM),   # -softplus(gammas)
            seq_spec, seq_spec, seq_spec,                        # q, k, v
            ws((D, D)), ws((1, D)),                              # wq, bq
            ws((D, D)), ws((1, D)),                              # wk, bk
            ws((D, D)), ws((1, D)),                              # wv, bv
            ws((D, D)), ws((1, D)),                              # wo, bo
            ws((1, D)), ws((1, D)),                              # ln1 w, b
            ws((D, F)), ws((1, F)),                              # linear1 w, b
            ws((F, D)), ws((1, D)),                              # linear2 w, b
            ws((1, D)), ws((1, D)),                              # ln2 w, b
        ]
        return pl.pallas_call(
            kernel,
            out_shape=jax.ShapeDtypeStruct((B, S, D), jnp.float32),
            grid=(B // Bt,),
            in_specs=in_specs,
            out_specs=seq_spec,
            compiler_params=pltpu.CompilerParams(
                dimension_semantics=("parallel",),
                vmem_limit_bytes=vmem_limit),
        )(neg_gamma, q32, k16, v16,
          wq, bq, wk, bk, wv, bv, wo, bo,
          ln1w, ln1b, w1, b1, w2, b2, ln2w, ln2b)

    try:
        return run(can_single_buffer)
    except Exception:
        if not can_single_buffer:
            raise
        # Fallback for JAX versions where pl.Buffered(1) single-buffering is unsupported.
        return run(False)


# ----------------------- pure-JAX reference (for verification) -----------------------
def reference(params, mask_flag, q, k, v):
    B, S, D = q.shape
    H = params["n_heads"]
    d_k = D // H

    def lin(x, w, b):
        return jnp.dot(x, w) + b

    Q = lin(q, params["wq"], params["bq"]).reshape(B, S, H, d_k).transpose(0, 2, 1, 3)
    K = lin(k, params["wk"], params["bk"]).reshape(B, S, H, d_k).transpose(0, 2, 1, 3)
    V = lin(v, params["wv"], params["bv"]).reshape(B, S, H, d_k).transpose(0, 2, 1, 3)

    scores = jnp.einsum("bhqd,bhkd->bhqk", Q, K) / math.sqrt(d_k)
    i = jnp.arange(S)[:, None]
    j = jnp.arange(S)[None, :]
    valid = j < (i + mask_flag)
    maskf = valid.astype(jnp.float32)

    s_ = jax.nn.softmax(jnp.where(valid, scores, -1e32), -1) * maskf
    distcum = jnp.cumsum(s_, -1)
    disttot = jnp.sum(s_, -1, keepdims=True)
    pos = jnp.abs(j - i).astype(jnp.float32)
    dist = jnp.sqrt(jnp.maximum((disttot - distcum) * pos, 0.0))
    gamma = (-jax.nn.softplus(params["gammas"])).reshape(1, H, 1, 1)
    tot = jnp.clip(jnp.exp(dist * gamma), 1e-5, 1e5)

    scores = jnp.where(valid, scores * tot, -1e32)
    scores = jax.nn.softmax(scores, -1)
    if mask_flag == 0:
        scores = scores.at[:, :, 0, :].set(0.0)
    out = jnp.einsum("bhqk,bhkd->bhqd", scores, V)
    out = out.transpose(0, 2, 1, 3).reshape(B, S, D)

    def layernorm(x, w, b):
        mu = jnp.mean(x, -1, keepdims=True)
        var = jnp.mean((x - mu) ** 2, -1, keepdims=True)
        return (x - mu) * lax.rsqrt(var + _LN_EPS) * w + b

    x = layernorm(q + lin(out, params["wo"], params["bo"]), params["ln1w"], params["ln1b"])
    ff = lin(jnp.maximum(lin(x, params["w1"], params["b1"]), 0.0), params["w2"], params["b2"])
    return layernorm(x + ff, params["ln2w"], params["ln2b"])


def _xavier(key, shape):
    fan_in, fan_out = shape[0], shape[-1]
    lim = math.sqrt(6.0 / (fan_in + fan_out))
    return jax.random.uniform(key, shape, jnp.float32, -lim, lim)


if __name__ == "__main__":
    B, S, D, H, F = 4, 8, 32, 4, 64     # batch, seq, d_model, n_heads, d_ff; d_feature = 8

    keys = jax.random.split(jax.random.PRNGKey(0), 16)
    params = {
        "n_heads": H,
        "wq": _xavier(keys[0], (D, D)), "bq": jnp.zeros((1, D), jnp.float32),
        "wk": _xavier(keys[1], (D, D)), "bk": jnp.zeros((1, D), jnp.float32),
        "wv": _xavier(keys[2], (D, D)), "bv": jnp.zeros((1, D), jnp.float32),
        "wo": _xavier(keys[3], (D, D)), "bo": jnp.zeros((1, D), jnp.float32),
        "gammas": 0.5 * jax.random.uniform(keys[4], (1, H), jnp.float32, -1.0, 1.0),
        "ln1w": jnp.ones((1, D), jnp.float32), "ln1b": jnp.zeros((1, D), jnp.float32),
        "ln2w": jnp.ones((1, D), jnp.float32), "ln2b": jnp.zeros((1, D), jnp.float32),
        "w1": _xavier(keys[5], (D, F)),
        "b1": 0.1 * jax.random.uniform(keys[6], (1, F), jnp.float32, -1.0, 1.0),
        "w2": _xavier(keys[7], (F, D)),
        "b2": 0.1 * jax.random.uniform(keys[8], (1, D), jnp.float32, -1.0, 1.0),
    }

    query = jax.random.normal(keys[9], (B, S, D), jnp.float32)
    key_in = jax.random.normal(keys[10], (B, S, D), jnp.float32)
    values = jax.random.normal(keys[11], (B, S, D), jnp.float32)

    # mask=0: strictly-past attention + zero_pad; mask=1: causal incl. current step.
    for mask_flag in (0, 1):
        out = jax.block_until_ready(transformer_layer(params, mask_flag, query, key_in, values))
        ref = jax.block_until_ready(reference(params, mask_flag, query, key_in, values))
        assert out.shape == (B, S, D)
        assert bool(jnp.all(jnp.isfinite(out)))
        # tolerance reflects bf16 MXU operands (kernel and reference)
        assert bool(jnp.allclose(out, ref, atol=3e-2, rtol=3e-2)), \
            f"mismatch vs pure-JAX reference (mask={mask_flag})"

    print("KERNEL_OK")
</pallas_src>

<mosaic_0001>
module attributes {stable_mosaic.version = 11 : i64} {
  func.func @transformer_layer_kernel(%arg0: i32, %arg1: memref<1x4xf32, #tpu.memory_space<smem>>, %arg2: memref<4x8x32xf32, #tpu.memory_space<vmem>>, %arg3: memref<4x8x32xbf16, #tpu.memory_space<vmem>>, %arg4: memref<4x8x32xbf16, #tpu.memory_space<vmem>>, %arg5: memref<32x32xbf16, #tpu.memory_space<vmem>>, %arg6: memref<1x32xf32, #tpu.memory_space<vmem>>, %arg7: memref<32x32xbf16, #tpu.memory_space<vmem>>, %arg8: memref<1x32xf32, #tpu.memory_space<vmem>>, %arg9: memref<32x32xbf16, #tpu.memory_space<vmem>>, %arg10: memref<1x32xf32, #tpu.memory_space<vmem>>, %arg11: memref<32x32xbf16, #tpu.memory_space<vmem>>, %arg12: memref<1x32xf32, #tpu.memory_space<vmem>>, %arg13: memref<1x32xf32, #tpu.memory_space<vmem>>, %arg14: memref<1x32xf32, #tpu.memory_space<vmem>>, %arg15: memref<32x64xbf16, #tpu.memory_space<vmem>>, %arg16: memref<1x64xf32, #tpu.memory_space<vmem>>, %arg17: memref<64x32xbf16, #tpu.memory_space<vmem>>, %arg18: memref<1x32xf32, #tpu.memory_space<vmem>>, %arg19: memref<1x32xf32, #tpu.memory_space<vmem>>, %arg20: memref<1x32xf32, #tpu.memory_space<vmem>>, %arg21: memref<4x8x32xf32, #tpu.memory_space<vmem>>) attributes {dimension_semantics = [#tpu.dimension_semantics<parallel>], iteration_bounds = array<i64: 1>, scalar_prefetch = 0 : i64, scratch_operands = 0 : i64, tpu.core_type = #tpu.core_type<tc>, window_params = [{transform_indices = @transform_0, window_bounds = array<i64: 1, 4>}, {transform_indices = @transform_1, window_bounds = array<i64: 4, 8, 32>}, {transform_indices = @transform_2, window_bounds = array<i64: 4, 8, 32>}, {transform_indices = @transform_3, window_bounds = array<i64: 4, 8, 32>}, {pipeline_mode = #tpu.pipeline_mode<synchronous>, transform_indices = @transform_4, window_bounds = array<i64: 32, 32>}, {pipeline_mode = #tpu.pipeline_mode<synchronous>, transform_indices = @transform_5, window_bounds = array<i64: 1, 32>}, {pipeline_mode = #tpu.pipeline_mode<synchronous>, transform_indices = @transform_6, window_bounds = array<i64: 32, 32>}, {pipeline_mode = #tpu.pipeline_mode<synchronous>, transform_indices = @transform_7, window_bounds = array<i64: 1, 32>}, {pipeline_mode = #tpu.pipeline_mode<synchronous>, transform_indices = @transform_8, window_bounds = array<i64: 32, 32>}, {pipeline_mode = #tpu.pipeline_mode<synchronous>, transform_indices = @transform_9, window_bounds = array<i64: 1, 32>}, {pipeline_mode = #tpu.pipeline_mode<synchronous>, transform_indices = @transform_10, window_bounds = array<i64: 32, 32>}, {pipeline_mode = #tpu.pipeline_mode<synchronous>, transform_indices = @transform_11, window_bounds = array<i64: 1, 32>}, {pipeline_mode = #tpu.pipeline_mode<synchronous>, transform_indices = @transform_12, window_bounds = array<i64: 1, 32>}, {pipeline_mode = #tpu.pipeline_mode<synchronous>, transform_indices = @transform_13, window_bounds = array<i64: 1, 32>}, {pipeline_mode = #tpu.pipeline_mode<synchronous>, transform_indices = @transform_14, window_bounds = array<i64: 32, 64>}, {pipeline_mode = #tpu.pipeline_mode<synchronous>, transform_indices = @transform_15, window_bounds = array<i64: 1, 64>}, {pipeline_mode = #tpu.pipeline_mode<synchronous>, transform_indices = @transform_16, window_bounds = array<i64: 64, 32>}, {pipeline_mode = #tpu.pipeline_mode<synchronous>, transform_indices = @transform_17, window_bounds = array<i64: 1, 32>}, {pipeline_mode = #tpu.pipeline_mode<synchronous>, transform_indices = @transform_18, window_bounds = array<i64: 1, 32>}, {pipeline_mode = #tpu.pipeline_mode<synchronous>, transform_indices = @transform_19, window_bounds = array<i64: 1, 32>}, {transform_indices = @transform_20, window_bounds = array<i64: 4, 8, 32>}]} {
    %c0 = arith.constant 0 : index
    %c0_0 = arith.constant 0 : index
    %c0_1 = arith.constant 0 : index
    %0 = vector.load %arg2[%c0, %c0_0, %c0_1] : memref<4x8x32xf32, #tpu.memory_space<vmem>>, vector<4x8x32xf32>
    %1 = vector.shape_cast %0 : vector<4x8x32xf32> to vector<32x32xf32>
    %2 = arith.truncf %1 : vector<32x32xf32> to vector<32x32xbf16>
    %c0_2 = arith.constant 0 : index
    %c0_3 = arith.constant 0 : index
    %c0_4 = arith.constant 0 : index
    %3 = vector.load %arg3[%c0_2, %c0_3, %c0_4] : memref<4x8x32xbf16, #tpu.memory_space<vmem>>, vector<4x8x32xbf16>
    %4 = vector.shape_cast %3 : vector<4x8x32xbf16> to vector<32x32xbf16>
    %c0_5 = arith.constant 0 : index
    %c0_6 = arith.constant 0 : index
    %c0_7 = arith.constant 0 : index
    %5 = vector.load %arg4[%c0_5, %c0_6, %c0_7] : memref<4x8x32xbf16, #tpu.memory_space<vmem>>, vector<4x8x32xbf16>
    %6 = vector.shape_cast %5 : vector<4x8x32xbf16> to vector<32x32xbf16>
    %c0_8 = arith.constant 0 : index
    %c0_9 = arith.constant 0 : index
    %7 = vector.load %arg5[%c0_8, %c0_9] : memref<32x32xbf16, #tpu.memory_space<vmem>>, vector<32x32xbf16>
    %cst = arith.constant dense<0.000000e+00> : vector<32x32xf32>
    %8 = tpu.matmul %2, %7, %cst {dimension_numbers = #tpu.dot_dimension_numbers<[1], [0], [0], [1], [0, 0, 1, 1], [], []>} : vector<32x32xbf16>, vector<32x32xbf16>, vector<32x32xf32> -> vector<32x32xf32>
    %c0_10 = arith.constant 0 : index
    %c0_11 = arith.constant 0 : index
    %9 = vector.load %arg6[%c0_10, %c0_11] : memref<1x32xf32, #tpu.memory_space<vmem>>, vector<1x32xf32>
    %10 = vector.broadcast %9 : vector<1x32xf32> to vector<32x32xf32>
    %11 = arith.addf %8, %10 : vector<32x32xf32>
    %c0_12 = arith.constant 0 : index
    %c0_13 = arith.constant 0 : index
    %12 = vector.load %arg7[%c0_12, %c0_13] : memref<32x32xbf16, #tpu.memory_space<vmem>>, vector<32x32xbf16>
    %cst_14 = arith.constant dense<0.000000e+00> : vector<32x32xf32>
    %13 = tpu.matmul %4, %12, %cst_14 {dimension_numbers = #tpu.dot_dimension_numbers<[1], [0], [0], [1], [0, 0, 1, 1], [], []>} : vector<32x32xbf16>, vector<32x32xbf16>, vector<32x32xf32> -> vector<32x32xf32>
    %c0_15 = arith.constant 0 : index
    %c0_16 = arith.constant 0 : index
    %14 = vector.load %arg8[%c0_15, %c0_16] : memref<1x32xf32, #tpu.memory_space<vmem>>, vector<1x32xf32>
    %15 = vector.broadcast %14 : vector<1x32xf32> to vector<32x32xf32>
    %16 = arith.addf %13, %15 : vector<32x32xf32>
    %c0_17 = arith.constant 0 : index
    %c0_18 = arith.constant 0 : index
    %17 = vector.load %arg9[%c0_17, %c0_18] : memref<32x32xbf16, #tpu.memory_space<vmem>>, vector<32x32xbf16>
    %cst_19 = arith.constant dense<0.000000e+00> : vector<32x32xf32>
    %18 = tpu.matmul %6, %17, %cst_19 {dimension_numbers = #tpu.dot_dimension_numbers<[1], [0], [0], [1], [0, 0, 1, 1], [], []>} : vector<32x32xbf16>, vector<32x32xbf16>, vector<32x32xf32> -> vector<32x32xf32>
    %c0_20 = arith.constant 0 : index
    %c0_21 = arith.constant 0 : index
    %19 = vector.load %arg10[%c0_20, %c0_21] : memref<1x32xf32, #tpu.memory_space<vmem>>, vector<1x32xf32>
    %20 = vector.broadcast %19 : vector<1x32xf32> to vector<32x32xf32>
    %21 = arith.addf %18, %20 : vector<32x32xf32>
    %22 = tpu.iota {dimensions = array<i32: 0>} : vector<8x8xi32>
    %23 = tpu.iota {dimensions = array<i32: 1>} : vector<8x8xi32>
    %c0_i32 = arith.constant 0 : i32
    %24 = vector.broadcast %c0_i32 : i32 to vector<8x8xi32>
    %25 = arith.addi %22, %24 : vector<8x8xi32>
    %26 = arith.cmpi slt, %23, %25 : vector<8x8xi32>
    %27 = arith.extui %26 : vector<8x8xi1> to vector<8x8xi32>
    %28 = arith.sitofp %27 : vector<8x8xi32> to vector<8x8xf32>
    %29 = arith.subi %23, %22 : vector<8x8xi32>
    %30 = math.absi %29 : vector<8x8xi32>
    %31 = arith.sitofp %30 : vector<8x8xi32> to vector<8x8xf32>
    %32 = arith.cmpi sgt, %22, %23 : vector<8x8xi32>
    %33 = arith.extui %32 : vector<8x8xi1> to vector<8x8xi32>
    %34 = arith.sitofp %33 : vector<8x8xi32> to vector<8x8xf32>
    %35 = vector.extract_strided_slice %11 {offsets = [0, 0], sizes = [32, 8], strides = [1, 1]} : vector<32x32xf32> to vector<32x8xf32>
    %36 = vector.shape_cast %35 : vector<32x8xf32> to vector<4x8x8xf32>
    %37 = arith.truncf %36 : vector<4x8x8xf32> to vector<4x8x8xbf16>
    %38 = vector.extract_strided_slice %16 {offsets = [0, 0], sizes = [32, 8], strides = [1, 1]} : vector<32x32xf32> to vector<32x8xf32>
    %39 = vector.shape_cast %38 : vector<32x8xf32> to vector<4x8x8xf32>
    %40 = arith.truncf %39 : vector<4x8x8xf32> to vector<4x8x8xbf16>
    %41 = vector.extract_strided_slice %21 {offsets = [0, 0], sizes = [32, 8], strides = [1, 1]} : vector<32x32xf32> to vector<32x8xf32>
    %42 = vector.shape_cast %41 : vector<32x8xf32> to vector<4x8x8xf32>
    %43 = arith.truncf %42 : vector<4x8x8xf32> to vector<4x8x8xbf16>
    "tpu.trace_start"() <{level = 10 : i32, message = "bik,bjk->bij"}> : () -> ()
    %cst_22 = arith.constant dense<0.000000e+00> : vector<4x8x8xf32>
    %44 = tpu.matmul %37, %40, %cst_22 {dimension_numbers = #tpu.dot_dimension_numbers<[2], [2], [1], [1], [0, 0, 0, 1, 1, 1], [0], [0]>} : vector<4x8x8xbf16>, vector<4x8x8xbf16>, vector<4x8x8xf32> -> vector<4x8x8xf32>
    "tpu.trace_stop"() : () -> ()
    %cst_23 = arith.constant 0.353553385 : f32
    %45 = vector.broadcast %cst_23 : f32 to vector<4x8x8xf32>
    %46 = arith.mulf %44, %45 : vector<4x8x8xf32>
    %cst_24 = arith.constant -1.000000e+32 : f32
    %47 = vector.shape_cast %26 : vector<8x8xi1> to vector<1x8x8xi1>
    %48 = vector.broadcast %47 : vector<1x8x8xi1> to vector<4x8x8xi1>
    %49 = vector.broadcast %cst_24 : f32 to vector<4x8x8xf32>
    %50 = arith.select %48, %46, %49 : vector<4x8x8xi1>, vector<4x8x8xf32>
    %cst_25 = arith.constant dense<0xFF800000> : vector<4x8xf32>
    %51 = vector.multi_reduction <maximumf>, %50, %cst_25 [2] : vector<4x8x8xf32> to vector<4x8xf32>
    %52 = vector.shape_cast %51 : vector<4x8xf32> to vector<4x8x1xf32>
    %53 = vector.broadcast %52 : vector<4x8x1xf32> to vector<4x8x8xf32>
    %54 = arith.subf %50, %53 : vector<4x8x8xf32>
    %55 = math.exp %54 : vector<4x8x8xf32>
    %cst_26 = arith.constant dense<0.000000e+00> : vector<4x8xf32>
    %56 = vector.multi_reduction <add>, %55, %cst_26 [2] : vector<4x8x8xf32> to vector<4x8xf32>
    %57 = vector.shape_cast %56 : vector<4x8xf32> to vector<4x8x1xf32>
    %58 = tpu.reciprocal %57 {approx = true} : vector<4x8x1xf32> -> vector<4x8x1xf32>
    %59 = vector.broadcast %58 : vector<4x8x1xf32> to vector<4x8x8xf32>
    %60 = arith.mulf %55, %59 : vector<4x8x8xf32>
    %61 = vector.shape_cast %28 : vector<8x8xf32> to vector<1x8x8xf32>
    %62 = vector.broadcast %61 : vector<1x8x8xf32> to vector<4x8x8xf32>
    %63 = arith.mulf %60, %62 : vector<4x8x8xf32>
    %64 = vector.shape_cast %63 : vector<4x8x8xf32> to vector<32x8xf32>
    %cst_27 = arith.constant dense<0.000000e+00> : vector<32x8xf32>
    %65 = tpu.matmul %64, %34, %cst_27 {dimension_numbers = #tpu.dot_dimension_numbers<[1], [0], [0], [1], [0, 0, 1, 1], [], []>} : vector<32x8xf32>, vector<8x8xf32>, vector<32x8xf32> -> vector<32x8xf32>
    %66 = vector.shape_cast %65 : vector<32x8xf32> to vector<4x8x8xf32>
    %67 = vector.shape_cast %31 : vector<8x8xf32> to vector<1x8x8xf32>
    %68 = vector.broadcast %67 : vector<1x8x8xf32> to vector<4x8x8xf32>
    %69 = arith.mulf %66, %68 : vector<4x8x8xf32>
    %cst_28 = arith.constant 0.000000e+00 : f32
    %70 = vector.broadcast %cst_28 : f32 to vector<4x8x8xf32>
    %71 = arith.maximumf %69, %70 : vector<4x8x8xf32>
    %72 = math.sqrt %71 : vector<4x8x8xf32>
    %c0_29 = arith.constant 0 : index
    %c0_30 = arith.constant 0 : index
    %73 = memref.load %arg1[%c0_29, %c0_30] : memref<1x4xf32, #tpu.memory_space<smem>>
    %74 = vector.broadcast %73 : f32 to vector<4x8x8xf32>
    %75 = arith.mulf %72, %74 : vector<4x8x8xf32>
    %cst_31 = arith.constant -11.5129251 : f32
    %cst_32 = arith.constant 11.5129251 : f32
    %76 = vector.broadcast %cst_31 : f32 to vector<4x8x8xf32>
    %77 = arith.maximumf %76, %75 : vector<4x8x8xf32>
    %78 = vector.broadcast %cst_32 : f32 to vector<4x8x8xf32>
    %79 = arith.minimumf %78, %77 : vector<4x8x8xf32>
    %80 = math.exp %79 : vector<4x8x8xf32>
    %81 = arith.mulf %46, %80 : vector<4x8x8xf32>
    %cst_33 = arith.constant -1.000000e+32 : f32
    %82 = vector.shape_cast %26 : vector<8x8xi1> to vector<1x8x8xi1>
    %83 = vector.broadcast %82 : vector<1x8x8xi1> to vector<4x8x8xi1>
    %84 = vector.broadcast %cst_33 : f32 to vector<4x8x8xf32>
    %85 = arith.select %83, %81, %84 : vector<4x8x8xi1>, vector<4x8x8xf32>
    %cst_34 = arith.constant dense<0xFF800000> : vector<4x8xf32>
    %86 = vector.multi_reduction <maximumf>, %85, %cst_34 [2] : vector<4x8x8xf32> to vector<4x8xf32>
    %87 = vector.shape_cast %86 : vector<4x8xf32> to vector<4x8x1xf32>
    %88 = vector.broadcast %87 : vector<4x8x1xf32> to vector<4x8x8xf32>
    %89 = arith.subf %85, %88 : vector<4x8x8xf32>
    %90 = math.exp %89 : vector<4x8x8xf32>
    %cst_35 = arith.constant dense<0.000000e+00> : vector<4x8xf32>
    %91 = vector.multi_reduction <add>, %90, %cst_35 [2] : vector<4x8x8xf32> to vector<4x8xf32>
    %92 = vector.shape_cast %91 : vector<4x8xf32> to vector<4x8x1xf32>
    %93 = tpu.reciprocal %92 {approx = true} : vector<4x8x1xf32> -> vector<4x8x1xf32>
    %94 = vector.broadcast %93 : vector<4x8x1xf32> to vector<4x8x8xf32>
    %95 = arith.mulf %90, %94 : vector<4x8x8xf32>
    %c0_i32_36 = arith.constant 0 : i32
    %96 = vector.broadcast %c0_i32_36 : i32 to vector<8x8xi32>
    %97 = arith.cmpi eq, %22, %96 : vector<8x8xi32>
    %cst_37 = arith.constant 0.000000e+00 : f32
    %98 = vector.shape_cast %97 : vector<8x8xi1> to vector<1x8x8xi1>
    %99 = vector.broadcast %98 : vector<1x8x8xi1> to vector<4x8x8xi1>
    %100 = vector.broadcast %cst_37 : f32 to vector<4x8x8xf32>
    %101 = arith.select %99, %100, %95 : vector<4x8x8xi1>, vector<4x8x8xf32>
    %102 = arith.truncf %101 : vector<4x8x8xf32> to vector<4x8x8xbf16>
    "tpu.trace_start"() <{level = 10 : i32, message = "bij,bjk->bik"}> : () -> ()
    %cst_38 = arith.constant dense<0.000000e+00> : vector<4x8x8xf32>
    %103 = tpu.matmul %102, %43, %cst_38 {dimension_numbers = #tpu.dot_dimension_numbers<[2], [1], [1], [2], [0, 0, 0, 1, 1, 2], [0], [0]>} : vector<4x8x8xbf16>, vector<4x8x8xbf16>, vector<4x8x8xf32> -> vector<4x8x8xf32>
    "tpu.trace_stop"() : () -> ()
    %104 = vector.extract_strided_slice %11 {offsets = [0, 8], sizes = [32, 8], strides = [1, 1]} : vector<32x32xf32> to vector<32x8xf32>
    %105 = vector.shape_cast %104 : vector<32x8xf32> to vector<4x8x8xf32>
    %106 = arith.truncf %105 : vector<4x8x8xf32> to vector<4x8x8xbf16>
    %107 = vector.extract_strided_slice %16 {offsets = [0, 8], sizes = [32, 8], strides = [1, 1]} : vector<32x32xf32> to vector<32x8xf32>
    %108 = vector.shape_cast %107 : vector<32x8xf32> to vector<4x8x8xf32>
    %109 = arith.truncf %108 : vector<4x8x8xf32> to vector<4x8x8xbf16>
    %110 = vector.extract_strided_slice %21 {offsets = [0, 8], sizes = [32, 8], strides = [1, 1]} : vector<32x32xf32> to vector<32x8xf32>
    %111 = vector.shape_cast %110 : vector<32x8xf32> to vector<4x8x8xf32>
    %112 = arith.truncf %111 : vector<4x8x8xf32> to vector<4x8x8xbf16>
    "tpu.trace_start"() <{level = 10 : i32, message = "bik,bjk->bij"}> : () -> ()
    %cst_39 = arith.constant dense<0.000000e+00> : vector<4x8x8xf32>
    %113 = tpu.matmul %106, %109, %cst_39 {dimension_numbers = #tpu.dot_dimension_numbers<[2], [2], [1], [1], [0, 0, 0, 1, 1, 1], [0], [0]>} : vector<4x8x8xbf16>, vector<4x8x8xbf16>, vector<4x8x8xf32> -> vector<4x8x8xf32>
    "tpu.trace_stop"() : () -> ()
    %cst_40 = arith.constant 0.353553385 : f32
    %114 = vector.broadcast %cst_40 : f32 to vector<4x8x8xf32>
    %115 = arith.mulf %113, %114 : vector<4x8x8xf32>
    %cst_41 = arith.constant -1.000000e+32 : f32
    %116 = vector.shape_cast %26 : vector<8x8xi1> to vector<1x8x8xi1>
    %117 = vector.broadcast %116 : vector<1x8x8xi1> to vector<4x8x8xi1>
    %118 = vector.broadcast %cst_41 : f32 to vector<4x8x8xf32>
    %119 = arith.select %117, %115, %118 : vector<4x8x8xi1>, vector<4x8x8xf32>
    %cst_42 = arith.constant dense<0xFF800000> : vector<4x8xf32>
    %120 = vector.multi_reduction <maximumf>, %119, %cst_42 [2] : vector<4x8x8xf32> to vector<4x8xf32>
    %121 = vector.shape_cast %120 : vector<4x8xf32> to vector<4x8x1xf32>
    %122 = vector.broadcast %121 : vector<4x8x1xf32> to vector<4x8x8xf32>
    %123 = arith.subf %119, %122 : vector<4x8x8xf32>
    %124 = math.exp %123 : vector<4x8x8xf32>
    %cst_43 = arith.constant dense<0.000000e+00> : vector<4x8xf32>
    %125 = vector.multi_reduction <add>, %124, %cst_43 [2] : vector<4x8x8xf32> to vector<4x8xf32>
    %126 = vector.shape_cast %125 : vector<4x8xf32> to vector<4x8x1xf32>
    %127 = tpu.reciprocal %126 {approx = true} : vector<4x8x1xf32> -> vector<4x8x1xf32>
    %128 = vector.broadcast %127 : vector<4x8x1xf32> to vector<4x8x8xf32>
    %129 = arith.mulf %124, %128 : vector<4x8x8xf32>
    %130 = vector.shape_cast %28 : vector<8x8xf32> to vector<1x8x8xf32>
    %131 = vector.broadcast %130 : vector<1x8x8xf32> to vector<4x8x8xf32>
    %132 = arith.mulf %129, %131 : vector<4x8x8xf32>
    %133 = vector.shape_cast %132 : vector<4x8x8xf32> to vector<32x8xf32>
    %cst_44 = arith.constant dense<0.000000e+00> : vector<32x8xf32>
    %134 = tpu.matmul %133, %34, %cst_44 {dimension_numbers = #tpu.dot_dimension_numbers<[1], [0], [0], [1], [0, 0, 1, 1], [], []>} : vector<32x8xf32>, vector<8x8xf32>, vector<32x8xf32> -> vector<32x8xf32>
    %135 = vector.shape_cast %134 : vector<32x8xf32> to vector<4x8x8xf32>
    %136 = vector.shape_cast %31 : vector<8x8xf32> to vector<1x8x8xf32>
    %137 = vector.broadcast %136 : vector<1x8x8xf32> to vector<4x8x8xf32>
    %138 = arith.mulf %135, %137 : vector<4x8x8xf32>
    %cst_45 = arith.constant 0.000000e+00 : f32
    %139 = vector.broadcast %cst_45 : f32 to vector<4x8x8xf32>
    %140 = arith.maximumf %138, %139 : vector<4x8x8xf32>
    %141 = math.sqrt %140 : vector<4x8x8xf32>
    %c0_46 = arith.constant 0 : index
    %c1 = arith.constant 1 : index
    %142 = memref.load %arg1[%c0_46, %c1] : memref<1x4xf32, #tpu.memory_space<smem>>
    %143 = vector.broadcast %142 : f32 to vector<4x8x8xf32>
    %144 = arith.mulf %141, %143 : vector<4x8x8xf32>
    %cst_47 = arith.constant -11.5129251 : f32
    %cst_48 = arith.constant 11.5129251 : f32
    %145 = vector.broadcast %cst_47 : f32 to vector<4x8x8xf32>
    %146 = arith.maximumf %145, %144 : vector<4x8x8xf32>
    %147 = vector.broadcast %cst_48 : f32 to vector<4x8x8xf32>
    %148 = arith.minimumf %147, %146 : vector<4x8x8xf32>
    %149 = math.exp %148 : vector<4x8x8xf32>
    %150 = arith.mulf %115, %149 : vector<4x8x8xf32>
    %cst_49 = arith.constant -1.000000e+32 : f32
    %151 = vector.shape_cast %26 : vector<8x8xi1> to vector<1x8x8xi1>
    %152 = vector.broadcast %151 : vector<1x8x8xi1> to vector<4x8x8xi1>
    %153 = vector.broadcast %cst_49 : f32 to vector<4x8x8xf32>
    %154 = arith.select %152, %150, %153 : vector<4x8x8xi1>, vector<4x8x8xf32>
    %cst_50 = arith.constant dense<0xFF800000> : vector<4x8xf32>
    %155 = vector.multi_reduction <maximumf>, %154, %cst_50 [2] : vector<4x8x8xf32> to vector<4x8xf32>
    %156 = vector.shape_cast %155 : vector<4x8xf32> to vector<4x8x1xf32>
    %157 = vector.broadcast %156 : vector<4x8x1xf32> to vector<4x8x8xf32>
    %158 = arith.subf %154, %157 : vector<4x8x8xf32>
    %159 = math.exp %158 : vector<4x8x8xf32>
    %cst_51 = arith.constant dense<0.000000e+00> : vector<4x8xf32>
    %160 = vector.multi_reduction <add>, %159, %cst_51 [2] : vector<4x8x8xf32> to vector<4x8xf32>
    %161 = vector.shape_cast %160 : vector<4x8xf32> to vector<4x8x1xf32>
    %162 = tpu.reciprocal %161 {approx = true} : vector<4x8x1xf32> -> vector<4x8x1xf32>
    %163 = vector.broadcast %162 : vector<4x8x1xf32> to vector<4x8x8xf32>
    %164 = arith.mulf %159, %163 : vector<4x8x8xf32>
    %c0_i32_52 = arith.constant 0 : i32
    %165 = vector.broadcast %c0_i32_52 : i32 to vector<8x8xi32>
    %166 = arith.cmpi eq, %22, %165 : vector<8x8xi32>
    %cst_53 = arith.constant 0.000000e+00 : f32
    %167 = vector.shape_cast %166 : vector<8x8xi1> to vector<1x8x8xi1>
    %168 = vector.broadcast %167 : vector<1x8x8xi1> to vector<4x8x8xi1>
    %169 = vector.broadcast %cst_53 : f32 to vector<4x8x8xf32>
    %170 = arith.select %168, %169, %164 : vector<4x8x8xi1>, vector<4x8x8xf32>
    %171 = arith.truncf %170 : vector<4x8x8xf32> to vector<4x8x8xbf16>
    "tpu.trace_start"() <{level = 10 : i32, message = "bij,bjk->bik"}> : () -> ()
    %cst_54 = arith.constant dense<0.000000e+00> : vector<4x8x8xf32>
    %172 = tpu.matmul %171, %112, %cst_54 {dimension_numbers = #tpu.dot_dimension_numbers<[2], [1], [1], [2], [0, 0, 0, 1, 1, 2], [0], [0]>} : vector<4x8x8xbf16>, vector<4x8x8xbf16>, vector<4x8x8xf32> -> vector<4x8x8xf32>
    "tpu.trace_stop"() : () -> ()
    %173 = vector.extract_strided_slice %11 {offsets = [0, 16], sizes = [32, 8], strides = [1, 1]} : vector<32x32xf32> to vector<32x8xf32>
    %174 = vector.shape_cast %173 : vector<32x8xf32> to vector<4x8x8xf32>
    %175 = arith.truncf %174 : vector<4x8x8xf32> to vector<4x8x8xbf16>
    %176 = vector.extract_strided_slice %16 {offsets = [0, 16], sizes = [32, 8], strides = [1, 1]} : vector<32x32xf32> to vector<32x8xf32>
    %177 = vector.shape_cast %176 : vector<32x8xf32> to vector<4x8x8xf32>
    %178 = arith.truncf %177 : vector<4x8x8xf32> to vector<4x8x8xbf16>
    %179 = vector.extract_strided_slice %21 {offsets = [0, 16], sizes = [32, 8], strides = [1, 1]} : vector<32x32xf32> to vector<32x8xf32>
    %180 = vector.shape_cast %179 : vector<32x8xf32> to vector<4x8x8xf32>
    %181 = arith.truncf %180 : vector<4x8x8xf32> to vector<4x8x8xbf16>
    "tpu.trace_start"() <{level = 10 : i32, message = "bik,bjk->bij"}> : () -> ()
    %cst_55 = arith.constant dense<0.000000e+00> : vector<4x8x8xf32>
    %182 = tpu.matmul %175, %178, %cst_55 {dimension_numbers = #tpu.dot_dimension_numbers<[2], [2], [1], [1], [0, 0, 0, 1, 1, 1], [0], [0]>} : vector<4x8x8xbf16>, vector<4x8x8xbf16>, vector<4x8x8xf32> -> vector<4x8x8xf32>
    "tpu.trace_stop"() : () -> ()
    %cst_56 = arith.constant 0.353553385 : f32
    %183 = vector.broadcast %cst_56 : f32 to vector<4x8x8xf32>
    %184 = arith.mulf %182, %183 : vector<4x8x8xf32>
    %cst_57 = arith.constant -1.000000e+32 : f32
    %185 = vector.shape_cast %26 : vector<8x8xi1> to vector<1x8x8xi1>
    %186 = vector.broadcast %185 : vector<1x8x8xi1> to vector<4x8x8xi1>
    %187 = vector.broadcast %cst_57 : f32 to vector<4x8x8xf32>
    %188 = arith.select %186, %184, %187 : vector<4x8x8xi1>, vector<4x8x8xf32>
    %cst_58 = arith.constant dense<0xFF800000> : vector<4x8xf32>
    %189 = vector.multi_reduction <maximumf>, %188, %cst_58 [2] : vector<4x8x8xf32> to vector<4x8xf32>
    %190 = vector.shape_cast %189 : vector<4x8xf32> to vector<4x8x1xf32>
    %191 = vector.broadcast %190 : vector<4x8x1xf32> to vector<4x8x8xf32>
    %192 = arith.subf %188, %191 : vector<4x8x8xf32>
    %193 = math.exp %192 : vector<4x8x8xf32>
    %cst_59 = arith.constant dense<0.000000e+00> : vector<4x8xf32>
    %194 = vector.multi_reduction <add>, %193, %cst_59 [2] : vector<4x8x8xf32> to vector<4x8xf32>
    %195 = vector.shape_cast %194 : vector<4x8xf32> to vector<4x8x1xf32>
    %196 = tpu.reciprocal %195 {approx = true} : vector<4x8x1xf32> -> vector<4x8x1xf32>
    %197 = vector.broadcast %196 : vector<4x8x1xf32> to vector<4x8x8xf32>
    %198 = arith.mulf %193, %197 : vector<4x8x8xf32>
    %199 = vector.shape_cast %28 : vector<8x8xf32> to vector<1x8x8xf32>
    %200 = vector.broadcast %199 : vector<1x8x8xf32> to vector<4x8x8xf32>
    %201 = arith.mulf %198, %200 : vector<4x8x8xf32>
    %202 = vector.shape_cast %201 : vector<4x8x8xf32> to vector<32x8xf32>
    %cst_60 = arith.constant dense<0.000000e+00> : vector<32x8xf32>
    %203 = tpu.matmul %202, %34, %cst_60 {dimension_numbers = #tpu.dot_dimension_numbers<[1], [0], [0], [1], [0, 0, 1, 1], [], []>} : vector<32x8xf32>, vector<8x8xf32>, vector<32x8xf32> -> vector<32x8xf32>
    %204 = vector.shape_cast %203 : vector<32x8xf32> to vector<4x8x8xf32>
    %205 = vector.shape_cast %31 : vector<8x8xf32> to vector<1x8x8xf32>
    %206 = vector.broadcast %205 : vector<1x8x8xf32> to vector<4x8x8xf32>
    %207 = arith.mulf %204, %206 : vector<4x8x8xf32>
    %cst_61 = arith.constant 0.000000e+00 : f32
    %208 = vector.broadcast %cst_61 : f32 to vector<4x8x8xf32>
    %209 = arith.maximumf %207, %208 : vector<4x8x8xf32>
    %210 = math.sqrt %209 : vector<4x8x8xf32>
    %c0_62 = arith.constant 0 : index
    %c2 = arith.constant 2 : index
    %211 = memref.load %arg1[%c0_62, %c2] : memref<1x4xf32, #tpu.memory_space<smem>>
    %212 = vector.broadcast %211 : f32 to vector<4x8x8xf32>
    %213 = arith.mulf %210, %212 : vector<4x8x8xf32>
    %cst_63 = arith.constant -11.5129251 : f32
    %cst_64 = arith.constant 11.5129251 : f32
    %214 = vector.broadcast %cst_63 : f32 to vector<4x8x8xf32>
    %215 = arith.maximumf %214, %213 : vector<4x8x8xf32>
    %216 = vector.broadcast %cst_64 : f32 to vector<4x8x8xf32>
    %217 = arith.minimumf %216, %215 : vector<4x8x8xf32>
    %218 = math.exp %217 : vector<4x8x8xf32>
    %219 = arith.mulf %184, %218 : vector<4x8x8xf32>
    %cst_65 = arith.constant -1.000000e+32 : f32
    %220 = vector.shape_cast %26 : vector<8x8xi1> to vector<1x8x8xi1>
    %221 = vector.broadcast %220 : vector<1x8x8xi1> to vector<4x8x8xi1>
    %222 = vector.broadcast %cst_65 : f32 to vector<4x8x8xf32>
    %223 = arith.select %221, %219, %222 : vector<4x8x8xi1>, vector<4x8x8xf32>
    %cst_66 = arith.constant dense<0xFF800000> : vector<4x8xf32>
    %224 = vector.multi_reduction <maximumf>, %223, %cst_66 [2] : vector<4x8x8xf32> to vector<4x8xf32>
    %225 = vector.shape_cast %224 : vector<4x8xf32> to vector<4x8x1xf32>
    %226 = vector.broadcast %225 : vector<4x8x1xf32> to vector<4x8x8xf32>
    %227 = arith.subf %223, %226 : vector<4x8x8xf32>
    %228 = math.exp %227 : vector<4x8x8xf32>
    %cst_67 = arith.constant dense<0.000000e+00> : vector<4x8xf32>
    %229 = vector.multi_reduction <add>, %228, %cst_67 [2] : vector<4x8x8xf32> to vector<4x8xf32>
    %230 = vector.shape_cast %229 : vector<4x8xf32> to vector<4x8x1xf32>
    %231 = tpu.reciprocal %230 {approx = true} : vector<4x8x1xf32> -> vector<4x8x1xf32>
    %232 = vector.broadcast %231 : vector<4x8x1xf32> to vector<4x8x8xf32>
    %233 = arith.mulf %228, %232 : vector<4x8x8xf32>
    %c0_i32_68 = arith.constant 0 : i32
    %234 = vector.broadcast %c0_i32_68 : i32 to vector<8x8xi32>
    %235 = arith.cmpi eq, %22, %234 : vector<8x8xi32>
    %cst_69 = arith.constant 0.000000e+00 : f32
    %236 = vector.shape_cast %235 : vector<8x8xi1> to vector<1x8x8xi1>
    %237 = vector.broadcast %236 : vector<1x8x8xi1> to vector<4x8x8xi1>
    %238 = vector.broadcast %cst_69 : f32 to vector<4x8x8xf32>
    %239 = arith.select %237, %238, %233 : vector<4x8x8xi1>, vector<4x8x8xf32>
    %240 = arith.truncf %239 : vector<4x8x8xf32> to vector<4x8x8xbf16>
    "tpu.trace_start"() <{level = 10 : i32, message = "bij,bjk->bik"}> : () -> ()
    %cst_70 = arith.constant dense<0.000000e+00> : vector<4x8x8xf32>
    %241 = tpu.matmul %240, %181, %cst_70 {dimension_numbers = #tpu.dot_dimension_numbers<[2], [1], [1], [2], [0, 0, 0, 1, 1, 2], [0], [0]>} : vector<4x8x8xbf16>, vector<4x8x8xbf16>, vector<4x8x8xf32> -> vector<4x8x8xf32>
    "tpu.trace_stop"() : () -> ()
    %242 = vector.extract_strided_slice %11 {offsets = [0, 24], sizes = [32, 8], strides = [1, 1]} : vector<32x32xf32> to vector<32x8xf32>
    %243 = vector.shape_cast %242 : vector<32x8xf32> to vector<4x8x8xf32>
    %244 = arith.truncf %243 : vector<4x8x8xf32> to vector<4x8x8xbf16>
    %245 = vector.extract_strided_slice %16 {offsets = [0, 24], sizes = [32, 8], strides = [1, 1]} : vector<32x32xf32> to vector<32x8xf32>
    %246 = vector.shape_cast %245 : vector<32x8xf32> to vector<4x8x8xf32>
    %247 = arith.truncf %246 : vector<4x8x8xf32> to vector<4x8x8xbf16>
    %248 = vector.extract_strided_slice %21 {offsets = [0, 24], sizes = [32, 8], strides = [1, 1]} : vector<32x32xf32> to vector<32x8xf32>
    %249 = vector.shape_cast %248 : vector<32x8xf32> to vector<4x8x8xf32>
    %250 = arith.truncf %249 : vector<4x8x8xf32> to vector<4x8x8xbf16>
    "tpu.trace_start"() <{level = 10 : i32, message = "bik,bjk->bij"}> : () -> ()
    %cst_71 = arith.constant dense<0.000000e+00> : vector<4x8x8xf32>
    %251 = tpu.matmul %244, %247, %cst_71 {dimension_numbers = #tpu.dot_dimension_numbers<[2], [2], [1], [1], [0, 0, 0, 1, 1, 1], [0], [0]>} : vector<4x8x8xbf16>, vector<4x8x8xbf16>, vector<4x8x8xf32> -> vector<4x8x8xf32>
    "tpu.trace_stop"() : () -> ()
    %cst_72 = arith.constant 0.353553385 : f32
    %252 = vector.broadcast %cst_72 : f32 to vector<4x8x8xf32>
    %253 = arith.mulf %251, %252 : vector<4x8x8xf32>
    %cst_73 = arith.constant -1.000000e+32 : f32
    %254 = vector.shape_cast %26 : vector<8x8xi1> to vector<1x8x8xi1>
    %255 = vector.broadcast %254 : vector<1x8x8xi1> to vector<4x8x8xi1>
    %256 = vector.broadcast %cst_73 : f32 to vector<4x8x8xf32>
    %257 = arith.select %255, %253, %256 : vector<4x8x8xi1>, vector<4x8x8xf32>
    %cst_74 = arith.constant dense<0xFF800000> : vector<4x8xf32>
    %258 = vector.multi_reduction <maximumf>, %257, %cst_74 [2] : vector<4x8x8xf32> to vector<4x8xf32>
    %259 = vector.shape_cast %258 : vector<4x8xf32> to vector<4x8x1xf32>
    %260 = vector.broadcast %259 : vector<4x8x1xf32> to vector<4x8x8xf32>
    %261 = arith.subf %257, %260 : vector<4x8x8xf32>
    %262 = math.exp %261 : vector<4x8x8xf32>
    %cst_75 = arith.constant dense<0.000000e+00> : vector<4x8xf32>
    %263 = vector.multi_reduction <add>, %262, %cst_75 [2] : vector<4x8x8xf32> to vector<4x8xf32>
    %264 = vector.shape_cast %263 : vector<4x8xf32> to vector<4x8x1xf32>
    %265 = tpu.reciprocal %264 {approx = true} : vector<4x8x1xf32> -> vector<4x8x1xf32>
    %266 = vector.broadcast %265 : vector<4x8x1xf32> to vector<4x8x8xf32>
    %267 = arith.mulf %262, %266 : vector<4x8x8xf32>
    %268 = vector.shape_cast %28 : vector<8x8xf32> to vector<1x8x8xf32>
    %269 = vector.broadcast %268 : vector<1x8x8xf32> to vector<4x8x8xf32>
    %270 = arith.mulf %267, %269 : vector<4x8x8xf32>
    %271 = vector.shape_cast %270 : vector<4x8x8xf32> to vector<32x8xf32>
    %cst_76 = arith.constant dense<0.000000e+00> : vector<32x8xf32>
    %272 = tpu.matmul %271, %34, %cst_76 {dimension_numbers = #tpu.dot_dimension_numbers<[1], [0], [0], [1], [0, 0, 1, 1], [], []>} : vector<32x8xf32>, vector<8x8xf32>, vector<32x8xf32> -> vector<32x8xf32>
    %273 = vector.shape_cast %272 : vector<32x8xf32> to vector<4x8x8xf32>
    %274 = vector.shape_cast %31 : vector<8x8xf32> to vector<1x8x8xf32>
    %275 = vector.broadcast %274 : vector<1x8x8xf32> to vector<4x8x8xf32>
    %276 = arith.mulf %273, %275 : vector<4x8x8xf32>
    %cst_77 = arith.constant 0.000000e+00 : f32
    %277 = vector.broadcast %cst_77 : f32 to vector<4x8x8xf32>
    %278 = arith.maximumf %276, %277 : vector<4x8x8xf32>
    %279 = math.sqrt %278 : vector<4x8x8xf32>
    %c0_78 = arith.constant 0 : index
    %c3 = arith.constant 3 : index
    %280 = memref.load %arg1[%c0_78, %c3] : memref<1x4xf32, #tpu.memory_space<smem>>
    %281 = vector.broadcast %280 : f32 to vector<4x8x8xf32>
    %282 = arith.mulf %279, %281 : vector<4x8x8xf32>
    %cst_79 = arith.constant -11.5129251 : f32
    %cst_80 = arith.constant 11.5129251 : f32
    %283 = vector.broadcast %cst_79 : f32 to vector<4x8x8xf32>
    %284 = arith.maximumf %283, %282 : vector<4x8x8xf32>
    %285 = vector.broadcast %cst_80 : f32 to vector<4x8x8xf32>
    %286 = arith.minimumf %285, %284 : vector<4x8x8xf32>
    %287 = math.exp %286 : vector<4x8x8xf32>
    %288 = arith.mulf %253, %287 : vector<4x8x8xf32>
    %cst_81 = arith.constant -1.000000e+32 : f32
    %289 = vector.shape_cast %26 : vector<8x8xi1> to vector<1x8x8xi1>
    %290 = vector.broadcast %289 : vector<1x8x8xi1> to vector<4x8x8xi1>
    %291 = vector.broadcast %cst_81 : f32 to vector<4x8x8xf32>
    %292 = arith.select %290, %288, %291 : vector<4x8x8xi1>, vector<4x8x8xf32>
    %cst_82 = arith.constant dense<0xFF800000> : vector<4x8xf32>
    %293 = vector.multi_reduction <maximumf>, %292, %cst_82 [2] : vector<4x8x8xf32> to vector<4x8xf32>
    %294 = vector.shape_cast %293 : vector<4x8xf32> to vector<4x8x1xf32>
    %295 = vector.broadcast %294 : vector<4x8x1xf32> to vector<4x8x8xf32>
    %296 = arith.subf %292, %295 : vector<4x8x8xf32>
    %297 = math.exp %296 : vector<4x8x8xf32>
    %cst_83 = arith.constant dense<0.000000e+00> : vector<4x8xf32>
    %298 = vector.multi_reduction <add>, %297, %cst_83 [2] : vector<4x8x8xf32> to vector<4x8xf32>
    %299 = vector.shape_cast %298 : vector<4x8xf32> to vector<4x8x1xf32>
    %300 = tpu.reciprocal %299 {approx = true} : vector<4x8x1xf32> -> vector<4x8x1xf32>
    %301 = vector.broadcast %300 : vector<4x8x1xf32> to vector<4x8x8xf32>
    %302 = arith.mulf %297, %301 : vector<4x8x8xf32>
    %c0_i32_84 = arith.constant 0 : i32
    %303 = vector.broadcast %c0_i32_84 : i32 to vector<8x8xi32>
    %304 = arith.cmpi eq, %22, %303 : vector<8x8xi32>
    %cst_85 = arith.constant 0.000000e+00 : f32
    %305 = vector.shape_cast %304 : vector<8x8xi1> to vector<1x8x8xi1>
    %306 = vector.broadcast %305 : vector<1x8x8xi1> to vector<4x8x8xi1>
    %307 = vector.broadcast %cst_85 : f32 to vector<4x8x8xf32>
    %308 = arith.select %306, %307, %302 : vector<4x8x8xi1>, vector<4x8x8xf32>
    %309 = arith.truncf %308 : vector<4x8x8xf32> to vector<4x8x8xbf16>
    "tpu.trace_start"() <{level = 10 : i32, message = "bij,bjk->bik"}> : () -> ()
    %cst_86 = arith.constant dense<0.000000e+00> : vector<4x8x8xf32>
    %310 = tpu.matmul %309, %250, %cst_86 {dimension_numbers = #tpu.dot_dimension_numbers<[2], [1], [1], [2], [0, 0, 0, 1, 1, 2], [0], [0]>} : vector<4x8x8xbf16>, vector<4x8x8xbf16>, vector<4x8x8xf32> -> vector<4x8x8xf32>
    "tpu.trace_stop"() : () -> ()
    %311 = tpu.concatenate %103, %172, %241, %310 in 2 : vector<4x8x8xf32>, vector<4x8x8xf32>, vector<4x8x8xf32>, vector<4x8x8xf32> -> vector<4x8x32xf32>
    %312 = vector.shape_cast %311 : vector<4x8x32xf32> to vector<32x32xf32>
    %313 = arith.truncf %312 : vector<32x32xf32> to vector<32x32xbf16>
    %c0_87 = arith.constant 0 : index
    %c0_88 = arith.constant 0 : index
    %314 = vector.load %arg12[%c0_87, %c0_88] : memref<1x32xf32, #tpu.memory_space<vmem>>, vector<1x32xf32>
    %315 = vector.broadcast %314 : vector<1x32xf32> to vector<32x32xf32>
    %316 = arith.addf %1, %315 : vector<32x32xf32>
    %c0_89 = arith.constant 0 : index
    %c0_90 = arith.constant 0 : index
    %317 = vector.load %arg11[%c0_89, %c0_90] : memref<32x32xbf16, #tpu.memory_space<vmem>>, vector<32x32xbf16>
    %cst_91 = arith.constant dense<0.000000e+00> : vector<32x32xf32>
    %318 = tpu.matmul %313, %317, %cst_91 {dimension_numbers = #tpu.dot_dimension_numbers<[1], [0], [0], [1], [0, 0, 1, 1], [], []>} : vector<32x32xbf16>, vector<32x32xbf16>, vector<32x32xf32> -> vector<32x32xf32>
    %319 = arith.addf %316, %318 : vector<32x32xf32>
    %c0_92 = arith.constant 0 : index
    %c0_93 = arith.constant 0 : index
    %320 = vector.load %arg13[%c0_92, %c0_93] : memref<1x32xf32, #tpu.memory_space<vmem>>, vector<1x32xf32>
    %c0_94 = arith.constant 0 : index
    %c0_95 = arith.constant 0 : index
    %321 = vector.load %arg14[%c0_94, %c0_95] : memref<1x32xf32, #tpu.memory_space<vmem>>, vector<1x32xf32>
    %cst_96 = arith.constant dense<0.000000e+00> : vector<32xf32>
    %322 = vector.multi_reduction <add>, %319, %cst_96 [1] : vector<32x32xf32> to vector<32xf32>
    %323 = vector.shape_cast %322 : vector<32xf32> to vector<32x1xf32>
    %cst_97 = arith.constant 3.200000e+01 : f32
    %324 = vector.broadcast %cst_97 : f32 to vector<32x1xf32>
    %325 = arith.divf %323, %324 : vector<32x1xf32>
    %326 = vector.broadcast %325 : vector<32x1xf32> to vector<32x32xf32>
    %327 = arith.subf %319, %326 : vector<32x32xf32>
    %328 = arith.mulf %327, %327 : vector<32x32xf32>
    %cst_98 = arith.constant dense<0.000000e+00> : vector<32xf32>
    %329 = vector.multi_reduction <add>, %328, %cst_98 [1] : vector<32x32xf32> to vector<32xf32>
    %330 = vector.shape_cast %329 : vector<32xf32> to vector<32x1xf32>
    %cst_99 = arith.constant 3.200000e+01 : f32
    %331 = vector.broadcast %cst_99 : f32 to vector<32x1xf32>
    %332 = arith.divf %330, %331 : vector<32x1xf32>
    %cst_100 = arith.constant 9.99999974E-6 : f32
    %333 = vector.broadcast %cst_100 : f32 to vector<32x1xf32>
    %334 = arith.addf %332, %333 : vector<32x1xf32>
    %335 = math.rsqrt %334 : vector<32x1xf32>
    %336 = vector.broadcast %335 : vector<32x1xf32> to vector<32x32xf32>
    %337 = arith.mulf %327, %336 : vector<32x32xf32>
    %338 = vector.broadcast %320 : vector<1x32xf32> to vector<32x32xf32>
    %339 = arith.mulf %337, %338 : vector<32x32xf32>
    %340 = vector.broadcast %321 : vector<1x32xf32> to vector<32x32xf32>
    %341 = arith.addf %339, %340 : vector<32x32xf32>
    %342 = arith.truncf %341 : vector<32x32xf32> to vector<32x32xbf16>
    %c0_101 = arith.constant 0 : index
    %c0_102 = arith.constant 0 : index
    %343 = vector.load %arg15[%c0_101, %c0_102] : memref<32x64xbf16, #tpu.memory_space<vmem>>, vector<32x64xbf16>
    %cst_103 = arith.constant dense<0.000000e+00> : vector<32x64xf32>
    %344 = tpu.matmul %342, %343, %cst_103 {dimension_numbers = #tpu.dot_dimension_numbers<[1], [0], [0], [1], [0, 0, 1, 1], [], []>} : vector<32x32xbf16>, vector<32x64xbf16>, vector<32x64xf32> -> vector<32x64xf32>
    %c0_104 = arith.constant 0 : index
    %c0_105 = arith.constant 0 : index
    %345 = vector.load %arg16[%c0_104, %c0_105] : memref<1x64xf32, #tpu.memory_space<vmem>>, vector<1x64xf32>
    %346 = vector.broadcast %345 : vector<1x64xf32> to vector<32x64xf32>
    %347 = arith.addf %344, %346 : vector<32x64xf32>
    %cst_106 = arith.constant 0.000000e+00 : f32
    %348 = vector.broadcast %cst_106 : f32 to vector<32x64xf32>
    %349 = arith.maximumf %347, %348 : vector<32x64xf32>
    %350 = arith.truncf %349 : vector<32x64xf32> to vector<32x64xbf16>
    %c0_107 = arith.constant 0 : index
    %c0_108 = arith.constant 0 : index
    %351 = vector.load %arg17[%c0_107, %c0_108] : memref<64x32xbf16, #tpu.memory_space<vmem>>, vector<64x32xbf16>
    %cst_109 = arith.constant dense<0.000000e+00> : vector<32x32xf32>
    %352 = tpu.matmul %350, %351, %cst_109 {dimension_numbers = #tpu.dot_dimension_numbers<[1], [0], [0], [1], [0, 0, 1, 1], [], []>} : vector<32x64xbf16>, vector<64x32xbf16>, vector<32x32xf32> -> vector<32x32xf32>
    %c0_110 = arith.constant 0 : index
    %c0_111 = arith.constant 0 : index
    %353 = vector.load %arg18[%c0_110, %c0_111] : memref<1x32xf32, #tpu.memory_space<vmem>>, vector<1x32xf32>
    %354 = vector.broadcast %353 : vector<1x32xf32> to vector<32x32xf32>
    %355 = arith.addf %352, %354 : vector<32x32xf32>
    %356 = arith.addf %341, %355 : vector<32x32xf32>
    %c0_112 = arith.constant 0 : index
    %c0_113 = arith.constant 0 : index
    %357 = vector.load %arg19[%c0_112, %c0_113] : memref<1x32xf32, #tpu.memory_space<vmem>>, vector<1x32xf32>
    %c0_114 = arith.constant 0 : index
    %c0_115 = arith.constant 0 : index
    %358 = vector.load %arg20[%c0_114, %c0_115] : memref<1x32xf32, #tpu.memory_space<vmem>>, vector<1x32xf32>
    %cst_116 = arith.constant dense<0.000000e+00> : vector<32xf32>
    %359 = vector.multi_reduction <add>, %356, %cst_116 [1] : vector<32x32xf32> to vector<32xf32>
    %360 = vector.shape_cast %359 : vector<32xf32> to vector<32x1xf32>
    %cst_117 = arith.constant 3.200000e+01 : f32
    %361 = vector.broadcast %cst_117 : f32 to vector<32x1xf32>
    %362 = arith.divf %360, %361 : vector<32x1xf32>
    %363 = vector.broadcast %362 : vector<32x1xf32> to vector<32x32xf32>
    %364 = arith.subf %356, %363 : vector<32x32xf32>
    %365 = arith.mulf %364, %364 : vector<32x32xf32>
    %cst_118 = arith.constant dense<0.000000e+00> : vector<32xf32>
    %366 = vector.multi_reduction <add>, %365, %cst_118 [1] : vector<32x32xf32> to vector<32xf32>
    %367 = vector.shape_cast %366 : vector<32xf32> to vector<32x1xf32>
    %cst_119 = arith.constant 3.200000e+01 : f32
    %368 = vector.broadcast %cst_119 : f32 to vector<32x1xf32>
    %369 = arith.divf %367, %368 : vector<32x1xf32>
    %cst_120 = arith.constant 9.99999974E-6 : f32
    %370 = vector.broadcast %cst_120 : f32 to vector<32x1xf32>
    %371 = arith.addf %369, %370 : vector<32x1xf32>
    %372 = math.rsqrt %371 : vector<32x1xf32>
    %373 = vector.broadcast %372 : vector<32x1xf32> to vector<32x32xf32>
    %374 = arith.mulf %364, %373 : vector<32x32xf32>
    %375 = vector.broadcast %357 : vector<1x32xf32> to vector<32x32xf32>
    %376 = arith.mulf %374, %375 : vector<32x32xf32>
    %377 = vector.broadcast %358 : vector<1x32xf32> to vector<32x32xf32>
    %378 = arith.addf %376, %377 : vector<32x32xf32>
    %379 = vector.shape_cast %378 : vector<32x32xf32> to vector<4x8x32xf32>
    %c0_121 = arith.constant 0 : index
    %c0_122 = arith.constant 0 : index
    %c0_123 = arith.constant 0 : index
    %380 = vector.load %arg21[%c0_121, %c0_122, %c0_123] : memref<4x8x32xf32, #tpu.memory_space<vmem>>, vector<4x8x32xf32>
    tpu.vector_store %arg21[%c0_121, %c0_122, %c0_123], %379 {strides = array<i32>} : memref<4x8x32xf32, #tpu.memory_space<vmem>>, vector<4x8x32xf32>,
    return
  }
  func.func @transform_0(%arg0: i32) -> (i32, i32) {
    %c0_i32 = arith.constant 0 : i32
    %c0_i32_0 = arith.constant 0 : i32
    %c0_i32_1 = arith.constant 0 : i32
    return %c0_i32, %c0_i32_0 : i32, i32
  }
  func.func @transform_1(%arg0: i32) -> (i32, i32, i32) {
    %c0_i32 = arith.constant 0 : i32
    %c0_i32_0 = arith.constant 0 : i32
    %c0_i32_1 = arith.constant 0 : i32
    return %arg0, %c0_i32, %c0_i32_0 : i32, i32, i32
  }
  func.func @transform_2(%arg0: i32) -> (i32, i32, i32) {
    %c0_i32 = arith.constant 0 : i32
    %c0_i32_0 = arith.constant 0 : i32
    %c0_i32_1 = arith.constant 0 : i32
    return %arg0, %c0_i32, %c0_i32_0 : i32, i32, i32
  }
  func.func @transform_3(%arg0: i32) -> (i32, i32, i32) {
    %c0_i32 = arith.constant 0 : i32
    %c0_i32_0 = arith.constant 0 : i32
    %c0_i32_1 = arith.constant 0 : i32
    return %arg0, %c0_i32, %c0_i32_0 : i32, i32, i32
  }
  func.func @transform_4(%arg0: i32) -> (i32, i32) {
    %c0_i32 = arith.constant 0 : i32
    %c0_i32_0 = arith.constant 0 : i32
    %c0_i32_1 = arith.constant 0 : i32
    return %c0_i32, %c0_i32_0 : i32, i32
  }
  func.func @transform_5(%arg0: i32) -> (i32, i32) {
    %c0_i32 = arith.constant 0 : i32
    %c0_i32_0 = arith.constant 0 : i32
    %c0_i32_1 = arith.constant 0 : i32
    return %c0_i32, %c0_i32_0 : i32, i32
  }
  func.func @transform_6(%arg0: i32) -> (i32, i32) {
    %c0_i32 = arith.constant 0 : i32
    %c0_i32_0 = arith.constant 0 : i32
    %c0_i32_1 = arith.constant 0 : i32
    return %c0_i32, %c0_i32_0 : i32, i32
  }
  func.func @transform_7(%arg0: i32) -> (i32, i32) {
    %c0_i32 = arith.constant 0 : i32
    %c0_i32_0 = arith.constant 0 : i32
    %c0_i32_1 = arith.constant 0 : i32
    return %c0_i32, %c0_i32_0 : i32, i32
  }
  func.func @transform_8(%arg0: i32) -> (i32, i32) {
    %c0_i32 = arith.constant 0 : i32
    %c0_i32_0 = arith.constant 0 : i32
    %c0_i32_1 = arith.constant 0 : i32
    return %c0_i32, %c0_i32_0 : i32, i32
  }
  func.func @transform_9(%arg0: i32) -> (i32, i32) {
    %c0_i32 = arith.constant 0 : i32
    %c0_i32_0 = arith.constant 0 : i32
    %c0_i32_1 = arith.constant 0 : i32
    return %c0_i32, %c0_i32_0 : i32, i32
  }
  func.func @transform_10(%arg0: i32) -> (i32, i32) {
    %c0_i32 = arith.constant 0 : i32
    %c0_i32_0 = arith.constant 0 : i32
    %c0_i32_1 = arith.constant 0 : i32
    return %c0_i32, %c0_i32_0 : i32, i32
  }
  func.func @transform_11(%arg0: i32) -> (i32, i32) {
    %c0_i32 = arith.constant 0 : i32
    %c0_i32_0 = arith.constant 0 : i32
    %c0_i32_1 = arith.constant 0 : i32
    return %c0_i32, %c0_i32_0 : i32, i32
  }
  func.func @transform_12(%arg0: i32) -> (i32, i32) {
    %c0_i32 = arith.constant 0 : i32
    %c0_i32_0 = arith.constant 0 : i32
    %c0_i32_1 = arith.constant 0 : i32
    return %c0_i32, %c0_i32_0 : i32, i32
  }
  func.func @transform_13(%arg0: i32) -> (i32, i32) {
    %c0_i32 = arith.constant 0 : i32
    %c0_i32_0 = arith.constant 0 : i32
    %c0_i32_1 = arith.constant 0 : i32
    return %c0_i32, %c0_i32_0 : i32, i32
  }
  func.func @transform_14(%arg0: i32) -> (i32, i32) {
    %c0_i32 = arith.constant 0 : i32
    %c0_i32_0 = arith.constant 0 : i32
    %c0_i32_1 = arith.constant 0 : i32
    return %c0_i32, %c0_i32_0 : i32, i32
  }
  func.func @transform_15(%arg0: i32) -> (i32, i32) {
    %c0_i32 = arith.constant 0 : i32
    %c0_i32_0 = arith.constant 0 : i32
    %c0_i32_1 = arith.constant 0 : i32
    return %c0_i32, %c0_i32_0 : i32, i32
  }
  func.func @transform_16(%arg0: i32) -> (i32, i32) {
    %c0_i32 = arith.constant 0 : i32
    %c0_i32_0 = arith.constant 0 : i32
    %c0_i32_1 = arith.constant 0 : i32
    return %c0_i32, %c0_i32_0 : i32, i32
  }
  func.func @transform_17(%arg0: i32) -> (i32, i32) {
    %c0_i32 = arith.constant 0 : i32
    %c0_i32_0 = arith.constant 0 : i32
    %c0_i32_1 = arith.constant 0 : i32
    return %c0_i32, %c0_i32_0 : i32, i32
  }
  func.func @transform_18(%arg0: i32) -> (i32, i32) {
    %c0_i32 = arith.constant 0 : i32
    %c0_i32_0 = arith.constant 0 : i32
    %c0_i32_1 = arith.constant 0 : i32
    return %c0_i32, %c0_i32_0 : i32, i32
  }
  func.func @transform_19(%arg0: i32) -> (i32, i32) {
    %c0_i32 = arith.constant 0 : i32
    %c0_i32_0 = arith.constant 0 : i32
    %c0_i32_1 = arith.constant 0 : i32
    return %c0_i32, %c0_i32_0 : i32, i32
  }
  func.func @transform_20(%arg0: i32) -> (i32, i32, i32) {
    %c0_i32 = arith.constant 0 : i32
    %c0_i32_0 = arith.constant 0 : i32
    %c0_i32_1 = arith.constant 0 : i32
    return %arg0, %c0_i32, %c0_i32_0 : i32, i32, i32
  }
}

module attributes {stable_mosaic.version = 11 : i64} {
  func.func @transformer_layer_kernel(%arg0: i32, %arg1: memref<1x4xf32, #tpu.memory_space<smem>>, %arg2: memref<4x8x32xf32, #tpu.memory_space<vmem>>, %arg3: memref<4x8x32xbf16, #tpu.memory_space<vmem>>, %arg4: memref<4x8x32xbf16, #tpu.memory_space<vmem>>, %arg5: memref<32x32xbf16, #tpu.memory_space<vmem>>, %arg6: memref<1x32xf32, #tpu.memory_space<vmem>>, %arg7: memref<32x32xbf16, #tpu.memory_space<vmem>>, %arg8: memref<1x32xf32, #tpu.memory_space<vmem>>, %arg9: memref<32x32xbf16, #tpu.memory_space<vmem>>, %arg10: memref<1x32xf32, #tpu.memory_space<vmem>>, %arg11: memref<32x32xbf16, #tpu.memory_space<vmem>>, %arg12: memref<1x32xf32, #tpu.memory_space<vmem>>, %arg13: memref<1x32xf32, #tpu.memory_space<vmem>>, %arg14: memref<1x32xf32, #tpu.memory_space<vmem>>, %arg15: memref<32x64xbf16, #tpu.memory_space<vmem>>, %arg16: memref<1x64xf32, #tpu.memory_space<vmem>>, %arg17: memref<64x32xbf16, #tpu.memory_space<vmem>>, %arg18: memref<1x32xf32, #tpu.memory_space<vmem>>, %arg19: memref<1x32xf32, #tpu.memory_space<vmem>>, %arg20: memref<1x32xf32, #tpu.memory_space<vmem>>, %arg21: memref<4x8x32xf32, #tpu.memory_space<vmem>>) attributes {dimension_semantics = [#tpu.dimension_semantics<parallel>], iteration_bounds = array<i64: 1>, scalar_prefetch = 0 : i64, scratch_operands = 0 : i64, tpu.core_type = #tpu.core_type<tc>, window_params = [{transform_indices = @transform_0, window_bounds = array<i64: 1, 4>}, {transform_indices = @transform_1, window_bounds = array<i64: 4, 8, 32>}, {transform_indices = @transform_2, window_bounds = array<i64: 4, 8, 32>}, {transform_indices = @transform_3, window_bounds = array<i64: 4, 8, 32>}, {pipeline_mode = #tpu.pipeline_mode<synchronous>, transform_indices = @transform_4, window_bounds = array<i64: 32, 32>}, {pipeline_mode = #tpu.pipeline_mode<synchronous>, transform_indices = @transform_5, window_bounds = array<i64: 1, 32>}, {pipeline_mode = #tpu.pipeline_mode<synchronous>, transform_indices = @transform_6, window_bounds = array<i64: 32, 32>}, {pipeline_mode = #tpu.pipeline_mode<synchronous>, transform_indices = @transform_7, window_bounds = array<i64: 1, 32>}, {pipeline_mode = #tpu.pipeline_mode<synchronous>, transform_indices = @transform_8, window_bounds = array<i64: 32, 32>}, {pipeline_mode = #tpu.pipeline_mode<synchronous>, transform_indices = @transform_9, window_bounds = array<i64: 1, 32>}, {pipeline_mode = #tpu.pipeline_mode<synchronous>, transform_indices = @transform_10, window_bounds = array<i64: 32, 32>}, {pipeline_mode = #tpu.pipeline_mode<synchronous>, transform_indices = @transform_11, window_bounds = array<i64: 1, 32>}, {pipeline_mode = #tpu.pipeline_mode<synchronous>, transform_indices = @transform_12, window_bounds = array<i64: 1, 32>}, {pipeline_mode = #tpu.pipeline_mode<synchronous>, transform_indices = @transform_13, window_bounds = array<i64: 1, 32>}, {pipeline_mode = #tpu.pipeline_mode<synchronous>, transform_indices = @transform_14, window_bounds = array<i64: 32, 64>}, {pipeline_mode = #tpu.pipeline_mode<synchronous>, transform_indices = @transform_15, window_bounds = array<i64: 1, 64>}, {pipeline_mode = #tpu.pipeline_mode<synchronous>, transform_indices = @transform_16, window_bounds = array<i64: 64, 32>}, {pipeline_mode = #tpu.pipeline_mode<synchronous>, transform_indices = @transform_17, window_bounds = array<i64: 1, 32>}, {pipeline_mode = #tpu.pipeline_mode<synchronous>, transform_indices = @transform_18, window_bounds = array<i64: 1, 32>}, {pipeline_mode = #tpu.pipeline_mode<synchronous>, transform_indices = @transform_19, window_bounds = array<i64: 1, 32>}, {transform_indices = @transform_20, window_bounds = array<i64: 4, 8, 32>}]} {
    %c0 = arith.constant 0 : index
    %c0_0 = arith.constant 0 : index
    %c0_1 = arith.constant 0 : index
    %0 = vector.load %arg2[%c0, %c0_0, %c0_1] : memref<4x8x32xf32, #tpu.memory_space<vmem>>, vector<4x8x32xf32>
    %1 = vector.shape_cast %0 : vector<4x8x32xf32> to vector<32x32xf32>
    %2 = arith.truncf %1 : vector<32x32xf32> to vector<32x32xbf16>
    %c0_2 = arith.constant 0 : index
    %c0_3 = arith.constant 0 : index
    %c0_4 = arith.constant 0 : index
    %3 = vector.load %arg3[%c0_2, %c0_3, %c0_4] : memref<4x8x32xbf16, #tpu.memory_space<vmem>>, vector<4x8x32xbf16>
    %4 = vector.shape_cast %3 : vector<4x8x32xbf16> to vector<32x32xbf16>
    %c0_5 = arith.constant 0 : index
    %c0_6 = arith.constant 0 : index
    %c0_7 = arith.constant 0 : index
    %5 = vector.load %arg4[%c0_5, %c0_6, %c0_7] : memref<4x8x32xbf16, #tpu.memory_space<vmem>>, vector<4x8x32xbf16>
    %6 = vector.shape_cast %5 : vector<4x8x32xbf16> to vector<32x32xbf16>
    %c0_8 = arith.constant 0 : index
    %c0_9 = arith.constant 0 : index
    %7 = vector.load %arg5[%c0_8, %c0_9] : memref<32x32xbf16, #tpu.memory_space<vmem>>, vector<32x32xbf16>
    %cst = arith.constant dense<0.000000e+00> : vector<32x32xf32>
    %8 = tpu.matmul %2, %7, %cst {dimension_numbers = #tpu.dot_dimension_numbers<[1], [0], [0], [1], [0, 0, 1, 1], [], []>} : vector<32x32xbf16>, vector<32x32xbf16>, vector<32x32xf32> -> vector<32x32xf32>
    %c0_10 = arith.constant 0 : index
    %c0_11 = arith.constant 0 : index
    %9 = vector.load %arg6[%c0_10, %c0_11] : memref<1x32xf32, #tpu.memory_space<vmem>>, vector<1x32xf32>
    %10 = vector.broadcast %9 : vector<1x32xf32> to vector<32x32xf32>
    %11 = arith.addf %8, %10 : vector<32x32xf32>
    %c0_12 = arith.constant 0 : index
    %c0_13 = arith.constant 0 : index
    %12 = vector.load %arg7[%c0_12, %c0_13] : memref<32x32xbf16, #tpu.memory_space<vmem>>, vector<32x32xbf16>
    %cst_14 = arith.constant dense<0.000000e+00> : vector<32x32xf32>
    %13 = tpu.matmul %4, %12, %cst_14 {dimension_numbers = #tpu.dot_dimension_numbers<[1], [0], [0], [1], [0, 0, 1, 1], [], []>} : vector<32x32xbf16>, vector<32x32xbf16>, vector<32x32xf32> -> vector<32x32xf32>
    %c0_15 = arith.constant 0 : index
    %c0_16 = arith.constant 0 : index
    %14 = vector.load %arg8[%c0_15, %c0_16] : memref<1x32xf32, #tpu.memory_space<vmem>>, vector<1x32xf32>
    %15 = vector.broadcast %14 : vector<1x32xf32> to vector<32x32xf32>
    %16 = arith.addf %13, %15 : vector<32x32xf32>
    %c0_17 = arith.constant 0 : index
    %c0_18 = arith.constant 0 : index
    %17 = vector.load %arg9[%c0_17, %c0_18] : memref<32x32xbf16, #tpu.memory_space<vmem>>, vector<32x32xbf16>
    %cst_19 = arith.constant dense<0.000000e+00> : vector<32x32xf32>
    %18 = tpu.matmul %6, %17, %cst_19 {dimension_numbers = #tpu.dot_dimension_numbers<[1], [0], [0], [1], [0, 0, 1, 1], [], []>} : vector<32x32xbf16>, vector<32x32xbf16>, vector<32x32xf32> -> vector<32x32xf32>
    %c0_20 = arith.constant 0 : index
    %c0_21 = arith.constant 0 : index
    %19 = vector.load %arg10[%c0_20, %c0_21] : memref<1x32xf32, #tpu.memory_space<vmem>>, vector<1x32xf32>
    %20 = vector.broadcast %19 : vector<1x32xf32> to vector<32x32xf32>
    %21 = arith.addf %18, %20 : vector<32x32xf32>
    %22 = tpu.iota {dimensions = array<i32: 0>} : vector<8x8xi32>
    %23 = tpu.iota {dimensions = array<i32: 1>} : vector<8x8xi32>
    %c0_i32 = arith.constant 0 : i32
    %24 = vector.broadcast %c0_i32 : i32 to vector<8x8xi32>
    %25 = arith.addi %22, %24 : vector<8x8xi32>
    %26 = arith.cmpi slt, %23, %25 : vector<8x8xi32>
    %27 = arith.extui %26 : vector<8x8xi1> to vector<8x8xi32>
    %28 = arith.sitofp %27 : vector<8x8xi32> to vector<8x8xf32>
    %29 = arith.subi %23, %22 : vector<8x8xi32>
    %30 = math.absi %29 : vector<8x8xi32>
    %31 = arith.sitofp %30 : vector<8x8xi32> to vector<8x8xf32>
    %32 = arith.cmpi sgt, %22, %23 : vector<8x8xi32>
    %33 = arith.extui %32 : vector<8x8xi1> to vector<8x8xi32>
    %34 = arith.sitofp %33 : vector<8x8xi32> to vector<8x8xf32>
    %35 = vector.extract_strided_slice %11 {offsets = [0, 0], sizes = [32, 8], strides = [1, 1]} : vector<32x32xf32> to vector<32x8xf32>
    %36 = vector.shape_cast %35 : vector<32x8xf32> to vector<4x8x8xf32>
    %37 = arith.truncf %36 : vector<4x8x8xf32> to vector<4x8x8xbf16>
    %38 = vector.extract_strided_slice %16 {offsets = [0, 0], sizes = [32, 8], strides = [1, 1]} : vector<32x32xf32> to vector<32x8xf32>
    %39 = vector.shape_cast %38 : vector<32x8xf32> to vector<4x8x8xf32>
    %40 = arith.truncf %39 : vector<4x8x8xf32> to vector<4x8x8xbf16>
    %41 = vector.extract_strided_slice %21 {offsets = [0, 0], sizes = [32, 8], strides = [1, 1]} : vector<32x32xf32> to vector<32x8xf32>
    %42 = vector.shape_cast %41 : vector<32x8xf32> to vector<4x8x8xf32>
    %43 = arith.truncf %42 : vector<4x8x8xf32> to vector<4x8x8xbf16>
    "tpu.trace_start"() <{level = 10 : i32, message = "bik,bjk->bij"}> : () -> ()
    %cst_22 = arith.constant dense<0.000000e+00> : vector<4x8x8xf32>
    %44 = tpu.matmul %37, %40, %cst_22 {dimension_numbers = #tpu.dot_dimension_numbers<[2], [2], [1], [1], [0, 0, 0, 1, 1, 1], [0], [0]>} : vector<4x8x8xbf16>, vector<4x8x8xbf16>, vector<4x8x8xf32> -> vector<4x8x8xf32>
    "tpu.trace_stop"() : () -> ()
    %cst_23 = arith.constant 0.353553385 : f32
    %45 = vector.broadcast %cst_23 : f32 to vector<4x8x8xf32>
    %46 = arith.mulf %44, %45 : vector<4x8x8xf32>
    %cst_24 = arith.constant -1.000000e+32 : f32
    %47 = vector.shape_cast %26 : vector<8x8xi1> to vector<1x8x8xi1>
    %48 = vector.broadcast %47 : vector<1x8x8xi1> to vector<4x8x8xi1>
    %49 = vector.broadcast %cst_24 : f32 to vector<4x8x8xf32>
    %50 = arith.select %48, %46, %49 : vector<4x8x8xi1>, vector<4x8x8xf32>
    %cst_25 = arith.constant dense<0xFF800000> : vector<4x8xf32>
    %51 = vector.multi_reduction <maximumf>, %50, %cst_25 [2] : vector<4x8x8xf32> to vector<4x8xf32>
    %52 = vector.shape_cast %51 : vector<4x8xf32> to vector<4x8x1xf32>
    %53 = vector.broadcast %52 : vector<4x8x1xf32> to vector<4x8x8xf32>
    %54 = arith.subf %50, %53 : vector<4x8x8xf32>
    %55 = math.exp %54 : vector<4x8x8xf32>
    %cst_26 = arith.constant dense<0.000000e+00> : vector<4x8xf32>
    %56 = vector.multi_reduction <add>, %55, %cst_26 [2] : vector<4x8x8xf32> to vector<4x8xf32>
    %57 = vector.shape_cast %56 : vector<4x8xf32> to vector<4x8x1xf32>
    %58 = tpu.reciprocal %57 {approx = true} : vector<4x8x1xf32> -> vector<4x8x1xf32>
    %59 = vector.broadcast %58 : vector<4x8x1xf32> to vector<4x8x8xf32>
    %60 = arith.mulf %55, %59 : vector<4x8x8xf32>
    %61 = vector.shape_cast %28 : vector<8x8xf32> to vector<1x8x8xf32>
    %62 = vector.broadcast %61 : vector<1x8x8xf32> to vector<4x8x8xf32>
    %63 = arith.mulf %60, %62 : vector<4x8x8xf32>
    %64 = vector.shape_cast %63 : vector<4x8x8xf32> to vector<32x8xf32>
    %cst_27 = arith.constant dense<0.000000e+00> : vector<32x8xf32>
    %65 = tpu.matmul %64, %34, %cst_27 {dimension_numbers = #tpu.dot_dimension_numbers<[1], [0], [0], [1], [0, 0, 1, 1], [], []>} : vector<32x8xf32>, vector<8x8xf32>, vector<32x8xf32> -> vector<32x8xf32>
    %66 = vector.shape_cast %65 : vector<32x8xf32> to vector<4x8x8xf32>
    %67 = vector.shape_cast %31 : vector<8x8xf32> to vector<1x8x8xf32>
    %68 = vector.broadcast %67 : vector<1x8x8xf32> to vector<4x8x8xf32>
    %69 = arith.mulf %66, %68 : vector<4x8x8xf32>
    %cst_28 = arith.constant 0.000000e+00 : f32
    %70 = vector.broadcast %cst_28 : f32 to vector<4x8x8xf32>
    %71 = arith.maximumf %69, %70 : vector<4x8x8xf32>
    %72 = math.sqrt %71 : vector<4x8x8xf32>
    %c0_29 = arith.constant 0 : index
    %c0_30 = arith.constant 0 : index
    %73 = memref.load %arg1[%c0_29, %c0_30] : memref<1x4xf32, #tpu.memory_space<smem>>
    %74 = vector.broadcast %73 : f32 to vector<4x8x8xf32>
    %75 = arith.mulf %72, %74 : vector<4x8x8xf32>
    %cst_31 = arith.constant -11.5129251 : f32
    %cst_32 = arith.constant 11.5129251 : f32
    %76 = vector.broadcast %cst_31 : f32 to vector<4x8x8xf32>
    %77 = arith.maximumf %76, %75 : vector<4x8x8xf32>
    %78 = vector.broadcast %cst_32 : f32 to vector<4x8x8xf32>
    %79 = arith.minimumf %78, %77 : vector<4x8x8xf32>
    %80 = math.exp %79 : vector<4x8x8xf32>
    %81 = arith.mulf %46, %80 : vector<4x8x8xf32>
    %cst_33 = arith.constant -1.000000e+32 : f32
    %82 = vector.shape_cast %26 : vector<8x8xi1> to vector<1x8x8xi1>
    %83 = vector.broadcast %82 : vector<1x8x8xi1> to vector<4x8x8xi1>
    %84 = vector.broadcast %cst_33 : f32 to vector<4x8x8xf32>
    %85 = arith.select %83, %81, %84 : vector<4x8x8xi1>, vector<4x8x8xf32>
    %cst_34 = arith.constant dense<0xFF800000> : vector<4x8xf32>
    %86 = vector.multi_reduction <maximumf>, %85, %cst_34 [2] : vector<4x8x8xf32> to vector<4x8xf32>
    %87 = vector.shape_cast %86 : vector<4x8xf32> to vector<4x8x1xf32>
    %88 = vector.broadcast %87 : vector<4x8x1xf32> to vector<4x8x8xf32>
    %89 = arith.subf %85, %88 : vector<4x8x8xf32>
    %90 = math.exp %89 : vector<4x8x8xf32>
    %cst_35 = arith.constant dense<0.000000e+00> : vector<4x8xf32>
    %91 = vector.multi_reduction <add>, %90, %cst_35 [2] : vector<4x8x8xf32> to vector<4x8xf32>
    %92 = vector.shape_cast %91 : vector<4x8xf32> to vector<4x8x1xf32>
    %93 = tpu.reciprocal %92 {approx = true} : vector<4x8x1xf32> -> vector<4x8x1xf32>
    %94 = vector.broadcast %93 : vector<4x8x1xf32> to vector<4x8x8xf32>
    %95 = arith.mulf %90, %94 : vector<4x8x8xf32>
    %c0_i32_36 = arith.constant 0 : i32
    %96 = vector.broadcast %c0_i32_36 : i32 to vector<8x8xi32>
    %97 = arith.cmpi eq, %22, %96 : vector<8x8xi32>
    %cst_37 = arith.constant 0.000000e+00 : f32
    %98 = vector.shape_cast %97 : vector<8x8xi1> to vector<1x8x8xi1>
    %99 = vector.broadcast %98 : vector<1x8x8xi1> to vector<4x8x8xi1>
    %100 = vector.broadcast %cst_37 : f32 to vector<4x8x8xf32>
    %101 = arith.select %99, %100, %95 : vector<4x8x8xi1>, vector<4x8x8xf32>
    %102 = arith.truncf %101 : vector<4x8x8xf32> to vector<4x8x8xbf16>
    "tpu.trace_start"() <{level = 10 : i32, message = "bij,bjk->bik"}> : () -> ()
    %cst_38 = arith.constant dense<0.000000e+00> : vector<4x8x8xf32>
    %103 = tpu.matmul %102, %43, %cst_38 {dimension_numbers = #tpu.dot_dimension_numbers<[2], [1], [1], [2], [0, 0, 0, 1, 1, 2], [0], [0]>} : vector<4x8x8xbf16>, vector<4x8x8xbf16>, vector<4x8x8xf32> -> vector<4x8x8xf32>
    "tpu.trace_stop"() : () -> ()
    %104 = vector.extract_strided_slice %11 {offsets = [0, 8], sizes = [32, 8], strides = [1, 1]} : vector<32x32xf32> to vector<32x8xf32>
    %105 = vector.shape_cast %104 : vector<32x8xf32> to vector<4x8x8xf32>
    %106 = arith.truncf %105 : vector<4x8x8xf32> to vector<4x8x8xbf16>
    %107 = vector.extract_strided_slice %16 {offsets = [0, 8], sizes = [32, 8], strides = [1, 1]} : vector<32x32xf32> to vector<32x8xf32>
    %108 = vector.shape_cast %107 : vector<32x8xf32> to vector<4x8x8xf32>
    %109 = arith.truncf %108 : vector<4x8x8xf32> to vector<4x8x8xbf16>
    %110 = vector.extract_strided_slice %21 {offsets = [0, 8], sizes = [32, 8], strides = [1, 1]} : vector<32x32xf32> to vector<32x8xf32>
    %111 = vector.shape_cast %110 : vector<32x8xf32> to vector<4x8x8xf32>
    %112 = arith.truncf %111 : vector<4x8x8xf32> to vector<4x8x8xbf16>
    "tpu.trace_start"() <{level = 10 : i32, message = "bik,bjk->bij"}> : () -> ()
    %cst_39 = arith.constant dense<0.000000e+00> : vector<4x8x8xf32>
    %113 = tpu.matmul %106, %109, %cst_39 {dimension_numbers = #tpu.dot_dimension_numbers<[2], [2], [1], [1], [0, 0, 0, 1, 1, 1], [0], [0]>} : vector<4x8x8xbf16>, vector<4x8x8xbf16>, vector<4x8x8xf32> -> vector<4x8x8xf32>
    "tpu.trace_stop"() : () -> ()
    %cst_40 = arith.constant 0.353553385 : f32
    %114 = vector.broadcast %cst_40 : f32 to vector<4x8x8xf32>
    %115 = arith.mulf %113, %114 : vector<4x8x8xf32>
    %cst_41 = arith.constant -1.000000e+32 : f32
    %116 = vector.shape_cast %26 : vector<8x8xi1> to vector<1x8x8xi1>
    %117 = vector.broadcast %116 : vector<1x8x8xi1> to vector<4x8x8xi1>
    %118 = vector.broadcast %cst_41 : f32 to vector<4x8x8xf32>
    %119 = arith.select %117, %115, %118 : vector<4x8x8xi1>, vector<4x8x8xf32>
    %cst_42 = arith.constant dense<0xFF800000> : vector<4x8xf32>
    %120 = vector.multi_reduction <maximumf>, %119, %cst_42 [2] : vector<4x8x8xf32> to vector<4x8xf32>
    %121 = vector.shape_cast %120 : vector<4x8xf32> to vector<4x8x1xf32>
    %122 = vector.broadcast %121 : vector<4x8x1xf32> to vector<4x8x8xf32>
    %123 = arith.subf %119, %122 : vector<4x8x8xf32>
    %124 = math.exp %123 : vector<4x8x8xf32>
    %cst_43 = arith.constant dense<0.000000e+00> : vector<4x8xf32>
    %125 = vector.multi_reduction <add>, %124, %cst_43 [2] : vector<4x8x8xf32> to vector<4x8xf32>
    %126 = vector.shape_cast %125 : vector<4x8xf32> to vector<4x8x1xf32>
    %127 = tpu.reciprocal %126 {approx = true} : vector<4x8x1xf32> -> vector<4x8x1xf32>
    %128 = vector.broadcast %127 : vector<4x8x1xf32> to vector<4x8x8xf32>
    %129 = arith.mulf %124, %128 : vector<4x8x8xf32>
    %130 = vector.shape_cast %28 : vector<8x8xf32> to vector<1x8x8xf32>
    %131 = vector.broadcast %130 : vector<1x8x8xf32> to vector<4x8x8xf32>
    %132 = arith.mulf %129, %131 : vector<4x8x8xf32>
    %133 = vector.shape_cast %132 : vector<4x8x8xf32> to vector<32x8xf32>
    %cst_44 = arith.constant dense<0.000000e+00> : vector<32x8xf32>
    %134 = tpu.matmul %133, %34, %cst_44 {dimension_numbers = #tpu.dot_dimension_numbers<[1], [0], [0], [1], [0, 0, 1, 1], [], []>} : vector<32x8xf32>, vector<8x8xf32>, vector<32x8xf32> -> vector<32x8xf32>
    %135 = vector.shape_cast %134 : vector<32x8xf32> to vector<4x8x8xf32>
    %136 = vector.shape_cast %31 : vector<8x8xf32> to vector<1x8x8xf32>
    %137 = vector.broadcast %136 : vector<1x8x8xf32> to vector<4x8x8xf32>
    %138 = arith.mulf %135, %137 : vector<4x8x8xf32>
    %cst_45 = arith.constant 0.000000e+00 : f32
    %139 = vector.broadcast %cst_45 : f32 to vector<4x8x8xf32>
    %140 = arith.maximumf %138, %139 : vector<4x8x8xf32>
    %141 = math.sqrt %140 : vector<4x8x8xf32>
    %c0_46 = arith.constant 0 : index
    %c1 = arith.constant 1 : index
    %142 = memref.load %arg1[%c0_46, %c1] : memref<1x4xf32, #tpu.memory_space<smem>>
    %143 = vector.broadcast %142 : f32 to vector<4x8x8xf32>
    %144 = arith.mulf %141, %143 : vector<4x8x8xf32>
    %cst_47 = arith.constant -11.5129251 : f32
    %cst_48 = arith.constant 11.5129251 : f32
    %145 = vector.broadcast %cst_47 : f32 to vector<4x8x8xf32>
    %146 = arith.maximumf %145, %144 : vector<4x8x8xf32>
    %147 = vector.broadcast %cst_48 : f32 to vector<4x8x8xf32>
    %148 = arith.minimumf %147, %146 : vector<4x8x8xf32>
    %149 = math.exp %148 : vector<4x8x8xf32>
    %150 = arith.mulf %115, %149 : vector<4x8x8xf32>
    %cst_49 = arith.constant -1.000000e+32 : f32
    %151 = vector.shape_cast %26 : vector<8x8xi1> to vector<1x8x8xi1>
    %152 = vector.broadcast %151 : vector<1x8x8xi1> to vector<4x8x8xi1>
    %153 = vector.broadcast %cst_49 : f32 to vector<4x8x8xf32>
    %154 = arith.select %152, %150, %153 : vector<4x8x8xi1>, vector<4x8x8xf32>
    %cst_50 = arith.constant dense<0xFF800000> : vector<4x8xf32>
    %155 = vector.multi_reduction <maximumf>, %154, %cst_50 [2] : vector<4x8x8xf32> to vector<4x8xf32>
    %156 = vector.shape_cast %155 : vector<4x8xf32> to vector<4x8x1xf32>
    %157 = vector.broadcast %156 : vector<4x8x1xf32> to vector<4x8x8xf32>
    %158 = arith.subf %154, %157 : vector<4x8x8xf32>
    %159 = math.exp %158 : vector<4x8x8xf32>
    %cst_51 = arith.constant dense<0.000000e+00> : vector<4x8xf32>
    %160 = vector.multi_reduction <add>, %159, %cst_51 [2] : vector<4x8x8xf32> to vector<4x8xf32>
    %161 = vector.shape_cast %160 : vector<4x8xf32> to vector<4x8x1xf32>
    %162 = tpu.reciprocal %161 {approx = true} : vector<4x8x1xf32> -> vector<4x8x1xf32>
    %163 = vector.broadcast %162 : vector<4x8x1xf32> to vector<4x8x8xf32>
    %164 = arith.mulf %159, %163 : vector<4x8x8xf32>
    %c0_i32_52 = arith.constant 0 : i32
    %165 = vector.broadcast %c0_i32_52 : i32 to vector<8x8xi32>
    %166 = arith.cmpi eq, %22, %165 : vector<8x8xi32>
    %cst_53 = arith.constant 0.000000e+00 : f32
    %167 = vector.shape_cast %166 : vector<8x8xi1> to vector<1x8x8xi1>
    %168 = vector.broadcast %167 : vector<1x8x8xi1> to vector<4x8x8xi1>
    %169 = vector.broadcast %cst_53 : f32 to vector<4x8x8xf32>
    %170 = arith.select %168, %169, %164 : vector<4x8x8xi1>, vector<4x8x8xf32>
    %171 = arith.truncf %170 : vector<4x8x8xf32> to vector<4x8x8xbf16>
    "tpu.trace_start"() <{level = 10 : i32, message = "bij,bjk->bik"}> : () -> ()
    %cst_54 = arith.constant dense<0.000000e+00> : vector<4x8x8xf32>
    %172 = tpu.matmul %171, %112, %cst_54 {dimension_numbers = #tpu.dot_dimension_numbers<[2], [1], [1], [2], [0, 0, 0, 1, 1, 2], [0], [0]>} : vector<4x8x8xbf16>, vector<4x8x8xbf16>, vector<4x8x8xf32> -> vector<4x8x8xf32>
    "tpu.trace_stop"() : () -> ()
    %173 = vector.extract_strided_slice %11 {offsets = [0, 16], sizes = [32, 8], strides = [1, 1]} : vector<32x32xf32> to vector<32x8xf32>
    %174 = vector.shape_cast %173 : vector<32x8xf32> to vector<4x8x8xf32>
    %175 = arith.truncf %174 : vector<4x8x8xf32> to vector<4x8x8xbf16>
    %176 = vector.extract_strided_slice %16 {offsets = [0, 16], sizes = [32, 8], strides = [1, 1]} : vector<32x32xf32> to vector<32x8xf32>
    %177 = vector.shape_cast %176 : vector<32x8xf32> to vector<4x8x8xf32>
    %178 = arith.truncf %177 : vector<4x8x8xf32> to vector<4x8x8xbf16>
    %179 = vector.extract_strided_slice %21 {offsets = [0, 16], sizes = [32, 8], strides = [1, 1]} : vector<32x32xf32> to vector<32x8xf32>
    %180 = vector.shape_cast %179 : vector<32x8xf32> to vector<4x8x8xf32>
    %181 = arith.truncf %180 : vector<4x8x8xf32> to vector<4x8x8xbf16>
    "tpu.trace_start"() <{level = 10 : i32, message = "bik,bjk->bij"}> : () -> ()
    %cst_55 = arith.constant dense<0.000000e+00> : vector<4x8x8xf32>
    %182 = tpu.matmul %175, %178, %cst_55 {dimension_numbers = #tpu.dot_dimension_numbers<[2], [2], [1], [1], [0, 0, 0, 1, 1, 1], [0], [0]>} : vector<4x8x8xbf16>, vector<4x8x8xbf16>, vector<4x8x8xf32> -> vector<4x8x8xf32>
    "tpu.trace_stop"() : () -> ()
    %cst_56 = arith.constant 0.353553385 : f32
    %183 = vector.broadcast %cst_56 : f32 to vector<4x8x8xf32>
    %184 = arith.mulf %182, %183 : vector<4x8x8xf32>
    %cst_57 = arith.constant -1.000000e+32 : f32
    %185 = vector.shape_cast %26 : vector<8x8xi1> to vector<1x8x8xi1>
    %186 = vector.broadcast %185 : vector<1x8x8xi1> to vector<4x8x8xi1>
    %187 = vector.broadcast %cst_57 : f32 to vector<4x8x8xf32>
    %188 = arith.select %186, %184, %187 : vector<4x8x8xi1>, vector<4x8x8xf32>
    %cst_58 = arith.constant dense<0xFF800000> : vector<4x8xf32>
    %189 = vector.multi_reduction <maximumf>, %188, %cst_58 [2] : vector<4x8x8xf32> to vector<4x8xf32>
    %190 = vector.shape_cast %189 : vector<4x8xf32> to vector<4x8x1xf32>
    %191 = vector.broadcast %190 : vector<4x8x1xf32> to vector<4x8x8xf32>
    %192 = arith.subf %188, %191 : vector<4x8x8xf32>
    %193 = math.exp %192 : vector<4x8x8xf32>
    %cst_59 = arith.constant dense<0.000000e+00> : vector<4x8xf32>
    %194 = vector.multi_reduction <add>, %193, %cst_59 [2] : vector<4x8x8xf32> to vector<4x8xf32>
    %195 = vector.shape_cast %194 : vector<4x8xf32> to vector<4x8x1xf32>
    %196 = tpu.reciprocal %195 {approx = true} : vector<4x8x1xf32> -> vector<4x8x1xf32>
    %197 = vector.broadcast %196 : vector<4x8x1xf32> to vector<4x8x8xf32>
    %198 = arith.mulf %193, %197 : vector<4x8x8xf32>
    %199 = vector.shape_cast %28 : vector<8x8xf32> to vector<1x8x8xf32>
    %200 = vector.broadcast %199 : vector<1x8x8xf32> to vector<4x8x8xf32>
    %201 = arith.mulf %198, %200 : vector<4x8x8xf32>
    %202 = vector.shape_cast %201 : vector<4x8x8xf32> to vector<32x8xf32>
    %cst_60 = arith.constant dense<0.000000e+00> : vector<32x8xf32>
    %203 = tpu.matmul %202, %34, %cst_60 {dimension_numbers = #tpu.dot_dimension_numbers<[1], [0], [0], [1], [0, 0, 1, 1], [], []>} : vector<32x8xf32>, vector<8x8xf32>, vector<32x8xf32> -> vector<32x8xf32>
    %204 = vector.shape_cast %203 : vector<32x8xf32> to vector<4x8x8xf32>
    %205 = vector.shape_cast %31 : vector<8x8xf32> to vector<1x8x8xf32>
    %206 = vector.broadcast %205 : vector<1x8x8xf32> to vector<4x8x8xf32>
    %207 = arith.mulf %204, %206 : vector<4x8x8xf32>
    %cst_61 = arith.constant 0.000000e+00 : f32
    %208 = vector.broadcast %cst_61 : f32 to vector<4x8x8xf32>
    %209 = arith.maximumf %207, %208 : vector<4x8x8xf32>
    %210 = math.sqrt %209 : vector<4x8x8xf32>
    %c0_62 = arith.constant 0 : index
    %c2 = arith.constant 2 : index
    %211 = memref.load %arg1[%c0_62, %c2] : memref<1x4xf32, #tpu.memory_space<smem>>
    %212 = vector.broadcast %211 : f32 to vector<4x8x8xf32>
    %213 = arith.mulf %210, %212 : vector<4x8x8xf32>
    %cst_63 = arith.constant -11.5129251 : f32
    %cst_64 = arith.constant 11.5129251 : f32
    %214 = vector.broadcast %cst_63 : f32 to vector<4x8x8xf32>
    %215 = arith.maximumf %214, %213 : vector<4x8x8xf32>
    %216 = vector.broadcast %cst_64 : f32 to vector<4x8x8xf32>
    %217 = arith.minimumf %216, %215 : vector<4x8x8xf32>
    %218 = math.exp %217 : vector<4x8x8xf32>
    %219 = arith.mulf %184, %218 : vector<4x8x8xf32>
    %cst_65 = arith.constant -1.000000e+32 : f32
    %220 = vector.shape_cast %26 : vector<8x8xi1> to vector<1x8x8xi1>
    %221 = vector.broadcast %220 : vector<1x8x8xi1> to vector<4x8x8xi1>
    %222 = vector.broadcast %cst_65 : f32 to vector<4x8x8xf32>
    %223 = arith.select %221, %219, %222 : vector<4x8x8xi1>, vector<4x8x8xf32>
    %cst_66 = arith.constant dense<0xFF800000> : vector<4x8xf32>
    %224 = vector.multi_reduction <maximumf>, %223, %cst_66 [2] : vector<4x8x8xf32> to vector<4x8xf32>
    %225 = vector.shape_cast %224 : vector<4x8xf32> to vector<4x8x1xf32>
    %226 = vector.broadcast %225 : vector<4x8x1xf32> to vector<4x8x8xf32>
    %227 = arith.subf %223, %226 : vector<4x8x8xf32>
    %228 = math.exp %227 : vector<4x8x8xf32>
    %cst_67 = arith.constant dense<0.000000e+00> : vector<4x8xf32>
    %229 = vector.multi_reduction <add>, %228, %cst_67 [2] : vector<4x8x8xf32> to vector<4x8xf32>
    %230 = vector.shape_cast %229 : vector<4x8xf32> to vector<4x8x1xf32>
    %231 = tpu.reciprocal %230 {approx = true} : vector<4x8x1xf32> -> vector<4x8x1xf32>
    %232 = vector.broadcast %231 : vector<4x8x1xf32> to vector<4x8x8xf32>
    %233 = arith.mulf %228, %232 : vector<4x8x8xf32>
    %c0_i32_68 = arith.constant 0 : i32
    %234 = vector.broadcast %c0_i32_68 : i32 to vector<8x8xi32>
    %235 = arith.cmpi eq, %22, %234 : vector<8x8xi32>
    %cst_69 = arith.constant 0.000000e+00 : f32
    %236 = vector.shape_cast %235 : vector<8x8xi1> to vector<1x8x8xi1>
    %237 = vector.broadcast %236 : vector<1x8x8xi1> to vector<4x8x8xi1>
    %238 = vector.broadcast %cst_69 : f32 to vector<4x8x8xf32>
    %239 = arith.select %237, %238, %233 : vector<4x8x8xi1>, vector<4x8x8xf32>
    %240 = arith.truncf %239 : vector<4x8x8xf32> to vector<4x8x8xbf16>
    "tpu.trace_start"() <{level = 10 : i32, message = "bij,bjk->bik"}> : () -> ()
    %cst_70 = arith.constant dense<0.000000e+00> : vector<4x8x8xf32>
    %241 = tpu.matmul %240, %181, %cst_70 {dimension_numbers = #tpu.dot_dimension_numbers<[2], [1], [1], [2], [0, 0, 0, 1, 1, 2], [0], [0]>} : vector<4x8x8xbf16>, vector<4x8x8xbf16>, vector<4x8x8xf32> -> vector<4x8x8xf32>
    "tpu.trace_stop"() : () -> ()
    %242 = vector.extract_strided_slice %11 {offsets = [0, 24], sizes = [32, 8], strides = [1, 1]} : vector<32x32xf32> to vector<32x8xf32>
    %243 = vector.shape_cast %242 : vector<32x8xf32> to vector<4x8x8xf32>
    %244 = arith.truncf %243 : vector<4x8x8xf32> to vector<4x8x8xbf16>
    %245 = vector.extract_strided_slice %16 {offsets = [0, 24], sizes = [32, 8], strides = [1, 1]} : vector<32x32xf32> to vector<32x8xf32>
    %246 = vector.shape_cast %245 : vector<32x8xf32> to vector<4x8x8xf32>
    %247 = arith.truncf %246 : vector<4x8x8xf32> to vector<4x8x8xbf16>
    %248 = vector.extract_strided_slice %21 {offsets = [0, 24], sizes = [32, 8], strides = [1, 1]} : vector<32x32xf32> to vector<32x8xf32>
    %249 = vector.shape_cast %248 : vector<32x8xf32> to vector<4x8x8xf32>
    %250 = arith.truncf %249 : vector<4x8x8xf32> to vector<4x8x8xbf16>
    "tpu.trace_start"() <{level = 10 : i32, message = "bik,bjk->bij"}> : () -> ()
    %cst_71 = arith.constant dense<0.000000e+00> : vector<4x8x8xf32>
    %251 = tpu.matmul %244, %247, %cst_71 {dimension_numbers = #tpu.dot_dimension_numbers<[2], [2], [1], [1], [0, 0, 0, 1, 1, 1], [0], [0]>} : vector<4x8x8xbf16>, vector<4x8x8xbf16>, vector<4x8x8xf32> -> vector<4x8x8xf32>
    "tpu.trace_stop"() : () -> ()
    %cst_72 = arith.constant 0.353553385 : f32
    %252 = vector.broadcast %cst_72 : f32 to vector<4x8x8xf32>
    %253 = arith.mulf %251, %252 : vector<4x8x8xf32>
    %cst_73 = arith.constant -1.000000e+32 : f32
    %254 = vector.shape_cast %26 : vector<8x8xi1> to vector<1x8x8xi1>
    %255 = vector.broadcast %254 : vector<1x8x8xi1> to vector<4x8x8xi1>
    %256 = vector.broadcast %cst_73 : f32 to vector<4x8x8xf32>
    %257 = arith.select %255, %253, %256 : vector<4x8x8xi1>, vector<4x8x8xf32>
    %cst_74 = arith.constant dense<0xFF800000> : vector<4x8xf32>
    %258 = vector.multi_reduction <maximumf>, %257, %cst_74 [2] : vector<4x8x8xf32> to vector<4x8xf32>
    %259 = vector.shape_cast %258 : vector<4x8xf32> to vector<4x8x1xf32>
    %260 = vector.broadcast %259 : vector<4x8x1xf32> to vector<4x8x8xf32>
    %261 = arith.subf %257, %260 : vector<4x8x8xf32>
    %262 = math.exp %261 : vector<4x8x8xf32>
    %cst_75 = arith.constant dense<0.000000e+00> : vector<4x8xf32>
    %263 = vector.multi_reduction <add>, %262, %cst_75 [2] : vector<4x8x8xf32> to vector<4x8xf32>
    %264 = vector.shape_cast %263 : vector<4x8xf32> to vector<4x8x1xf32>
    %265 = tpu.reciprocal %264 {approx = true} : vector<4x8x1xf32> -> vector<4x8x1xf32>
    %266 = vector.broadcast %265 : vector<4x8x1xf32> to vector<4x8x8xf32>
    %267 = arith.mulf %262, %266 : vector<4x8x8xf32>
    %268 = vector.shape_cast %28 : vector<8x8xf32> to vector<1x8x8xf32>
    %269 = vector.broadcast %268 : vector<1x8x8xf32> to vector<4x8x8xf32>
    %270 = arith.mulf %267, %269 : vector<4x8x8xf32>
    %271 = vector.shape_cast %270 : vector<4x8x8xf32> to vector<32x8xf32>
    %cst_76 = arith.constant dense<0.000000e+00> : vector<32x8xf32>
    %272 = tpu.matmul %271, %34, %cst_76 {dimension_numbers = #tpu.dot_dimension_numbers<[1], [0], [0], [1], [0, 0, 1, 1], [], []>} : vector<32x8xf32>, vector<8x8xf32>, vector<32x8xf32> -> vector<32x8xf32>
    %273 = vector.shape_cast %272 : vector<32x8xf32> to vector<4x8x8xf32>
    %274 = vector.shape_cast %31 : vector<8x8xf32> to vector<1x8x8xf32>
    %275 = vector.broadcast %274 : vector<1x8x8xf32> to vector<4x8x8xf32>
    %276 = arith.mulf %273, %275 : vector<4x8x8xf32>
    %cst_77 = arith.constant 0.000000e+00 : f32
    %277 = vector.broadcast %cst_77 : f32 to vector<4x8x8xf32>
    %278 = arith.maximumf %276, %277 : vector<4x8x8xf32>
    %279 = math.sqrt %278 : vector<4x8x8xf32>
    %c0_78 = arith.constant 0 : index
    %c3 = arith.constant 3 : index
    %280 = memref.load %arg1[%c0_78, %c3] : memref<1x4xf32, #tpu.memory_space<smem>>
    %281 = vector.broadcast %280 : f32 to vector<4x8x8xf32>
    %282 = arith.mulf %279, %281 : vector<4x8x8xf32>
    %cst_79 = arith.constant -11.5129251 : f32
    %cst_80 = arith.constant 11.5129251 : f32
    %283 = vector.broadcast %cst_79 : f32 to vector<4x8x8xf32>
    %284 = arith.maximumf %283, %282 : vector<4x8x8xf32>
    %285 = vector.broadcast %cst_80 : f32 to vector<4x8x8xf32>
    %286 = arith.minimumf %285, %284 : vector<4x8x8xf32>
    %287 = math.exp %286 : vector<4x8x8xf32>
    %288 = arith.mulf %253, %287 : vector<4x8x8xf32>
    %cst_81 = arith.constant -1.000000e+32 : f32
    %289 = vector.shape_cast %26 : vector<8x8xi1> to vector<1x8x8xi1>
    %290 = vector.broadcast %289 : vector<1x8x8xi1> to vector<4x8x8xi1>
    %291 = vector.broadcast %cst_81 : f32 to vector<4x8x8xf32>
    %292 = arith.select %290, %288, %291 : vector<4x8x8xi1>, vector<4x8x8xf32>
    %cst_82 = arith.constant dense<0xFF800000> : vector<4x8xf32>
    %293 = vector.multi_reduction <maximumf>, %292, %cst_82 [2] : vector<4x8x8xf32> to vector<4x8xf32>
    %294 = vector.shape_cast %293 : vector<4x8xf32> to vector<4x8x1xf32>
    %295 = vector.broadcast %294 : vector<4x8x1xf32> to vector<4x8x8xf32>
    %296 = arith.subf %292, %295 : vector<4x8x8xf32>
    %297 = math.exp %296 : vector<4x8x8xf32>
    %cst_83 = arith.constant dense<0.000000e+00> : vector<4x8xf32>
    %298 = vector.multi_reduction <add>, %297, %cst_83 [2] : vector<4x8x8xf32> to vector<4x8xf32>
    %299 = vector.shape_cast %298 : vector<4x8xf32> to vector<4x8x1xf32>
    %300 = tpu.reciprocal %299 {approx = true} : vector<4x8x1xf32> -> vector<4x8x1xf32>
    %301 = vector.broadcast %300 : vector<4x8x1xf32> to vector<4x8x8xf32>
    %302 = arith.mulf %297, %301 : vector<4x8x8xf32>
    %c0_i32_84 = arith.constant 0 : i32
    %303 = vector.broadcast %c0_i32_84 : i32 to vector<8x8xi32>
    %304 = arith.cmpi eq, %22, %303 : vector<8x8xi32>
    %cst_85 = arith.constant 0.000000e+00 : f32
    %305 = vector.shape_cast %304 : vector<8x8xi1> to vector<1x8x8xi1>
    %306 = vector.broadcast %305 : vector<1x8x8xi1> to vector<4x8x8xi1>
    %307 = vector.broadcast %cst_85 : f32 to vector<4x8x8xf32>
    %308 = arith.select %306, %307, %302 : vector<4x8x8xi1>, vector<4x8x8xf32>
    %309 = arith.truncf %308 : vector<4x8x8xf32> to vector<4x8x8xbf16>
    "tpu.trace_start"() <{level = 10 : i32, message = "bij,bjk->bik"}> : () -> ()
    %cst_86 = arith.constant dense<0.000000e+00> : vector<4x8x8xf32>
    %310 = tpu.matmul %309, %250, %cst_86 {dimension_numbers = #tpu.dot_dimension_numbers<[2], [1], [1], [2], [0, 0, 0, 1, 1, 2], [0], [0]>} : vector<4x8x8xbf16>, vector<4x8x8xbf16>, vector<4x8x8xf32> -> vector<4x8x8xf32>
    "tpu.trace_stop"() : () -> ()
    %311 = tpu.concatenate %103, %172, %241, %310 in 2 : vector<4x8x8xf32>, vector<4x8x8xf32>, vector<4x8x8xf32>, vector<4x8x8xf32> -> vector<4x8x32xf32>
    %312 = vector.shape_cast %311 : vector<4x8x32xf32> to vector<32x32xf32>
    %313 = arith.truncf %312 : vector<32x32xf32> to vector<32x32xbf16>
    %c0_87 = arith.constant 0 : index
    %c0_88 = arith.constant 0 : index
    %314 = vector.load %arg12[%c0_87, %c0_88] : memref<1x32xf32, #tpu.memory_space<vmem>>, vector<1x32xf32>
    %315 = vector.broadcast %314 : vector<1x32xf32> to vector<32x32xf32>
    %316 = arith.addf %1, %315 : vector<32x32xf32>
    %c0_89 = arith.constant 0 : index
    %c0_90 = arith.constant 0 : index
    %317 = vector.load %arg11[%c0_89, %c0_90] : memref<32x32xbf16, #tpu.memory_space<vmem>>, vector<32x32xbf16>
    %cst_91 = arith.constant dense<0.000000e+00> : vector<32x32xf32>
    %318 = tpu.matmul %313, %317, %cst_91 {dimension_numbers = #tpu.dot_dimension_numbers<[1], [0], [0], [1], [0, 0, 1, 1], [], []>} : vector<32x32xbf16>, vector<32x32xbf16>, vector<32x32xf32> -> vector<32x32xf32>
    %319 = arith.addf %316, %318 : vector<32x32xf32>
    %c0_92 = arith.constant 0 : index
    %c0_93 = arith.constant 0 : index
    %320 = vector.load %arg13[%c0_92, %c0_93] : memref<1x32xf32, #tpu.memory_space<vmem>>, vector<1x32xf32>
    %c0_94 = arith.constant 0 : index
    %c0_95 = arith.constant 0 : index
    %321 = vector.load %arg14[%c0_94, %c0_95] : memref<1x32xf32, #tpu.memory_space<vmem>>, vector<1x32xf32>
    %cst_96 = arith.constant dense<0.000000e+00> : vector<32xf32>
    %322 = vector.multi_reduction <add>, %319, %cst_96 [1] : vector<32x32xf32> to vector<32xf32>
    %323 = vector.shape_cast %322 : vector<32xf32> to vector<32x1xf32>
    %cst_97 = arith.constant 3.200000e+01 : f32
    %324 = vector.broadcast %cst_97 : f32 to vector<32x1xf32>
    %325 = arith.divf %323, %324 : vector<32x1xf32>
    %326 = vector.broadcast %325 : vector<32x1xf32> to vector<32x32xf32>
    %327 = arith.subf %319, %326 : vector<32x32xf32>
    %328 = arith.mulf %327, %327 : vector<32x32xf32>
    %cst_98 = arith.constant dense<0.000000e+00> : vector<32xf32>
    %329 = vector.multi_reduction <add>, %328, %cst_98 [1] : vector<32x32xf32> to vector<32xf32>
    %330 = vector.shape_cast %329 : vector<32xf32> to vector<32x1xf32>
    %cst_99 = arith.constant 3.200000e+01 : f32
    %331 = vector.broadcast %cst_99 : f32 to vector<32x1xf32>
    %332 = arith.divf %330, %331 : vector<32x1xf32>
    %cst_100 = arith.constant 9.99999974E-6 : f32
    %333 = vector.broadcast %cst_100 : f32 to vector<32x1xf32>
    %334 = arith.addf %332, %333 : vector<32x1xf32>
    %335 = math.rsqrt %334 : vector<32x1xf32>
    %336 = vector.broadcast %335 : vector<32x1xf32> to vector<32x32xf32>
    %337 = arith.mulf %327, %336 : vector<32x32xf32>
    %338 = vector.broadcast %320 : vector<1x32xf32> to vector<32x32xf32>
    %339 = arith.mulf %337, %338 : vector<32x32xf32>
    %340 = vector.broadcast %321 : vector<1x32xf32> to vector<32x32xf32>
    %341 = arith.addf %339, %340 : vector<32x32xf32>
    %342 = arith.truncf %341 : vector<32x32xf32> to vector<32x32xbf16>
    %c0_101 = arith.constant 0 : index
    %c0_102 = arith.constant 0 : index
    %343 = vector.load %arg15[%c0_101, %c0_102] : memref<32x64xbf16, #tpu.memory_space<vmem>>, vector<32x64xbf16>
    %cst_103 = arith.constant dense<0.000000e+00> : vector<32x64xf32>
    %344 = tpu.matmul %342, %343, %cst_103 {dimension_numbers = #tpu.dot_dimension_numbers<[1], [0], [0], [1], [0, 0, 1, 1], [], []>} : vector<32x32xbf16>, vector<32x64xbf16>, vector<32x64xf32> -> vector<32x64xf32>
    %c0_104 = arith.constant 0 : index
    %c0_105 = arith.constant 0 : index
    %345 = vector.load %arg16[%c0_104, %c0_105] : memref<1x64xf32, #tpu.memory_space<vmem>>, vector<1x64xf32>
    %346 = vector.broadcast %345 : vector<1x64xf32> to vector<32x64xf32>
    %347 = arith.addf %344, %346 : vector<32x64xf32>
    %cst_106 = arith.constant 0.000000e+00 : f32
    %348 = vector.broadcast %cst_106 : f32 to vector<32x64xf32>
    %349 = arith.maximumf %347, %348 : vector<32x64xf32>
    %350 = arith.truncf %349 : vector<32x64xf32> to vector<32x64xbf16>
    %c0_107 = arith.constant 0 : index
    %c0_108 = arith.constant 0 : index
    %351 = vector.load %arg17[%c0_107, %c0_108] : memref<64x32xbf16, #tpu.memory_space<vmem>>, vector<64x32xbf16>
    %cst_109 = arith.constant dense<0.000000e+00> : vector<32x32xf32>
    %352 = tpu.matmul %350, %351, %cst_109 {dimension_numbers = #tpu.dot_dimension_numbers<[1], [0], [0], [1], [0, 0, 1, 1], [], []>} : vector<32x64xbf16>, vector<64x32xbf16>, vector<32x32xf32> -> vector<32x32xf32>
    %c0_110 = arith.constant 0 : index
    %c0_111 = arith.constant 0 : index
    %353 = vector.load %arg18[%c0_110, %c0_111] : memref<1x32xf32, #tpu.memory_space<vmem>>, vector<1x32xf32>
    %354 = vector.broadcast %353 : vector<1x32xf32> to vector<32x32xf32>
    %355 = arith.addf %352, %354 : vector<32x32xf32>
    %356 = arith.addf %341, %355 : vector<32x32xf32>
    %c0_112 = arith.constant 0 : index
    %c0_113 = arith.constant 0 : index
    %357 = vector.load %arg19[%c0_112, %c0_113] : memref<1x32xf32, #tpu.memory_space<vmem>>, vector<1x32xf32>
    %c0_114 = arith.constant 0 : index
    %c0_115 = arith.constant 0 : index
    %358 = vector.load %arg20[%c0_114, %c0_115] : memref<1x32xf32, #tpu.memory_space<vmem>>, vector<1x32xf32>
    %cst_116 = arith.constant dense<0.000000e+00> : vector<32xf32>
    %359 = vector.multi_reduction <add>, %356, %cst_116 [1] : vector<32x32xf32> to vector<32xf32>
    %360 = vector.shape_cast %359 : vector<32xf32> to vector<32x1xf32>
    %cst_117 = arith.constant 3.200000e+01 : f32
    %361 = vector.broadcast %cst_117 : f32 to vector<32x1xf32>
    %362 = arith.divf %360, %361 : vector<32x1xf32>
    %363 = vector.broadcast %362 : vector<32x1xf32> to vector<32x32xf32>
    %364 = arith.subf %356, %363 : vector<32x32xf32>
    %365 = arith.mulf %364, %364 : vector<32x32xf32>
    %cst_118 = arith.constant dense<0.000000e+00> : vector<32xf32>
    %366 = vector.multi_reduction <add>, %365, %cst_118 [1] : vector<32x32xf32> to vector<32xf32>
    %367 = vector.shape_cast %366 : vector<32xf32> to vector<32x1xf32>
    %cst_119 = arith.constant 3.200000e+01 : f32
    %368 = vector.broadcast %cst_119 : f32 to vector<32x1xf32>
    %369 = arith.divf %367, %368 : vector<32x1xf32>
    %cst_120 = arith.constant 9.99999974E-6 : f32
    %370 = vector.broadcast %cst_120 : f32 to vector<32x1xf32>
    %371 = arith.addf %369, %370 : vector<32x1xf32>
    %372 = math.rsqrt %371 : vector<32x1xf32>
    %373 = vector.broadcast %372 : vector<32x1xf32> to vector<32x32xf32>
    %374 = arith.mulf %364, %373 : vector<32x32xf32>
    %375 = vector.broadcast %357 : vector<1x32xf32> to vector<32x32xf32>
    %376 = arith.mulf %374, %375 : vector<32x32xf32>
    %377 = vector.broadcast %358 : vector<1x32xf32> to vector<32x32xf32>
    %378 = arith.addf %376, %377 : vector<32x32xf32>
    %379 = vector.shape_cast %378 : vector<32x32xf32> to vector<4x8x32xf32>
    %c0_121 = arith.constant 0 : index
    %c0_122 = arith.constant 0 : index
    %c0_123 = arith.constant 0 : index
    %380 = vector.load %arg21[%c0_121, %c0_122, %c0_123] : memref<4x8x32xf32, #tpu.memory_space<vmem>>, vector<4x8x32xf32>
    tpu.vector_store %arg21[%c0_121, %c0_122, %c0_123], %379 {strides = array<i32>} : memref<4x8x32xf32, #tpu.memory_space<vmem>>, vector<4x8x32xf32>,
    return
  }
  func.func @transform_0(%arg0: i32) -> (i32, i32) {
    %c0_i32 = arith.constant 0 : i32
    %c0_i32_0 = arith.constant 0 : i32
    %c0_i32_1 = arith.constant 0 : i32
    return %c0_i32, %c0_i32_0 : i32, i32
  }
  func.func @transform_1(%arg0: i32) -> (i32, i32, i32) {
    %c0_i32 = arith.constant 0 : i32
    %c0_i32_0 = arith.constant 0 : i32
    %c0_i32_1 = arith.constant 0 : i32
    return %arg0, %c0_i32, %c0_i32_0 : i32, i32, i32
  }
  func.func @transform_2(%arg0: i32) -> (i32, i32, i32) {
    %c0_i32 = arith.constant 0 : i32
    %c0_i32_0 = arith.constant 0 : i32
    %c0_i32_1 = arith.constant 0 : i32
    return %arg0, %c0_i32, %c0_i32_0 : i32, i32, i32
  }
  func.func @transform_3(%arg0: i32) -> (i32, i32, i32) {
    %c0_i32 = arith.constant 0 : i32
    %c0_i32_0 = arith.constant 0 : i32
    %c0_i32_1 = arith.constant 0 : i32
    return %arg0, %c0_i32, %c0_i32_0 : i32, i32, i32
  }
  func.func @transform_4(%arg0: i32) -> (i32, i32) {
    %c0_i32 = arith.constant 0 : i32
    %c0_i32_0 = arith.constant 0 : i32
    %c0_i32_1 = arith.constant 0 : i32
    return %c0_i32, %c0_i32_0 : i32, i32
  }
  func.func @transform_5(%arg0: i32) -> (i32, i32) {
    %c0_i32 = arith.constant 0 : i32
    %c0_i32_0 = arith.constant 0 : i32
    %c0_i32_1 = arith.constant 0 : i32
    return %c0_i32, %c0_i32_0 : i32, i32
  }
  func.func @transform_6(%arg0: i32) -> (i32, i32) {
    %c0_i32 = arith.constant 0 : i32
    %c0_i32_0 = arith.constant 0 : i32
    %c0_i32_1 = arith.constant 0 : i32
    return %c0_i32, %c0_i32_0 : i32, i32
  }
  func.func @transform_7(%arg0: i32) -> (i32, i32) {
    %c0_i32 = arith.constant 0 : i32
    %c0_i32_0 = arith.constant 0 : i32
    %c0_i32_1 = arith.constant 0 : i32
    return %c0_i32, %c0_i32_0 : i32, i32
  }
  func.func @transform_8(%arg0: i32) -> (i32, i32) {
    %c0_i32 = arith.constant 0 : i32
    %c0_i32_0 = arith.constant 0 : i32
    %c0_i32_1 = arith.constant 0 : i32
    return %c0_i32, %c0_i32_0 : i32, i32
  }
  func.func @transform_9(%arg0: i32) -> (i32, i32) {
    %c0_i32 = arith.constant 0 : i32
    %c0_i32_0 = arith.constant 0 : i32
    %c0_i32_1 = arith.constant 0 : i32
    return %c0_i32, %c0_i32_0 : i32, i32
  }
  func.func @transform_10(%arg0: i32) -> (i32, i32) {
    %c0_i32 = arith.constant 0 : i32
    %c0_i32_0 = arith.constant 0 : i32
    %c0_i32_1 = arith.constant 0 : i32
    return %c0_i32, %c0_i32_0 : i32, i32
  }
  func.func @transform_11(%arg0: i32) -> (i32, i32) {
    %c0_i32 = arith.constant 0 : i32
    %c0_i32_0 = arith.constant 0 : i32
    %c0_i32_1 = arith.constant 0 : i32
    return %c0_i32, %c0_i32_0 : i32, i32
  }
  func.func @transform_12(%arg0: i32) -> (i32, i32) {
    %c0_i32 = arith.constant 0 : i32
    %c0_i32_0 = arith.constant 0 : i32
    %c0_i32_1 = arith.constant 0 : i32
    return %c0_i32, %c0_i32_0 : i32, i32
  }
  func.func @transform_13(%arg0: i32) -> (i32, i32) {
    %c0_i32 = arith.constant 0 : i32
    %c0_i32_0 = arith.constant 0 : i32
    %c0_i32_1 = arith.constant 0 : i32
    return %c0_i32, %c0_i32_0 : i32, i32
  }
  func.func @transform_14(%arg0: i32) -> (i32, i32) {
    %c0_i32 = arith.constant 0 : i32
    %c0_i32_0 = arith.constant 0 : i32
    %c0_i32_1 = arith.constant 0 : i32
    return %c0_i32, %c0_i32_0 : i32, i32
  }
  func.func @transform_15(%arg0: i32) -> (i32, i32) {
    %c0_i32 = arith.constant 0 : i32
    %c0_i32_0 = arith.constant 0 : i32
    %c0_i32_1 = arith.constant 0 : i32
    return %c0_i32, %c0_i32_0 : i32, i32
  }
  func.func @transform_16(%arg0: i32) -> (i32, i32) {
    %c0_i32 = arith.constant 0 : i32
    %c0_i32_0 = arith.constant 0 : i32
    %c0_i32_1 = arith.constant 0 : i32
    return %c0_i32, %c0_i32_0 : i32, i32
  }
  func.func @transform_17(%arg0: i32) -> (i32, i32) {
    %c0_i32 = arith.constant 0 : i32
    %c0_i32_0 = arith.constant 0 : i32
    %c0_i32_1 = arith.constant 0 : i32
    return %c0_i32, %c0_i32_0 : i32, i32
  }
  func.func @transform_18(%arg0: i32) -> (i32, i32) {
    %c0_i32 = arith.constant 0 : i32
    %c0_i32_0 = arith.constant 0 : i32
    %c0_i32_1 = arith.constant 0 : i32
    return %c0_i32, %c0_i32_0 : i32, i32
  }
  func.func @transform_19(%arg0: i32) -> (i32, i32) {
    %c0_i32 = arith.constant 0 : i32
    %c0_i32_0 = arith.constant 0 : i32
    %c0_i32_1 = arith.constant 0 : i32
    return %c0_i32, %c0_i32_0 : i32, i32
  }
  func.func @transform_20(%arg0: i32) -> (i32, i32, i32) {
    %c0_i32 = arith.constant 0 : i32
    %c0_i32_0 = arith.constant 0 : i32
    %c0_i32_1 = arith.constant 0 : i32
    return %arg0, %c0_i32, %c0_i32_0 : i32, i32, i32
  }
}

</mosaic_0001>

<llo_original>
// kernel: tpu_custom_call.1
$region0: #{tpu_custom_call.1}
  #allocation0 [shape = 'u32[]', space=smem, size = 0x4, offset = 0x4, fixed_abs, tag = 'smem constant byte address 0x4 - core index']
  #allocation1 [shape = 'u32[144,128]{1,0:T(1,128)}', space=vmem, size = 0x12000, scoped, tag = 'internal scratch']
  %s0 = inlined_call_operand.vmem [shape: f32[1,4], index: 0, kind: input, shape index: {}]
  %s1 = inlined_call_operand.vmem [shape: f32[4,8,32], index: 1, kind: input, shape index: {}]
  %s2 = inlined_call_operand.vmem [shape: bf16[4,8,32], index: 2, kind: input, shape index: {}]
  %s3 = inlined_call_operand.hbm [shape: bf16[4,8,32], index: 3, kind: input, shape index: {}]
  %s4 = inlined_call_operand.hbm [shape: bf16[32,32], index: 4, kind: input, shape index: {}]
  %s5 = inlined_call_operand.hbm [shape: f32[1,32], index: 5, kind: input, shape index: {}]
  %s6 = inlined_call_operand.hbm [shape: bf16[32,32], index: 6, kind: input, shape index: {}]
  %s7 = inlined_call_operand.hbm [shape: f32[1,32], index: 7, kind: input, shape index: {}]
  %s8 = inlined_call_operand.hbm [shape: bf16[32,32], index: 8, kind: input, shape index: {}]
  %s9 = inlined_call_operand.hbm [shape: f32[1,32], index: 9, kind: input, shape index: {}]
  %s10 = inlined_call_operand.vmem [shape: bf16[32,32], index: 10, kind: input, shape index: {}]
  %s11 = inlined_call_operand.hbm [shape: f32[1,32], index: 11, kind: input, shape index: {}]
  %s12 = inlined_call_operand.hbm [shape: f32[1,32], index: 12, kind: input, shape index: {}]
  %s13 = inlined_call_operand.hbm [shape: f32[1,32], index: 13, kind: input, shape index: {}]
  %s14 = inlined_call_operand.vmem [shape: bf16[32,64], index: 14, kind: input, shape index: {}]
  %s15 = inlined_call_operand.vmem [shape: f32[1,64], index: 15, kind: input, shape index: {}]
  %s16 = inlined_call_operand.vmem [shape: bf16[64,32], index: 16, kind: input, shape index: {}]
  %s17 = inlined_call_operand.vmem [shape: f32[1,32], index: 17, kind: input, shape index: {}]
  %s18 = inlined_call_operand.vmem [shape: f32[1,32], index: 18, kind: input, shape index: {}]
  %s19 = inlined_call_operand.vmem [shape: f32[1,32], index: 19, kind: input, shape index: {}]
  %s20 = inlined_call_operand.hbm [shape: f32[4,8,32], index: 20, kind: output, shape index: {}]
  %s21 = sld [smem:[#allocation0]]
  $region134: #{tpu_custom_call.1} parent=0
    _
  %s23 = ssub.s32 1, %s21
  %s24 = scalar_select 0, %s23, %s21
  $region1: #{tpu_custom_call.1} parent=0
    #allocation2 [shape = 'u8[512]{0}', space=smem, size = 0x200, scoped, tag = 'input window, operand 0, single buffered']
    #allocation3 [shape = 's32[1]{0}', space=sflag, size = 0x4, scoped, tag = 'scoped memory for tpu_custom_call.1']
    #allocation4 [shape = 's32[1]{0}', space=sflag, size = 0x4, scoped, tag = 'scoped memory for tpu_custom_call.1']
    #allocation5 [shape = 's32[1]{0}', space=sflag, size = 0x4, scoped, tag = 'scoped memory for tpu_custom_call.1']
    #allocation6 [shape = 'u8[8192]{0}', space=vmem, size = 0x2000, scoped, tag = 'input window, operand 3, single buffered']
    #allocation7 [shape = 'u8[8192]{0}', space=vmem, size = 0x2000, scoped, tag = 'input window, operand 4, single buffered']
    #allocation8 [shape = 's32[1]{0}', space=sflag, size = 0x4, scoped, tag = 'scoped memory for tpu_custom_call.1']
    #allocation9 [shape = 'u8[512]{0}', space=vmem, size = 0x400, scoped, tag = 'input window, operand 5, single buffered']
    #allocation10 [shape = 'u8[8192]{0}', space=vmem, size = 0x2000, scoped, tag = 'input window, operand 6, single buffered']
    #allocation11 [shape = 's32[1]{0}', space=sflag, size = 0x4, scoped, tag = 'scoped memory for tpu_custom_call.1']
    #allocation12 [shape = 'u8[512]{0}', space=vmem, size = 0x400, scoped, tag = 'input window, operand 7, single buffered']
    #allocation13 [shape = 'u8[8192]{0}', space=vmem, size = 0x2000, scoped, tag = 'input window, operand 8, single buffered']
    #allocation14 [shape = 's32[1]{0}', space=sflag, size = 0x4, scoped, tag = 'scoped memory for tpu_custom_call.1']
    #allocation15 [shape = 'u8[512]{0}', space=vmem, size = 0x400, scoped, tag = 'input window, operand 9, single buffered']
    #allocation16 [shape = 'u8[512]{0}', space=vmem, size = 0x400, scoped, tag = 'input window, operand 11, single buffered']
    #allocation17 [shape = 's32[1]{0}', space=sflag, size = 0x4, scoped, tag = 'scoped memory for tpu_custom_call.1']
    #allocation18 [shape = 'u8[512]{0}', space=vmem, size = 0x400, scoped, tag = 'input window, operand 12, single buffered']
    #allocation19 [shape = 'u8[512]{0}', space=vmem, size = 0x400, scoped, tag = 'input window, operand 13, single buffered']
    #allocation20 [shape = 's32[1]{0}', space=sflag, size = 0x4, scoped, tag = 'scoped memory for tpu_custom_call.1']
    #allocation21 [shape = 'u8[16384]{0}', space=vmem, size = 0x4000, scoped, tag = 'output window, operand 0, single buffered']
    %25 = vsyncpa [#allocation5], 0
    %26 = vsyncpa [#allocation3], 0
    %27 = vsyncpa [#allocation8], 0
    %28 = vsyncpa [#allocation11], 0
    %29 = vsyncpa [#allocation14], 0
    %30 = vsyncpa [#allocation17], 0
    %31 = vsyncpa [#allocation20], 0
    %32 = vsyncpa [#allocation4], 0
    // Predicated region
    $region2: #{tpu_custom_call.1} parent=1 // pred_check
      _
    $region3: #{tpu_custom_call.1} parent=1 // pred_check_branch
      %34 = sbr.rel (0) target = $region5
    $region4: #{tpu_custom_call.1} parent=1 // pred_region
      %s36 = ssub.s32 16, 16
      %37 = vsyncadd [#allocation5], %s36
      %s39 = sshll.u32 %s0, 4
      %s40 = int_to_ptr.vmem [resolvable:$true] %s39
      %42 = dma.vmem_to_smem %s40, 16, [#allocation2], [#allocation5]
    $region5: #{tpu_custom_call.1} parent=1 // pred_fallthru
      _
    // Predicated region
    $region6: #{tpu_custom_call.1} parent=1 // pred_check
      _
    $region7: #{tpu_custom_call.1} parent=1 // pred_check_branch
      %44 = sbr.rel (0) target = $region9
    $region8: #{tpu_custom_call.1} parent=1 // pred_region
      _
    $region9: #{tpu_custom_call.1} parent=1 // pred_fallthru
      _
    // Predicated region
    $region10: #{tpu_custom_call.1} parent=1 // pred_check
      _
    $region11: #{tpu_custom_call.1} parent=1 // pred_check_branch
      %46 = sbr.rel (0) target = $region13
    $region12: #{tpu_custom_call.1} parent=1 // pred_region
      _
    $region13: #{tpu_custom_call.1} parent=1 // pred_fallthru
      _
    // Predicated region
    $region14: #{tpu_custom_call.1} parent=1 // pred_check
      _
    $region15: #{tpu_custom_call.1} parent=1 // pred_check_branch
      %48 = sbr.rel (0) target = $region17
    $region16: #{tpu_custom_call.1} parent=1 // pred_region
      %s50 = ssub.s32 256, 256
      %51 = vsyncadd [#allocation3], %s50
      %s52 = sshll.u32 [#allocation6], 4
      %s53 = int_to_ptr.vmem [resolvable:$true] %s52
      %58 = dma.hbm_to_vmem [thread:$0]  %s3, 256, %s53, [#allocation3], 64, 64, 4
    $region17: #{tpu_custom_call.1} parent=1 // pred_fallthru
      _
    // Predicated region
    $region18: #{tpu_custom_call.1} parent=1 // pred_check
      _
    $region19: #{tpu_custom_call.1} parent=1 // pred_check_branch
      %60 = sbr.rel (0) target = $region21
    $region20: #{tpu_custom_call.1} parent=1 // pred_region
      %s62 = ssub.s32 256, 256
      %63 = vsyncadd [#allocation8], %s62
      %s64 = sshll.u32 [#allocation7], 4
      %s65 = int_to_ptr.vmem [resolvable:$true] %s64
      %70 = dma.hbm_to_vmem [thread:$0]  %s4, 256, %s65, [#allocation8], 64, 64, 4
    $region21: #{tpu_custom_call.1} parent=1 // pred_fallthru
      _
    // Predicated region
    $region22: #{tpu_custom_call.1} parent=1 // pred_check
      _
    $region23: #{tpu_custom_call.1} parent=1 // pred_check_branch
      %72 = sbr.rel (0) target = $region25
    $region24: #{tpu_custom_call.1} parent=1 // pred_region
      %s74 = ssub.s32 16, 16
      %75 = vsyncadd [#allocation8], %s74
      %s77 = sshll.u32 [#allocation9], 4
      %s78 = int_to_ptr.vmem [resolvable:$true] %s77
      %80 = dma.hbm_to_vmem [thread:$0]  %s5, 16, %s78, [#allocation8]
    $region25: #{tpu_custom_call.1} parent=1 // pred_fallthru
      _
    // Predicated region
    $region26: #{tpu_custom_call.1} parent=1 // pred_check
      _
    $region27: #{tpu_custom_call.1} parent=1 // pred_check_branch
      %82 = sbr.rel (0) target = $region29
    $region28: #{tpu_custom_call.1} parent=1 // pred_region
      %s84 = ssub.s32 256, 256
      %85 = vsyncadd [#allocation11], %s84
      %s86 = sshll.u32 [#allocation10], 4
      %s87 = int_to_ptr.vmem [resolvable:$true] %s86
      %92 = dma.hbm_to_vmem [thread:$0]  %s6, 256, %s87, [#allocation11], 64, 64, 4
    $region29: #{tpu_custom_call.1} parent=1 // pred_fallthru
      _
    // Predicated region
    $region30: #{tpu_custom_call.1} parent=1 // pred_check
      _
    $region31: #{tpu_custom_call.1} parent=1 // pred_check_branch
      %94 = sbr.rel (0) target = $region33
    $region32: #{tpu_custom_call.1} parent=1 // pred_region
      %s96 = ssub.s32 16, 16
      %97 = vsyncadd [#allocation11], %s96
      %s99 = sshll.u32 [#allocation12], 4
      %s100 = int_to_ptr.vmem [resolvable:$true] %s99
      %102 = dma.hbm_to_vmem [thread:$0]  %s7, 16, %s100, [#allocation11]
    $region33: #{tpu_custom_call.1} parent=1 // pred_fallthru
      _
    // Predicated region
    $region34: #{tpu_custom_call.1} parent=1 // pred_check
      _
    $region35: #{tpu_custom_call.1} parent=1 // pred_check_branch
      %104 = sbr.rel (0) target = $region37
    $region36: #{tpu_custom_call.1} parent=1 // pred_region
      %s106 = ssub.s32 256, 256
      %107 = vsyncadd [#allocation14], %s106
      %s108 = sshll.u32 [#allocation13], 4
      %s109 = int_to_ptr.vmem [resolvable:$true] %s108
      %114 = dma.hbm_to_vmem [thread:$0]  %s8, 256, %s109, [#allocation14], 64, 64, 4
    $region37: #{tpu_custom_call.1} parent=1 // pred_fallthru
      _
    // Predicated region
    $region38: #{tpu_custom_call.1} parent=1 // pred_check
      _
    $region39: #{tpu_custom_call.1} parent=1 // pred_check_branch
      %116 = sbr.rel (0) target = $region41
    $region40: #{tpu_custom_call.1} parent=1 // pred_region
      %s118 = ssub.s32 16, 16
      %119 = vsyncadd [#allocation14], %s118
      %s121 = sshll.u32 [#allocation15], 4
      %s122 = int_to_ptr.vmem [resolvable:$true] %s121
      %124 = dma.hbm_to_vmem [thread:$0]  %s9, 16, %s122, [#allocation14]
    $region41: #{tpu_custom_call.1} parent=1 // pred_fallthru
      _
    // Predicated region
    $region42: #{tpu_custom_call.1} parent=1 // pred_check
      _
    $region43: #{tpu_custom_call.1} parent=1 // pred_check_branch
      %126 = sbr.rel (0) target = $region45
    $region44: #{tpu_custom_call.1} parent=1 // pred_region
      _
    $region45: #{tpu_custom_call.1} parent=1 // pred_fallthru
      _
    // Predicated region
    $region46: #{tpu_custom_call.1} parent=1 // pred_check
      _
    $region47: #{tpu_custom_call.1} parent=1 // pred_check_branch
      %128 = sbr.rel (0) target = $region49
    $region48: #{tpu_custom_call.1} parent=1 // pred_region
      %s130 = ssub.s32 16, 16
      %131 = vsyncadd [#allocation17], %s130
      %s133 = sshll.u32 [#allocation16], 4
      %s134 = int_to_ptr.vmem [resolvable:$true] %s133
      %136 = dma.hbm_to_vmem [thread:$0]  %s11, 16, %s134, [#allocation17]
    $region49: #{tpu_custom_call.1} parent=1 // pred_fallthru
      _
    // Predicated region
    $region50: #{tpu_custom_call.1} parent=1 // pred_check
      _
    $region51: #{tpu_custom_call.1} parent=1 // pred_check_branch
      %138 = sbr.rel (0) target = $region53
    $region52: #{tpu_custom_call.1} parent=1 // pred_region
      %s140 = ssub.s32 16, 16
      %141 = vsyncadd [#allocation17], %s140
      %s143 = sshll.u32 [#allocation18], 4
      %s144 = int_to_ptr.vmem [resolvable:$true] %s143
      %146 = dma.hbm_to_vmem [thread:$0]  %s12, 16, %s144, [#allocation17]
    $region53: #{tpu_custom_call.1} parent=1 // pred_fallthru
      _
    // Predicated region
    $region54: #{tpu_custom_call.1} parent=1 // pred_check
      _
    $region55: #{tpu_custom_call.1} parent=1 // pred_check_branch
      %148 = sbr.rel (0) target = $region57
    $region56: #{tpu_custom_call.1} parent=1 // pred_region
      %s150 = ssub.s32 16, 16
      %151 = vsyncadd [#allocation20], %s150
      %s153 = sshll.u32 [#allocation19], 4
      %s154 = int_to_ptr.vmem [resolvable:$true] %s153
      %156 = dma.hbm_to_vmem [thread:$0]  %s13, 16, %s154, [#allocation20]
    $region57: #{tpu_custom_call.1} parent=1 // pred_fallthru
      _
    // Predicated region
    $region58: #{tpu_custom_call.1} parent=1 // pred_check
      _
    $region59: #{tpu_custom_call.1} parent=1 // pred_check_branch
      %158 = sbr.rel (0) target = $region61
    $region60: #{tpu_custom_call.1} parent=1 // pred_region
      _
    $region61: #{tpu_custom_call.1} parent=1 // pred_fallthru
      _
    // Predicated region
    $region62: #{tpu_custom_call.1} parent=1 // pred_check
      _
    $region63: #{tpu_custom_call.1} parent=1 // pred_check_branch
      %160 = sbr.rel (0) target = $region65
    $region64: #{tpu_custom_call.1} parent=1 // pred_region
      _
    $region65: #{tpu_custom_call.1} parent=1 // pred_fallthru
      _
    // Predicated region
    $region66: #{tpu_custom_call.1} parent=1 // pred_check
      _
    $region67: #{tpu_custom_call.1} parent=1 // pred_check_branch
      %162 = sbr.rel (0) target = $region69
    $region68: #{tpu_custom_call.1} parent=1 // pred_region
      _
    $region69: #{tpu_custom_call.1} parent=1 // pred_fallthru
      _
    // Predicated region
    $region70: #{tpu_custom_call.1} parent=1 // pred_check
      _
    $region71: #{tpu_custom_call.1} parent=1 // pred_check_branch
      %164 = sbr.rel (0) target = $region73
    $region72: #{tpu_custom_call.1} parent=1 // pred_region
      _
    $region73: #{tpu_custom_call.1} parent=1 // pred_fallthru
      _
    // Predicated region
    $region74: #{tpu_custom_call.1} parent=1 // pred_check
      _
    $region75: #{tpu_custom_call.1} parent=1 // pred_check_branch
      %166 = sbr.rel (0) target = $region77
    $region76: #{tpu_custom_call.1} parent=1 // pred_region
      _
    $region77: #{tpu_custom_call.1} parent=1 // pred_fallthru
      _
    // Predicated region
    $region78: #{tpu_custom_call.1} parent=1 // pred_check
      _
    $region79: #{tpu_custom_call.1} parent=1 // pred_check_branch
      %168 = sbr.rel (0) target = $region81
    $region80: #{tpu_custom_call.1} parent=1 // pred_region
      _
    $region81: #{tpu_custom_call.1} parent=1 // pred_fallthru
      _
    // Predicated region
    $region82: #{tpu_custom_call.1} parent=1 // pred_check
      _
    $region83: #{tpu_custom_call.1} parent=1 // pred_check_branch
      %170 = sbr.rel (0) target = $region85
    $region84: #{tpu_custom_call.1} parent=1 // pred_region
      %171 = dma.done [#allocation5], 16
    $region85: #{tpu_custom_call.1} parent=1 // pred_fallthru
      _
    // Predicated region
    $region86: #{tpu_custom_call.1} parent=1 // pred_check
      _
    $region87: #{tpu_custom_call.1} parent=1 // pred_check_branch
      %173 = sbr.rel (0) target = $region89
    $region88: #{tpu_custom_call.1} parent=1 // pred_region
      %174 = dma.done [#allocation3], 256
    $region89: #{tpu_custom_call.1} parent=1 // pred_fallthru
      _
    // Predicated region
    $region90: #{tpu_custom_call.1} parent=1 // pred_check
      _
    $region91: #{tpu_custom_call.1} parent=1 // pred_check_branch
      %176 = sbr.rel (0) target = $region93
    $region92: #{tpu_custom_call.1} parent=1 // pred_region
      %177 = dma.done [#allocation8], 256
    $region93: #{tpu_custom_call.1} parent=1 // pred_fallthru
      _
    // Predicated region
    $region94: #{tpu_custom_call.1} parent=1 // pred_check
      _
    $region95: #{tpu_custom_call.1} parent=1 // pred_check_branch
      %179 = sbr.rel (0) target = $region97
    $region96: #{tpu_custom_call.1} parent=1 // pred_region
      %180 = dma.done [#allocation8], 16
    $region97: #{tpu_custom_call.1} parent=1 // pred_fallthru
      _
    // Predicated region
    $region98: #{tpu_custom_call.1} parent=1 // pred_check
      _
    $region99: #{tpu_custom_call.1} parent=1 // pred_check_branch
      %182 = sbr.rel (0) target = $region101
    $region100: #{tpu_custom_call.1} parent=1 // pred_region
      %183 = dma.done [#allocation11], 256
    $region101: #{tpu_custom_call.1} parent=1 // pred_fallthru
      _
    // Predicated region
    $region102: #{tpu_custom_call.1} parent=1 // pred_check
      _
    $region103: #{tpu_custom_call.1} parent=1 // pred_check_branch
      %185 = sbr.rel (0) target = $region105
    $region104: #{tpu_custom_call.1} parent=1 // pred_region
      %186 = dma.done [#allocation11], 16
    $region105: #{tpu_custom_call.1} parent=1 // pred_fallthru
      _
    // Predicated region
    $region106: #{tpu_custom_call.1} parent=1 // pred_check
      _
    $region107: #{tpu_custom_call.1} parent=1 // pred_check_branch
      %188 = sbr.rel (0) target = $region109
    $region108: #{tpu_custom_call.1} parent=1 // pred_region
      %189 = dma.done [#allocation14], 256
    $region109: #{tpu_custom_call.1} parent=1 // pred_fallthru
      _
    // Predicated region
    $region110: #{tpu_custom_call.1} parent=1 // pred_check
      _
    $region111: #{tpu_custom_call.1} parent=1 // pred_check_branch
      %191 = sbr.rel (0) target = $region113
    $region112: #{tpu_custom_call.1} parent=1 // pred_region
      %192 = dma.done [#allocation14], 16
    $region113: #{tpu_custom_call.1} parent=1 // pred_fallthru
      _
    // Predicated region
    $region114: #{tpu_custom_call.1} parent=1 // pred_check
      _
    $region115: #{tpu_custom_call.1} parent=1 // pred_check_branch
      %194 = sbr.rel (0) target = $region117
    $region116: #{tpu_custom_call.1} parent=1 // pred_region
      %195 = dma.done [#allocation17], 16
    $region117: #{tpu_custom_call.1} parent=1 // pred_fallthru
      _
    // Predicated region
    $region118: #{tpu_custom_call.1} parent=1 // pred_check
      _
    $region119: #{tpu_custom_call.1} parent=1 // pred_check_branch
      %197 = sbr.rel (0) target = $region121
    $region120: #{tpu_custom_call.1} parent=1 // pred_region
      %198 = dma.done [#allocation17], 16
    $region121: #{tpu_custom_call.1} parent=1 // pred_fallthru
      _
    // Predicated region
    $region122: #{tpu_custom_call.1} parent=1 // pred_check
      _
    $region123: #{tpu_custom_call.1} parent=1 // pred_check_branch
      %200 = sbr.rel (0) target = $region125
    $region124: #{tpu_custom_call.1} parent=1 // pred_region
      %201 = dma.done [#allocation20], 16
    $region125: #{tpu_custom_call.1} parent=1 // pred_fallthru
      _
    %202 = sfence
    %v204 = vld [vmem:[%s1] sm:$0xff]
    %v205 = vld [vmem:[%s1 + $0x8] sm:$0xff]
    %v206 = vld [vmem:[%s1 + $0x10] sm:$0xff]
    %v207 = vld [vmem:[%s1 + $0x18] sm:$0xff]
    %v208 = vpack.c.bf16 %v205, %v204
    %v209 = vpack.c.bf16 %v207, %v206
    %v210 = vld [vmem:[%s2] sm:$0xf]
    %v211 = vld [vmem:[%s2 + $0x4] sm:$0xf]
    %v212 = vld [vmem:[%s2 + $0x8] sm:$0xf]
    %v213 = vld [vmem:[%s2 + $0xc] sm:$0xf]
    %v214 = vld [vmem:[#allocation6] sm:$0xf]
    %v215 = vld [vmem:[#allocation6 + $0x4] sm:$0xf]
    %v216 = vld [vmem:[#allocation6 + $0x8] sm:$0xf]
    %v217 = vld [vmem:[#allocation6 + $0xc] sm:$0xf]
    %v218 = vld [vmem:[#allocation7] sm:$0xf]
    %v219 = vld [vmem:[#allocation7 + $0x4] sm:$0xf]
    %v220 = vld [vmem:[#allocation7 + $0x8] sm:$0xf]
    %v221 = vld [vmem:[#allocation7 + $0xc] sm:$0xf]
    %v222 = vld [vmem:[#allocation9] sm:$0x1]
    %v224 = vlaneseq
    %v225 = vshrl.u32 %v224, 7
    %v226 = vsub.s32 0, %v225
    %v227 = vrot.slane %v222, %v226
    %v233 = vunpack.c.l.b16 %v218
    %v234 = vunpack.c.l.b16 %v219
    %v235 = vunpack.c.l.b16 %v220
    %v236 = vunpack.c.l.b16 %v221
    %v237 = vpack.c.b16 %v234, %v233
    %v238 = vpack.c.b16 %v236, %v235
    %vm241 = vcmask 261120
    %v243 = vsel %vm241, %v208, 0
    %v246 = vsel %vm241, %v209, 0
    %248 = vmatprep.subr.bf16.mxu0 0
    %249 = vmatpush1.bf16.msra.mxu0 %v237
    %250 = vmatprep.subr.bf16.mxu0 0
    %251 = vmatpush1.bf16.msra.mxu0 %v238
    %252 = vmatprep.subr.bf16.mxu0 0
    %253 = vmatpush1.bf16.msra.mxu0 0
    %254 = vmatprep.subr.bf16.mxu0 0
    %255 = vmatpush1.bf16.msra.mxu0 0
    %256 = vmatprep.subr.bf16.mxu0 0
    %257 = vmatpush1.bf16.msra.mxu0 0
    %258 = vmatprep.subr.bf16.mxu0 0
    %259 = vmatpush1.bf16.msra.mxu0 0
    %260 = vmatprep.subr.bf16.mxu0 0
    %261 = vmatpush1.bf16.msra.mxu0 0
    %262 = vmatprep.subr.bf16.mxu0 0
    %263 = vmatpush1.bf16.msra.mxu0 0
    %264 = vmatprep.subr.bf16.mxu0 0
    %265 = vmatpush1.bf16.msra.mxu0 0
    %266 = vmatprep.subr.bf16.mxu0 0
    %267 = vmatpush1.bf16.msra.mxu0 0
    %268 = vmatprep.subr.bf16.mxu0 0
    %269 = vmatpush1.bf16.msra.mxu0 0
    %270 = vmatprep.subr.bf16.mxu0 0
    %271 = vmatpush1.bf16.msra.mxu0 0
    %272 = vmatprep.subr.bf16.mxu0 0
    %273 = vmatpush1.bf16.msra.mxu0 0
    %274 = vmatprep.subr.bf16.mxu0 0
    %275 = vmatpush1.bf16.msra.mxu0 0
    %276 = vmatprep.subr.bf16.mxu0 0
    %277 = vmatpush1.bf16.msra.mxu0 0
    %278 = vmatprep.subr.bf16.mxu0 0
    %279 = vmatpush1.bf16.msra.mxu0 0
    %280 = vmatprep.mubr.bf16.mxu0 0
    %281 = vmatmul.mubr.bf16.gmra.mrb[0].mxu0 %v243
    %v282 = vpop.f32.mrb[0].mxu0
    %v283 = vadd.f32 %v227, %v282
    %v284 = vpop.f32.mrb[0].mxu0
    %v285 = vpop.f32.mrb[0].mxu0
    %v286 = vadd.f32 %v227, %v285
    %v287 = vpop.f32.mrb[0].mxu0
    %288 = vmatprep.mubr.bf16.mxu0 0
    %289 = vmatmul.mubr.bf16.gmra.mrb[0].mxu0 %v246
    %v290 = vpop.f32.mrb[0].mxu0
    %v291 = vadd.f32 %v227, %v290
    %v292 = vpop.f32.mrb[0].mxu0
    %v293 = vpop.f32.mrb[0].mxu0
    %v294 = vadd.f32 %v227, %v293
    %v295 = vpop.f32.mrb[0].mxu0
    %296 = vdwg.mxu0
    %v297 = vld [vmem:[#allocation10] sm:$0xf]
    %v298 = vld [vmem:[#allocation10 + $0x4] sm:$0xf]
    %v299 = vld [vmem:[#allocation10 + $0x8] sm:$0xf]
    %v300 = vld [vmem:[#allocation10 + $0xc] sm:$0xf]
    %v301 = vld [vmem:[#allocation12] sm:$0x1]
    %v303 = vlaneseq
    %v304 = vshrl.u32 %v303, 7
    %v305 = vsub.s32 0, %v304
    %v306 = vrot.slane %v301, %v305
    %v312 = vunpack.c.l.b16 %v210
    %v313 = vunpack.c.l.b16 %v211
    %v314 = vunpack.c.l.b16 %v212
    %v315 = vunpack.c.l.b16 %v213
    %v316 = vpack.c.b16 %v313, %v312
    %v317 = vpack.c.b16 %v315, %v314
    %v322 = vunpack.c.l.b16 %v297
    %v323 = vunpack.c.l.b16 %v298
    %v324 = vunpack.c.l.b16 %v299
    %v325 = vunpack.c.l.b16 %v300
    %v326 = vpack.c.b16 %v323, %v322
    %v327 = vpack.c.b16 %v325, %v324
    %v331 = vsel %vm241, %v316, 0
    %v334 = vsel %vm241, %v317, 0
    %336 = vmatprep.subr.bf16.mxu0 0
    %337 = vmatpush1.bf16.msra.mxu0 %v326
    %338 = vmatprep.subr.bf16.mxu0 0
    %339 = vmatpush1.bf16.msra.mxu0 %v327
    %340 = vmatprep.subr.bf16.mxu0 0
    %341 = vmatpush1.bf16.msra.mxu0 0
    %342 = vmatprep.subr.bf16.mxu0 0
    %343 = vmatpush1.bf16.msra.mxu0 0
    %344 = vmatprep.subr.bf16.mxu0 0
    %345 = vmatpush1.bf16.msra.mxu0 0
    %346 = vmatprep.subr.bf16.mxu0 0
    %347 = vmatpush1.bf16.msra.mxu0 0
    %348 = vmatprep.subr.bf16.mxu0 0
    %349 = vmatpush1.bf16.msra.mxu0 0
    %350 = vmatprep.subr.bf16.mxu0 0
    %351 = vmatpush1.bf16.msra.mxu0 0
    %352 = vmatprep.subr.bf16.mxu0 0
    %353 = vmatpush1.bf16.msra.mxu0 0
    %354 = vmatprep.subr.bf16.mxu0 0
    %355 = vmatpush1.bf16.msra.mxu0 0
    %356 = vmatprep.subr.bf16.mxu0 0
    %357 = vmatpush1.bf16.msra.mxu0 0
    %358 = vmatprep.subr.bf16.mxu0 0
    %359 = vmatpush1.bf16.msra.mxu0 0
    %360 = vmatprep.subr.bf16.mxu0 0
    %361 = vmatpush1.bf16.msra.mxu0 0
    %362 = vmatprep.subr.bf16.mxu0 0
    %363 = vmatpush1.bf16.msra.mxu0 0
    %364 = vmatprep.subr.bf16.mxu0 0
    %365 = vmatpush1.bf16.msra.mxu0 0
    %366 = vmatprep.subr.bf16.mxu0 0
    %367 = vmatpush1.bf16.msra.mxu0 0
    %368 = vmatprep.mubr.bf16.mxu0 0
    %369 = vmatmul.mubr.bf16.gmra.mrb[0].mxu0 %v331
    %v370 = vpop.f32.mrb[0].mxu0
    %v371 = vadd.f32 %v306, %v370
    %v372 = vpop.f32.mrb[0].mxu0
    %v373 = vpop.f32.mrb[0].mxu0
    %v374 = vadd.f32 %v306, %v373
    %v375 = vpop.f32.mrb[0].mxu0
    %376 = vmatprep.mubr.bf16.mxu0 0
    %377 = vmatmul.mubr.bf16.gmra.mrb[0].mxu0 %v334
    %v378 = vpop.f32.mrb[0].mxu0
    %v379 = vadd.f32 %v306, %v378
    %v380 = vpop.f32.mrb[0].mxu0
    %v381 = vpop.f32.mrb[0].mxu0
    %v382 = vadd.f32 %v306, %v381
    %v383 = vpop.f32.mrb[0].mxu0
    %384 = vdwg.mxu0
    %v385 = vld [vmem:[#allocation13] sm:$0xf]
    %v386 = vld [vmem:[#allocation13 + $0x4] sm:$0xf]
    %v387 = vld [vmem:[#allocation13 + $0x8] sm:$0xf]
    %v388 = vld [vmem:[#allocation13 + $0xc] sm:$0xf]
    %v389 = vld [vmem:[#allocation15] sm:$0x1]
    %v391 = vlaneseq
    %v392 = vshrl.u32 %v391, 7
    %v393 = vsub.s32 0, %v392
    %v394 = vrot.slane %v389, %v393
    %v400 = vunpack.c.l.b16 %v214
    %v401 = vunpack.c.l.b16 %v215
    %v402 = vunpack.c.l.b16 %v216
    %v403 = vunpack.c.l.b16 %v217
    %v404 = vpack.c.b16 %v401, %v400
    %v405 = vpack.c.b16 %v403, %v402
    %v410 = vunpack.c.l.b16 %v385
    %v411 = vunpack.c.l.b16 %v386
    %v412 = vunpack.c.l.b16 %v387
    %v413 = vunpack.c.l.b16 %v388
    %v414 = vpack.c.b16 %v411, %v410
    %v415 = vpack.c.b16 %v413, %v412
    %v419 = vsel %vm241, %v404, 0
    %v422 = vsel %vm241, %v405, 0
    %424 = vmatprep.subr.bf16.mxu0 0
    %425 = vmatpush1.bf16.msra.mxu0 %v414
    %426 = vmatprep.subr.bf16.mxu0 0
    %427 = vmatpush1.bf16.msra.mxu0 %v415
    %428 = vmatprep.subr.bf16.mxu0 0
    %429 = vmatpush1.bf16.msra.mxu0 0
    %430 = vmatprep.subr.bf16.mxu0 0
    %431 = vmatpush1.bf16.msra.mxu0 0
    %432 = vmatprep.subr.bf16.mxu0 0
    %433 = vmatpush1.bf16.msra.mxu0 0
    %434 = vmatprep.subr.bf16.mxu0 0
    %435 = vmatpush1.bf16.msra.mxu0 0
    %436 = vmatprep.subr.bf16.mxu0 0
    %437 = vmatpush1.bf16.msra.mxu0 0
    %438 = vmatprep.subr.bf16.mxu0 0
    %439 = vmatpush1.bf16.msra.mxu0 0
    %440 = vmatprep.subr.bf16.mxu0 0
    %441 = vmatpush1.bf16.msra.mxu0 0
    %442 = vmatprep.subr.bf16.mxu0 0
    %443 = vmatpush1.bf16.msra.mxu0 0
    %444 = vmatprep.subr.bf16.mxu0 0
    %445 = vmatpush1.bf16.msra.mxu0 0
    %446 = vmatprep.subr.bf16.mxu0 0
    %447 = vmatpush1.bf16.msra.mxu0 0
    %448 = vmatprep.subr.bf16.mxu0 0
    %449 = vmatpush1.bf16.msra.mxu0 0
    %450 = vmatprep.subr.bf16.mxu0 0
    %451 = vmatpush1.bf16.msra.mxu0 0
    %452 = vmatprep.subr.bf16.mxu0 0
    %453 = vmatpush1.bf16.msra.mxu0 0
    %454 = vmatprep.subr.bf16.mxu0 0
    %455 = vmatpush1.bf16.msra.mxu0 0
    %456 = vmatprep.mubr.bf16.mxu0 0
    %457 = vmatmul.mubr.bf16.gmra.mrb[0].mxu0 %v419
    %v458 = vpop.f32.mrb[0].mxu0
    %v459 = vadd.f32 %v394, %v458
    %v460 = vpop.f32.mrb[0].mxu0
    %v461 = vpop.f32.mrb[0].mxu0
    %v462 = vadd.f32 %v394, %v461
    %v463 = vpop.f32.mrb[0].mxu0
    %464 = vmatprep.mubr.bf16.mxu0 0
    %465 = vmatmul.mubr.bf16.gmra.mrb[0].mxu0 %v422
    %v466 = vpop.f32.mrb[0].mxu0
    %v467 = vadd.f32 %v394, %v466
    %v468 = vpop.f32.mrb[0].mxu0
    %v469 = vpop.f32.mrb[0].mxu0
    %v470 = vadd.f32 %v394, %v469
    %v471 = vpop.f32.mrb[0].mxu0
    %472 = vdwg.mxu0
    %v473 = vlaneseq
    %v474 = vshrl.u32 %v473, 7
    %v475 = vlaneseq
    %v476 = vand.u32 %v475, 127
    %vm477 = vcmp.lt.s32.totalorder %v476, %v474
    %v478 = vsel %vm477, 1, 0
    %v479 = vcvt.s32.f32 %v478
    %v480 = vsub.s32 %v476, %v474
    %vm481 = vcmp.lt.s32.totalorder %v480, 0
    %v482 = vsub.s32 0, %v480
    %v483 = vsel %vm481, %v482, %v480
    %v484 = vcvt.s32.f32 %v483
    %vm485 = vcmp.gt.s32.totalorder %v474, %v476
    %v486 = vsel %vm485, 1, 0
    %v487 = vcvt.s32.f32 %v486
    %v488 = vpack.c.bf16 %v283, %v283
    %v489 = vpack.c.bf16 %v286, %v286
    %v490 = vpack.c.bf16 %v291, %v291
    %v491 = vpack.c.bf16 %v294, %v294
    %v492 = vpack.c.bf16 %v371, %v371
    %v493 = vpack.c.bf16 %v374, %v374
    %v494 = vpack.c.bf16 %v379, %v379
    %v495 = vpack.c.bf16 %v382, %v382
    %v496 = vpack.c.bf16 %v459, %v459
    %v497 = vpack.c.bf16 %v462, %v462
    %v498 = vpack.c.bf16 %v467, %v467
    %v499 = vpack.c.bf16 %v470, %v470
    %vm500 = vcmask 64512
    %v502 = vsel %vm500, %v488, 0
    %v505 = vsel %vm500, %v492, 0
    %507 = vmatprep.subr.bf16.mxu0 0
    %508 = vmatpush1.bf16.xpose.msra.mxu0 %v505
    %509 = vmatprep.subr.bf16.mxu0 0
    %510 = vmatpush1.bf16.xpose.msra.mxu0 0
    %511 = vmatprep.subr.bf16.mxu0 0
    %512 = vmatpush1.bf16.xpose.msra.mxu0 0
    %513 = vmatprep.subr.bf16.mxu0 0
    %514 = vmatpush1.bf16.xpose.msra.mxu0 0
    %515 = vmatprep.subr.bf16.mxu0 0
    %516 = vmatpush1.bf16.xpose.msra.mxu0 0
    %517 = vmatprep.subr.bf16.mxu0 0
    %518 = vmatpush1.bf16.xpose.msra.mxu0 0
    %519 = vmatprep.subr.bf16.mxu0 0
    %520 = vmatpush1.bf16.xpose.msra.mxu0 0
    %521 = vmatprep.subr.bf16.mxu0 0
    %522 = vmatpush1.bf16.xpose.msra.mxu0 0
    %523 = vmatprep.subr.bf16.mxu0 0
    %524 = vmatpush1.bf16.xpose.msra.mxu0 0
    %525 = vmatprep.subr.bf16.mxu0 0
    %526 = vmatpush1.bf16.xpose.msra.mxu0 0
    %527 = vmatprep.subr.bf16.mxu0 0
    %528 = vmatpush1.bf16.xpose.msra.mxu0 0
    %529 = vmatprep.subr.bf16.mxu0 0
    %530 = vmatpush1.bf16.xpose.msra.mxu0 0
    %531 = vmatprep.subr.bf16.mxu0 0
    %532 = vmatpush1.bf16.xpose.msra.mxu0 0
    %533 = vmatprep.subr.bf16.mxu0 0
    %534 = vmatpush1.bf16.xpose.msra.mxu0 0
    %535 = vmatprep.subr.bf16.mxu0 0
    %536 = vmatpush1.bf16.xpose.msra.mxu0 0
    %537 = vmatprep.subr.bf16.mxu0 0
    %538 = vmatpush1.bf16.xpose.msra.mxu0 0
    %539 = vmatprep.mubr.bf16.mxu0 0
    %540 = vmatmul.mubr.bf16.gmra.mrb[0].mxu0 %v502
    %v541 = vpop.f32.mrb[0].mxu0
    %v542 = vadd.f32 0.0, %v541
    %v543 = vpop.f32.mrb[0].mxu0
    %v544 = vpop.f32.mrb[0].mxu0
    %v545 = vpop.f32.mrb[0].mxu0
    %546 = vdwg.mxu0
    %v548 = vsel %vm500, %v489, 0
    %v551 = vsel %vm500, %v493, 0
    %553 = vmatprep.subr.bf16.mxu0 0
    %554 = vmatpush1.bf16.xpose.msra.mxu0 %v551
    %555 = vmatprep.subr.bf16.mxu0 0
    %556 = vmatpush1.bf16.xpose.msra.mxu0 0
    %557 = vmatprep.subr.bf16.mxu0 0
    %558 = vmatpush1.bf16.xpose.msra.mxu0 0
    %559 = vmatprep.subr.bf16.mxu0 0
    %560 = vmatpush1.bf16.xpose.msra.mxu0 0
    %561 = vmatprep.subr.bf16.mxu0 0
    %562 = vmatpush1.bf16.xpose.msra.mxu0 0
    %563 = vmatprep.subr.bf16.mxu0 0
    %564 = vmatpush1.bf16.xpose.msra.mxu0 0
    %565 = vmatprep.subr.bf16.mxu0 0
    %566 = vmatpush1.bf16.xpose.msra.mxu0 0
    %567 = vmatprep.subr.bf16.mxu0 0
    %568 = vmatpush1.bf16.xpose.msra.mxu0 0
    %569 = vmatprep.subr.bf16.mxu0 0
    %570 = vmatpush1.bf16.xpose.msra.mxu0 0
    %571 = vmatprep.subr.bf16.mxu0 0
    %572 = vmatpush1.bf16.xpose.msra.mxu0 0
    %573 = vmatprep.subr.bf16.mxu0 0
    %574 = vmatpush1.bf16.xpose.msra.mxu0 0
    %575 = vmatprep.subr.bf16.mxu0 0
    %576 = vmatpush1.bf16.xpose.msra.mxu0 0
    %577 = vmatprep.subr.bf16.mxu0 0
    %578 = vmatpush1.bf16.xpose.msra.mxu0 0
    %579 = vmatprep.subr.bf16.mxu0 0
    %580 = vmatpush1.bf16.xpose.msra.mxu0 0
    %581 = vmatprep.subr.bf16.mxu0 0
    %582 = vmatpush1.bf16.xpose.msra.mxu0 0
    %583 = vmatprep.subr.bf16.mxu0 0
    %584 = vmatpush1.bf16.xpose.msra.mxu0 0
    %585 = vmatprep.mubr.bf16.mxu0 0
    %586 = vmatmul.mubr.bf16.gmra.mrb[0].mxu0 %v548
    %v587 = vpop.f32.mrb[0].mxu0
    %v588 = vadd.f32 0.0, %v587
    %v589 = vpop.f32.mrb[0].mxu0
    %v590 = vpop.f32.mrb[0].mxu0
    %v591 = vpop.f32.mrb[0].mxu0
    %592 = vdwg.mxu0
    %v594 = vsel %vm500, %v490, 0
    %v597 = vsel %vm500, %v494, 0
    %599 = vmatprep.subr.bf16.mxu0 0
    %600 = vmatpush1.bf16.xpose.msra.mxu0 %v597
    %601 = vmatprep.subr.bf16.mxu0 0
    %602 = vmatpush1.bf16.xpose.msra.mxu0 0
    %603 = vmatprep.subr.bf16.mxu0 0
    %604 = vmatpush1.bf16.xpose.msra.mxu0 0
    %605 = vmatprep.subr.bf16.mxu0 0
    %606 = vmatpush1.bf16.xpose.msra.mxu0 0
    %607 = vmatprep.subr.bf16.mxu0 0
    %608 = vmatpush1.bf16.xpose.msra.mxu0 0
    %609 = vmatprep.subr.bf16.mxu0 0
    %610 = vmatpush1.bf16.xpose.msra.mxu0 0
    %611 = vmatprep.subr.bf16.mxu0 0
    %612 = vmatpush1.bf16.xpose.msra.mxu0 0
    %613 = vmatprep.subr.bf16.mxu0 0
    %614 = vmatpush1.bf16.xpose.msra.mxu0 0
    %615 = vmatprep.subr.bf16.mxu0 0
    %616 = vmatpush1.bf16.xpose.msra.mxu0 0
    %617 = vmatprep.subr.bf16.mxu0 0
    %618 = vmatpush1.bf16.xpose.msra.mxu0 0
    %619 = vmatprep.subr.bf16.mxu0 0
    %620 = vmatpush1.bf16.xpose.msra.mxu0 0
    %621 = vmatprep.subr.bf16.mxu0 0
    %622 = vmatpush1.bf16.xpose.msra.mxu0 0
    %623 = vmatprep.subr.bf16.mxu0 0
    %624 = vmatpush1.bf16.xpose.msra.mxu0 0
    %625 = vmatprep.subr.bf16.mxu0 0
    %626 = vmatpush1.bf16.xpose.msra.mxu0 0
    %627 = vmatprep.subr.bf16.mxu0 0
    %628 = vmatpush1.bf16.xpose.msra.mxu0 0
    %629 = vmatprep.subr.bf16.mxu0 0
    %630 = vmatpush1.bf16.xpose.msra.mxu0 0
    %631 = vmatprep.mubr.bf16.mxu0 0
    %632 = vmatmul.mubr.bf16.gmra.mrb[0].mxu0 %v594
    %v633 = vpop.f32.mrb[0].mxu0
    %v634 = vadd.f32 0.0, %v633
    %v635 = vpop.f32.mrb[0].mxu0
    %v636 = vpop.f32.mrb[0].mxu0
    %v637 = vpop.f32.mrb[0].mxu0
    %638 = vdwg.mxu0
    %v640 = vsel %vm500, %v491, 0
    %v643 = vsel %vm500, %v495, 0
    %645 = vmatprep.subr.bf16.mxu0 0
    %646 = vmatpush1.bf16.xpose.msra.mxu0 %v643
    %647 = vmatprep.subr.bf16.mxu0 0
    %648 = vmatpush1.bf16.xpose.msra.mxu0 0
    %649 = vmatprep.subr.bf16.mxu0 0
    %650 = vmatpush1.bf16.xpose.msra.mxu0 0
    %651 = vmatprep.subr.bf16.mxu0 0
    %652 = vmatpush1.bf16.xpose.msra.mxu0 0
    %653 = vmatprep.subr.bf16.mxu0 0
    %654 = vmatpush1.bf16.xpose.msra.mxu0 0
    %655 = vmatprep.subr.bf16.mxu0 0
    %656 = vmatpush1.bf16.xpose.msra.mxu0 0
    %657 = vmatprep.subr.bf16.mxu0 0
    %658 = vmatpush1.bf16.xpose.msra.mxu0 0
    %659 = vmatprep.subr.bf16.mxu0 0
    %660 = vmatpush1.bf16.xpose.msra.mxu0 0
    %661 = vmatprep.subr.bf16.mxu0 0
    %662 = vmatpush1.bf16.xpose.msra.mxu0 0
    %663 = vmatprep.subr.bf16.mxu0 0
    %664 = vmatpush1.bf16.xpose.msra.mxu0 0
    %665 = vmatprep.subr.bf16.mxu0 0
    %666 = vmatpush1.bf16.xpose.msra.mxu0 0
    %667 = vmatprep.subr.bf16.mxu0 0
    %668 = vmatpush1.bf16.xpose.msra.mxu0 0
    %669 = vmatprep.subr.bf16.mxu0 0
    %670 = vmatpush1.bf16.xpose.msra.mxu0 0
    %671 = vmatprep.subr.bf16.mxu0 0
    %672 = vmatpush1.bf16.xpose.msra.mxu0 0
    %673 = vmatprep.subr.bf16.mxu0 0
    %674 = vmatpush1.bf16.xpose.msra.mxu0 0
    %675 = vmatprep.subr.bf16.mxu0 0
    %676 = vmatpush1.bf16.xpose.msra.mxu0 0
    %677 = vmatprep.mubr.bf16.mxu0 0
    %678 = vmatmul.mubr.bf16.gmra.mrb[0].mxu0 %v640
    %v679 = vpop.f32.mrb[0].mxu0
    %v680 = vadd.f32 0.0, %v679
    %v681 = vpop.f32.mrb[0].mxu0
    %v682 = vpop.f32.mrb[0].mxu0
    %v683 = vpop.f32.mrb[0].mxu0
    %684 = vdwg.mxu0
    %v685 = vmul.f32 %v542, 0.35355338
    %v686 = vmul.f32 %v588, 0.35355338
    %v687 = vmul.f32 %v634, 0.35355338
    %v688 = vmul.f32 %v680, 0.35355338
    %vm689 = vcmp.eq.s32.totalorder %v478, 1
    %v690 = vsel %vm689, %v685, -1e+32
    %v691 = vsel %vm689, %v686, -1e+32
    %v692 = vsel %vm689, %v687, -1e+32
    %v693 = vsel %vm689, %v688, -1e+32
    %v694 = vsel %vm500, %v690, -inf
    %695 = vmax.xlane.f32.xlu0 %v694
    %v696 = vpop.xlane.xlu0 %695
    %v697 = vsel %vm500, %v691, -inf
    %698 = vmax.xlane.f32.xlu0 %v697
    %v699 = vpop.xlane.xlu0 %698
    %v700 = vsel %vm500, %v692, -inf
    %701 = vmax.xlane.f32.xlu0 %v700
    %v702 = vpop.xlane.xlu0 %701
    %v703 = vsel %vm500, %v693, -inf
    %704 = vmax.xlane.f32.xlu0 %v703
    %v705 = vpop.xlane.xlu0 %704
    %v706 = vsub.f32 %v690, %v696
    %v707 = vsub.f32 %v691, %v699
    %v708 = vsub.f32 %v692, %v702
    %v709 = vsub.f32 %v693, %v705
    %v710 = vmul.f32 %v706, 1.442695
    %v711 = vpow.pop %v710
    %v712 = vmul.f32 %v707, 1.442695
    %v713 = vpow.pop %v712
    %v714 = vmul.f32 %v708, 1.442695
    %v715 = vpow.pop %v714
    %v716 = vmul.f32 %v709, 1.442695
    %v717 = vpow.pop %v716
    %v718 = vsel %vm500, %v711, 0.0
    %719 = vadd.xlane.f32.xlu0 %v718
    %v720 = vpop.xlane.xlu0 %719
    %v721 = vsel %vm500, %v713, 0.0
    %722 = vadd.xlane.f32.xlu0 %v721
    %v723 = vpop.xlane.xlu0 %722
    %v724 = vsel %vm500, %v715, 0.0
    %725 = vadd.xlane.f32.xlu0 %v724
    %v726 = vpop.xlane.xlu0 %725
    %v727 = vsel %vm500, %v717, 0.0
    %728 = vadd.xlane.f32.xlu0 %v727
    %v729 = vpop.xlane.xlu0 %728
    %v730 = vrcp.pop %v720
    %v731 = vrcp.pop %v723
    %v732 = vrcp.pop %v726
    %v733 = vrcp.pop %v729
    %v734 = vmul.f32 %v711, %v730
    %v735 = vmul.f32 %v713, %v731
    %v736 = vmul.f32 %v715, %v732
    %v737 = vmul.f32 %v717, %v733
    %v738 = vmul.f32 %v734, %v479
    %v739 = vmul.f32 %v735, %v479
    %v740 = vmul.f32 %v736, %v479
    %v741 = vmul.f32 %v737, %v479
    %v743 = vsel %vm500, %v738, 0
    %v746 = vsel %vm500, %v739, 0
    %v749 = vsel %vm500, %v740, 0
    %v752 = vsel %vm500, %v741, 0
    %754 = vmatprep.subr.mxu0 0.0
    %755 = vmatpush1.msra.mxu0 %v487
    %756 = vmatprep.subr.mxu0 0.0
    %757 = vmatpush1.msra.mxu0 0.0
    %758 = vmatprep.subr.mxu0 0.0
    %759 = vmatpush1.msra.mxu0 0.0
    %760 = vmatprep.subr.mxu0 0.0
    %761 = vmatpush1.msra.mxu0 0.0
    %762 = vmatprep.subr.mxu0 0.0
    %763 = vmatpush1.msra.mxu0 0.0
    %764 = vmatprep.subr.mxu0 0.0
    %765 = vmatpush1.msra.mxu0 0.0
    %766 = vmatprep.subr.mxu0 0.0
    %767 = vmatpush1.msra.mxu0 0.0
    %768 = vmatprep.subr.mxu0 0.0
    %769 = vmatpush1.msra.mxu0 0.0
    %770 = vmatprep.subr.mxu0 0.0
    %771 = vmatpush1.msra.mxu0 0.0
    %772 = vmatprep.subr.mxu0 0.0
    %773 = vmatpush1.msra.mxu0 0.0
    %774 = vmatprep.subr.mxu0 0.0
    %775 = vmatpush1.msra.mxu0 0.0
    %776 = vmatprep.subr.mxu0 0.0
    %777 = vmatpush1.msra.mxu0 0.0
    %778 = vmatprep.subr.mxu0 0.0
    %779 = vmatpush1.msra.mxu0 0.0
    %780 = vmatprep.subr.mxu0 0.0
    %781 = vmatpush1.msra.mxu0 0.0
    %782 = vmatprep.subr.mxu0 0.0
    %783 = vmatpush1.msra.mxu0 0.0
    %784 = vmatprep.subr.mxu0 0.0
    %785 = vmatpush1.msra.mxu0 0.0
    %786 = vmatprep.subr.mxu0 0.0
    %787 = vmatpush1.msra.mxu0 0.0
    %788 = vmatprep.subr.mxu0 0.0
    %789 = vmatpush1.msra.mxu0 0.0
    %790 = vmatprep.subr.mxu0 0.0
    %791 = vmatpush1.msra.mxu0 0.0
    %792 = vmatprep.subr.mxu0 0.0
    %793 = vmatpush1.msra.mxu0 0.0
    %794 = vmatprep.subr.mxu0 0.0
    %795 = vmatpush1.msra.mxu0 0.0
    %796 = vmatprep.subr.mxu0 0.0
    %797 = vmatpush1.msra.mxu0 0.0
    %798 = vmatprep.subr.mxu0 0.0
    %799 = vmatpush1.msra.mxu0 0.0
    %800 = vmatprep.subr.mxu0 0.0
    %801 = vmatpush1.msra.mxu0 0.0
    %802 = vmatprep.subr.mxu0 0.0
    %803 = vmatpush1.msra.mxu0 0.0
    %804 = vmatprep.subr.mxu0 0.0
    %805 = vmatpush1.msra.mxu0 0.0
    %806 = vmatprep.subr.mxu0 0.0
    %807 = vmatpush1.msra.mxu0 0.0
    %808 = vmatprep.subr.mxu0 0.0
    %809 = vmatpush1.msra.mxu0 0.0
    %810 = vmatprep.subr.mxu0 0.0
    %811 = vmatpush1.msra.mxu0 0.0
    %812 = vmatprep.subr.mxu0 0.0
    %813 = vmatpush1.msra.mxu0 0.0
    %814 = vmatprep.subr.mxu0 0.0
    %815 = vmatpush1.msra.mxu0 0.0
    %816 = vmatprep.subr.mxu0 0.0
    %817 = vmatpush1.msra.mxu0 0.0
    %818 = vmatprep.mubr.f32.mxu0 0.0
    %819 = vmatmul.mubr.f32.gmra.mrb[0].mxu0 %v743
    %v820 = vpop.f32.mrb[0].mxu0
    %v821 = vadd.f32 0.0, %v820
    %v822 = vpop.f32.mrb[0].mxu0
    %823 = vmatprep.mubr.f32.mxu0 0.0
    %824 = vmatmul.mubr.f32.gmra.mrb[0].mxu0 %v746
    %v825 = vpop.f32.mrb[0].mxu0
    %v826 = vadd.f32 0.0, %v825
    %v827 = vpop.f32.mrb[0].mxu0
    %828 = vmatprep.mubr.f32.mxu0 0.0
    %829 = vmatmul.mubr.f32.gmra.mrb[0].mxu0 %v749
    %v830 = vpop.f32.mrb[0].mxu0
    %v831 = vadd.f32 0.0, %v830
    %v832 = vpop.f32.mrb[0].mxu0
    %833 = vmatprep.mubr.f32.mxu0 0.0
    %834 = vmatmul.mubr.f32.gmra.mrb[0].mxu0 %v752
    %v835 = vpop.f32.mrb[0].mxu0
    %v836 = vadd.f32 0.0, %v835
    %v837 = vpop.f32.mrb[0].mxu0
    %838 = vdwg.mxu0
    %v839 = vmul.f32 %v821, %v484
    %v840 = vmul.f32 %v826, %v484
    %v841 = vmul.f32 %v831, %v484
    %v842 = vmul.f32 %v836, %v484
    %v843 = vmax.f32 %v839, 0.0
    %v844 = vmax.f32 %v840, 0.0
    %v845 = vmax.f32 %v841, 0.0
    %v846 = vmax.f32 %v842, 0.0
    %v847 = vrsqrt.pop %v843
    %v848 = vmul.f32 %v843, %v847
    %vm849 = vcmp.eq.f32.partialorder %v843, inf
    %v850 = vsel %vm849, %v843, %v848
    %vm851 = vcmp.eq.f32.partialorder %v843, 0.0
    %v852 = vand.u32 %v843, 2147483648
    %v853 = vsel %vm851, %v852, %v850
    %v854 = vrsqrt.pop %v844
    %v855 = vmul.f32 %v844, %v854
    %vm856 = vcmp.eq.f32.partialorder %v844, inf
    %v857 = vsel %vm856, %v844, %v855
    %vm858 = vcmp.eq.f32.partialorder %v844, 0.0
    %v859 = vand.u32 %v844, 2147483648
    %v860 = vsel %vm858, %v859, %v857
    %v861 = vrsqrt.pop %v845
    %v862 = vmul.f32 %v845, %v861
    %vm863 = vcmp.eq.f32.partialorder %v845, inf
    %v864 = vsel %vm863, %v845, %v862
    %vm865 = vcmp.eq.f32.partialorder %v845, 0.0
    %v866 = vand.u32 %v845, 2147483648
    %v867 = vsel %vm865, %v866, %v864
    %v868 = vrsqrt.pop %v846
    %v869 = vmul.f32 %v846, %v868
    %vm870 = vcmp.eq.f32.partialorder %v846, inf
    %v871 = vsel %vm870, %v846, %v869
    %vm872 = vcmp.eq.f32.partialorder %v846, 0.0
    %v873 = vand.u32 %v846, 2147483648
    %v874 = vsel %vm872, %v873, %v871
    %s875 = sld [smem:[#allocation2]]
    %v876 = vstv %s875
    %v877 = vmul.f32 %v853, %v876
    %v878 = vmul.f32 %v860, %v876
    %v879 = vmul.f32 %v867, %v876
    %v880 = vmul.f32 %v874, %v876
    %v881 = vmax.f32 %v877, -11.512925
    %v882 = vmax.f32 %v878, -11.512925
    %v883 = vmax.f32 %v879, -11.512925
    %v884 = vmax.f32 %v880, -11.512925
    %v885 = vmin.f32 %v881, 11.512925
    %v886 = vmin.f32 %v882, 11.512925
    %v887 = vmin.f32 %v883, 11.512925
    %v888 = vmin.f32 %v884, 11.512925
    %v889 = vmul.f32 %v885, 1.442695
    %v890 = vpow.pop %v889
    %v891 = vmul.f32 %v886, 1.442695
    %v892 = vpow.pop %v891
    %v893 = vmul.f32 %v887, 1.442695
    %v894 = vpow.pop %v893
    %v895 = vmul.f32 %v888, 1.442695
    %v896 = vpow.pop %v895
    %v897 = vmul.f32 %v685, %v890
    %v898 = vmul.f32 %v686, %v892
    %v899 = vmul.f32 %v687, %v894
    %v900 = vmul.f32 %v688, %v896
    %v901 = vsel %vm689, %v897, -1e+32
    %v902 = vsel %vm689, %v898, -1e+32
    %v903 = vsel %vm689, %v899, -1e+32
    %v904 = vsel %vm689, %v900, -1e+32
    %v905 = vsel %vm500, %v901, -inf
    %906 = vmax.xlane.f32.xlu0 %v905
    %v907 = vpop.xlane.xlu0 %906
    %v908 = vsel %vm500, %v902, -inf
    %909 = vmax.xlane.f32.xlu0 %v908
    %v910 = vpop.xlane.xlu0 %909
    %v911 = vsel %vm500, %v903, -inf
    %912 = vmax.xlane.f32.xlu0 %v911
    %v913 = vpop.xlane.xlu0 %912
    %v914 = vsel %vm500, %v904, -inf
    %915 = vmax.xlane.f32.xlu0 %v914
    %v916 = vpop.xlane.xlu0 %915
    %v917 = vsub.f32 %v901, %v907
    %v918 = vsub.f32 %v902, %v910
    %v919 = vsub.f32 %v903, %v913
    %v920 = vsub.f32 %v904, %v916
    %v921 = vmul.f32 %v917, 1.442695
    %v922 = vpow.pop %v921
    %v923 = vmul.f32 %v918, 1.442695
    %v924 = vpow.pop %v923
    %v925 = vmul.f32 %v919, 1.442695
    %v926 = vpow.pop %v925
    %v927 = vmul.f32 %v920, 1.442695
    %v928 = vpow.pop %v927
    %v929 = vsel %vm500, %v922, 0.0
    %930 = vadd.xlane.f32.xlu0 %v929
    %v931 = vpop.xlane.xlu0 %930
    %v932 = vsel %vm500, %v924, 0.0
    %933 = vadd.xlane.f32.xlu0 %v932
    %v934 = vpop.xlane.xlu0 %933
    %v935 = vsel %vm500, %v926, 0.0
    %936 = vadd.xlane.f32.xlu0 %v935
    %v937 = vpop.xlane.xlu0 %936
    %v938 = vsel %vm500, %v928, 0.0
    %939 = vadd.xlane.f32.xlu0 %v938
    %v940 = vpop.xlane.xlu0 %939
    %v941 = vrcp.pop %v931
    %v942 = vrcp.pop %v934
    %v943 = vrcp.pop %v937
    %v944 = vrcp.pop %v940
    %v945 = vmul.f32 %v922, %v941
    %v946 = vmul.f32 %v924, %v942
    %v947 = vmul.f32 %v926, %v943
    %v948 = vmul.f32 %v928, %v944
    %vm949 = vcmp.eq.s32.totalorder %v474, 0
    %v950 = vsel %vm949, 1, 0
    %vm951 = vcmp.eq.s32.totalorder %v950, 1
    %v952 = vsel %vm951, 0.0, %v945
    %v953 = vsel %vm951, 0.0, %v946
    %v954 = vsel %vm951, 0.0, %v947
    %v955 = vsel %vm951, 0.0, %v948
    %v956 = vpack.c.bf16 %v952, %v952
    %v957 = vpack.c.bf16 %v953, %v953
    %v958 = vpack.c.bf16 %v954, %v954
    %v959 = vpack.c.bf16 %v955, %v955
    %v961 = vsel %vm500, %v956, 0
    %vm963 = vcmask 1043456
    %v965 = vsel %vm963, %v496, 0
    %967 = vmatprep.subr.bf16.mxu0 0
    %968 = vmatpush1.bf16.msra.mxu0 %v965
    %969 = vmatprep.subr.bf16.mxu0 0
    %970 = vmatpush1.bf16.msra.mxu0 0
    %971 = vmatprep.subr.bf16.mxu0 0
    %972 = vmatpush1.bf16.msra.mxu0 0
    %973 = vmatprep.subr.bf16.mxu0 0
    %974 = vmatpush1.bf16.msra.mxu0 0
    %975 = vmatprep.subr.bf16.mxu0 0
    %976 = vmatpush1.bf16.msra.mxu0 0
    %977 = vmatprep.subr.bf16.mxu0 0
    %978 = vmatpush1.bf16.msra.mxu0 0
    %979 = vmatprep.subr.bf16.mxu0 0
    %980 = vmatpush1.bf16.msra.mxu0 0
    %981 = vmatprep.subr.bf16.mxu0 0
    %982 = vmatpush1.bf16.msra.mxu0 0
    %983 = vmatprep.subr.bf16.mxu0 0
    %984 = vmatpush1.bf16.msra.mxu0 0
    %985 = vmatprep.subr.bf16.mxu0 0
    %986 = vmatpush1.bf16.msra.mxu0 0
    %987 = vmatprep.subr.bf16.mxu0 0
    %988 = vmatpush1.bf16.msra.mxu0 0
    %989 = vmatprep.subr.bf16.mxu0 0
    %990 = vmatpush1.bf16.msra.mxu0 0
    %991 = vmatprep.subr.bf16.mxu0 0
    %992 = vmatpush1.bf16.msra.mxu0 0
    %993 = vmatprep.subr.bf16.mxu0 0
    %994 = vmatpush1.bf16.msra.mxu0 0
    %995 = vmatprep.subr.bf16.mxu0 0
    %996 = vmatpush1.bf16.msra.mxu0 0
    %997 = vmatprep.subr.bf16.mxu0 0
    %998 = vmatpush1.bf16.msra.mxu0 0
    %999 = vmatprep.mubr.bf16.mxu0 0
    %1000 = vmatmul.mubr.bf16.gmra.mrb[0].mxu0 %v961
    %v1001 = vpop.f32.mrb[0].mxu0
    %v1002 = vadd.f32 0.0, %v1001
    %v1003 = vpop.f32.mrb[0].mxu0
    %v1004 = vpop.f32.mrb[0].mxu0
    %v1005 = vpop.f32.mrb[0].mxu0
    %1006 = vdwg.mxu0
    %v1008 = vsel %vm500, %v957, 0
    %v1011 = vsel %vm963, %v497, 0
    %1013 = vmatprep.subr.bf16.mxu0 0
    %1014 = vmatpush1.bf16.msra.mxu0 %v1011
    %1015 = vmatprep.subr.bf16.mxu0 0
    %1016 = vmatpush1.bf16.msra.mxu0 0
    %1017 = vmatprep.subr.bf16.mxu0 0
    %1018 = vmatpush1.bf16.msra.mxu0 0
    %1019 = vmatprep.subr.bf16.mxu0 0
    %1020 = vmatpush1.bf16.msra.mxu0 0
    %1021 = vmatprep.subr.bf16.mxu0 0
    %1022 = vmatpush1.bf16.msra.mxu0 0
    %1023 = vmatprep.subr.bf16.mxu0 0
    %1024 = vmatpush1.bf16.msra.mxu0 0
    %1025 = vmatprep.subr.bf16.mxu0 0
    %1026 = vmatpush1.bf16.msra.mxu0 0
    %1027 = vmatprep.subr.bf16.mxu0 0
    %1028 = vmatpush1.bf16.msra.mxu0 0
    %1029 = vmatprep.subr.bf16.mxu0 0
    %1030 = vmatpush1.bf16.msra.mxu0 0
    %1031 = vmatprep.subr.bf16.mxu0 0
    %1032 = vmatpush1.bf16.msra.mxu0 0
    %1033 = vmatprep.subr.bf16.mxu0 0
    %1034 = vmatpush1.bf16.msra.mxu0 0
    %1035 = vmatprep.subr.bf16.mxu0 0
    %1036 = vmatpush1.bf16.msra.mxu0 0
    %1037 = vmatprep.subr.bf16.mxu0 0
    %1038 = vmatpush1.bf16.msra.mxu0 0
    %1039 = vmatprep.subr.bf16.mxu0 0
    %1040 = vmatpush1.bf16.msra.mxu0 0
    %1041 = vmatprep.subr.bf16.mxu0 0
    %1042 = vmatpush1.bf16.msra.mxu0 0
    %1043 = vmatprep.subr.bf16.mxu0 0
    %1044 = vmatpush1.bf16.msra.mxu0 0
    %1045 = vmatprep.mubr.bf16.mxu0 0
    %1046 = vmatmul.mubr.bf16.gmra.mrb[0].mxu0 %v1008
    %v1047 = vpop.f32.mrb[0].mxu0
    %v1048 = vadd.f32 0.0, %v1047
    %v1049 = vpop.f32.mrb[0].mxu0
    %v1050 = vpop.f32.mrb[0].mxu0
    %v1051 = vpop.f32.mrb[0].mxu0
    %1052 = vdwg.mxu0
    %v1054 = vsel %vm500, %v958, 0
    %v1057 = vsel %vm963, %v498, 0
    %1059 = vmatprep.subr.bf16.mxu0 0
    %1060 = vmatpush1.bf16.msra.mxu0 %v1057
    %1061 = vmatprep.subr.bf16.mxu0 0
    %1062 = vmatpush1.bf16.msra.mxu0 0
    %1063 = vmatprep.subr.bf16.mxu0 0
    %1064 = vmatpush1.bf16.msra.mxu0 0
    %1065 = vmatprep.subr.bf16.mxu0 0
    %1066 = vmatpush1.bf16.msra.mxu0 0
    %1067 = vmatprep.subr.bf16.mxu0 0
    %1068 = vmatpush1.bf16.msra.mxu0 0
    %1069 = vmatprep.subr.bf16.mxu0 0
    %1070 = vmatpush1.bf16.msra.mxu0 0
    %1071 = vmatprep.subr.bf16.mxu0 0
    %1072 = vmatpush1.bf16.msra.mxu0 0
    %1073 = vmatprep.subr.bf16.mxu0 0
    %1074 = vmatpush1.bf16.msra.mxu0 0
    %1075 = vmatprep.subr.bf16.mxu0 0
    %1076 = vmatpush1.bf16.msra.mxu0 0
    %1077 = vmatprep.subr.bf16.mxu0 0
    %1078 = vmatpush1.bf16.msra.mxu0 0
    %1079 = vmatprep.subr.bf16.mxu0 0
    %1080 = vmatpush1.bf16.msra.mxu0 0
    %1081 = vmatprep.subr.bf16.mxu0 0
    %1082 = vmatpush1.bf16.msra.mxu0 0
    %1083 = vmatprep.subr.bf16.mxu0 0
    %1084 = vmatpush1.bf16.msra.mxu0 0
    %1085 = vmatprep.subr.bf16.mxu0 0
    %1086 = vmatpush1.bf16.msra.mxu0 0
    %1087 = vmatprep.subr.bf16.mxu0 0
    %1088 = vmatpush1.bf16.msra.mxu0 0
    %1089 = vmatprep.subr.bf16.mxu0 0
    %1090 = vmatpush1.bf16.msra.mxu0 0
    %1091 = vmatprep.mubr.bf16.mxu0 0
    %1092 = vmatmul.mubr.bf16.gmra.mrb[0].mxu0 %v1054
    %v1093 = vpop.f32.mrb[0].mxu0
    %v1094 = vadd.f32 0.0, %v1093
    %v1095 = vpop.f32.mrb[0].mxu0
    %v1096 = vpop.f32.mrb[0].mxu0
    %v1097 = vpop.f32.mrb[0].mxu0
    %1098 = vdwg.mxu0
    %v1100 = vsel %vm500, %v959, 0
    %v1103 = vsel %vm963, %v499, 0
    %1105 = vmatprep.subr.bf16.mxu0 0
    %1106 = vmatpush1.bf16.msra.mxu0 %v1103
    %1107 = vmatprep.subr.bf16.mxu0 0
    %1108 = vmatpush1.bf16.msra.mxu0 0
    %1109 = vmatprep.subr.bf16.mxu0 0
    %1110 = vmatpush1.bf16.msra.mxu0 0
    %1111 = vmatprep.subr.bf16.mxu0 0
    %1112 = vmatpush1.bf16.msra.mxu0 0
    %1113 = vmatprep.subr.bf16.mxu0 0
    %1114 = vmatpush1.bf16.msra.mxu0 0
    %1115 = vmatprep.subr.bf16.mxu0 0
    %1116 = vmatpush1.bf16.msra.mxu0 0
    %1117 = vmatprep.subr.bf16.mxu0 0
    %1118 = vmatpush1.bf16.msra.mxu0 0
    %1119 = vmatprep.subr.bf16.mxu0 0
    %1120 = vmatpush1.bf16.msra.mxu0 0
    %1121 = vmatprep.subr.bf16.mxu0 0
    %1122 = vmatpush1.bf16.msra.mxu0 0
    %1123 = vmatprep.subr.bf16.mxu0 0
    %1124 = vmatpush1.bf16.msra.mxu0 0
    %1125 = vmatprep.subr.bf16.mxu0 0
    %1126 = vmatpush1.bf16.msra.mxu0 0
    %1127 = vmatprep.subr.bf16.mxu0 0
    %1128 = vmatpush1.bf16.msra.mxu0 0
    %1129 = vmatprep.subr.bf16.mxu0 0
    %1130 = vmatpush1.bf16.msra.mxu0 0
    %1131 = vmatprep.subr.bf16.mxu0 0
    %1132 = vmatpush1.bf16.msra.mxu0 0
    %1133 = vmatprep.subr.bf16.mxu0 0
    %1134 = vmatpush1.bf16.msra.mxu0 0
    %1135 = vmatprep.subr.bf16.mxu0 0
    %1136 = vmatpush1.bf16.msra.mxu0 0
    %1137 = vmatprep.mubr.bf16.mxu0 0
    %1138 = vmatmul.mubr.bf16.gmra.mrb[0].mxu0 %v1100
    %v1139 = vpop.f32.mrb[0].mxu0
    %v1140 = vadd.f32 0.0, %v1139
    %v1141 = vpop.f32.mrb[0].mxu0
    %v1142 = vpop.f32.mrb[0].mxu0
    %v1143 = vpop.f32.mrb[0].mxu0
    %1144 = vdwg.mxu0
    %1146 = vrot.lane.b32.xlu0 %v488, 120
    %v1147 = vpop.permute.xlu0 %1146
    %1149 = vrot.lane.b32.xlu0 %v492, 120
    %v1150 = vpop.permute.xlu0 %1149
    %v1152 = vsel %vm500, %v1147, 0
    %v1155 = vsel %vm500, %v1150, 0
    %1157 = vmatprep.subr.bf16.mxu0 0
    %1158 = vmatpush1.bf16.xpose.msra.mxu0 %v1155
    %1159 = vmatprep.subr.bf16.mxu0 0
    %1160 = vmatpush1.bf16.xpose.msra.mxu0 0
    %1161 = vmatprep.subr.bf16.mxu0 0
    %1162 = vmatpush1.bf16.xpose.msra.mxu0 0
    %1163 = vmatprep.subr.bf16.mxu0 0
    %1164 = vmatpush1.bf16.xpose.msra.mxu0 0
    %1165 = vmatprep.subr.bf16.mxu0 0
    %1166 = vmatpush1.bf16.xpose.msra.mxu0 0
    %1167 = vmatprep.subr.bf16.mxu0 0
    %1168 = vmatpush1.bf16.xpose.msra.mxu0 0
    %1169 = vmatprep.subr.bf16.mxu0 0
    %1170 = vmatpush1.bf16.xpose.msra.mxu0 0
    %1171 = vmatprep.subr.bf16.mxu0 0
    %1172 = vmatpush1.bf16.xpose.msra.mxu0 0
    %1173 = vmatprep.subr.bf16.mxu0 0
    %1174 = vmatpush1.bf16.xpose.msra.mxu0 0
    %1175 = vmatprep.subr.bf16.mxu0 0
    %1176 = vmatpush1.bf16.xpose.msra.mxu0 0
    %1177 = vmatprep.subr.bf16.mxu0 0
    %1178 = vmatpush1.bf16.xpose.msra.mxu0 0
    %1179 = vmatprep.subr.bf16.mxu0 0
    %1180 = vmatpush1.bf16.xpose.msra.mxu0 0
    %1181 = vmatprep.subr.bf16.mxu0 0
    %1182 = vmatpush1.bf16.xpose.msra.mxu0 0
    %1183 = vmatprep.subr.bf16.mxu0 0
    %1184 = vmatpush1.bf16.xpose.msra.mxu0 0
    %1185 = vmatprep.subr.bf16.mxu0 0
    %1186 = vmatpush1.bf16.xpose.msra.mxu0 0
    %1187 = vmatprep.subr.bf16.mxu0 0
    %1188 = vmatpush1.bf16.xpose.msra.mxu0 0
    %1189 = vmatprep.mubr.bf16.mxu0 0
    %1190 = vmatmul.mubr.bf16.gmra.mrb[0].mxu0 %v1152
    %v1191 = vpop.f32.mrb[0].mxu0
    %v1192 = vadd.f32 0.0, %v1191
    %v1193 = vpop.f32.mrb[0].mxu0
    %v1194 = vpop.f32.mrb[0].mxu0
    %v1195 = vpop.f32.mrb[0].mxu0
    %1196 = vdwg.mxu0
    %1198 = vrot.lane.b32.xlu0 %v489, 120
    %v1199 = vpop.permute.xlu0 %1198
    %1201 = vrot.lane.b32.xlu0 %v493, 120
    %v1202 = vpop.permute.xlu0 %1201
    %v1204 = vsel %vm500, %v1199, 0
    %v1207 = vsel %vm500, %v1202, 0
    %1209 = vmatprep.subr.bf16.mxu0 0
    %1210 = vmatpush1.bf16.xpose.msra.mxu0 %v1207
    %1211 = vmatprep.subr.bf16.mxu0 0
    %1212 = vmatpush1.bf16.xpose.msra.mxu0 0
    %1213 = vmatprep.subr.bf16.mxu0 0
    %1214 = vmatpush1.bf16.xpose.msra.mxu0 0
    %1215 = vmatprep.subr.bf16.mxu0 0
    %1216 = vmatpush1.bf16.xpose.msra.mxu0 0
    %1217 = vmatprep.subr.bf16.mxu0 0
    %1218 = vmatpush1.bf16.xpose.msra.mxu0 0
    %1219 = vmatprep.subr.bf16.mxu0 0
    %1220 = vmatpush1.bf16.xpose.msra.mxu0 0
    %1221 = vmatprep.subr.bf16.mxu0 0
    %1222 = vmatpush1.bf16.xpose.msra.mxu0 0
    %1223 = vmatprep.subr.bf16.mxu0 0
    %1224 = vmatpush1.bf16.xpose.msra.mxu0 0
    %1225 = vmatprep.subr.bf16.mxu0 0
    %1226 = vmatpush1.bf16.xpose.msra.mxu0 0
    %1227 = vmatprep.subr.bf16.mxu0 0
    %1228 = vmatpush1.bf16.xpose.msra.mxu0 0
    %1229 = vmatprep.subr.bf16.mxu0 0
    %1230 = vmatpush1.bf16.xpose.msra.mxu0 0
    %1231 = vmatprep.subr.bf16.mxu0 0
    %1232 = vmatpush1.bf16.xpose.msra.mxu0 0
    %1233 = vmatprep.subr.bf16.mxu0 0
    %1234 = vmatpush1.bf16.xpose.msra.mxu0 0
    %1235 = vmatprep.subr.bf16.mxu0 0
    %1236 = vmatpush1.bf16.xpose.msra.mxu0 0
    %1237 = vmatprep.subr.bf16.mxu0 0
    %1238 = vmatpush1.bf16.xpose.msra.mxu0 0
    %1239 = vmatprep.subr.bf16.mxu0 0
    %1240 = vmatpush1.bf16.xpose.msra.mxu0 0
    %1241 = vmatprep.mubr.bf16.mxu0 0
    %1242 = vmatmul.mubr.bf16.gmra.mrb[0].mxu0 %v1204
    %v1243 = vpop.f32.mrb[0].mxu0
    %v1244 = vadd.f32 0.0, %v1243
    %v1245 = vpop.f32.mrb[0].mxu0
    %v1246 = vpop.f32.mrb[0].mxu0
    %v1247 = vpop.f32.mrb[0].mxu0
    %1248 = vdwg.mxu0
    %1250 = vrot.lane.b32.xlu0 %v490, 120
    %v1251 = vpop.permute.xlu0 %1250
    %1253 = vrot.lane.b32.xlu0 %v494, 120
    %v1254 = vpop.permute.xlu0 %1253
    %v1256 = vsel %vm500, %v1251, 0
    %v1259 = vsel %vm500, %v1254, 0
    %1261 = vmatprep.subr.bf16.mxu0 0
    %1262 = vmatpush1.bf16.xpose.msra.mxu0 %v1259
    %1263 = vmatprep.subr.bf16.mxu0 0
    %1264 = vmatpush1.bf16.xpose.msra.mxu0 0
    %1265 = vmatprep.subr.bf16.mxu0 0
    %1266 = vmatpush1.bf16.xpose.msra.mxu0 0
    %1267 = vmatprep.subr.bf16.mxu0 0
    %1268 = vmatpush1.bf16.xpose.msra.mxu0 0
    %1269 = vmatprep.subr.bf16.mxu0 0
    %1270 = vmatpush1.bf16.xpose.msra.mxu0 0
    %1271 = vmatprep.subr.bf16.mxu0 0
    %1272 = vmatpush1.bf16.xpose.msra.mxu0 0
    %1273 = vmatprep.subr.bf16.mxu0 0
    %1274 = vmatpush1.bf16.xpose.msra.mxu0 0
    %1275 = vmatprep.subr.bf16.mxu0 0
    %1276 = vmatpush1.bf16.xpose.msra.mxu0 0
    %1277 = vmatprep.subr.bf16.mxu0 0
    %1278 = vmatpush1.bf16.xpose.msra.mxu0 0
    %1279 = vmatprep.subr.bf16.mxu0 0
    %1280 = vmatpush1.bf16.xpose.msra.mxu0 0
    %1281 = vmatprep.subr.bf16.mxu0 0
    %1282 = vmatpush1.bf16.xpose.msra.mxu0 0
    %1283 = vmatprep.subr.bf16.mxu0 0
    %1284 = vmatpush1.bf16.xpose.msra.mxu0 0
    %1285 = vmatprep.subr.bf16.mxu0 0
    %1286 = vmatpush1.bf16.xpose.msra.mxu0 0
    %1287 = vmatprep.subr.bf16.mxu0 0
    %1288 = vmatpush1.bf16.xpose.msra.mxu0 0
    %1289 = vmatprep.subr.bf16.mxu0 0
    %1290 = vmatpush1.bf16.xpose.msra.mxu0 0
    %1291 = vmatprep.subr.bf16.mxu0 0
    %1292 = vmatpush1.bf16.xpose.msra.mxu0 0
    %1293 = vmatprep.mubr.bf16.mxu0 0
    %1294 = vmatmul.mubr.bf16.gmra.mrb[0].mxu0 %v1256
    %v1295 = vpop.f32.mrb[0].mxu0
    %v1296 = vadd.f32 0.0, %v1295
    %v1297 = vpop.f32.mrb[0].mxu0
    %v1298 = vpop.f32.mrb[0].mxu0
    %v1299 = vpop.f32.mrb[0].mxu0
    %1300 = vdwg.mxu0
    %1302 = vrot.lane.b32.xlu0 %v491, 120
    %v1303 = vpop.permute.xlu0 %1302
    %1305 = vrot.lane.b32.xlu0 %v495, 120
    %v1306 = vpop.permute.xlu0 %1305
    %v1308 = vsel %vm500, %v1303, 0
    %v1311 = vsel %vm500, %v1306, 0
    %1313 = vmatprep.subr.bf16.mxu0 0
    %1314 = vmatpush1.bf16.xpose.msra.mxu0 %v1311
    %1315 = vmatprep.subr.bf16.mxu0 0
    %1316 = vmatpush1.bf16.xpose.msra.mxu0 0
    %1317 = vmatprep.subr.bf16.mxu0 0
    %1318 = vmatpush1.bf16.xpose.msra.mxu0 0
    %1319 = vmatprep.subr.bf16.mxu0 0
    %1320 = vmatpush1.bf16.xpose.msra.mxu0 0
    %1321 = vmatprep.subr.bf16.mxu0 0
    %1322 = vmatpush1.bf16.xpose.msra.mxu0 0
    %1323 = vmatprep.subr.bf16.mxu0 0
    %1324 = vmatpush1.bf16.xpose.msra.mxu0 0
    %1325 = vmatprep.subr.bf16.mxu0 0
    %1326 = vmatpush1.bf16.xpose.msra.mxu0 0
    %1327 = vmatprep.subr.bf16.mxu0 0
    %1328 = vmatpush1.bf16.xpose.msra.mxu0 0
    %1329 = vmatprep.subr.bf16.mxu0 0
    %1330 = vmatpush1.bf16.xpose.msra.mxu0 0
    %1331 = vmatprep.subr.bf16.mxu0 0
    %1332 = vmatpush1.bf16.xpose.msra.mxu0 0
    %1333 = vmatprep.subr.bf16.mxu0 0
    %1334 = vmatpush1.bf16.xpose.msra.mxu0 0
    %1335 = vmatprep.subr.bf16.mxu0 0
    %1336 = vmatpush1.bf16.xpose.msra.mxu0 0
    %1337 = vmatprep.subr.bf16.mxu0 0
    %1338 = vmatpush1.bf16.xpose.msra.mxu0 0
    %1339 = vmatprep.subr.bf16.mxu0 0
    %1340 = vmatpush1.bf16.xpose.msra.mxu0 0
    %1341 = vmatprep.subr.bf16.mxu0 0
    %1342 = vmatpush1.bf16.xpose.msra.mxu0 0
    %1343 = vmatprep.subr.bf16.mxu0 0
    %1344 = vmatpush1.bf16.xpose.msra.mxu0 0
    %1345 = vmatprep.mubr.bf16.mxu0 0
    %1346 = vmatmul.mubr.bf16.gmra.mrb[0].mxu0 %v1308
    %v1347 = vpop.f32.mrb[0].mxu0
    %v1348 = vadd.f32 0.0, %v1347
    %v1349 = vpop.f32.mrb[0].mxu0
    %v1350 = vpop.f32.mrb[0].mxu0
    %v1351 = vpop.f32.mrb[0].mxu0
    %1352 = vdwg.mxu0
    %v1353 = vmul.f32 %v1192, 0.35355338
    %v1354 = vmul.f32 %v1244, 0.35355338
    %v1355 = vmul.f32 %v1296, 0.35355338
    %v1356 = vmul.f32 %v1348, 0.35355338
    %v1357 = vsel %vm689, %v1353, -1e+32
    %v1358 = vsel %vm689, %v1354, -1e+32
    %v1359 = vsel %vm689, %v1355, -1e+32
    %v1360 = vsel %vm689, %v1356, -1e+32
    %v1361 = vsel %vm500, %v1357, -inf
    %1362 = vmax.xlane.f32.xlu0 %v1361
    %v1363 = vpop.xlane.xlu0 %1362
    %v1364 = vsel %vm500, %v1358, -inf
    %1365 = vmax.xlane.f32.xlu0 %v1364
    %v1366 = vpop.xlane.xlu0 %1365
    %v1367 = vsel %vm500, %v1359, -inf
    %1368 = vmax.xlane.f32.xlu0 %v1367
    %v1369 = vpop.xlane.xlu0 %1368
    %v1370 = vsel %vm500, %v1360, -inf
    %1371 = vmax.xlane.f32.xlu0 %v1370
    %v1372 = vpop.xlane.xlu0 %1371
    %v1373 = vsub.f32 %v1357, %v1363
    %v1374 = vsub.f32 %v1358, %v1366
    %v1375 = vsub.f32 %v1359, %v1369
    %v1376 = vsub.f32 %v1360, %v1372
    %v1377 = vmul.f32 %v1373, 1.442695
    %v1378 = vpow.pop %v1377
    %v1379 = vmul.f32 %v1374, 1.442695
    %v1380 = vpow.pop %v1379
    %v1381 = vmul.f32 %v1375, 1.442695
    %v1382 = vpow.pop %v1381
    %v1383 = vmul.f32 %v1376, 1.442695
    %v1384 = vpow.pop %v1383
    %v1385 = vsel %vm500, %v1378, 0.0
    %1386 = vadd.xlane.f32.xlu0 %v1385
    %v1387 = vpop.xlane.xlu0 %1386
    %v1388 = vsel %vm500, %v1380, 0.0
    %1389 = vadd.xlane.f32.xlu0 %v1388
    %v1390 = vpop.xlane.xlu0 %1389
    %v1391 = vsel %vm500, %v1382, 0.0
    %1392 = vadd.xlane.f32.xlu0 %v1391
    %v1393 = vpop.xlane.xlu0 %1392
    %v1394 = vsel %vm500, %v1384, 0.0
    %1395 = vadd.xlane.f32.xlu0 %v1394
    %v1396 = vpop.xlane.xlu0 %1395
    %v1397 = vrcp.pop %v1387
    %v1398 = vrcp.pop %v1390
    %v1399 = vrcp.pop %v1393
    %v1400 = vrcp.pop %v1396
    %v1401 = vmul.f32 %v1378, %v1397
    %v1402 = vmul.f32 %v1380, %v1398
    %v1403 = vmul.f32 %v1382, %v1399
    %v1404 = vmul.f32 %v1384, %v1400
    %v1405 = vmul.f32 %v1401, %v479
    %v1406 = vmul.f32 %v1402, %v479
    %v1407 = vmul.f32 %v1403, %v479
    %v1408 = vmul.f32 %v1404, %v479
    %v1410 = vsel %vm500, %v1405, 0
    %v1413 = vsel %vm500, %v1406, 0
    %v1416 = vsel %vm500, %v1407, 0
    %v1419 = vsel %vm500, %v1408, 0
    %1421 = vmatprep.subr.mxu0 0.0
    %1422 = vmatpush1.msra.mxu0 %v487
    %1423 = vmatprep.subr.mxu0 0.0
    %1424 = vmatpush1.msra.mxu0 0.0
    %1425 = vmatprep.subr.mxu0 0.0
    %1426 = vmatpush1.msra.mxu0 0.0
    %1427 = vmatprep.subr.mxu0 0.0
    %1428 = vmatpush1.msra.mxu0 0.0
    %1429 = vmatprep.subr.mxu0 0.0
    %1430 = vmatpush1.msra.mxu0 0.0
    %1431 = vmatprep.subr.mxu0 0.0
    %1432 = vmatpush1.msra.mxu0 0.0
    %1433 = vmatprep.subr.mxu0 0.0
    %1434 = vmatpush1.msra.mxu0 0.0
    %1435 = vmatprep.subr.mxu0 0.0
    %1436 = vmatpush1.msra.mxu0 0.0
    %1437 = vmatprep.subr.mxu0 0.0
    %1438 = vmatpush1.msra.mxu0 0.0
    %1439 = vmatprep.subr.mxu0 0.0
    %1440 = vmatpush1.msra.mxu0 0.0
    %1441 = vmatprep.subr.mxu0 0.0
    %1442 = vmatpush1.msra.mxu0 0.0
    %1443 = vmatprep.subr.mxu0 0.0
    %1444 = vmatpush1.msra.mxu0 0.0
    %1445 = vmatprep.subr.mxu0 0.0
    %1446 = vmatpush1.msra.mxu0 0.0
    %1447 = vmatprep.subr.mxu0 0.0
    %1448 = vmatpush1.msra.mxu0 0.0
    %1449 = vmatprep.subr.mxu0 0.0
    %1450 = vmatpush1.msra.mxu0 0.0
    %1451 = vmatprep.subr.mxu0 0.0
    %1452 = vmatpush1.msra.mxu0 0.0
    %1453 = vmatprep.subr.mxu0 0.0
    %1454 = vmatpush1.msra.mxu0 0.0
    %1455 = vmatprep.subr.mxu0 0.0
    %1456 = vmatpush1.msra.mxu0 0.0
    %1457 = vmatprep.subr.mxu0 0.0
    %1458 = vmatpush1.msra.mxu0 0.0
    %1459 = vmatprep.subr.mxu0 0.0
    %1460 = vmatpush1.msra.mxu0 0.0
    %1461 = vmatprep.subr.mxu0 0.0
    %1462 = vmatpush1.msra.mxu0 0.0
    %1463 = vmatprep.subr.mxu0 0.0
    %1464 = vmatpush1.msra.mxu0 0.0
    %1465 = vmatprep.subr.mxu0 0.0
    %1466 = vmatpush1.msra.mxu0 0.0
    %1467 = vmatprep.subr.mxu0 0.0
    %1468 = vmatpush1.msra.mxu0 0.0
    %1469 = vmatprep.subr.mxu0 0.0
    %1470 = vmatpush1.msra.mxu0 0.0
    %1471 = vmatprep.subr.mxu0 0.0
    %1472 = vmatpush1.msra.mxu0 0.0
    %1473 = vmatprep.subr.mxu0 0.0
    %1474 = vmatpush1.msra.mxu0 0.0
    %1475 = vmatprep.subr.mxu0 0.0
    %1476 = vmatpush1.msra.mxu0 0.0
    %1477 = vmatprep.subr.mxu0 0.0
    %1478 = vmatpush1.msra.mxu0 0.0
    %1479 = vmatprep.subr.mxu0 0.0
    %1480 = vmatpush1.msra.mxu0 0.0
    %1481 = vmatprep.subr.mxu0 0.0
    %1482 = vmatpush1.msra.mxu0 0.0
    %1483 = vmatprep.subr.mxu0 0.0
    %1484 = vmatpush1.msra.mxu0 0.0
    %1485 = vmatprep.mubr.f32.mxu0 0.0
    %1486 = vmatmul.mubr.f32.gmra.mrb[0].mxu0 %v1410
    %v1487 = vpop.f32.mrb[0].mxu0
    %v1488 = vadd.f32 0.0, %v1487
    %v1489 = vpop.f32.mrb[0].mxu0
    %1490 = vmatprep.mubr.f32.mxu0 0.0
    %1491 = vmatmul.mubr.f32.gmra.mrb[0].mxu0 %v1413
    %v1492 = vpop.f32.mrb[0].mxu0
    %v1493 = vadd.f32 0.0, %v1492
    %v1494 = vpop.f32.mrb[0].mxu0
    %1495 = vmatprep.mubr.f32.mxu0 0.0
    %1496 = vmatmul.mubr.f32.gmra.mrb[0].mxu0 %v1416
    %v1497 = vpop.f32.mrb[0].mxu0
    %v1498 = vadd.f32 0.0, %v1497
    %v1499 = vpop.f32.mrb[0].mxu0
    %1500 = vmatprep.mubr.f32.mxu0 0.0
    %1501 = vmatmul.mubr.f32.gmra.mrb[0].mxu0 %v1419
    %v1502 = vpop.f32.mrb[0].mxu0
    %v1503 = vadd.f32 0.0, %v1502
    %v1504 = vpop.f32.mrb[0].mxu0
    %1505 = vdwg.mxu0
    %v1506 = vmul.f32 %v1488, %v484
    %v1507 = vmul.f32 %v1493, %v484
    %v1508 = vmul.f32 %v1498, %v484
    %v1509 = vmul.f32 %v1503, %v484
    %v1510 = vmax.f32 %v1506, 0.0
    %v1511 = vmax.f32 %v1507, 0.0
    %v1512 = vmax.f32 %v1508, 0.0
    %v1513 = vmax.f32 %v1509, 0.0
    %v1514 = vrsqrt.pop %v1510
    %v1515 = vmul.f32 %v1510, %v1514
    %vm1516 = vcmp.eq.f32.partialorder %v1510, inf
    %v1517 = vsel %vm1516, %v1510, %v1515
    %vm1518 = vcmp.eq.f32.partialorder %v1510, 0.0
    %v1519 = vand.u32 %v1510, 2147483648
    %v1520 = vsel %vm1518, %v1519, %v1517
    %v1521 = vrsqrt.pop %v1511
    %v1522 = vmul.f32 %v1511, %v1521
    %vm1523 = vcmp.eq.f32.partialorder %v1511, inf
    %v1524 = vsel %vm1523, %v1511, %v1522
    %vm1525 = vcmp.eq.f32.partialorder %v1511, 0.0
    %v1526 = vand.u32 %v1511, 2147483648
    %v1527 = vsel %vm1525, %v1526, %v1524
    %v1528 = vrsqrt.pop %v1512
    %v1529 = vmul.f32 %v1512, %v1528
    %vm1530 = vcmp.eq.f32.partialorder %v1512, inf
    %v1531 = vsel %vm1530, %v1512, %v1529
    %vm1532 = vcmp.eq.f32.partialorder %v1512, 0.0
    %v1533 = vand.u32 %v1512, 2147483648
    %v1534 = vsel %vm1532, %v1533, %v1531
    %v1535 = vrsqrt.pop %v1513
    %v1536 = vmul.f32 %v1513, %v1535
    %vm1537 = vcmp.eq.f32.partialorder %v1513, inf
    %v1538 = vsel %vm1537, %v1513, %v1536
    %vm1539 = vcmp.eq.f32.partialorder %v1513, 0.0
    %v1540 = vand.u32 %v1513, 2147483648
    %v1541 = vsel %vm1539, %v1540, %v1538
    %s1542 = sld [smem:[#allocation2 + $0x1]]
    %v1543 = vstv %s1542
    %v1544 = vmul.f32 %v1520, %v1543
    %v1545 = vmul.f32 %v1527, %v1543
    %v1546 = vmul.f32 %v1534, %v1543
    %v1547 = vmul.f32 %v1541, %v1543
    %v1548 = vmax.f32 %v1544, -11.512925
    %v1549 = vmax.f32 %v1545, -11.512925
    %v1550 = vmax.f32 %v1546, -11.512925
    %v1551 = vmax.f32 %v1547, -11.512925
    %v1552 = vmin.f32 %v1548, 11.512925
    %v1553 = vmin.f32 %v1549, 11.512925
    %v1554 = vmin.f32 %v1550, 11.512925
    %v1555 = vmin.f32 %v1551, 11.512925
    %v1556 = vmul.f32 %v1552, 1.442695
    %v1557 = vpow.pop %v1556
    %v1558 = vmul.f32 %v1553, 1.442695
    %v1559 = vpow.pop %v1558
    %v1560 = vmul.f32 %v1554, 1.442695
    %v1561 = vpow.pop %v1560
    %v1562 = vmul.f32 %v1555, 1.442695
    %v1563 = vpow.pop %v1562
    %v1564 = vmul.f32 %v1353, %v1557
    %v1565 = vmul.f32 %v1354, %v1559
    %v1566 = vmul.f32 %v1355, %v1561
    %v1567 = vmul.f32 %v1356, %v1563
    %v1568 = vsel %vm689, %v1564, -1e+32
    %v1569 = vsel %vm689, %v1565, -1e+32
    %v1570 = vsel %vm689, %v1566, -1e+32
    %v1571 = vsel %vm689, %v1567, -1e+32
    %v1572 = vsel %vm500, %v1568, -inf
    %1573 = vmax.xlane.f32.xlu0 %v1572
    %v1574 = vpop.xlane.xlu0 %1573
    %v1575 = vsel %vm500, %v1569, -inf
    %1576 = vmax.xlane.f32.xlu0 %v1575
    %v1577 = vpop.xlane.xlu0 %1576
    %v1578 = vsel %vm500, %v1570, -inf
    %1579 = vmax.xlane.f32.xlu0 %v1578
    %v1580 = vpop.xlane.xlu0 %1579
    %v1581 = vsel %vm500, %v1571, -inf
    %1582 = vmax.xlane.f32.xlu0 %v1581
    %v1583 = vpop.xlane.xlu0 %1582
    %v1584 = vsub.f32 %v1568, %v1574
    %v1585 = vsub.f32 %v1569, %v1577
    %v1586 = vsub.f32 %v1570, %v1580
    %v1587 = vsub.f32 %v1571, %v1583
    %v1588 = vmul.f32 %v1584, 1.442695
    %v1589 = vpow.pop %v1588
    %v1590 = vmul.f32 %v1585, 1.442695
    %v1591 = vpow.pop %v1590
    %v1592 = vmul.f32 %v1586, 1.442695
    %v1593 = vpow.pop %v1592
    %v1594 = vmul.f32 %v1587, 1.442695
    %v1595 = vpow.pop %v1594
    %v1596 = vsel %vm500, %v1589, 0.0
    %1597 = vadd.xlane.f32.xlu0 %v1596
    %v1598 = vpop.xlane.xlu0 %1597
    %v1599 = vsel %vm500, %v1591, 0.0
    %1600 = vadd.xlane.f32.xlu0 %v1599
    %v1601 = vpop.xlane.xlu0 %1600
    %v1602 = vsel %vm500, %v1593, 0.0
    %1603 = vadd.xlane.f32.xlu0 %v1602
    %v1604 = vpop.xlane.xlu0 %1603
    %v1605 = vsel %vm500, %v1595, 0.0
    %1606 = vadd.xlane.f32.xlu0 %v1605
    %v1607 = vpop.xlane.xlu0 %1606
    %v1608 = vrcp.pop %v1598
    %v1609 = vrcp.pop %v1601
    %v1610 = vrcp.pop %v1604
    %v1611 = vrcp.pop %v1607
    %v1612 = vmul.f32 %v1589, %v1608
    %v1613 = vmul.f32 %v1591, %v1609
    %v1614 = vmul.f32 %v1593, %v1610
    %v1615 = vmul.f32 %v1595, %v1611
    %v1616 = vsel %vm951, 0.0, %v1612
    %v1617 = vsel %vm951, 0.0, %v1613
    %v1618 = vsel %vm951, 0.0, %v1614
    %v1619 = vsel %vm951, 0.0, %v1615
    %v1620 = vpack.c.bf16 %v1616, %v1616
    %v1621 = vpack.c.bf16 %v1617, %v1617
    %v1622 = vpack.c.bf16 %v1618, %v1618
    %v1623 = vpack.c.bf16 %v1619, %v1619
    %1625 = vrot.lane.b32.xlu0 %v496, 120
    %v1626 = vpop.permute.xlu0 %1625
    %v1628 = vsel %vm500, %v1620, 0
    %v1631 = vsel %vm963, %v1626, 0
    %1633 = vmatprep.subr.bf16.mxu0 0
    %1634 = vmatpush1.bf16.msra.mxu0 %v1631
    %1635 = vmatprep.subr.bf16.mxu0 0
    %1636 = vmatpush1.bf16.msra.mxu0 0
    %1637 = vmatprep.subr.bf16.mxu0 0
    %1638 = vmatpush1.bf16.msra.mxu0 0
    %1639 = vmatprep.subr.bf16.mxu0 0
    %1640 = vmatpush1.bf16.msra.mxu0 0
    %1641 = vmatprep.subr.bf16.mxu0 0
    %1642 = vmatpush1.bf16.msra.mxu0 0
    %1643 = vmatprep.subr.bf16.mxu0 0
    %1644 = vmatpush1.bf16.msra.mxu0 0
    %1645 = vmatprep.subr.bf16.mxu0 0
    %1646 = vmatpush1.bf16.msra.mxu0 0
    %1647 = vmatprep.subr.bf16.mxu0 0
    %1648 = vmatpush1.bf16.msra.mxu0 0
    %1649 = vmatprep.subr.bf16.mxu0 0
    %1650 = vmatpush1.bf16.msra.mxu0 0
    %1651 = vmatprep.subr.bf16.mxu0 0
    %1652 = vmatpush1.bf16.msra.mxu0 0
    %1653 = vmatprep.subr.bf16.mxu0 0
    %1654 = vmatpush1.bf16.msra.mxu0 0
    %1655 = vmatprep.subr.bf16.mxu0 0
    %1656 = vmatpush1.bf16.msra.mxu0 0
    %1657 = vmatprep.subr.bf16.mxu0 0
    %1658 = vmatpush1.bf16.msra.mxu0 0
    %1659 = vmatprep.subr.bf16.mxu0 0
    %1660 = vmatpush1.bf16.msra.mxu0 0
    %1661 = vmatprep.subr.bf16.mxu0 0
    %1662 = vmatpush1.bf16.msra.mxu0 0
    %1663 = vmatprep.subr.bf16.mxu0 0
    %1664 = vmatpush1.bf16.msra.mxu0 0
    %1665 = vmatprep.mubr.bf16.mxu0 0
    %1666 = vmatmul.mubr.bf16.gmra.mrb[0].mxu0 %v1628
    %v1667 = vpop.f32.mrb[0].mxu0
    %v1668 = vadd.f32 0.0, %v1667
    %v1669 = vpop.f32.mrb[0].mxu0
    %v1670 = vpop.f32.mrb[0].mxu0
    %v1671 = vpop.f32.mrb[0].mxu0
    %1672 = vdwg.mxu0
    %1674 = vrot.lane.b32.xlu0 %v497, 120
    %v1675 = vpop.permute.xlu0 %1674
    %v1677 = vsel %vm500, %v1621, 0
    %v1680 = vsel %vm963, %v1675, 0
    %1682 = vmatprep.subr.bf16.mxu0 0
    %1683 = vmatpush1.bf16.msra.mxu0 %v1680
    %1684 = vmatprep.subr.bf16.mxu0 0
    %1685 = vmatpush1.bf16.msra.mxu0 0
    %1686 = vmatprep.subr.bf16.mxu0 0
    %1687 = vmatpush1.bf16.msra.mxu0 0
    %1688 = vmatprep.subr.bf16.mxu0 0
    %1689 = vmatpush1.bf16.msra.mxu0 0
    %1690 = vmatprep.subr.bf16.mxu0 0
    %1691 = vmatpush1.bf16.msra.mxu0 0
    %1692 = vmatprep.subr.bf16.mxu0 0
    %1693 = vmatpush1.bf16.msra.mxu0 0
    %1694 = vmatprep.subr.bf16.mxu0 0
    %1695 = vmatpush1.bf16.msra.mxu0 0
    %1696 = vmatprep.subr.bf16.mxu0 0
    %1697 = vmatpush1.bf16.msra.mxu0 0
    %1698 = vmatprep.subr.bf16.mxu0 0
    %1699 = vmatpush1.bf16.msra.mxu0 0
    %1700 = vmatprep.subr.bf16.mxu0 0
    %1701 = vmatpush1.bf16.msra.mxu0 0
    %1702 = vmatprep.subr.bf16.mxu0 0
    %1703 = vmatpush1.bf16.msra.mxu0 0
    %1704 = vmatprep.subr.bf16.mxu0 0
    %1705 = vmatpush1.bf16.msra.mxu0 0
    %1706 = vmatprep.subr.bf16.mxu0 0
    %1707 = vmatpush1.bf16.msra.mxu0 0
    %1708 = vmatprep.subr.bf16.mxu0 0
    %1709 = vmatpush1.bf16.msra.mxu0 0
    %1710 = vmatprep.subr.bf16.mxu0 0
    %1711 = vmatpush1.bf16.msra.mxu0 0
    %1712 = vmatprep.subr.bf16.mxu0 0
    %1713 = vmatpush1.bf16.msra.mxu0 0
    %1714 = vmatprep.mubr.bf16.mxu0 0
    %1715 = vmatmul.mubr.bf16.gmra.mrb[0].mxu0 %v1677
    %v1716 = vpop.f32.mrb[0].mxu0
    %v1717 = vadd.f32 0.0, %v1716
    %v1718 = vpop.f32.mrb[0].mxu0
    %v1719 = vpop.f32.mrb[0].mxu0
    %v1720 = vpop.f32.mrb[0].mxu0
    %1721 = vdwg.mxu0
    %1723 = vrot.lane.b32.xlu0 %v498, 120
    %v1724 = vpop.permute.xlu0 %1723
    %v1726 = vsel %vm500, %v1622, 0
    %v1729 = vsel %vm963, %v1724, 0
    %1731 = vmatprep.subr.bf16.mxu0 0
    %1732 = vmatpush1.bf16.msra.mxu0 %v1729
    %1733 = vmatprep.subr.bf16.mxu0 0
    %1734 = vmatpush1.bf16.msra.mxu0 0
    %1735 = vmatprep.subr.bf16.mxu0 0
    %1736 = vmatpush1.bf16.msra.mxu0 0
    %1737 = vmatprep.subr.bf16.mxu0 0
    %1738 = vmatpush1.bf16.msra.mxu0 0
    %1739 = vmatprep.subr.bf16.mxu0 0
    %1740 = vmatpush1.bf16.msra.mxu0 0
    %1741 = vmatprep.subr.bf16.mxu0 0
    %1742 = vmatpush1.bf16.msra.mxu0 0
    %1743 = vmatprep.subr.bf16.mxu0 0
    %1744 = vmatpush1.bf16.msra.mxu0 0
    %1745 = vmatprep.subr.bf16.mxu0 0
    %1746 = vmatpush1.bf16.msra.mxu0 0
    %1747 = vmatprep.subr.bf16.mxu0 0
    %1748 = vmatpush1.bf16.msra.mxu0 0
    %1749 = vmatprep.subr.bf16.mxu0 0
    %1750 = vmatpush1.bf16.msra.mxu0 0
    %1751 = vmatprep.subr.bf16.mxu0 0
    %1752 = vmatpush1.bf16.msra.mxu0 0
    %1753 = vmatprep.subr.bf16.mxu0 0
    %1754 = vmatpush1.bf16.msra.mxu0 0
    %1755 = vmatprep.subr.bf16.mxu0 0
    %1756 = vmatpush1.bf16.msra.mxu0 0
    %1757 = vmatprep.subr.bf16.mxu0 0
    %1758 = vmatpush1.bf16.msra.mxu0 0
    %1759 = vmatprep.subr.bf16.mxu0 0
    %1760 = vmatpush1.bf16.msra.mxu0 0
    %1761 = vmatprep.subr.bf16.mxu0 0
    %1762 = vmatpush1.bf16.msra.mxu0 0
    %1763 = vmatprep.mubr.bf16.mxu0 0
    %1764 = vmatmul.mubr.bf16.gmra.mrb[0].mxu0 %v1726
    %v1765 = vpop.f32.mrb[0].mxu0
    %v1766 = vadd.f32 0.0, %v1765
    %v1767 = vpop.f32.mrb[0].mxu0
    %v1768 = vpop.f32.mrb[0].mxu0
    %v1769 = vpop.f32.mrb[0].mxu0
    %1770 = vdwg.mxu0
    %1772 = vrot.lane.b32.xlu0 %v499, 120
    %v1773 = vpop.permute.xlu0 %1772
    %v1775 = vsel %vm500, %v1623, 0
    %v1778 = vsel %vm963, %v1773, 0
    %1780 = vmatprep.subr.bf16.mxu0 0
    %1781 = vmatpush1.bf16.msra.mxu0 %v1778
    %1782 = vmatprep.subr.bf16.mxu0 0
    %1783 = vmatpush1.bf16.msra.mxu0 0
    %1784 = vmatprep.subr.bf16.mxu0 0
    %1785 = vmatpush1.bf16.msra.mxu0 0
    %1786 = vmatprep.subr.bf16.mxu0 0
    %1787 = vmatpush1.bf16.msra.mxu0 0
    %1788 = vmatprep.subr.bf16.mxu0 0
    %1789 = vmatpush1.bf16.msra.mxu0 0
    %1790 = vmatprep.subr.bf16.mxu0 0
    %1791 = vmatpush1.bf16.msra.mxu0 0
    %1792 = vmatprep.subr.bf16.mxu0 0
    %1793 = vmatpush1.bf16.msra.mxu0 0
    %1794 = vmatprep.subr.bf16.mxu0 0
    %1795 = vmatpush1.bf16.msra.mxu0 0
    %1796 = vmatprep.subr.bf16.mxu0 0
    %1797 = vmatpush1.bf16.msra.mxu0 0
    %1798 = vmatprep.subr.bf16.mxu0 0
    %1799 = vmatpush1.bf16.msra.mxu0 0
    %1800 = vmatprep.subr.bf16.mxu0 0
    %1801 = vmatpush1.bf16.msra.mxu0 0
    %1802 = vmatprep.subr.bf16.mxu0 0
    %1803 = vmatpush1.bf16.msra.mxu0 0
    %1804 = vmatprep.subr.bf16.mxu0 0
    %1805 = vmatpush1.bf16.msra.mxu0 0
    %1806 = vmatprep.subr.bf16.mxu0 0
    %1807 = vmatpush1.bf16.msra.mxu0 0
    %1808 = vmatprep.subr.bf16.mxu0 0
    %1809 = vmatpush1.bf16.msra.mxu0 0
    %1810 = vmatprep.subr.bf16.mxu0 0
    %1811 = vmatpush1.bf16.msra.mxu0 0
    %1812 = vmatprep.mubr.bf16.mxu0 0
    %1813 = vmatmul.mubr.bf16.gmra.mrb[0].mxu0 %v1775
    %v1814 = vpop.f32.mrb[0].mxu0
    %v1815 = vadd.f32 0.0, %v1814
    %v1816 = vpop.f32.mrb[0].mxu0
    %v1817 = vpop.f32.mrb[0].mxu0
    %v1818 = vpop.f32.mrb[0].mxu0
    %1819 = vdwg.mxu0
    %1820 = vrot.lane.b32.xlu0 %v488, 112
    %v1821 = vpop.permute.xlu0 %1820
    %1822 = vrot.lane.b32.xlu0 %v492, 112
    %v1823 = vpop.permute.xlu0 %1822
    %v1825 = vsel %vm500, %v1821, 0
    %v1828 = vsel %vm500, %v1823, 0
    %1830 = vmatprep.subr.bf16.mxu0 0
    %1831 = vmatpush1.bf16.xpose.msra.mxu0 %v1828
    %1832 = vmatprep.subr.bf16.mxu0 0
    %1833 = vmatpush1.bf16.xpose.msra.mxu0 0
    %1834 = vmatprep.subr.bf16.mxu0 0
    %1835 = vmatpush1.bf16.xpose.msra.mxu0 0
    %1836 = vmatprep.subr.bf16.mxu0 0
    %1837 = vmatpush1.bf16.xpose.msra.mxu0 0
    %1838 = vmatprep.subr.bf16.mxu0 0
    %1839 = vmatpush1.bf16.xpose.msra.mxu0 0
    %1840 = vmatprep.subr.bf16.mxu0 0
    %1841 = vmatpush1.bf16.xpose.msra.mxu0 0
    %1842 = vmatprep.subr.bf16.mxu0 0
    %1843 = vmatpush1.bf16.xpose.msra.mxu0 0
    %1844 = vmatprep.subr.bf16.mxu0 0
    %1845 = vmatpush1.bf16.xpose.msra.mxu0 0
    %1846 = vmatprep.subr.bf16.mxu0 0
    %1847 = vmatpush1.bf16.xpose.msra.mxu0 0
    %1848 = vmatprep.subr.bf16.mxu0 0
    %1849 = vmatpush1.bf16.xpose.msra.mxu0 0
    %1850 = vmatprep.subr.bf16.mxu0 0
    %1851 = vmatpush1.bf16.xpose.msra.mxu0 0
    %1852 = vmatprep.subr.bf16.mxu0 0
    %1853 = vmatpush1.bf16.xpose.msra.mxu0 0
    %1854 = vmatprep.subr.bf16.mxu0 0
    %1855 = vmatpush1.bf16.xpose.msra.mxu0 0
    %1856 = vmatprep.subr.bf16.mxu0 0
    %1857 = vmatpush1.bf16.xpose.msra.mxu0 0
    %1858 = vmatprep.subr.bf16.mxu0 0
    %1859 = vmatpush1.bf16.xpose.msra.mxu0 0
    %1860 = vmatprep.subr.bf16.mxu0 0
    %1861 = vmatpush1.bf16.xpose.msra.mxu0 0
    %1862 = vmatprep.mubr.bf16.mxu0 0
    %1863 = vmatmul.mubr.bf16.gmra.mrb[0].mxu0 %v1825
    %v1864 = vpop.f32.mrb[0].mxu0
    %v1865 = vadd.f32 0.0, %v1864
    %v1866 = vpop.f32.mrb[0].mxu0
    %v1867 = vpop.f32.mrb[0].mxu0
    %v1868 = vpop.f32.mrb[0].mxu0
    %1869 = vdwg.mxu0
    %1870 = vrot.lane.b32.xlu0 %v489, 112
    %v1871 = vpop.permute.xlu0 %1870
    %1872 = vrot.lane.b32.xlu0 %v493, 112
    %v1873 = vpop.permute.xlu0 %1872
    %v1875 = vsel %vm500, %v1871, 0
    %v1878 = vsel %vm500, %v1873, 0
    %1880 = vmatprep.subr.bf16.mxu0 0
    %1881 = vmatpush1.bf16.xpose.msra.mxu0 %v1878
    %1882 = vmatprep.subr.bf16.mxu0 0
    %1883 = vmatpush1.bf16.xpose.msra.mxu0 0
    %1884 = vmatprep.subr.bf16.mxu0 0
    %1885 = vmatpush1.bf16.xpose.msra.mxu0 0
    %1886 = vmatprep.subr.bf16.mxu0 0
    %1887 = vmatpush1.bf16.xpose.msra.mxu0 0
    %1888 = vmatprep.subr.bf16.mxu0 0
    %1889 = vmatpush1.bf16.xpose.msra.mxu0 0
    %1890 = vmatprep.subr.bf16.mxu0 0
    %1891 = vmatpush1.bf16.xpose.msra.mxu0 0
    %1892 = vmatprep.subr.bf16.mxu0 0
    %1893 = vmatpush1.bf16.xpose.msra.mxu0 0
    %1894 = vmatprep.subr.bf16.mxu0 0
    %1895 = vmatpush1.bf16.xpose.msra.mxu0 0
    %1896 = vmatprep.subr.bf16.mxu0 0
    %1897 = vmatpush1.bf16.xpose.msra.mxu0 0
    %1898 = vmatprep.subr.bf16.mxu0 0
    %1899 = vmatpush1.bf16.xpose.msra.mxu0 0
    %1900 = vmatprep.subr.bf16.mxu0 0
    %1901 = vmatpush1.bf16.xpose.msra.mxu0 0
    %1902 = vmatprep.subr.bf16.mxu0 0
    %1903 = vmatpush1.bf16.xpose.msra.mxu0 0
    %1904 = vmatprep.subr.bf16.mxu0 0
    %1905 = vmatpush1.bf16.xpose.msra.mxu0 0
    %1906 = vmatprep.subr.bf16.mxu0 0
    %1907 = vmatpush1.bf16.xpose.msra.mxu0 0
    %1908 = vmatprep.subr.bf16.mxu0 0
    %1909 = vmatpush1.bf16.xpose.msra.mxu0 0
    %1910 = vmatprep.subr.bf16.mxu0 0
    %1911 = vmatpush1.bf16.xpose.msra.mxu0 0
    %1912 = vmatprep.mubr.bf16.mxu0 0
    %1913 = vmatmul.mubr.bf16.gmra.mrb[0].mxu0 %v1875
    %v1914 = vpop.f32.mrb[0].mxu0
    %v1915 = vadd.f32 0.0, %v1914
    %v1916 = vpop.f32.mrb[0].mxu0
    %v1917 = vpop.f32.mrb[0].mxu0
    %v1918 = vpop.f32.mrb[0].mxu0
    %1919 = vdwg.mxu0
    %1920 = vrot.lane.b32.xlu0 %v490, 112
    %v1921 = vpop.permute.xlu0 %1920
    %1922 = vrot.lane.b32.xlu0 %v494, 112
    %v1923 = vpop.permute.xlu0 %1922
    %v1925 = vsel %vm500, %v1921, 0
    %v1928 = vsel %vm500, %v1923, 0
    %1930 = vmatprep.subr.bf16.mxu0 0
    %1931 = vmatpush1.bf16.xpose.msra.mxu0 %v1928
    %1932 = vmatprep.subr.bf16.mxu0 0
    %1933 = vmatpush1.bf16.xpose.msra.mxu0 0
    %1934 = vmatprep.subr.bf16.mxu0 0
    %1935 = vmatpush1.bf16.xpose.msra.mxu0 0
    %1936 = vmatprep.subr.bf16.mxu0 0
    %1937 = vmatpush1.bf16.xpose.msra.mxu0 0
    %1938 = vmatprep.subr.bf16.mxu0 0
    %1939 = vmatpush1.bf16.xpose.msra.mxu0 0
    %1940 = vmatprep.subr.bf16.mxu0 0
    %1941 = vmatpush1.bf16.xpose.msra.mxu0 0
    %1942 = vmatprep.subr.bf16.mxu0 0
    %1943 = vmatpush1.bf16.xpose.msra.mxu0 0
    %1944 = vmatprep.subr.bf16.mxu0 0
    %1945 = vmatpush1.bf16.xpose.msra.mxu0 0
    %1946 = vmatprep.subr.bf16.mxu0 0
    %1947 = vmatpush1.bf16.xpose.msra.mxu0 0
    %1948 = vmatprep.subr.bf16.mxu0 0
    %1949 = vmatpush1.bf16.xpose.msra.mxu0 0
    %1950 = vmatprep.subr.bf16.mxu0 0
    %1951 = vmatpush1.bf16.xpose.msra.mxu0 0
    %1952 = vmatprep.subr.bf16.mxu0 0
    %1953 = vmatpush1.bf16.xpose.msra.mxu0 0
    %1954 = vmatprep.subr.bf16.mxu0 0
    %1955 = vmatpush1.bf16.xpose.msra.mxu0 0
    %1956 = vmatprep.subr.bf16.mxu0 0
    %1957 = vmatpush1.bf16.xpose.msra.mxu0 0
    %1958 = vmatprep.subr.bf16.mxu0 0
    %1959 = vmatpush1.bf16.xpose.msra.mxu0 0
    %1960 = vmatprep.subr.bf16.mxu0 0
    %1961 = vmatpush1.bf16.xpose.msra.mxu0 0
    %1962 = vmatprep.mubr.bf16.mxu0 0
    %1963 = vmatmul.mubr.bf16.gmra.mrb[0].mxu0 %v1925
    %v1964 = vpop.f32.mrb[0].mxu0
    %v1965 = vadd.f32 0.0, %v1964
    %v1966 = vpop.f32.mrb[0].mxu0
    %v1967 = vpop.f32.mrb[0].mxu0
    %v1968 = vpop.f32.mrb[0].mxu0
    %1969 = vdwg.mxu0
    %1970 = vrot.lane.b32.xlu0 %v491, 112
    %v1971 = vpop.permute.xlu0 %1970
    %1972 = vrot.lane.b32.xlu0 %v495, 112
    %v1973 = vpop.permute.xlu0 %1972
    %v1975 = vsel %vm500, %v1971, 0
    %v1978 = vsel %vm500, %v1973, 0
    %1980 = vmatprep.subr.bf16.mxu0 0
    %1981 = vmatpush1.bf16.xpose.msra.mxu0 %v1978
    %1982 = vmatprep.subr.bf16.mxu0 0
    %1983 = vmatpush1.bf16.xpose.msra.mxu0 0
    %1984 = vmatprep.subr.bf16.mxu0 0
    %1985 = vmatpush1.bf16.xpose.msra.mxu0 0
    %1986 = vmatprep.subr.bf16.mxu0 0
    %1987 = vmatpush1.bf16.xpose.msra.mxu0 0
    %1988 = vmatprep.subr.bf16.mxu0 0
    %1989 = vmatpush1.bf16.xpose.msra.mxu0 0
    %1990 = vmatprep.subr.bf16.mxu0 0
    %1991 = vmatpush1.bf16.xpose.msra.mxu0 0
    %1992 = vmatprep.subr.bf16.mxu0 0
    %1993 = vmatpush1.bf16.xpose.msra.mxu0 0
    %1994 = vmatprep.subr.bf16.mxu0 0
    %1995 = vmatpush1.bf16.xpose.msra.mxu0 0
    %1996 = vmatprep.subr.bf16.mxu0 0
    %1997 = vmatpush1.bf16.xpose.msra.mxu0 0
    %1998 = vmatprep.subr.bf16.mxu0 0
    %1999 = vmatpush1.bf16.xpose.msra.mxu0 0
    %2000 = vmatprep.subr.bf16.mxu0 0
    %2001 = vmatpush1.bf16.xpose.msra.mxu0 0
    %2002 = vmatprep.subr.bf16.mxu0 0
    %2003 = vmatpush1.bf16.xpose.msra.mxu0 0
    %2004 = vmatprep.subr.bf16.mxu0 0
    %2005 = vmatpush1.bf16.xpose.msra.mxu0 0
    %2006 = vmatprep.subr.bf16.mxu0 0
    %2007 = vmatpush1.bf16.xpose.msra.mxu0 0
    %2008 = vmatprep.subr.bf16.mxu0 0
    %2009 = vmatpush1.bf16.xpose.msra.mxu0 0
    %2010 = vmatprep.subr.bf16.mxu0 0
    %2011 = vmatpush1.bf16.xpose.msra.mxu0 0
    %2012 = vmatprep.mubr.bf16.mxu0 0
    %2013 = vmatmul.mubr.bf16.gmra.mrb[0].mxu0 %v1975
    %v2014 = vpop.f32.mrb[0].mxu0
    %v2015 = vadd.f32 0.0, %v2014
    %v2016 = vpop.f32.mrb[0].mxu0
    %v2017 = vpop.f32.mrb[0].mxu0
    %v2018 = vpop.f32.mrb[0].mxu0
    %2019 = vdwg.mxu0
    %v2020 = vmul.f32 %v1865, 0.35355338
    %v2021 = vmul.f32 %v1915, 0.35355338
    %v2022 = vmul.f32 %v1965, 0.35355338
    %v2023 = vmul.f32 %v2015, 0.35355338
    %v2024 = vsel %vm689, %v2020, -1e+32
    %v2025 = vsel %vm689, %v2021, -1e+32
    %v2026 = vsel %vm689, %v2022, -1e+32
    %v2027 = vsel %vm689, %v2023, -1e+32
    %v2028 = vsel %vm500, %v2024, -inf
    %2029 = vmax.xlane.f32.xlu0 %v2028
    %v2030 = vpop.xlane.xlu0 %2029
    %v2031 = vsel %vm500, %v2025, -inf
    %2032 = vmax.xlane.f32.xlu0 %v2031
    %v2033 = vpop.xlane.xlu0 %2032
    %v2034 = vsel %vm500, %v2026, -inf
    %2035 = vmax.xlane.f32.xlu0 %v2034
    %v2036 = vpop.xlane.xlu0 %2035
    %v2037 = vsel %vm500, %v2027, -inf
    %2038 = vmax.xlane.f32.xlu0 %v2037
    %v2039 = vpop.xlane.xlu0 %2038
    %v2040 = vsub.f32 %v2024, %v2030
    %v2041 = vsub.f32 %v2025, %v2033
    %v2042 = vsub.f32 %v2026, %v2036
    %v2043 = vsub.f32 %v2027, %v2039
    %v2044 = vmul.f32 %v2040, 1.442695
    %v2045 = vpow.pop %v2044
    %v2046 = vmul.f32 %v2041, 1.442695
    %v2047 = vpow.pop %v2046
    %v2048 = vmul.f32 %v2042, 1.442695
    %v2049 = vpow.pop %v2048
    %v2050 = vmul.f32 %v2043, 1.442695
    %v2051 = vpow.pop %v2050
    %v2052 = vsel %vm500, %v2045, 0.0
    %2053 = vadd.xlane.f32.xlu0 %v2052
    %v2054 = vpop.xlane.xlu0 %2053
    %v2055 = vsel %vm500, %v2047, 0.0
    %2056 = vadd.xlane.f32.xlu0 %v2055
    %v2057 = vpop.xlane.xlu0 %2056
    %v2058 = vsel %vm500, %v2049, 0.0
    %2059 = vadd.xlane.f32.xlu0 %v2058
    %v2060 = vpop.xlane.xlu0 %2059
    %v2061 = vsel %vm500, %v2051, 0.0
    %2062 = vadd.xlane.f32.xlu0 %v2061
    %v2063 = vpop.xlane.xlu0 %2062
    %v2064 = vrcp.pop %v2054
    %v2065 = vrcp.pop %v2057
    %v2066 = vrcp.pop %v2060
    %v2067 = vrcp.pop %v2063
    %v2068 = vmul.f32 %v2045, %v2064
    %v2069 = vmul.f32 %v2047, %v2065
    %v2070 = vmul.f32 %v2049, %v2066
    %v2071 = vmul.f32 %v2051, %v2067
    %v2072 = vmul.f32 %v2068, %v479
    %v2073 = vmul.f32 %v2069, %v479
    %v2074 = vmul.f32 %v2070, %v479
    %v2075 = vmul.f32 %v2071, %v479
    %v2077 = vsel %vm500, %v2072, 0
    %v2080 = vsel %vm500, %v2073, 0
    %v2083 = vsel %vm500, %v2074, 0
    %v2086 = vsel %vm500, %v2075, 0
    %2088 = vmatprep.subr.mxu0 0.0
    %2089 = vmatpush1.msra.mxu0 %v487
    %2090 = vmatprep.subr.mxu0 0.0
    %2091 = vmatpush1.msra.mxu0 0.0
    %2092 = vmatprep.subr.mxu0 0.0
    %2093 = vmatpush1.msra.mxu0 0.0
    %2094 = vmatprep.subr.mxu0 0.0
    %2095 = vmatpush1.msra.mxu0 0.0
    %2096 = vmatprep.subr.mxu0 0.0
    %2097 = vmatpush1.msra.mxu0 0.0
    %2098 = vmatprep.subr.mxu0 0.0
    %2099 = vmatpush1.msra.mxu0 0.0
    %2100 = vmatprep.subr.mxu0 0.0
    %2101 = vmatpush1.msra.mxu0 0.0
    %2102 = vmatprep.subr.mxu0 0.0
    %2103 = vmatpush1.msra.mxu0 0.0
    %2104 = vmatprep.subr.mxu0 0.0
    %2105 = vmatpush1.msra.mxu0 0.0
    %2106 = vmatprep.subr.mxu0 0.0
    %2107 = vmatpush1.msra.mxu0 0.0
    %2108 = vmatprep.subr.mxu0 0.0
    %2109 = vmatpush1.msra.mxu0 0.0
    %2110 = vmatprep.subr.mxu0 0.0
    %2111 = vmatpush1.msra.mxu0 0.0
    %2112 = vmatprep.subr.mxu0 0.0
    %2113 = vmatpush1.msra.mxu0 0.0
    %2114 = vmatprep.subr.mxu0 0.0
    %2115 = vmatpush1.msra.mxu0 0.0
    %2116 = vmatprep.subr.mxu0 0.0
    %2117 = vmatpush1.msra.mxu0 0.0
    %2118 = vmatprep.subr.mxu0 0.0
    %2119 = vmatpush1.msra.mxu0 0.0
    %2120 = vmatprep.subr.mxu0 0.0
    %2121 = vmatpush1.msra.mxu0 0.0
    %2122 = vmatprep.subr.mxu0 0.0
    %2123 = vmatpush1.msra.mxu0 0.0
    %2124 = vmatprep.subr.mxu0 0.0
    %2125 = vmatpush1.msra.mxu0 0.0
    %2126 = vmatprep.subr.mxu0 0.0
    %2127 = vmatpush1.msra.mxu0 0.0
    %2128 = vmatprep.subr.mxu0 0.0
    %2129 = vmatpush1.msra.mxu0 0.0
    %2130 = vmatprep.subr.mxu0 0.0
    %2131 = vmatpush1.msra.mxu0 0.0
    %2132 = vmatprep.subr.mxu0 0.0
    %2133 = vmatpush1.msra.mxu0 0.0
    %2134 = vmatprep.subr.mxu0 0.0
    %2135 = vmatpush1.msra.mxu0 0.0
    %2136 = vmatprep.subr.mxu0 0.0
    %2137 = vmatpush1.msra.mxu0 0.0
    %2138 = vmatprep.subr.mxu0 0.0
    %2139 = vmatpush1.msra.mxu0 0.0
    %2140 = vmatprep.subr.mxu0 0.0
    %2141 = vmatpush1.msra.mxu0 0.0
    %2142 = vmatprep.subr.mxu0 0.0
    %2143 = vmatpush1.msra.mxu0 0.0
    %2144 = vmatprep.subr.mxu0 0.0
    %2145 = vmatpush1.msra.mxu0 0.0
    %2146 = vmatprep.subr.mxu0 0.0
    %2147 = vmatpush1.msra.mxu0 0.0
    %2148 = vmatprep.subr.mxu0 0.0
    %2149 = vmatpush1.msra.mxu0 0.0
    %2150 = vmatprep.subr.mxu0 0.0
    %2151 = vmatpush1.msra.mxu0 0.0
    %2152 = vmatprep.mubr.f32.mxu0 0.0
    %2153 = vmatmul.mubr.f32.gmra.mrb[0].mxu0 %v2077
    %v2154 = vpop.f32.mrb[0].mxu0
    %v2155 = vadd.f32 0.0, %v2154
    %v2156 = vpop.f32.mrb[0].mxu0
    %2157 = vmatprep.mubr.f32.mxu0 0.0
    %2158 = vmatmul.mubr.f32.gmra.mrb[0].mxu0 %v2080
    %v2159 = vpop.f32.mrb[0].mxu0
    %v2160 = vadd.f32 0.0, %v2159
    %v2161 = vpop.f32.mrb[0].mxu0
    %2162 = vmatprep.mubr.f32.mxu0 0.0
    %2163 = vmatmul.mubr.f32.gmra.mrb[0].mxu0 %v2083
    %v2164 = vpop.f32.mrb[0].mxu0
    %v2165 = vadd.f32 0.0, %v2164
    %v2166 = vpop.f32.mrb[0].mxu0
    %2167 = vmatprep.mubr.f32.mxu0 0.0
    %2168 = vmatmul.mubr.f32.gmra.mrb[0].mxu0 %v2086
    %v2169 = vpop.f32.mrb[0].mxu0
    %v2170 = vadd.f32 0.0, %v2169
    %v2171 = vpop.f32.mrb[0].mxu0
    %2172 = vdwg.mxu0
    %v2173 = vmul.f32 %v2155, %v484
    %v2174 = vmul.f32 %v2160, %v484
    %v2175 = vmul.f32 %v2165, %v484
    %v2176 = vmul.f32 %v2170, %v484
    %v2177 = vmax.f32 %v2173, 0.0
    %v2178 = vmax.f32 %v2174, 0.0
    %v2179 = vmax.f32 %v2175, 0.0
    %v2180 = vmax.f32 %v2176, 0.0
    %v2181 = vrsqrt.pop %v2177
    %v2182 = vmul.f32 %v2177, %v2181
    %vm2183 = vcmp.eq.f32.partialorder %v2177, inf
    %v2184 = vsel %vm2183, %v2177, %v2182
    %vm2185 = vcmp.eq.f32.partialorder %v2177, 0.0
    %v2186 = vand.u32 %v2177, 2147483648
    %v2187 = vsel %vm2185, %v2186, %v2184
    %v2188 = vrsqrt.pop %v2178
    %v2189 = vmul.f32 %v2178, %v2188
    %vm2190 = vcmp.eq.f32.partialorder %v2178, inf
    %v2191 = vsel %vm2190, %v2178, %v2189
    %vm2192 = vcmp.eq.f32.partialorder %v2178, 0.0
    %v2193 = vand.u32 %v2178, 2147483648
    %v2194 = vsel %vm2192, %v2193, %v2191
    %v2195 = vrsqrt.pop %v2179
    %v2196 = vmul.f32 %v2179, %v2195
    %vm2197 = vcmp.eq.f32.partialorder %v2179, inf
    %v2198 = vsel %vm2197, %v2179, %v2196
    %vm2199 = vcmp.eq.f32.partialorder %v2179, 0.0
    %v2200 = vand.u32 %v2179, 2147483648
    %v2201 = vsel %vm2199, %v2200, %v2198
    %v2202 = vrsqrt.pop %v2180
    %v2203 = vmul.f32 %v2180, %v2202
    %vm2204 = vcmp.eq.f32.partialorder %v2180, inf
    %v2205 = vsel %vm2204, %v2180, %v2203
    %vm2206 = vcmp.eq.f32.partialorder %v2180, 0.0
    %v2207 = vand.u32 %v2180, 2147483648
    %v2208 = vsel %vm2206, %v2207, %v2205
    %s2209 = sld [smem:[#allocation2 + $0x2]]
    %v2210 = vstv %s2209
    %v2211 = vmul.f32 %v2187, %v2210
    %v2212 = vmul.f32 %v2194, %v2210
    %v2213 = vmul.f32 %v2201, %v2210
    %v2214 = vmul.f32 %v2208, %v2210
    %v2215 = vmax.f32 %v2211, -11.512925
    %v2216 = vmax.f32 %v2212, -11.512925
    %v2217 = vmax.f32 %v2213, -11.512925
    %v2218 = vmax.f32 %v2214, -11.512925
    %v2219 = vmin.f32 %v2215, 11.512925
    %v2220 = vmin.f32 %v2216, 11.512925
    %v2221 = vmin.f32 %v2217, 11.512925
    %v2222 = vmin.f32 %v2218, 11.512925
    %v2223 = vmul.f32 %v2219, 1.442695
    %v2224 = vpow.pop %v2223
    %v2225 = vmul.f32 %v2220, 1.442695
    %v2226 = vpow.pop %v2225
    %v2227 = vmul.f32 %v2221, 1.442695
    %v2228 = vpow.pop %v2227
    %v2229 = vmul.f32 %v2222, 1.442695
    %v2230 = vpow.pop %v2229
    %v2231 = vmul.f32 %v2020, %v2224
    %v2232 = vmul.f32 %v2021, %v2226
    %v2233 = vmul.f32 %v2022, %v2228
    %v2234 = vmul.f32 %v2023, %v2230
    %v2235 = vsel %vm689, %v2231, -1e+32
    %v2236 = vsel %vm689, %v2232, -1e+32
    %v2237 = vsel %vm689, %v2233, -1e+32
    %v2238 = vsel %vm689, %v2234, -1e+32
    %v2239 = vsel %vm500, %v2235, -inf
    %2240 = vmax.xlane.f32.xlu0 %v2239
    %v2241 = vpop.xlane.xlu0 %2240
    %v2242 = vsel %vm500, %v2236, -inf
    %2243 = vmax.xlane.f32.xlu0 %v2242
    %v2244 = vpop.xlane.xlu0 %2243
    %v2245 = vsel %vm500, %v2237, -inf
    %2246 = vmax.xlane.f32.xlu0 %v2245
    %v2247 = vpop.xlane.xlu0 %2246
    %v2248 = vsel %vm500, %v2238, -inf
    %2249 = vmax.xlane.f32.xlu0 %v2248
    %v2250 = vpop.xlane.xlu0 %2249
    %v2251 = vsub.f32 %v2235, %v2241
    %v2252 = vsub.f32 %v2236, %v2244
    %v2253 = vsub.f32 %v2237, %v2247
    %v2254 = vsub.f32 %v2238, %v2250
    %v2255 = vmul.f32 %v2251, 1.442695
    %v2256 = vpow.pop %v2255
    %v2257 = vmul.f32 %v2252, 1.442695
    %v2258 = vpow.pop %v2257
    %v2259 = vmul.f32 %v2253, 1.442695
    %v2260 = vpow.pop %v2259
    %v2261 = vmul.f32 %v2254, 1.442695
    %v2262 = vpow.pop %v2261
    %v2263 = vsel %vm500, %v2256, 0.0
    %2264 = vadd.xlane.f32.xlu0 %v2263
    %v2265 = vpop.xlane.xlu0 %2264
    %v2266 = vsel %vm500, %v2258, 0.0
    %2267 = vadd.xlane.f32.xlu0 %v2266
    %v2268 = vpop.xlane.xlu0 %2267
    %v2269 = vsel %vm500, %v2260, 0.0
    %2270 = vadd.xlane.f32.xlu0 %v2269
    %v2271 = vpop.xlane.xlu0 %2270
    %v2272 = vsel %vm500, %v2262, 0.0
    %2273 = vadd.xlane.f32.xlu0 %v2272
    %v2274 = vpop.xlane.xlu0 %2273
    %v2275 = vrcp.pop %v2265
    %v2276 = vrcp.pop %v2268
    %v2277 = vrcp.pop %v2271
    %v2278 = vrcp.pop %v2274
    %v2279 = vmul.f32 %v2256, %v2275
    %v2280 = vmul.f32 %v2258, %v2276
    %v2281 = vmul.f32 %v2260, %v2277
    %v2282 = vmul.f32 %v2262, %v2278
    %v2283 = vsel %vm951, 0.0, %v2279
    %v2284 = vsel %vm951, 0.0, %v2280
    %v2285 = vsel %vm951, 0.0, %v2281
    %v2286 = vsel %vm951, 0.0, %v2282
    %v2287 = vpack.c.bf16 %v2283, %v2283
    %v2288 = vpack.c.bf16 %v2284, %v2284
    %v2289 = vpack.c.bf16 %v2285, %v2285
    %v2290 = vpack.c.bf16 %v2286, %v2286
    %2291 = vrot.lane.b32.xlu0 %v496, 112
    %v2292 = vpop.permute.xlu0 %2291
    %v2294 = vsel %vm500, %v2287, 0
    %v2297 = vsel %vm963, %v2292, 0
    %2299 = vmatprep.subr.bf16.mxu0 0
    %2300 = vmatpush1.bf16.msra.mxu0 %v2297
    %2301 = vmatprep.subr.bf16.mxu0 0
    %2302 = vmatpush1.bf16.msra.mxu0 0
    %2303 = vmatprep.subr.bf16.mxu0 0
    %2304 = vmatpush1.bf16.msra.mxu0 0
    %2305 = vmatprep.subr.bf16.mxu0 0
    %2306 = vmatpush1.bf16.msra.mxu0 0
    %2307 = vmatprep.subr.bf16.mxu0 0
    %2308 = vmatpush1.bf16.msra.mxu0 0
    %2309 = vmatprep.subr.bf16.mxu0 0
    %2310 = vmatpush1.bf16.msra.mxu0 0
    %2311 = vmatprep.subr.bf16.mxu0 0
    %2312 = vmatpush1.bf16.msra.mxu0 0
    %2313 = vmatprep.subr.bf16.mxu0 0
    %2314 = vmatpush1.bf16.msra.mxu0 0
    %2315 = vmatprep.subr.bf16.mxu0 0
    %2316 = vmatpush1.bf16.msra.mxu0 0
    %2317 = vmatprep.subr.bf16.mxu0 0
    %2318 = vmatpush1.bf16.msra.mxu0 0
    %2319 = vmatprep.subr.bf16.mxu0 0
    %2320 = vmatpush1.bf16.msra.mxu0 0
    %2321 = vmatprep.subr.bf16.mxu0 0
    %2322 = vmatpush1.bf16.msra.mxu0 0
    %2323 = vmatprep.subr.bf16.mxu0 0
    %2324 = vmatpush1.bf16.msra.mxu0 0
    %2325 = vmatprep.subr.bf16.mxu0 0
    %2326 = vmatpush1.bf16.msra.mxu0 0
    %2327 = vmatprep.subr.bf16.mxu0 0
    %2328 = vmatpush1.bf16.msra.mxu0 0
    %2329 = vmatprep.subr.bf16.mxu0 0
    %2330 = vmatpush1.bf16.msra.mxu0 0
    %2331 = vmatprep.mubr.bf16.mxu0 0
    %2332 = vmatmul.mubr.bf16.gmra.mrb[0].mxu0 %v2294
    %v2333 = vpop.f32.mrb[0].mxu0
    %v2334 = vadd.f32 0.0, %v2333
    %v2335 = vpop.f32.mrb[0].mxu0
    %v2336 = vpop.f32.mrb[0].mxu0
    %v2337 = vpop.f32.mrb[0].mxu0
    %2338 = vdwg.mxu0
    %2339 = vrot.lane.b32.xlu0 %v497, 112
    %v2340 = vpop.permute.xlu0 %2339
    %v2342 = vsel %vm500, %v2288, 0
    %v2345 = vsel %vm963, %v2340, 0
    %2347 = vmatprep.subr.bf16.mxu0 0
    %2348 = vmatpush1.bf16.msra.mxu0 %v2345
    %2349 = vmatprep.subr.bf16.mxu0 0
    %2350 = vmatpush1.bf16.msra.mxu0 0
    %2351 = vmatprep.subr.bf16.mxu0 0
    %2352 = vmatpush1.bf16.msra.mxu0 0
    %2353 = vmatprep.subr.bf16.mxu0 0
    %2354 = vmatpush1.bf16.msra.mxu0 0
    %2355 = vmatprep.subr.bf16.mxu0 0
    %2356 = vmatpush1.bf16.msra.mxu0 0
    %2357 = vmatprep.subr.bf16.mxu0 0
    %2358 = vmatpush1.bf16.msra.mxu0 0
    %2359 = vmatprep.subr.bf16.mxu0 0
    %2360 = vmatpush1.bf16.msra.mxu0 0
    %2361 = vmatprep.subr.bf16.mxu0 0
    %2362 = vmatpush1.bf16.msra.mxu0 0
    %2363 = vmatprep.subr.bf16.mxu0 0
    %2364 = vmatpush1.bf16.msra.mxu0 0
    %2365 = vmatprep.subr.bf16.mxu0 0
    %2366 = vmatpush1.bf16.msra.mxu0 0
    %2367 = vmatprep.subr.bf16.mxu0 0
    %2368 = vmatpush1.bf16.msra.mxu0 0
    %2369 = vmatprep.subr.bf16.mxu0 0
    %2370 = vmatpush1.bf16.msra.mxu0 0
    %2371 = vmatprep.subr.bf16.mxu0 0
    %2372 = vmatpush1.bf16.msra.mxu0 0
    %2373 = vmatprep.subr.bf16.mxu0 0
    %2374 = vmatpush1.bf16.msra.mxu0 0
    %2375 = vmatprep.subr.bf16.mxu0 0
    %2376 = vmatpush1.bf16.msra.mxu0 0
    %2377 = vmatprep.subr.bf16.mxu0 0
    %2378 = vmatpush1.bf16.msra.mxu0 0
    %2379 = vmatprep.mubr.bf16.mxu0 0
    %2380 = vmatmul.mubr.bf16.gmra.mrb[0].mxu0 %v2342
    %v2381 = vpop.f32.mrb[0].mxu0
    %v2382 = vadd.f32 0.0, %v2381
    %v2383 = vpop.f32.mrb[0].mxu0
    %v2384 = vpop.f32.mrb[0].mxu0
    %v2385 = vpop.f32.mrb[0].mxu0
    %2386 = vdwg.mxu0
    %2387 = vrot.lane.b32.xlu0 %v498, 112
    %v2388 = vpop.permute.xlu0 %2387
    %v2390 = vsel %vm500, %v2289, 0
    %v2393 = vsel %vm963, %v2388, 0
    %2395 = vmatprep.subr.bf16.mxu0 0
    %2396 = vmatpush1.bf16.msra.mxu0 %v2393
    %2397 = vmatprep.subr.bf16.mxu0 0
    %2398 = vmatpush1.bf16.msra.mxu0 0
    %2399 = vmatprep.subr.bf16.mxu0 0
    %2400 = vmatpush1.bf16.msra.mxu0 0
    %2401 = vmatprep.subr.bf16.mxu0 0
    %2402 = vmatpush1.bf16.msra.mxu0 0
    %2403 = vmatprep.subr.bf16.mxu0 0
    %2404 = vmatpush1.bf16.msra.mxu0 0
    %2405 = vmatprep.subr.bf16.mxu0 0
    %2406 = vmatpush1.bf16.msra.mxu0 0
    %2407 = vmatprep.subr.bf16.mxu0 0
    %2408 = vmatpush1.bf16.msra.mxu0 0
    %2409 = vmatprep.subr.bf16.mxu0 0
    %2410 = vmatpush1.bf16.msra.mxu0 0
    %2411 = vmatprep.subr.bf16.mxu0 0
    %2412 = vmatpush1.bf16.msra.mxu0 0
    %2413 = vmatprep.subr.bf16.mxu0 0
    %2414 = vmatpush1.bf16.msra.mxu0 0
    %2415 = vmatprep.subr.bf16.mxu0 0
    %2416 = vmatpush1.bf16.msra.mxu0 0
    %2417 = vmatprep.subr.bf16.mxu0 0
    %2418 = vmatpush1.bf16.msra.mxu0 0
    %2419 = vmatprep.subr.bf16.mxu0 0
    %2420 = vmatpush1.bf16.msra.mxu0 0
    %2421 = vmatprep.subr.bf16.mxu0 0
    %2422 = vmatpush1.bf16.msra.mxu0 0
    %2423 = vmatprep.subr.bf16.mxu0 0
    %2424 = vmatpush1.bf16.msra.mxu0 0
    %2425 = vmatprep.subr.bf16.mxu0 0
    %2426 = vmatpush1.bf16.msra.mxu0 0
    %2427 = vmatprep.mubr.bf16.mxu0 0
    %2428 = vmatmul.mubr.bf16.gmra.mrb[0].mxu0 %v2390
    %v2429 = vpop.f32.mrb[0].mxu0
    %v2430 = vadd.f32 0.0, %v2429
    %v2431 = vpop.f32.mrb[0].mxu0
    %v2432 = vpop.f32.mrb[0].mxu0
    %v2433 = vpop.f32.mrb[0].mxu0
    %2434 = vdwg.mxu0
    %2435 = vrot.lane.b32.xlu0 %v499, 112
    %v2436 = vpop.permute.xlu0 %2435
    %v2438 = vsel %vm500, %v2290, 0
    %v2441 = vsel %vm963, %v2436, 0
    %2443 = vmatprep.subr.bf16.mxu0 0
    %2444 = vmatpush1.bf16.msra.mxu0 %v2441
    %2445 = vmatprep.subr.bf16.mxu0 0
    %2446 = vmatpush1.bf16.msra.mxu0 0
    %2447 = vmatprep.subr.bf16.mxu0 0
    %2448 = vmatpush1.bf16.msra.mxu0 0
    %2449 = vmatprep.subr.bf16.mxu0 0
    %2450 = vmatpush1.bf16.msra.mxu0 0
    %2451 = vmatprep.subr.bf16.mxu0 0
    %2452 = vmatpush1.bf16.msra.mxu0 0
    %2453 = vmatprep.subr.bf16.mxu0 0
    %2454 = vmatpush1.bf16.msra.mxu0 0
    %2455 = vmatprep.subr.bf16.mxu0 0
    %2456 = vmatpush1.bf16.msra.mxu0 0
    %2457 = vmatprep.subr.bf16.mxu0 0
    %2458 = vmatpush1.bf16.msra.mxu0 0
    %2459 = vmatprep.subr.bf16.mxu0 0
    %2460 = vmatpush1.bf16.msra.mxu0 0
    %2461 = vmatprep.subr.bf16.mxu0 0
    %2462 = vmatpush1.bf16.msra.mxu0 0
    %2463 = vmatprep.subr.bf16.mxu0 0
    %2464 = vmatpush1.bf16.msra.mxu0 0
    %2465 = vmatprep.subr.bf16.mxu0 0
    %2466 = vmatpush1.bf16.msra.mxu0 0
    %2467 = vmatprep.subr.bf16.mxu0 0
    %2468 = vmatpush1.bf16.msra.mxu0 0
    %2469 = vmatprep.subr.bf16.mxu0 0
    %2470 = vmatpush1.bf16.msra.mxu0 0
    %2471 = vmatprep.subr.bf16.mxu0 0
    %2472 = vmatpush1.bf16.msra.mxu0 0
    %2473 = vmatprep.subr.bf16.mxu0 0
    %2474 = vmatpush1.bf16.msra.mxu0 0
    %2475 = vmatprep.mubr.bf16.mxu0 0
    %2476 = vmatmul.mubr.bf16.gmra.mrb[0].mxu0 %v2438
    %v2477 = vpop.f32.mrb[0].mxu0
    %v2478 = vadd.f32 0.0, %v2477
    %v2479 = vpop.f32.mrb[0].mxu0
    %v2480 = vpop.f32.mrb[0].mxu0
    %v2481 = vpop.f32.mrb[0].mxu0
    %2482 = vdwg.mxu0
    %2483 = vrot.lane.b32.xlu0 %v488, 104
    %v2484 = vpop.permute.xlu0 %2483
    %2485 = vrot.lane.b32.xlu0 %v492, 104
    %v2486 = vpop.permute.xlu0 %2485
    %v2488 = vsel %vm500, %v2484, 0
    %v2491 = vsel %vm500, %v2486, 0
    %2493 = vmatprep.subr.bf16.mxu0 0
    %2494 = vmatpush1.bf16.xpose.msra.mxu0 %v2491
    %2495 = vmatprep.subr.bf16.mxu0 0
    %2496 = vmatpush1.bf16.xpose.msra.mxu0 0
    %2497 = vmatprep.subr.bf16.mxu0 0
    %2498 = vmatpush1.bf16.xpose.msra.mxu0 0
    %2499 = vmatprep.subr.bf16.mxu0 0
    %2500 = vmatpush1.bf16.xpose.msra.mxu0 0
    %2501 = vmatprep.subr.bf16.mxu0 0
    %2502 = vmatpush1.bf16.xpose.msra.mxu0 0
    %2503 = vmatprep.subr.bf16.mxu0 0
    %2504 = vmatpush1.bf16.xpose.msra.mxu0 0
    %2505 = vmatprep.subr.bf16.mxu0 0
    %2506 = vmatpush1.bf16.xpose.msra.mxu0 0
    %2507 = vmatprep.subr.bf16.mxu0 0
    %2508 = vmatpush1.bf16.xpose.msra.mxu0 0
    %2509 = vmatprep.subr.bf16.mxu0 0
    %2510 = vmatpush1.bf16.xpose.msra.mxu0 0
    %2511 = vmatprep.subr.bf16.mxu0 0
    %2512 = vmatpush1.bf16.xpose.msra.mxu0 0
    %2513 = vmatprep.subr.bf16.mxu0 0
    %2514 = vmatpush1.bf16.xpose.msra.mxu0 0
    %2515 = vmatprep.subr.bf16.mxu0 0
    %2516 = vmatpush1.bf16.xpose.msra.mxu0 0
    %2517 = vmatprep.subr.bf16.mxu0 0
    %2518 = vmatpush1.bf16.xpose.msra.mxu0 0
    %2519 = vmatprep.subr.bf16.mxu0 0
    %2520 = vmatpush1.bf16.xpose.msra.mxu0 0
    %2521 = vmatprep.subr.bf16.mxu0 0
    %2522 = vmatpush1.bf16.xpose.msra.mxu0 0
    %2523 = vmatprep.subr.bf16.mxu0 0
    %2524 = vmatpush1.bf16.xpose.msra.mxu0 0
    %2525 = vmatprep.mubr.bf16.mxu0 0
    %2526 = vmatmul.mubr.bf16.gmra.mrb[0].mxu0 %v2488
    %v2527 = vpop.f32.mrb[0].mxu0
    %v2528 = vadd.f32 0.0, %v2527
    %v2529 = vpop.f32.mrb[0].mxu0
    %v2530 = vpop.f32.mrb[0].mxu0
    %v2531 = vpop.f32.mrb[0].mxu0
    %2532 = vdwg.mxu0
    %2533 = vrot.lane.b32.xlu0 %v489, 104
    %v2534 = vpop.permute.xlu0 %2533
    %2535 = vrot.lane.b32.xlu0 %v493, 104
    %v2536 = vpop.permute.xlu0 %2535
    %v2538 = vsel %vm500, %v2534, 0
    %v2541 = vsel %vm500, %v2536, 0
    %2543 = vmatprep.subr.bf16.mxu0 0
    %2544 = vmatpush1.bf16.xpose.msra.mxu0 %v2541
    %2545 = vmatprep.subr.bf16.mxu0 0
    %2546 = vmatpush1.bf16.xpose.msra.mxu0 0
    %2547 = vmatprep.subr.bf16.mxu0 0
    %2548 = vmatpush1.bf16.xpose.msra.mxu0 0
    %2549 = vmatprep.subr.bf16.mxu0 0
    %2550 = vmatpush1.bf16.xpose.msra.mxu0 0
    %2551 = vmatprep.subr.bf16.mxu0 0
    %2552 = vmatpush1.bf16.xpose.msra.mxu0 0
    %2553 = vmatprep.subr.bf16.mxu0 0
    %2554 = vmatpush1.bf16.xpose.msra.mxu0 0
    %2555 = vmatprep.subr.bf16.mxu0 0
    %2556 = vmatpush1.bf16.xpose.msra.mxu0 0
    %2557 = vmatprep.subr.bf16.mxu0 0
    %2558 = vmatpush1.bf16.xpose.msra.mxu0 0
    %2559 = vmatprep.subr.bf16.mxu0 0
    %2560 = vmatpush1.bf16.xpose.msra.mxu0 0
    %2561 = vmatprep.subr.bf16.mxu0 0
    %2562 = vmatpush1.bf16.xpose.msra.mxu0 0
    %2563 = vmatprep.subr.bf16.mxu0 0
    %2564 = vmatpush1.bf16.xpose.msra.mxu0 0
    %2565 = vmatprep.subr.bf16.mxu0 0
    %2566 = vmatpush1.bf16.xpose.msra.mxu0 0
    %2567 = vmatprep.subr.bf16.mxu0 0
    %2568 = vmatpush1.bf16.xpose.msra.mxu0 0
    %2569 = vmatprep.subr.bf16.mxu0 0
    %2570 = vmatpush1.bf16.xpose.msra.mxu0 0
    %2571 = vmatprep.subr.bf16.mxu0 0
    %2572 = vmatpush1.bf16.xpose.msra.mxu0 0
    %2573 = vmatprep.subr.bf16.mxu0 0
    %2574 = vmatpush1.bf16.xpose.msra.mxu0 0
    %2575 = vmatprep.mubr.bf16.mxu0 0
    %2576 = vmatmul.mubr.bf16.gmra.mrb[0].mxu0 %v2538
    %v2577 = vpop.f32.mrb[0].mxu0
    %v2578 = vadd.f32 0.0, %v2577
    %v2579 = vpop.f32.mrb[0].mxu0
    %v2580 = vpop.f32.mrb[0].mxu0
    %v2581 = vpop.f32.mrb[0].mxu0
    %2582 = vdwg.mxu0
    %2583 = vrot.lane.b32.xlu0 %v490, 104
    %v2584 = vpop.permute.xlu0 %2583
    %2585 = vrot.lane.b32.xlu0 %v494, 104
    %v2586 = vpop.permute.xlu0 %2585
    %v2588 = vsel %vm500, %v2584, 0
    %v2591 = vsel %vm500, %v2586, 0
    %2593 = vmatprep.subr.bf16.mxu0 0
    %2594 = vmatpush1.bf16.xpose.msra.mxu0 %v2591
    %2595 = vmatprep.subr.bf16.mxu0 0
    %2596 = vmatpush1.bf16.xpose.msra.mxu0 0
    %2597 = vmatprep.subr.bf16.mxu0 0
    %2598 = vmatpush1.bf16.xpose.msra.mxu0 0
    %2599 = vmatprep.subr.bf16.mxu0 0
    %2600 = vmatpush1.bf16.xpose.msra.mxu0 0
    %2601 = vmatprep.subr.bf16.mxu0 0
    %2602 = vmatpush1.bf16.xpose.msra.mxu0 0
    %2603 = vmatprep.subr.bf16.mxu0 0
    %2604 = vmatpush1.bf16.xpose.msra.mxu0 0
    %2605 = vmatprep.subr.bf16.mxu0 0
    %2606 = vmatpush1.bf16.xpose.msra.mxu0 0
    %2607 = vmatprep.subr.bf16.mxu0 0
    %2608 = vmatpush1.bf16.xpose.msra.mxu0 0
    %2609 = vmatprep.subr.bf16.mxu0 0
    %2610 = vmatpush1.bf16.xpose.msra.mxu0 0
    %2611 = vmatprep.subr.bf16.mxu0 0
    %2612 = vmatpush1.bf16.xpose.msra.mxu0 0
    %2613 = vmatprep.subr.bf16.mxu0 0
    %2614 = vmatpush1.bf16.xpose.msra.mxu0 0
    %2615 = vmatprep.subr.bf16.mxu0 0
    %2616 = vmatpush1.bf16.xpose.msra.mxu0 0
    %2617 = vmatprep.subr.bf16.mxu0 0
    %2618 = vmatpush1.bf16.xpose.msra.mxu0 0
    %2619 = vmatprep.subr.bf16.mxu0 0
    %2620 = vmatpush1.bf16.xpose.msra.mxu0 0
    %2621 = vmatprep.subr.bf16.mxu0 0
    %2622 = vmatpush1.bf16.xpose.msra.mxu0 0
    %2623 = vmatprep.subr.bf16.mxu0 0
    %2624 = vmatpush1.bf16.xpose.msra.mxu0 0
    %2625 = vmatprep.mubr.bf16.mxu0 0
    %2626 = vmatmul.mubr.bf16.gmra.mrb[0].mxu0 %v2588
    %v2627 = vpop.f32.mrb[0].mxu0
    %v2628 = vadd.f32 0.0, %v2627
    %v2629 = vpop.f32.mrb[0].mxu0
    %v2630 = vpop.f32.mrb[0].mxu0
    %v2631 = vpop.f32.mrb[0].mxu0
    %2632 = vdwg.mxu0
    %2633 = vrot.lane.b32.xlu0 %v491, 104
    %v2634 = vpop.permute.xlu0 %2633
    %2635 = vrot.lane.b32.xlu0 %v495, 104
    %v2636 = vpop.permute.xlu0 %2635
    %v2638 = vsel %vm500, %v2634, 0
    %v2641 = vsel %vm500, %v2636, 0
    %2643 = vmatprep.subr.bf16.mxu0 0
    %2644 = vmatpush1.bf16.xpose.msra.mxu0 %v2641
    %2645 = vmatprep.subr.bf16.mxu0 0
    %2646 = vmatpush1.bf16.xpose.msra.mxu0 0
    %2647 = vmatprep.subr.bf16.mxu0 0
    %2648 = vmatpush1.bf16.xpose.msra.mxu0 0
    %2649 = vmatprep.subr.bf16.mxu0 0
    %2650 = vmatpush1.bf16.xpose.msra.mxu0 0
    %2651 = vmatprep.subr.bf16.mxu0 0
    %2652 = vmatpush1.bf16.xpose.msra.mxu0 0
    %2653 = vmatprep.subr.bf16.mxu0 0
    %2654 = vmatpush1.bf16.xpose.msra.mxu0 0
    %2655 = vmatprep.subr.bf16.mxu0 0
    %2656 = vmatpush1.bf16.xpose.msra.mxu0 0
    %2657 = vmatprep.subr.bf16.mxu0 0
    %2658 = vmatpush1.bf16.xpose.msra.mxu0 0
    %2659 = vmatprep.subr.bf16.mxu0 0
    %2660 = vmatpush1.bf16.xpose.msra.mxu0 0
    %2661 = vmatprep.subr.bf16.mxu0 0
    %2662 = vmatpush1.bf16.xpose.msra.mxu0 0
    %2663 = vmatprep.subr.bf16.mxu0 0
    %2664 = vmatpush1.bf16.xpose.msra.mxu0 0
    %2665 = vmatprep.subr.bf16.mxu0 0
    %2666 = vmatpush1.bf16.xpose.msra.mxu0 0
    %2667 = vmatprep.subr.bf16.mxu0 0
    %2668 = vmatpush1.bf16.xpose.msra.mxu0 0
    %2669 = vmatprep.subr.bf16.mxu0 0
    %2670 = vmatpush1.bf16.xpose.msra.mxu0 0
    %2671 = vmatprep.subr.bf16.mxu0 0
    %2672 = vmatpush1.bf16.xpose.msra.mxu0 0
    %2673 = vmatprep.subr.bf16.mxu0 0
    %2674 = vmatpush1.bf16.xpose.msra.mxu0 0
    %2675 = vmatprep.mubr.bf16.mxu0 0
    %2676 = vmatmul.mubr.bf16.gmra.mrb[0].mxu0 %v2638
    %v2677 = vpop.f32.mrb[0].mxu0
    %v2678 = vadd.f32 0.0, %v2677
    %v2679 = vpop.f32.mrb[0].mxu0
    %v2680 = vpop.f32.mrb[0].mxu0
    %v2681 = vpop.f32.mrb[0].mxu0
    %2682 = vdwg.mxu0
    %v2683 = vmul.f32 %v2528, 0.35355338
    %v2684 = vmul.f32 %v2578, 0.35355338
    %v2685 = vmul.f32 %v2628, 0.35355338
    %v2686 = vmul.f32 %v2678, 0.35355338
    %v2687 = vsel %vm689, %v2683, -1e+32
    %v2688 = vsel %vm689, %v2684, -1e+32
    %v2689 = vsel %vm689, %v2685, -1e+32
    %v2690 = vsel %vm689, %v2686, -1e+32
    %v2691 = vsel %vm500, %v2687, -inf
    %2692 = vmax.xlane.f32.xlu0 %v2691
    %v2693 = vpop.xlane.xlu0 %2692
    %v2694 = vsel %vm500, %v2688, -inf
    %2695 = vmax.xlane.f32.xlu0 %v2694
    %v2696 = vpop.xlane.xlu0 %2695
    %v2697 = vsel %vm500, %v2689, -inf
    %2698 = vmax.xlane.f32.xlu0 %v2697
    %v2699 = vpop.xlane.xlu0 %2698
    %v2700 = vsel %vm500, %v2690, -inf
    %2701 = vmax.xlane.f32.xlu0 %v2700
    %v2702 = vpop.xlane.xlu0 %2701
    %v2703 = vsub.f32 %v2687, %v2693
    %v2704 = vsub.f32 %v2688, %v2696
    %v2705 = vsub.f32 %v2689, %v2699
    %v2706 = vsub.f32 %v2690, %v2702
    %v2707 = vmul.f32 %v2703, 1.442695
    %v2708 = vpow.pop %v2707
    %v2709 = vmul.f32 %v2704, 1.442695
    %v2710 = vpow.pop %v2709
    %v2711 = vmul.f32 %v2705, 1.442695
    %v2712 = vpow.pop %v2711
    %v2713 = vmul.f32 %v2706, 1.442695
    %v2714 = vpow.pop %v2713
    %v2715 = vsel %vm500, %v2708, 0.0
    %2716 = vadd.xlane.f32.xlu0 %v2715
    %v2717 = vpop.xlane.xlu0 %2716
    %v2718 = vsel %vm500, %v2710, 0.0
    %2719 = vadd.xlane.f32.xlu0 %v2718
    %v2720 = vpop.xlane.xlu0 %2719
    %v2721 = vsel %vm500, %v2712, 0.0
    %2722 = vadd.xlane.f32.xlu0 %v2721
    %v2723 = vpop.xlane.xlu0 %2722
    %v2724 = vsel %vm500, %v2714, 0.0
    %2725 = vadd.xlane.f32.xlu0 %v2724
    %v2726 = vpop.xlane.xlu0 %2725
    %v2727 = vrcp.pop %v2717
    %v2728 = vrcp.pop %v2720
    %v2729 = vrcp.pop %v2723
    %v2730 = vrcp.pop %v2726
    %v2731 = vmul.f32 %v2708, %v2727
    %v2732 = vmul.f32 %v2710, %v2728
    %v2733 = vmul.f32 %v2712, %v2729
    %v2734 = vmul.f32 %v2714, %v2730
    %v2735 = vmul.f32 %v2731, %v479
    %v2736 = vmul.f32 %v2732, %v479
    %v2737 = vmul.f32 %v2733, %v479
    %v2738 = vmul.f32 %v2734, %v479
    %v2740 = vsel %vm500, %v2735, 0
    %v2743 = vsel %vm500, %v2736, 0
    %v2746 = vsel %vm500, %v2737, 0
    %v2749 = vsel %vm500, %v2738, 0
    %2751 = vmatprep.subr.mxu0 0.0
    %2752 = vmatpush1.msra.mxu0 %v487
    %2753 = vmatprep.subr.mxu0 0.0
    %2754 = vmatpush1.msra.mxu0 0.0
    %2755 = vmatprep.subr.mxu0 0.0
    %2756 = vmatpush1.msra.mxu0 0.0
    %2757 = vmatprep.subr.mxu0 0.0
    %2758 = vmatpush1.msra.mxu0 0.0
    %2759 = vmatprep.subr.mxu0 0.0
    %2760 = vmatpush1.msra.mxu0 0.0
    %2761 = vmatprep.subr.mxu0 0.0
    %2762 = vmatpush1.msra.mxu0 0.0
    %2763 = vmatprep.subr.mxu0 0.0
    %2764 = vmatpush1.msra.mxu0 0.0
    %2765 = vmatprep.subr.mxu0 0.0
    %2766 = vmatpush1.msra.mxu0 0.0
    %2767 = vmatprep.subr.mxu0 0.0
    %2768 = vmatpush1.msra.mxu0 0.0
    %2769 = vmatprep.subr.mxu0 0.0
    %2770 = vmatpush1.msra.mxu0 0.0
    %2771 = vmatprep.subr.mxu0 0.0
    %2772 = vmatpush1.msra.mxu0 0.0
    %2773 = vmatprep.subr.mxu0 0.0
    %2774 = vmatpush1.msra.mxu0 0.0
    %2775 = vmatprep.subr.mxu0 0.0
    %2776 = vmatpush1.msra.mxu0 0.0
    %2777 = vmatprep.subr.mxu0 0.0
    %2778 = vmatpush1.msra.mxu0 0.0
    %2779 = vmatprep.subr.mxu0 0.0
    %2780 = vmatpush1.msra.mxu0 0.0
    %2781 = vmatprep.subr.mxu0 0.0
    %2782 = vmatpush1.msra.mxu0 0.0
    %2783 = vmatprep.subr.mxu0 0.0
    %2784 = vmatpush1.msra.mxu0 0.0
    %2785 = vmatprep.subr.mxu0 0.0
    %2786 = vmatpush1.msra.mxu0 0.0
    %2787 = vmatprep.subr.mxu0 0.0
    %2788 = vmatpush1.msra.mxu0 0.0
    %2789 = vmatprep.subr.mxu0 0.0
    %2790 = vmatpush1.msra.mxu0 0.0
    %2791 = vmatprep.subr.mxu0 0.0
    %2792 = vmatpush1.msra.mxu0 0.0
    %2793 = vmatprep.subr.mxu0 0.0
    %2794 = vmatpush1.msra.mxu0 0.0
    %2795 = vmatprep.subr.mxu0 0.0
    %2796 = vmatpush1.msra.mxu0 0.0
    %2797 = vmatprep.subr.mxu0 0.0
    %2798 = vmatpush1.msra.mxu0 0.0
    %2799 = vmatprep.subr.mxu0 0.0
    %2800 = vmatpush1.msra.mxu0 0.0
    %2801 = vmatprep.subr.mxu0 0.0
    %2802 = vmatpush1.msra.mxu0 0.0
    %2803 = vmatprep.subr.mxu0 0.0
    %2804 = vmatpush1.msra.mxu0 0.0
    %2805 = vmatprep.subr.mxu0 0.0
    %2806 = vmatpush1.msra.mxu0 0.0
    %2807 = vmatprep.subr.mxu0 0.0
    %2808 = vmatpush1.msra.mxu0 0.0
    %2809 = vmatprep.subr.mxu0 0.0
    %2810 = vmatpush1.msra.mxu0 0.0
    %2811 = vmatprep.subr.mxu0 0.0
    %2812 = vmatpush1.msra.mxu0 0.0
    %2813 = vmatprep.subr.mxu0 0.0
    %2814 = vmatpush1.msra.mxu0 0.0
    %2815 = vmatprep.mubr.f32.mxu0 0.0
    %2816 = vmatmul.mubr.f32.gmra.mrb[0].mxu0 %v2740
    %v2817 = vpop.f32.mrb[0].mxu0
    %v2818 = vadd.f32 0.0, %v2817
    %v2819 = vpop.f32.mrb[0].mxu0
    %2820 = vmatprep.mubr.f32.mxu0 0.0
    %2821 = vmatmul.mubr.f32.gmra.mrb[0].mxu0 %v2743
    %v2822 = vpop.f32.mrb[0].mxu0
    %v2823 = vadd.f32 0.0, %v2822
    %v2824 = vpop.f32.mrb[0].mxu0
    %2825 = vmatprep.mubr.f32.mxu0 0.0
    %2826 = vmatmul.mubr.f32.gmra.mrb[0].mxu0 %v2746
    %v2827 = vpop.f32.mrb[0].mxu0
    %v2828 = vadd.f32 0.0, %v2827
    %v2829 = vpop.f32.mrb[0].mxu0
    %2830 = vmatprep.mubr.f32.mxu0 0.0
    %2831 = vmatmul.mubr.f32.gmra.mrb[0].mxu0 %v2749
    %v2832 = vpop.f32.mrb[0].mxu0
    %v2833 = vadd.f32 0.0, %v2832
    %v2834 = vpop.f32.mrb[0].mxu0
    %2835 = vdwg.mxu0
    %v2836 = vmul.f32 %v2818, %v484
    %v2837 = vmul.f32 %v2823, %v484
    %v2838 = vmul.f32 %v2828, %v484
    %v2839 = vmul.f32 %v2833, %v484
    %v2840 = vmax.f32 %v2836, 0.0
    %v2841 = vmax.f32 %v2837, 0.0
    %v2842 = vmax.f32 %v2838, 0.0
    %v2843 = vmax.f32 %v2839, 0.0
    %v2844 = vrsqrt.pop %v2840
    %v2845 = vmul.f32 %v2840, %v2844
    %vm2846 = vcmp.eq.f32.partialorder %v2840, inf
    %v2847 = vsel %vm2846, %v2840, %v2845
    %vm2848 = vcmp.eq.f32.partialorder %v2840, 0.0
    %v2849 = vand.u32 %v2840, 2147483648
    %v2850 = vsel %vm2848, %v2849, %v2847
    %v2851 = vrsqrt.pop %v2841
    %v2852 = vmul.f32 %v2841, %v2851
    %vm2853 = vcmp.eq.f32.partialorder %v2841, inf
    %v2854 = vsel %vm2853, %v2841, %v2852
    %vm2855 = vcmp.eq.f32.partialorder %v2841, 0.0
    %v2856 = vand.u32 %v2841, 2147483648
    %v2857 = vsel %vm2855, %v2856, %v2854
    %v2858 = vrsqrt.pop %v2842
    %v2859 = vmul.f32 %v2842, %v2858
    %vm2860 = vcmp.eq.f32.partialorder %v2842, inf
    %v2861 = vsel %vm2860, %v2842, %v2859
    %vm2862 = vcmp.eq.f32.partialorder %v2842, 0.0
    %v2863 = vand.u32 %v2842, 2147483648
    %v2864 = vsel %vm2862, %v2863, %v2861
    %v2865 = vrsqrt.pop %v2843
    %v2866 = vmul.f32 %v2843, %v2865
    %vm2867 = vcmp.eq.f32.partialorder %v2843, inf
    %v2868 = vsel %vm2867, %v2843, %v2866
    %vm2869 = vcmp.eq.f32.partialorder %v2843, 0.0
    %v2870 = vand.u32 %v2843, 2147483648
    %v2871 = vsel %vm2869, %v2870, %v2868
    %s2872 = sld [smem:[#allocation2 + $0x3]]
    %v2873 = vstv %s2872
    %v2874 = vmul.f32 %v2850, %v2873
    %v2875 = vmul.f32 %v2857, %v2873
    %v2876 = vmul.f32 %v2864, %v2873
    %v2877 = vmul.f32 %v2871, %v2873
    %v2878 = vmax.f32 %v2874, -11.512925
    %v2879 = vmax.f32 %v2875, -11.512925
    %v2880 = vmax.f32 %v2876, -11.512925
    %v2881 = vmax.f32 %v2877, -11.512925
    %v2882 = vmin.f32 %v2878, 11.512925
    %v2883 = vmin.f32 %v2879, 11.512925
    %v2884 = vmin.f32 %v2880, 11.512925
    %v2885 = vmin.f32 %v2881, 11.512925
    %v2886 = vmul.f32 %v2882, 1.442695
    %v2887 = vpow.pop %v2886
    %v2888 = vmul.f32 %v2883, 1.442695
    %v2889 = vpow.pop %v2888
    %v2890 = vmul.f32 %v2884, 1.442695
    %v2891 = vpow.pop %v2890
    %v2892 = vmul.f32 %v2885, 1.442695
    %v2893 = vpow.pop %v2892
    %v2894 = vmul.f32 %v2683, %v2887
    %v2895 = vmul.f32 %v2684, %v2889
    %v2896 = vmul.f32 %v2685, %v2891
    %v2897 = vmul.f32 %v2686, %v2893
    %v2898 = vsel %vm689, %v2894, -1e+32
    %v2899 = vsel %vm689, %v2895, -1e+32
    %v2900 = vsel %vm689, %v2896, -1e+32
    %v2901 = vsel %vm689, %v2897, -1e+32
    %v2902 = vsel %vm500, %v2898, -inf
    %2903 = vmax.xlane.f32.xlu0 %v2902
    %v2904 = vpop.xlane.xlu0 %2903
    %v2905 = vsel %vm500, %v2899, -inf
    %2906 = vmax.xlane.f32.xlu0 %v2905
    %v2907 = vpop.xlane.xlu0 %2906
    %v2908 = vsel %vm500, %v2900, -inf
    %2909 = vmax.xlane.f32.xlu0 %v2908
    %v2910 = vpop.xlane.xlu0 %2909
    %v2911 = vsel %vm500, %v2901, -inf
    %2912 = vmax.xlane.f32.xlu0 %v2911
    %v2913 = vpop.xlane.xlu0 %2912
    %v2914 = vsub.f32 %v2898, %v2904
    %v2915 = vsub.f32 %v2899, %v2907
    %v2916 = vsub.f32 %v2900, %v2910
    %v2917 = vsub.f32 %v2901, %v2913
    %v2918 = vmul.f32 %v2914, 1.442695
    %v2919 = vpow.pop %v2918
    %v2920 = vmul.f32 %v2915, 1.442695
    %v2921 = vpow.pop %v2920
    %v2922 = vmul.f32 %v2916, 1.442695
    %v2923 = vpow.pop %v2922
    %v2924 = vmul.f32 %v2917, 1.442695
    %v2925 = vpow.pop %v2924
    %v2926 = vsel %vm500, %v2919, 0.0
    %2927 = vadd.xlane.f32.xlu0 %v2926
    %v2928 = vpop.xlane.xlu0 %2927
    %v2929 = vsel %vm500, %v2921, 0.0
    %2930 = vadd.xlane.f32.xlu0 %v2929
    %v2931 = vpop.xlane.xlu0 %2930
    %v2932 = vsel %vm500, %v2923, 0.0
    %2933 = vadd.xlane.f32.xlu0 %v2932
    %v2934 = vpop.xlane.xlu0 %2933
    %v2935 = vsel %vm500, %v2925, 0.0
    %2936 = vadd.xlane.f32.xlu0 %v2935
    %v2937 = vpop.xlane.xlu0 %2936
    %v2938 = vrcp.pop %v2928
    %v2939 = vrcp.pop %v2931
    %v2940 = vrcp.pop %v2934
    %v2941 = vrcp.pop %v2937
    %v2942 = vmul.f32 %v2919, %v2938
    %v2943 = vmul.f32 %v2921, %v2939
    %v2944 = vmul.f32 %v2923, %v2940
    %v2945 = vmul.f32 %v2925, %v2941
    %v2946 = vsel %vm951, 0.0, %v2942
    %v2947 = vsel %vm951, 0.0, %v2943
    %v2948 = vsel %vm951, 0.0, %v2944
    %v2949 = vsel %vm951, 0.0, %v2945
    %v2950 = vpack.c.bf16 %v2946, %v2946
    %v2951 = vpack.c.bf16 %v2947, %v2947
    %v2952 = vpack.c.bf16 %v2948, %v2948
    %v2953 = vpack.c.bf16 %v2949, %v2949
    %2954 = vrot.lane.b32.xlu0 %v496, 104
    %v2955 = vpop.permute.xlu0 %2954
    %v2957 = vsel %vm500, %v2950, 0
    %v2960 = vsel %vm963, %v2955, 0
    %2962 = vmatprep.subr.bf16.mxu0 0
    %2963 = vmatpush1.bf16.msra.mxu0 %v2960
    %2964 = vmatprep.subr.bf16.mxu0 0
    %2965 = vmatpush1.bf16.msra.mxu0 0
    %2966 = vmatprep.subr.bf16.mxu0 0
    %2967 = vmatpush1.bf16.msra.mxu0 0
    %2968 = vmatprep.subr.bf16.mxu0 0
    %2969 = vmatpush1.bf16.msra.mxu0 0
    %2970 = vmatprep.subr.bf16.mxu0 0
    %2971 = vmatpush1.bf16.msra.mxu0 0
    %2972 = vmatprep.subr.bf16.mxu0 0
    %2973 = vmatpush1.bf16.msra.mxu0 0
    %2974 = vmatprep.subr.bf16.mxu0 0
    %2975 = vmatpush1.bf16.msra.mxu0 0
    %2976 = vmatprep.subr.bf16.mxu0 0
    %2977 = vmatpush1.bf16.msra.mxu0 0
    %2978 = vmatprep.subr.bf16.mxu0 0
    %2979 = vmatpush1.bf16.msra.mxu0 0
    %2980 = vmatprep.subr.bf16.mxu0 0
    %2981 = vmatpush1.bf16.msra.mxu0 0
    %2982 = vmatprep.subr.bf16.mxu0 0
    %2983 = vmatpush1.bf16.msra.mxu0 0
    %2984 = vmatprep.subr.bf16.mxu0 0
    %2985 = vmatpush1.bf16.msra.mxu0 0
    %2986 = vmatprep.subr.bf16.mxu0 0
    %2987 = vmatpush1.bf16.msra.mxu0 0
    %2988 = vmatprep.subr.bf16.mxu0 0
    %2989 = vmatpush1.bf16.msra.mxu0 0
    %2990 = vmatprep.subr.bf16.mxu0 0
    %2991 = vmatpush1.bf16.msra.mxu0 0
    %2992 = vmatprep.subr.bf16.mxu0 0
    %2993 = vmatpush1.bf16.msra.mxu0 0
    %2994 = vmatprep.mubr.bf16.mxu0 0
    %2995 = vmatmul.mubr.bf16.gmra.mrb[0].mxu0 %v2957
    %v2996 = vpop.f32.mrb[0].mxu0
    %v2997 = vadd.f32 0.0, %v2996
    %v2998 = vpop.f32.mrb[0].mxu0
    %v2999 = vpop.f32.mrb[0].mxu0
    %v3000 = vpop.f32.mrb[0].mxu0
    %3001 = vdwg.mxu0
    %3002 = vrot.lane.b32.xlu0 %v497, 104
    %v3003 = vpop.permute.xlu0 %3002
    %v3005 = vsel %vm500, %v2951, 0
    %v3008 = vsel %vm963, %v3003, 0
    %3010 = vmatprep.subr.bf16.mxu0 0
    %3011 = vmatpush1.bf16.msra.mxu0 %v3008
    %3012 = vmatprep.subr.bf16.mxu0 0
    %3013 = vmatpush1.bf16.msra.mxu0 0
    %3014 = vmatprep.subr.bf16.mxu0 0
    %3015 = vmatpush1.bf16.msra.mxu0 0
    %3016 = vmatprep.subr.bf16.mxu0 0
    %3017 = vmatpush1.bf16.msra.mxu0 0
    %3018 = vmatprep.subr.bf16.mxu0 0
    %3019 = vmatpush1.bf16.msra.mxu0 0
    %3020 = vmatprep.subr.bf16.mxu0 0
    %3021 = vmatpush1.bf16.msra.mxu0 0
    %3022 = vmatprep.subr.bf16.mxu0 0
    %3023 = vmatpush1.bf16.msra.mxu0 0
    %3024 = vmatprep.subr.bf16.mxu0 0
    %3025 = vmatpush1.bf16.msra.mxu0 0
    %3026 = vmatprep.subr.bf16.mxu0 0
    %3027 = vmatpush1.bf16.msra.mxu0 0
    %3028 = vmatprep.subr.bf16.mxu0 0
    %3029 = vmatpush1.bf16.msra.mxu0 0
    %3030 = vmatprep.subr.bf16.mxu0 0
    %3031 = vmatpush1.bf16.msra.mxu0 0
    %3032 = vmatprep.subr.bf16.mxu0 0
    %3033 = vmatpush1.bf16.msra.mxu0 0
    %3034 = vmatprep.subr.bf16.mxu0 0
    %3035 = vmatpush1.bf16.msra.mxu0 0
    %3036 = vmatprep.subr.bf16.mxu0 0
    %3037 = vmatpush1.bf16.msra.mxu0 0
    %3038 = vmatprep.subr.bf16.mxu0 0
    %3039 = vmatpush1.bf16.msra.mxu0 0
    %3040 = vmatprep.subr.bf16.mxu0 0
    %3041 = vmatpush1.bf16.msra.mxu0 0
    %3042 = vmatprep.mubr.bf16.mxu0 0
    %3043 = vmatmul.mubr.bf16.gmra.mrb[0].mxu0 %v3005
    %v3044 = vpop.f32.mrb[0].mxu0
    %v3045 = vadd.f32 0.0, %v3044
    %v3046 = vpop.f32.mrb[0].mxu0
    %v3047 = vpop.f32.mrb[0].mxu0
    %v3048 = vpop.f32.mrb[0].mxu0
    %3049 = vdwg.mxu0
    %3050 = vrot.lane.b32.xlu0 %v498, 104
    %v3051 = vpop.permute.xlu0 %3050
    %v3053 = vsel %vm500, %v2952, 0
    %v3056 = vsel %vm963, %v3051, 0
    %3058 = vmatprep.subr.bf16.mxu0 0
    %3059 = vmatpush1.bf16.msra.mxu0 %v3056
    %3060 = vmatprep.subr.bf16.mxu0 0
    %3061 = vmatpush1.bf16.msra.mxu0 0
    %3062 = vmatprep.subr.bf16.mxu0 0
    %3063 = vmatpush1.bf16.msra.mxu0 0
    %3064 = vmatprep.subr.bf16.mxu0 0
    %3065 = vmatpush1.bf16.msra.mxu0 0
    %3066 = vmatprep.subr.bf16.mxu0 0
    %3067 = vmatpush1.bf16.msra.mxu0 0
    %3068 = vmatprep.subr.bf16.mxu0 0
    %3069 = vmatpush1.bf16.msra.mxu0 0
    %3070 = vmatprep.subr.bf16.mxu0 0
    %3071 = vmatpush1.bf16.msra.mxu0 0
    %3072 = vmatprep.subr.bf16.mxu0 0
    %3073 = vmatpush1.bf16.msra.mxu0 0
    %3074 = vmatprep.subr.bf16.mxu0 0
    %3075 = vmatpush1.bf16.msra.mxu0 0
    %3076 = vmatprep.subr.bf16.mxu0 0
    %3077 = vmatpush1.bf16.msra.mxu0 0
    %3078 = vmatprep.subr.bf16.mxu0 0
    %3079 = vmatpush1.bf16.msra.mxu0 0
    %3080 = vmatprep.subr.bf16.mxu0 0
    %3081 = vmatpush1.bf16.msra.mxu0 0
    %3082 = vmatprep.subr.bf16.mxu0 0
    %3083 = vmatpush1.bf16.msra.mxu0 0
    %3084 = vmatprep.subr.bf16.mxu0 0
    %3085 = vmatpush1.bf16.msra.mxu0 0
    %3086 = vmatprep.subr.bf16.mxu0 0
    %3087 = vmatpush1.bf16.msra.mxu0 0
    %3088 = vmatprep.subr.bf16.mxu0 0
    %3089 = vmatpush1.bf16.msra.mxu0 0
    %3090 = vmatprep.mubr.bf16.mxu0 0
    %3091 = vmatmul.mubr.bf16.gmra.mrb[0].mxu0 %v3053
    %v3092 = vpop.f32.mrb[0].mxu0
    %v3093 = vadd.f32 0.0, %v3092
    %v3094 = vpop.f32.mrb[0].mxu0
    %v3095 = vpop.f32.mrb[0].mxu0
    %v3096 = vpop.f32.mrb[0].mxu0
    %3097 = vdwg.mxu0
    %3098 = vrot.lane.b32.xlu0 %v499, 104
    %v3099 = vpop.permute.xlu0 %3098
    %v3101 = vsel %vm500, %v2953, 0
    %v3104 = vsel %vm963, %v3099, 0
    %3106 = vmatprep.subr.bf16.mxu0 0
    %3107 = vmatpush1.bf16.msra.mxu0 %v3104
    %3108 = vmatprep.subr.bf16.mxu0 0
    %3109 = vmatpush1.bf16.msra.mxu0 0
    %3110 = vmatprep.subr.bf16.mxu0 0
    %3111 = vmatpush1.bf16.msra.mxu0 0
    %3112 = vmatprep.subr.bf16.mxu0 0
    %3113 = vmatpush1.bf16.msra.mxu0 0
    %3114 = vmatprep.subr.bf16.mxu0 0
    %3115 = vmatpush1.bf16.msra.mxu0 0
    %3116 = vmatprep.subr.bf16.mxu0 0
    %3117 = vmatpush1.bf16.msra.mxu0 0
    %3118 = vmatprep.subr.bf16.mxu0 0
    %3119 = vmatpush1.bf16.msra.mxu0 0
    %3120 = vmatprep.subr.bf16.mxu0 0
    %3121 = vmatpush1.bf16.msra.mxu0 0
    %3122 = vmatprep.subr.bf16.mxu0 0
    %3123 = vmatpush1.bf16.msra.mxu0 0
    %3124 = vmatprep.subr.bf16.mxu0 0
    %3125 = vmatpush1.bf16.msra.mxu0 0
    %3126 = vmatprep.subr.bf16.mxu0 0
    %3127 = vmatpush1.bf16.msra.mxu0 0
    %3128 = vmatprep.subr.bf16.mxu0 0
    %3129 = vmatpush1.bf16.msra.mxu0 0
    %3130 = vmatprep.subr.bf16.mxu0 0
    %3131 = vmatpush1.bf16.msra.mxu0 0
    %3132 = vmatprep.subr.bf16.mxu0 0
    %3133 = vmatpush1.bf16.msra.mxu0 0
    %3134 = vmatprep.subr.bf16.mxu0 0
    %3135 = vmatpush1.bf16.msra.mxu0 0
    %3136 = vmatprep.subr.bf16.mxu0 0
    %3137 = vmatpush1.bf16.msra.mxu0 0
    %3138 = vmatprep.mubr.bf16.mxu0 0
    %3139 = vmatmul.mubr.bf16.gmra.mrb[0].mxu0 %v3101
    %v3140 = vpop.f32.mrb[0].mxu0
    %v3141 = vadd.f32 0.0, %v3140
    %v3142 = vpop.f32.mrb[0].mxu0
    %v3143 = vpop.f32.mrb[0].mxu0
    %v3144 = vpop.f32.mrb[0].mxu0
    %3145 = vdwg.mxu0
    %3150 = vrot.lane.b32.xlu0 %v1668, 8
    %v3151 = vpop.permute.xlu0 %3150
    %3152 = vrot.lane.b32.xlu0 %v1717, 8
    %v3153 = vpop.permute.xlu0 %3152
    %3154 = vrot.lane.b32.xlu0 %v1766, 8
    %v3155 = vpop.permute.xlu0 %3154
    %3156 = vrot.lane.b32.xlu0 %v1815, 8
    %v3157 = vpop.permute.xlu0 %3156
    %3166 = vrot.lane.b32.xlu0 %v2334, 16
    %v3167 = vpop.permute.xlu0 %3166
    %3168 = vrot.lane.b32.xlu0 %v2382, 16
    %v3169 = vpop.permute.xlu0 %3168
    %3170 = vrot.lane.b32.xlu0 %v2430, 16
    %v3171 = vpop.permute.xlu0 %3170
    %3172 = vrot.lane.b32.xlu0 %v2478, 16
    %v3173 = vpop.permute.xlu0 %3172
    %3182 = vrot.lane.b32.xlu0 %v2997, 24
    %v3183 = vpop.permute.xlu0 %3182
    %3184 = vrot.lane.b32.xlu0 %v3045, 24
    %v3185 = vpop.permute.xlu0 %3184
    %3186 = vrot.lane.b32.xlu0 %v3093, 24
    %v3187 = vpop.permute.xlu0 %3186
    %3188 = vrot.lane.b32.xlu0 %v3141, 24
    %v3189 = vpop.permute.xlu0 %3188
    %v3194 = vsel %vm500, %v1002, %v3151
    %v3195 = vsel %vm500, %v1048, %v3153
    %v3196 = vsel %vm500, %v1094, %v3155
    %v3197 = vsel %vm500, %v1140, %v3157
    %vm3198 = vcmask 130048
    %v3199 = vsel %vm3198, %v3194, %v3167
    %v3200 = vsel %vm3198, %v3195, %v3169
    %v3201 = vsel %vm3198, %v3196, %v3171
    %v3202 = vsel %vm3198, %v3197, %v3173
    %vm3203 = vcmask 195584
    %v3204 = vsel %vm3203, %v3199, %v3183
    %v3205 = vsel %vm3203, %v3200, %v3185
    %v3206 = vsel %vm3203, %v3201, %v3187
    %v3207 = vsel %vm3203, %v3202, %v3189
    %v3208 = vpack.c.bf16 %v3205, %v3204
    %v3209 = vpack.c.bf16 %v3207, %v3206
    %v3210 = vld [vmem:[#allocation16] sm:$0x1]
    %v3212 = vlaneseq
    %v3213 = vshrl.u32 %v3212, 7
    %v3214 = vsub.s32 0, %v3213
    %v3215 = vrot.slane %v3210, %v3214
    %v3217 = vadd.f32 %v204, %v3215
    %v3218 = vadd.f32 %v205, %v3215
    %v3219 = vadd.f32 %v206, %v3215
    %v3220 = vadd.f32 %v207, %v3215
    %v3221 = vld [vmem:[%s10] sm:$0xf]
    %v3222 = vld [vmem:[%s10 + $0x4] sm:$0xf]
    %v3223 = vld [vmem:[%s10 + $0x8] sm:$0xf]
    %v3224 = vld [vmem:[%s10 + $0xc] sm:$0xf]
    %v3229 = vunpack.c.l.b16 %v3221
    %v3230 = vunpack.c.l.b16 %v3222
    %v3231 = vunpack.c.l.b16 %v3223
    %v3232 = vunpack.c.l.b16 %v3224
    %v3233 = vpack.c.b16 %v3230, %v3229
    %v3234 = vpack.c.b16 %v3232, %v3231
    %v3238 = vsel %vm241, %v3208, 0
    %v3241 = vsel %vm241, %v3209, 0
    %3243 = vmatprep.subr.bf16.mxu0 0
    %3244 = vmatpush1.bf16.msra.mxu0 %v3233
    %3245 = vmatprep.subr.bf16.mxu0 0
    %3246 = vmatpush1.bf16.msra.mxu0 %v3234
    %3247 = vmatprep.subr.bf16.mxu0 0
    %3248 = vmatpush1.bf16.msra.mxu0 0
    %3249 = vmatprep.subr.bf16.mxu0 0
    %3250 = vmatpush1.bf16.msra.mxu0 0
    %3251 = vmatprep.subr.bf16.mxu0 0
    %3252 = vmatpush1.bf16.msra.mxu0 0
    %3253 = vmatprep.subr.bf16.mxu0 0
    %3254 = vmatpush1.bf16.msra.mxu0 0
    %3255 = vmatprep.subr.bf16.mxu0 0
    %3256 = vmatpush1.bf16.msra.mxu0 0
    %3257 = vmatprep.subr.bf16.mxu0 0
    %3258 = vmatpush1.bf16.msra.mxu0 0
    %3259 = vmatprep.subr.bf16.mxu0 0
    %3260 = vmatpush1.bf16.msra.mxu0 0
    %3261 = vmatprep.subr.bf16.mxu0 0
    %3262 = vmatpush1.bf16.msra.mxu0 0
    %3263 = vmatprep.subr.bf16.mxu0 0
    %3264 = vmatpush1.bf16.msra.mxu0 0
    %3265 = vmatprep.subr.bf16.mxu0 0
    %3266 = vmatpush1.bf16.msra.mxu0 0
    %3267 = vmatprep.subr.bf16.mxu0 0
    %3268 = vmatpush1.bf16.msra.mxu0 0
    %3269 = vmatprep.subr.bf16.mxu0 0
    %3270 = vmatpush1.bf16.msra.mxu0 0
    %3271 = vmatprep.subr.bf16.mxu0 0
    %3272 = vmatpush1.bf16.msra.mxu0 0
    %3273 = vmatprep.subr.bf16.mxu0 0
    %3274 = vmatpush1.bf16.msra.mxu0 0
    %3275 = vmatprep.mubr.bf16.mxu0 0
    %3276 = vmatmul.mubr.bf16.gmra.mrb[0].mxu0 %v3238
    %v3277 = vpop.f32.mrb[0].mxu0
    %v3278 = vadd.f32 0.0, %v3277
    %v3279 = vpop.f32.mrb[0].mxu0
    %v3280 = vpop.f32.mrb[0].mxu0
    %v3281 = vadd.f32 0.0, %v3280
    %v3282 = vpop.f32.mrb[0].mxu0
    %3283 = vmatprep.mubr.bf16.mxu0 0
    %3284 = vmatmul.mubr.bf16.gmra.mrb[0].mxu0 %v3241
    %v3285 = vpop.f32.mrb[0].mxu0
    %v3286 = vadd.f32 0.0, %v3285
    %v3287 = vpop.f32.mrb[0].mxu0
    %v3288 = vpop.f32.mrb[0].mxu0
    %v3289 = vadd.f32 0.0, %v3288
    %v3290 = vpop.f32.mrb[0].mxu0
    %3291 = vdwg.mxu0
    %v3292 = vadd.f32 %v3217, %v3278
    %v3293 = vadd.f32 %v3218, %v3281
    %v3294 = vadd.f32 %v3219, %v3286
    %v3295 = vadd.f32 %v3220, %v3289
    %v3296 = vld [vmem:[#allocation18] sm:$0x1]
    %v3297 = vld [vmem:[#allocation19] sm:$0x1]
    %v3298 = vsel %vm241, %v3292, 0.0
    %3299 = vadd.xlane.f32.xlu0 %v3298
    %v3300 = vpop.xlane.xlu0 %3299
    %v3301 = vsel %vm241, %v3293, 0.0
    %3302 = vadd.xlane.f32.xlu0 %v3301
    %v3303 = vpop.xlane.xlu0 %3302
    %v3304 = vsel %vm241, %v3294, 0.0
    %3305 = vadd.xlane.f32.xlu0 %v3304
    %v3306 = vpop.xlane.xlu0 %3305
    %v3307 = vsel %vm241, %v3295, 0.0
    %3308 = vadd.xlane.f32.xlu0 %v3307
    %v3309 = vpop.xlane.xlu0 %3308
    %v3310 = vrcp.pop 32.0
    %v3311 = vmul.f32 %v3300, %v3310
    %v3312 = vmul.f32 %v3303, %v3310
    %v3313 = vmul.f32 %v3306, %v3310
    %v3314 = vmul.f32 %v3309, %v3310
    %v3315 = vsub.f32 %v3292, %v3311
    %v3316 = vsub.f32 %v3293, %v3312
    %v3317 = vsub.f32 %v3294, %v3313
    %v3318 = vsub.f32 %v3295, %v3314
    %v3319 = vmul.f32 %v3315, %v3315
    %v3320 = vmul.f32 %v3316, %v3316
    %v3321 = vmul.f32 %v3317, %v3317
    %v3322 = vmul.f32 %v3318, %v3318
    %v3323 = vsel %vm241, %v3319, 0.0
    %3324 = vadd.xlane.f32.xlu0 %v3323
    %v3325 = vpop.xlane.xlu0 %3324
    %v3326 = vsel %vm241, %v3320, 0.0
    %3327 = vadd.xlane.f32.xlu0 %v3326
    %v3328 = vpop.xlane.xlu0 %3327
    %v3329 = vsel %vm241, %v3321, 0.0
    %3330 = vadd.xlane.f32.xlu0 %v3329
    %v3331 = vpop.xlane.xlu0 %3330
    %v3332 = vsel %vm241, %v3322, 0.0
    %3333 = vadd.xlane.f32.xlu0 %v3332
    %v3334 = vpop.xlane.xlu0 %3333
    %v3335 = vmul.f32 %v3325, %v3310
    %v3336 = vmul.f32 %v3328, %v3310
    %v3337 = vmul.f32 %v3331, %v3310
    %v3338 = vmul.f32 %v3334, %v3310
    %v3339 = vadd.f32 %v3335, 1e-05
    %v3340 = vadd.f32 %v3336, 1e-05
    %v3341 = vadd.f32 %v3337, 1e-05
    %v3342 = vadd.f32 %v3338, 1e-05
    %v3343 = vrsqrt.pop %v3339
    %v3344 = vrsqrt.pop %v3340
    %v3345 = vrsqrt.pop %v3341
    %v3346 = vrsqrt.pop %v3342
    %v3347 = vmul.f32 %v3315, %v3343
    %v3348 = vmul.f32 %v3316, %v3344
    %v3349 = vmul.f32 %v3317, %v3345
    %v3350 = vmul.f32 %v3318, %v3346
    %v3352 = vlaneseq
    %v3353 = vshrl.u32 %v3352, 7
    %v3354 = vsub.s32 0, %v3353
    %v3355 = vrot.slane %v3296, %v3354
    %v3357 = vmul.f32 %v3347, %v3355
    %v3358 = vmul.f32 %v3348, %v3355
    %v3359 = vmul.f32 %v3349, %v3355
    %v3360 = vmul.f32 %v3350, %v3355
    %v3362 = vlaneseq
    %v3363 = vshrl.u32 %v3362, 7
    %v3364 = vsub.s32 0, %v3363
    %v3365 = vrot.slane %v3297, %v3364
    %v3367 = vadd.f32 %v3357, %v3365
    %v3368 = vadd.f32 %v3358, %v3365
    %v3369 = vadd.f32 %v3359, %v3365
    %v3370 = vadd.f32 %v3360, %v3365
    %v3371 = vpack.c.bf16 %v3368, %v3367
    %v3372 = vpack.c.bf16 %v3370, %v3369
    %v3373 = vld [vmem:[%s14] sm:$0xf]
    %v3374 = vld [vmem:[%s14 + $0x4] sm:$0xf]
    %v3375 = vld [vmem:[%s14 + $0x8] sm:$0xf]
    %v3376 = vld [vmem:[%s14 + $0xc] sm:$0xf]
    %v3377 = vld [vmem:[%s15] sm:$0x1]
    %v3379 = vlaneseq
    %v3380 = vshrl.u32 %v3379, 7
    %v3381 = vsub.s32 0, %v3380
    %v3382 = vrot.slane %v3377, %v3381
    %v3388 = vunpack.c.l.b16 %v3373
    %v3389 = vunpack.c.l.b16 %v3374
    %v3390 = vunpack.c.l.b16 %v3375
    %v3391 = vunpack.c.l.b16 %v3376
    %v3392 = vpack.c.b16 %v3389, %v3388
    %v3393 = vpack.c.b16 %v3391, %v3390
    %v3397 = vsel %vm241, %v3371, 0
    %v3400 = vsel %vm241, %v3372, 0
    %3402 = vmatprep.subr.bf16.mxu0 0
    %3403 = vmatpush1.bf16.msra.mxu0 %v3392
    %3404 = vmatprep.subr.bf16.mxu0 0
    %3405 = vmatpush1.bf16.msra.mxu0 %v3393
    %3406 = vmatprep.subr.bf16.mxu0 0
    %3407 = vmatpush1.bf16.msra.mxu0 0
    %3408 = vmatprep.subr.bf16.mxu0 0
    %3409 = vmatpush1.bf16.msra.mxu0 0
    %3410 = vmatprep.subr.bf16.mxu0 0
    %3411 = vmatpush1.bf16.msra.mxu0 0
    %3412 = vmatprep.subr.bf16.mxu0 0
    %3413 = vmatpush1.bf16.msra.mxu0 0
    %3414 = vmatprep.subr.bf16.mxu0 0
    %3415 = vmatpush1.bf16.msra.mxu0 0
    %3416 = vmatprep.subr.bf16.mxu0 0
    %3417 = vmatpush1.bf16.msra.mxu0 0
    %3418 = vmatprep.subr.bf16.mxu0 0
    %3419 = vmatpush1.bf16.msra.mxu0 0
    %3420 = vmatprep.subr.bf16.mxu0 0
    %3421 = vmatpush1.bf16.msra.mxu0 0
    %3422 = vmatprep.subr.bf16.mxu0 0
    %3423 = vmatpush1.bf16.msra.mxu0 0
    %3424 = vmatprep.subr.bf16.mxu0 0
    %3425 = vmatpush1.bf16.msra.mxu0 0
    %3426 = vmatprep.subr.bf16.mxu0 0
    %3427 = vmatpush1.bf16.msra.mxu0 0
    %3428 = vmatprep.subr.bf16.mxu0 0
    %3429 = vmatpush1.bf16.msra.mxu0 0
    %3430 = vmatprep.subr.bf16.mxu0 0
    %3431 = vmatpush1.bf16.msra.mxu0 0
    %3432 = vmatprep.subr.bf16.mxu0 0
    %3433 = vmatpush1.bf16.msra.mxu0 0
    %3434 = vmatprep.mubr.bf16.mxu0 0
    %3435 = vmatmul.mubr.bf16.gmra.mrb[0].mxu0 %v3397
    %v3436 = vpop.f32.mrb[0].mxu0
    %v3437 = vadd.f32 %v3382, %v3436
    %v3438 = vpop.f32.mrb[0].mxu0
    %v3439 = vpop.f32.mrb[0].mxu0
    %v3440 = vadd.f32 %v3382, %v3439
    %v3441 = vpop.f32.mrb[0].mxu0
    %3442 = vmatprep.mubr.bf16.mxu0 0
    %3443 = vmatmul.mubr.bf16.gmra.mrb[0].mxu0 %v3400
    %v3444 = vpop.f32.mrb[0].mxu0
    %v3445 = vadd.f32 %v3382, %v3444
    %v3446 = vpop.f32.mrb[0].mxu0
    %v3447 = vpop.f32.mrb[0].mxu0
    %v3448 = vadd.f32 %v3382, %v3447
    %v3449 = vpop.f32.mrb[0].mxu0
    %3450 = vdwg.mxu0
    %v3451 = vmax.f32 %v3437, 0.0
    %v3452 = vmax.f32 %v3440, 0.0
    %v3453 = vmax.f32 %v3445, 0.0
    %v3454 = vmax.f32 %v3448, 0.0
    %v3455 = vpack.c.bf16 %v3452, %v3451
    %v3456 = vpack.c.bf16 %v3454, %v3453
    %v3457 = vld [vmem:[%s16] sm:$0xf]
    %v3458 = vld [vmem:[%s16 + $0x4] sm:$0xf]
    %v3459 = vld [vmem:[%s16 + $0x8] sm:$0xf]
    %v3460 = vld [vmem:[%s16 + $0xc] sm:$0xf]
    %v3461 = vld [vmem:[%s16 + $0x10] sm:$0xf]
    %v3462 = vld [vmem:[%s16 + $0x14] sm:$0xf]
    %v3463 = vld [vmem:[%s16 + $0x18] sm:$0xf]
    %v3464 = vld [vmem:[%s16 + $0x1c] sm:$0xf]
    %v3465 = vld [vmem:[%s17] sm:$0x1]
    %v3467 = vlaneseq
    %v3468 = vshrl.u32 %v3467, 7
    %v3469 = vsub.s32 0, %v3468
    %v3470 = vrot.slane %v3465, %v3469
    %v3480 = vunpack.c.l.b16 %v3457
    %v3481 = vunpack.c.l.b16 %v3458
    %v3482 = vunpack.c.l.b16 %v3459
    %v3483 = vunpack.c.l.b16 %v3460
    %v3484 = vunpack.c.l.b16 %v3461
    %v3485 = vunpack.c.l.b16 %v3462
    %v3486 = vunpack.c.l.b16 %v3463
    %v3487 = vunpack.c.l.b16 %v3464
    %v3488 = vpack.c.b16 %v3481, %v3480
    %v3489 = vpack.c.b16 %v3483, %v3482
    %v3490 = vpack.c.b16 %v3485, %v3484
    %v3491 = vpack.c.b16 %v3487, %v3486
    %vm3496 = vcmask 523264
    %v3498 = vsel %vm3496, %v3455, 0
    %v3501 = vsel %vm3496, %v3456, 0
    %3503 = vmatprep.subr.bf16.mxu0 0
    %3504 = vmatpush1.bf16.msra.mxu0 %v3488
    %3505 = vmatprep.subr.bf16.mxu0 0
    %3506 = vmatpush1.bf16.msra.mxu0 %v3489
    %3507 = vmatprep.subr.bf16.mxu0 0
    %3508 = vmatpush1.bf16.msra.mxu0 %v3490
    %3509 = vmatprep.subr.bf16.mxu0 0
    %3510 = vmatpush1.bf16.msra.mxu0 %v3491
    %3511 = vmatprep.subr.bf16.mxu0 0
    %3512 = vmatpush1.bf16.msra.mxu0 0
    %3513 = vmatprep.subr.bf16.mxu0 0
    %3514 = vmatpush1.bf16.msra.mxu0 0
    %3515 = vmatprep.subr.bf16.mxu0 0
    %3516 = vmatpush1.bf16.msra.mxu0 0
    %3517 = vmatprep.subr.bf16.mxu0 0
    %3518 = vmatpush1.bf16.msra.mxu0 0
    %3519 = vmatprep.subr.bf16.mxu0 0
    %3520 = vmatpush1.bf16.msra.mxu0 0
    %3521 = vmatprep.subr.bf16.mxu0 0
    %3522 = vmatpush1.bf16.msra.mxu0 0
    %3523 = vmatprep.subr.bf16.mxu0 0
    %3524 = vmatpush1.bf16.msra.mxu0 0
    %3525 = vmatprep.subr.bf16.mxu0 0
    %3526 = vmatpush1.bf16.msra.mxu0 0
    %3527 = vmatprep.subr.bf16.mxu0 0
    %3528 = vmatpush1.bf16.msra.mxu0 0
    %3529 = vmatprep.subr.bf16.mxu0 0
    %3530 = vmatpush1.bf16.msra.mxu0 0
    %3531 = vmatprep.subr.bf16.mxu0 0
    %3532 = vmatpush1.bf16.msra.mxu0 0
    %3533 = vmatprep.subr.bf16.mxu0 0
    %3534 = vmatpush1.bf16.msra.mxu0 0
    %3535 = vmatprep.mubr.bf16.mxu0 0
    %3536 = vmatmul.mubr.bf16.gmra.mrb[0].mxu0 %v3498
    %v3537 = vpop.f32.mrb[0].mxu0
    %v3538 = vadd.f32 %v3470, %v3537
    %v3539 = vpop.f32.mrb[0].mxu0
    %v3540 = vpop.f32.mrb[0].mxu0
    %v3541 = vadd.f32 %v3470, %v3540
    %v3542 = vpop.f32.mrb[0].mxu0
    %3543 = vmatprep.mubr.bf16.mxu0 0
    %3544 = vmatmul.mubr.bf16.gmra.mrb[0].mxu0 %v3501
    %v3545 = vpop.f32.mrb[0].mxu0
    %v3546 = vadd.f32 %v3470, %v3545
    %v3547 = vpop.f32.mrb[0].mxu0
    %v3548 = vpop.f32.mrb[0].mxu0
    %v3549 = vadd.f32 %v3470, %v3548
    %v3550 = vpop.f32.mrb[0].mxu0
    %3551 = vdwg.mxu0
    %v3552 = vadd.f32 %v3367, %v3538
    %v3553 = vadd.f32 %v3368, %v3541
    %v3554 = vadd.f32 %v3369, %v3546
    %v3555 = vadd.f32 %v3370, %v3549
    %v3556 = vld [vmem:[%s18] sm:$0x1]
    %v3557 = vld [vmem:[%s19] sm:$0x1]
    %v3558 = vsel %vm241, %v3552, 0.0
    %3559 = vadd.xlane.f32.xlu0 %v3558
    %v3560 = vpop.xlane.xlu0 %3559
    %v3561 = vsel %vm241, %v3553, 0.0
    %3562 = vadd.xlane.f32.xlu0 %v3561
    %v3563 = vpop.xlane.xlu0 %3562
    %v3564 = vsel %vm241, %v3554, 0.0
    %3565 = vadd.xlane.f32.xlu0 %v3564
    %v3566 = vpop.xlane.xlu0 %3565
    %v3567 = vsel %vm241, %v3555, 0.0
    %3568 = vadd.xlane.f32.xlu0 %v3567
    %v3569 = vpop.xlane.xlu0 %3568
    %v3570 = vmul.f32 %v3560, %v3310
    %v3571 = vmul.f32 %v3563, %v3310
    %v3572 = vmul.f32 %v3566, %v3310
    %v3573 = vmul.f32 %v3569, %v3310
    %v3574 = vsub.f32 %v3552, %v3570
    %v3575 = vsub.f32 %v3553, %v3571
    %v3576 = vsub.f32 %v3554, %v3572
    %v3577 = vsub.f32 %v3555, %v3573
    %v3578 = vmul.f32 %v3574, %v3574
    %v3579 = vmul.f32 %v3575, %v3575
    %v3580 = vmul.f32 %v3576, %v3576
    %v3581 = vmul.f32 %v3577, %v3577
    %v3582 = vsel %vm241, %v3578, 0.0
    %3583 = vadd.xlane.f32.xlu0 %v3582
    %v3584 = vpop.xlane.xlu0 %3583
    %v3585 = vsel %vm241, %v3579, 0.0
    %3586 = vadd.xlane.f32.xlu0 %v3585
    %v3587 = vpop.xlane.xlu0 %3586
    %v3588 = vsel %vm241, %v3580, 0.0
    %3589 = vadd.xlane.f32.xlu0 %v3588
    %v3590 = vpop.xlane.xlu0 %3589
    %v3591 = vsel %vm241, %v3581, 0.0
    %3592 = vadd.xlane.f32.xlu0 %v3591
    %v3593 = vpop.xlane.xlu0 %3592
    %v3594 = vmul.f32 %v3584, %v3310
    %v3595 = vmul.f32 %v3587, %v3310
    %v3596 = vmul.f32 %v3590, %v3310
    %v3597 = vmul.f32 %v3593, %v3310
    %v3598 = vadd.f32 %v3594, 1e-05
    %v3599 = vadd.f32 %v3595, 1e-05
    %v3600 = vadd.f32 %v3596, 1e-05
    %v3601 = vadd.f32 %v3597, 1e-05
    %v3602 = vrsqrt.pop %v3598
    %v3603 = vrsqrt.pop %v3599
    %v3604 = vrsqrt.pop %v3600
    %v3605 = vrsqrt.pop %v3601
    %v3606 = vmul.f32 %v3574, %v3602
    %v3607 = vmul.f32 %v3575, %v3603
    %v3608 = vmul.f32 %v3576, %v3604
    %v3609 = vmul.f32 %v3577, %v3605
    %v3611 = vlaneseq
    %v3612 = vshrl.u32 %v3611, 7
    %v3613 = vsub.s32 0, %v3612
    %v3614 = vrot.slane %v3556, %v3613
    %v3616 = vmul.f32 %v3606, %v3614
    %v3617 = vmul.f32 %v3607, %v3614
    %v3618 = vmul.f32 %v3608, %v3614
    %v3619 = vmul.f32 %v3609, %v3614
    %v3621 = vlaneseq
    %v3622 = vshrl.u32 %v3621, 7
    %v3623 = vsub.s32 0, %v3622
    %v3624 = vrot.slane %v3557, %v3623
    %v3626 = vadd.f32 %v3616, %v3624
    %v3627 = vadd.f32 %v3617, %v3624
    %v3628 = vadd.f32 %v3618, %v3624
    %v3629 = vadd.f32 %v3619, %v3624
    %3630 = vst.msk [vmem:[#allocation21] sm:$0xff] %vm241, %v3626
    %3631 = vst.msk [vmem:[#allocation21 + $0x8] sm:$0xff] %vm241, %v3627
    %3632 = vst.msk [vmem:[#allocation21 + $0x10] sm:$0xff] %vm241, %v3628
    %3633 = vst.msk [vmem:[#allocation21 + $0x18] sm:$0xff] %vm241, %v3629
    // Predicated region
    $region126: #{tpu_custom_call.1} parent=1 // pred_check
      _
    $region127: #{tpu_custom_call.1} parent=1 // pred_check_branch
      %3635 = sbr.rel (0) target = $region129
    $region128: #{tpu_custom_call.1} parent=1 // pred_region
      %s3637 = ssub.s32 512, 512
      %3638 = vsyncadd [#allocation4], %s3637
      %s3639 = sshll.u32 [#allocation21], 4
      %s3640 = int_to_ptr.vmem [resolvable:$true] %s3639
      %3645 = dma.vmem_to_hbm [thread:$0]  %s3640, 512, %s20, [#allocation4], 128, 128, 8
    $region129: #{tpu_custom_call.1} parent=1 // pred_fallthru
      _
    // Predicated region
    $region130: #{tpu_custom_call.1} parent=1 // pred_check
      _
    $region131: #{tpu_custom_call.1} parent=1 // pred_check_branch
      %3647 = sbr.rel (0) target = $region133
    $region132: #{tpu_custom_call.1} parent=1 // pred_region
      %3648 = dma.done [#allocation4], 512
    $region133: #{tpu_custom_call.1} parent=1 // pred_fallthru
      _
    %3649 = vsyncpa [#allocation3], 1
    %3650 = vsyncpa [#allocation8], 1
    %3651 = vsyncpa [#allocation11], 1
    %3652 = vsyncpa [#allocation14], 1
    %3653 = vsyncpa [#allocation17], 1
    %3654 = vsyncpa [#allocation20], 1
    %3655 = vsyncpa [#allocation4], 1
    %3656 = vsyncpa [#allocation5], 1

// kernel: tpu_custom_call.1
$region0: #{tpu_custom_call.1}
  #allocation0 [shape = 'u32[]', space=smem, size = 0x4, offset = 0x4, fixed_abs, tag = 'smem constant byte address 0x4 - core index']
  #allocation1 [shape = 'u32[144,128]{1,0:T(1,128)}', space=vmem, size = 0x12000, scoped, tag = 'internal scratch']
  %s0 = inlined_call_operand.vmem [shape: f32[1,4], index: 0, kind: input, shape index: {}]
  %s1 = inlined_call_operand.vmem [shape: f32[4,8,32], index: 1, kind: input, shape index: {}]
  %s2 = inlined_call_operand.vmem [shape: bf16[4,8,32], index: 2, kind: input, shape index: {}]
  %s3 = inlined_call_operand.hbm [shape: bf16[4,8,32], index: 3, kind: input, shape index: {}]
  %s4 = inlined_call_operand.hbm [shape: bf16[32,32], index: 4, kind: input, shape index: {}]
  %s5 = inlined_call_operand.hbm [shape: f32[1,32], index: 5, kind: input, shape index: {}]
  %s6 = inlined_call_operand.hbm [shape: bf16[32,32], index: 6, kind: input, shape index: {}]
  %s7 = inlined_call_operand.hbm [shape: f32[1,32], index: 7, kind: input, shape index: {}]
  %s8 = inlined_call_operand.hbm [shape: bf16[32,32], index: 8, kind: input, shape index: {}]
  %s9 = inlined_call_operand.hbm [shape: f32[1,32], index: 9, kind: input, shape index: {}]
  %s10 = inlined_call_operand.vmem [shape: bf16[32,32], index: 10, kind: input, shape index: {}]
  %s11 = inlined_call_operand.hbm [shape: f32[1,32], index: 11, kind: input, shape index: {}]
  %s12 = inlined_call_operand.hbm [shape: f32[1,32], index: 12, kind: input, shape index: {}]
  %s13 = inlined_call_operand.hbm [shape: f32[1,32], index: 13, kind: input, shape index: {}]
  %s14 = inlined_call_operand.vmem [shape: bf16[32,64], index: 14, kind: input, shape index: {}]
  %s15 = inlined_call_operand.vmem [shape: f32[1,64], index: 15, kind: input, shape index: {}]
  %s16 = inlined_call_operand.vmem [shape: bf16[64,32], index: 16, kind: input, shape index: {}]
  %s17 = inlined_call_operand.vmem [shape: f32[1,32], index: 17, kind: input, shape index: {}]
  %s18 = inlined_call_operand.vmem [shape: f32[1,32], index: 18, kind: input, shape index: {}]
  %s19 = inlined_call_operand.vmem [shape: f32[1,32], index: 19, kind: input, shape index: {}]
  %s20 = inlined_call_operand.hbm [shape: f32[4,8,32], index: 20, kind: output, shape index: {}]
  %s21 = sld [smem:[#allocation0]]
  $region134: #{tpu_custom_call.1} parent=0
    _
  %s23 = ssub.s32 1, %s21
  %s24 = scalar_select 0, %s23, %s21
  $region1: #{tpu_custom_call.1} parent=0
    #allocation2 [shape = 'u8[512]{0}', space=smem, size = 0x200, scoped, tag = 'input window, operand 0, single buffered']
    #allocation3 [shape = 's32[1]{0}', space=sflag, size = 0x4, scoped, tag = 'scoped memory for tpu_custom_call.1']
    #allocation4 [shape = 's32[1]{0}', space=sflag, size = 0x4, scoped, tag = 'scoped memory for tpu_custom_call.1']
    #allocation5 [shape = 's32[1]{0}', space=sflag, size = 0x4, scoped, tag = 'scoped memory for tpu_custom_call.1']
    #allocation6 [shape = 'u8[8192]{0}', space=vmem, size = 0x2000, scoped, tag = 'input window, operand 3, single buffered']
    #allocation7 [shape = 'u8[8192]{0}', space=vmem, size = 0x2000, scoped, tag = 'input window, operand 4, single buffered']
    #allocation8 [shape = 's32[1]{0}', space=sflag, size = 0x4, scoped, tag = 'scoped memory for tpu_custom_call.1']
    #allocation9 [shape = 'u8[512]{0}', space=vmem, size = 0x400, scoped, tag = 'input window, operand 5, single buffered']
    #allocation10 [shape = 'u8[8192]{0}', space=vmem, size = 0x2000, scoped, tag = 'input window, operand 6, single buffered']
    #allocation11 [shape = 's32[1]{0}', space=sflag, size = 0x4, scoped, tag = 'scoped memory for tpu_custom_call.1']
    #allocation12 [shape = 'u8[512]{0}', space=vmem, size = 0x400, scoped, tag = 'input window, operand 7, single buffered']
    #allocation13 [shape = 'u8[8192]{0}', space=vmem, size = 0x2000, scoped, tag = 'input window, operand 8, single buffered']
    #allocation14 [shape = 's32[1]{0}', space=sflag, size = 0x4, scoped, tag = 'scoped memory for tpu_custom_call.1']
    #allocation15 [shape = 'u8[512]{0}', space=vmem, size = 0x400, scoped, tag = 'input window, operand 9, single buffered']
    #allocation16 [shape = 'u8[512]{0}', space=vmem, size = 0x400, scoped, tag = 'input window, operand 11, single buffered']
    #allocation17 [shape = 's32[1]{0}', space=sflag, size = 0x4, scoped, tag = 'scoped memory for tpu_custom_call.1']
    #allocation18 [shape = 'u8[512]{0}', space=vmem, size = 0x400, scoped, tag = 'input window, operand 12, single buffered']
    #allocation19 [shape = 'u8[512]{0}', space=vmem, size = 0x400, scoped, tag = 'input window, operand 13, single buffered']
    #allocation20 [shape = 's32[1]{0}', space=sflag, size = 0x4, scoped, tag = 'scoped memory for tpu_custom_call.1']
    #allocation21 [shape = 'u8[16384]{0}', space=vmem, size = 0x4000, scoped, tag = 'output window, operand 0, single buffered']
    %25 = vsyncpa [#allocation5], 0
    %26 = vsyncpa [#allocation3], 0
    %27 = vsyncpa [#allocation8], 0
    %28 = vsyncpa [#allocation11], 0
    %29 = vsyncpa [#allocation14], 0
    %30 = vsyncpa [#allocation17], 0
    %31 = vsyncpa [#allocation20], 0
    %32 = vsyncpa [#allocation4], 0
    // Predicated region
    $region2: #{tpu_custom_call.1} parent=1 // pred_check
      _
    $region3: #{tpu_custom_call.1} parent=1 // pred_check_branch
      %34 = sbr.rel (0) target = $region5
    $region4: #{tpu_custom_call.1} parent=1 // pred_region
      %s36 = ssub.s32 16, 16
      %37 = vsyncadd [#allocation5], %s36
      %s39 = sshll.u32 %s0, 4
      %s40 = int_to_ptr.vmem [resolvable:$true] %s39
      %42 = dma.vmem_to_smem %s40, 16, [#allocation2], [#allocation5]
    $region5: #{tpu_custom_call.1} parent=1 // pred_fallthru
      _
    // Predicated region
    $region6: #{tpu_custom_call.1} parent=1 // pred_check
      _
    $region7: #{tpu_custom_call.1} parent=1 // pred_check_branch
      %44 = sbr.rel (0) target = $region9
    $region8: #{tpu_custom_call.1} parent=1 // pred_region
      _
    $region9: #{tpu_custom_call.1} parent=1 // pred_fallthru
      _
    // Predicated region
    $region10: #{tpu_custom_call.1} parent=1 // pred_check
      _
    $region11: #{tpu_custom_call.1} parent=1 // pred_check_branch
      %46 = sbr.rel (0) target = $region13
    $region12: #{tpu_custom_call.1} parent=1 // pred_region
      _
    $region13: #{tpu_custom_call.1} parent=1 // pred_fallthru
      _
    // Predicated region
    $region14: #{tpu_custom_call.1} parent=1 // pred_check
      _
    $region15: #{tpu_custom_call.1} parent=1 // pred_check_branch
      %48 = sbr.rel (0) target = $region17
    $region16: #{tpu_custom_call.1} parent=1 // pred_region
      %s50 = ssub.s32 256, 256
      %51 = vsyncadd [#allocation3], %s50
      %s52 = sshll.u32 [#allocation6], 4
      %s53 = int_to_ptr.vmem [resolvable:$true] %s52
      %58 = dma.hbm_to_vmem [thread:$0]  %s3, 256, %s53, [#allocation3], 64, 64, 4
    $region17: #{tpu_custom_call.1} parent=1 // pred_fallthru
      _
    // Predicated region
    $region18: #{tpu_custom_call.1} parent=1 // pred_check
      _
    $region19: #{tpu_custom_call.1} parent=1 // pred_check_branch
      %60 = sbr.rel (0) target = $region21
    $region20: #{tpu_custom_call.1} parent=1 // pred_region
      %s62 = ssub.s32 256, 256
      %63 = vsyncadd [#allocation8], %s62
      %s64 = sshll.u32 [#allocation7], 4
      %s65 = int_to_ptr.vmem [resolvable:$true] %s64
      %70 = dma.hbm_to_vmem [thread:$0]  %s4, 256, %s65, [#allocation8], 64, 64, 4
    $region21: #{tpu_custom_call.1} parent=1 // pred_fallthru
      _
    // Predicated region
    $region22: #{tpu_custom_call.1} parent=1 // pred_check
      _
    $region23: #{tpu_custom_call.1} parent=1 // pred_check_branch
      %72 = sbr.rel (0) target = $region25
    $region24: #{tpu_custom_call.1} parent=1 // pred_region
      %s74 = ssub.s32 16, 16
      %75 = vsyncadd [#allocation8], %s74
      %s77 = sshll.u32 [#allocation9], 4
      %s78 = int_to_ptr.vmem [resolvable:$true] %s77
      %80 = dma.hbm_to_vmem [thread:$0]  %s5, 16, %s78, [#allocation8]
    $region25: #{tpu_custom_call.1} parent=1 // pred_fallthru
      _
    // Predicated region
    $region26: #{tpu_custom_call.1} parent=1 // pred_check
      _
    $region27: #{tpu_custom_call.1} parent=1 // pred_check_branch
      %82 = sbr.rel (0) target = $region29
    $region28: #{tpu_custom_call.1} parent=1 // pred_region
      %s84 = ssub.s32 256, 256
      %85 = vsyncadd [#allocation11], %s84
      %s86 = sshll.u32 [#allocation10], 4
      %s87 = int_to_ptr.vmem [resolvable:$true] %s86
      %92 = dma.hbm_to_vmem [thread:$0]  %s6, 256, %s87, [#allocation11], 64, 64, 4
    $region29: #{tpu_custom_call.1} parent=1 // pred_fallthru
      _
    // Predicated region
    $region30: #{tpu_custom_call.1} parent=1 // pred_check
      _
    $region31: #{tpu_custom_call.1} parent=1 // pred_check_branch
      %94 = sbr.rel (0) target = $region33
    $region32: #{tpu_custom_call.1} parent=1 // pred_region
      %s96 = ssub.s32 16, 16
      %97 = vsyncadd [#allocation11], %s96
      %s99 = sshll.u32 [#allocation12], 4
      %s100 = int_to_ptr.vmem [resolvable:$true] %s99
      %102 = dma.hbm_to_vmem [thread:$0]  %s7, 16, %s100, [#allocation11]
    $region33: #{tpu_custom_call.1} parent=1 // pred_fallthru
      _
    // Predicated region
    $region34: #{tpu_custom_call.1} parent=1 // pred_check
      _
    $region35: #{tpu_custom_call.1} parent=1 // pred_check_branch
      %104 = sbr.rel (0) target = $region37
    $region36: #{tpu_custom_call.1} parent=1 // pred_region
      %s106 = ssub.s32 256, 256
      %107 = vsyncadd [#allocation14], %s106
      %s108 = sshll.u32 [#allocation13], 4
      %s109 = int_to_ptr.vmem [resolvable:$true] %s108
      %114 = dma.hbm_to_vmem [thread:$0]  %s8, 256, %s109, [#allocation14], 64, 64, 4
    $region37: #{tpu_custom_call.1} parent=1 // pred_fallthru
      _
    // Predicated region
    $region38: #{tpu_custom_call.1} parent=1 // pred_check
      _
    $region39: #{tpu_custom_call.1} parent=1 // pred_check_branch
      %116 = sbr.rel (0) target = $region41
    $region40: #{tpu_custom_call.1} parent=1 // pred_region
      %s118 = ssub.s32 16, 16
      %119 = vsyncadd [#allocation14], %s118
      %s121 = sshll.u32 [#allocation15], 4
      %s122 = int_to_ptr.vmem [resolvable:$true] %s121
      %124 = dma.hbm_to_vmem [thread:$0]  %s9, 16, %s122, [#allocation14]
    $region41: #{tpu_custom_call.1} parent=1 // pred_fallthru
      _
    // Predicated region
    $region42: #{tpu_custom_call.1} parent=1 // pred_check
      _
    $region43: #{tpu_custom_call.1} parent=1 // pred_check_branch
      %126 = sbr.rel (0) target = $region45
    $region44: #{tpu_custom_call.1} parent=1 // pred_region
      _
    $region45: #{tpu_custom_call.1} parent=1 // pred_fallthru
      _
    // Predicated region
    $region46: #{tpu_custom_call.1} parent=1 // pred_check
      _
    $region47: #{tpu_custom_call.1} parent=1 // pred_check_branch
      %128 = sbr.rel (0) target = $region49
    $region48: #{tpu_custom_call.1} parent=1 // pred_region
      %s130 = ssub.s32 16, 16
      %131 = vsyncadd [#allocation17], %s130
      %s133 = sshll.u32 [#allocation16], 4
      %s134 = int_to_ptr.vmem [resolvable:$true] %s133
      %136 = dma.hbm_to_vmem [thread:$0]  %s11, 16, %s134, [#allocation17]
    $region49: #{tpu_custom_call.1} parent=1 // pred_fallthru
      _
    // Predicated region
    $region50: #{tpu_custom_call.1} parent=1 // pred_check
      _
    $region51: #{tpu_custom_call.1} parent=1 // pred_check_branch
      %138 = sbr.rel (0) target = $region53
    $region52: #{tpu_custom_call.1} parent=1 // pred_region
      %s140 = ssub.s32 16, 16
      %141 = vsyncadd [#allocation17], %s140
      %s143 = sshll.u32 [#allocation18], 4
      %s144 = int_to_ptr.vmem [resolvable:$true] %s143
      %146 = dma.hbm_to_vmem [thread:$0]  %s12, 16, %s144, [#allocation17]
    $region53: #{tpu_custom_call.1} parent=1 // pred_fallthru
      _
    // Predicated region
    $region54: #{tpu_custom_call.1} parent=1 // pred_check
      _
    $region55: #{tpu_custom_call.1} parent=1 // pred_check_branch
      %148 = sbr.rel (0) target = $region57
    $region56: #{tpu_custom_call.1} parent=1 // pred_region
      %s150 = ssub.s32 16, 16
      %151 = vsyncadd [#allocation20], %s150
      %s153 = sshll.u32 [#allocation19], 4
      %s154 = int_to_ptr.vmem [resolvable:$true] %s153
      %156 = dma.hbm_to_vmem [thread:$0]  %s13, 16, %s154, [#allocation20]
    $region57: #{tpu_custom_call.1} parent=1 // pred_fallthru
      _
    // Predicated region
    $region58: #{tpu_custom_call.1} parent=1 // pred_check
      _
    $region59: #{tpu_custom_call.1} parent=1 // pred_check_branch
      %158 = sbr.rel (0) target = $region61
    $region60: #{tpu_custom_call.1} parent=1 // pred_region
      _
    $region61: #{tpu_custom_call.1} parent=1 // pred_fallthru
      _
    // Predicated region
    $region62: #{tpu_custom_call.1} parent=1 // pred_check
      _
    $region63: #{tpu_custom_call.1} parent=1 // pred_check_branch
      %160 = sbr.rel (0) target = $region65
    $region64: #{tpu_custom_call.1} parent=1 // pred_region
      _
    $region65: #{tpu_custom_call.1} parent=1 // pred_fallthru
      _
    // Predicated region
    $region66: #{tpu_custom_call.1} parent=1 // pred_check
      _
    $region67: #{tpu_custom_call.1} parent=1 // pred_check_branch
      %162 = sbr.rel (0) target = $region69
    $region68: #{tpu_custom_call.1} parent=1 // pred_region
      _
    $region69: #{tpu_custom_call.1} parent=1 // pred_fallthru
      _
    // Predicated region
    $region70: #{tpu_custom_call.1} parent=1 // pred_check
      _
    $region71: #{tpu_custom_call.1} parent=1 // pred_check_branch
      %164 = sbr.rel (0) target = $region73
    $region72: #{tpu_custom_call.1} parent=1 // pred_region
      _
    $region73: #{tpu_custom_call.1} parent=1 // pred_fallthru
      _
    // Predicated region
    $region74: #{tpu_custom_call.1} parent=1 // pred_check
      _
    $region75: #{tpu_custom_call.1} parent=1 // pred_check_branch
      %166 = sbr.rel (0) target = $region77
    $region76: #{tpu_custom_call.1} parent=1 // pred_region
      _
    $region77: #{tpu_custom_call.1} parent=1 // pred_fallthru
      _
    // Predicated region
    $region78: #{tpu_custom_call.1} parent=1 // pred_check
      _
    $region79: #{tpu_custom_call.1} parent=1 // pred_check_branch
      %168 = sbr.rel (0) target = $region81
    $region80: #{tpu_custom_call.1} parent=1 // pred_region
      _
    $region81: #{tpu_custom_call.1} parent=1 // pred_fallthru
      _
    // Predicated region
    $region82: #{tpu_custom_call.1} parent=1 // pred_check
      _
    $region83: #{tpu_custom_call.1} parent=1 // pred_check_branch
      %170 = sbr.rel (0) target = $region85
    $region84: #{tpu_custom_call.1} parent=1 // pred_region
      %171 = dma.done [#allocation5], 16
    $region85: #{tpu_custom_call.1} parent=1 // pred_fallthru
      _
    // Predicated region
    $region86: #{tpu_custom_call.1} parent=1 // pred_check
      _
    $region87: #{tpu_custom_call.1} parent=1 // pred_check_branch
      %173 = sbr.rel (0) target = $region89
    $region88: #{tpu_custom_call.1} parent=1 // pred_region
      %174 = dma.done [#allocation3], 256
    $region89: #{tpu_custom_call.1} parent=1 // pred_fallthru
      _
    // Predicated region
    $region90: #{tpu_custom_call.1} parent=1 // pred_check
      _
    $region91: #{tpu_custom_call.1} parent=1 // pred_check_branch
      %176 = sbr.rel (0) target = $region93
    $region92: #{tpu_custom_call.1} parent=1 // pred_region
      %177 = dma.done [#allocation8], 256
    $region93: #{tpu_custom_call.1} parent=1 // pred_fallthru
      _
    // Predicated region
    $region94: #{tpu_custom_call.1} parent=1 // pred_check
      _
    $region95: #{tpu_custom_call.1} parent=1 // pred_check_branch
      %179 = sbr.rel (0) target = $region97
    $region96: #{tpu_custom_call.1} parent=1 // pred_region
      %180 = dma.done [#allocation8], 16
    $region97: #{tpu_custom_call.1} parent=1 // pred_fallthru
      _
    // Predicated region
    $region98: #{tpu_custom_call.1} parent=1 // pred_check
      _
    $region99: #{tpu_custom_call.1} parent=1 // pred_check_branch
      %182 = sbr.rel (0) target = $region101
    $region100: #{tpu_custom_call.1} parent=1 // pred_region
      %183 = dma.done [#allocation11], 256
    $region101: #{tpu_custom_call.1} parent=1 // pred_fallthru
      _
    // Predicated region
    $region102: #{tpu_custom_call.1} parent=1 // pred_check
      _
    $region103: #{tpu_custom_call.1} parent=1 // pred_check_branch
      %185 = sbr.rel (0) target = $region105
    $region104: #{tpu_custom_call.1} parent=1 // pred_region
      %186 = dma.done [#allocation11], 16
    $region105: #{tpu_custom_call.1} parent=1 // pred_fallthru
      _
    // Predicated region
    $region106: #{tpu_custom_call.1} parent=1 // pred_check
      _
    $region107: #{tpu_custom_call.1} parent=1 // pred_check_branch
      %188 = sbr.rel (0) target = $region109
    $region108: #{tpu_custom_call.1} parent=1 // pred_region
      %189 = dma.done [#allocation14], 256
    $region109: #{tpu_custom_call.1} parent=1 // pred_fallthru
      _
    // Predicated region
    $region110: #{tpu_custom_call.1} parent=1 // pred_check
      _
    $region111: #{tpu_custom_call.1} parent=1 // pred_check_branch
      %191 = sbr.rel (0) target = $region113
    $region112: #{tpu_custom_call.1} parent=1 // pred_region
      %192 = dma.done [#allocation14], 16
    $region113: #{tpu_custom_call.1} parent=1 // pred_fallthru
      _
    // Predicated region
    $region114: #{tpu_custom_call.1} parent=1 // pred_check
      _
    $region115: #{tpu_custom_call.1} parent=1 // pred_check_branch
      %194 = sbr.rel (0) target = $region117
    $region116: #{tpu_custom_call.1} parent=1 // pred_region
      %195 = dma.done [#allocation17], 16
    $region117: #{tpu_custom_call.1} parent=1 // pred_fallthru
      _
    // Predicated region
    $region118: #{tpu_custom_call.1} parent=1 // pred_check
      _
    $region119: #{tpu_custom_call.1} parent=1 // pred_check_branch
      %197 = sbr.rel (0) target = $region121
    $region120: #{tpu_custom_call.1} parent=1 // pred_region
      %198 = dma.done [#allocation17], 16
    $region121: #{tpu_custom_call.1} parent=1 // pred_fallthru
      _
    // Predicated region
    $region122: #{tpu_custom_call.1} parent=1 // pred_check
      _
    $region123: #{tpu_custom_call.1} parent=1 // pred_check_branch
      %200 = sbr.rel (0) target = $region125
    $region124: #{tpu_custom_call.1} parent=1 // pred_region
      %201 = dma.done [#allocation20], 16
    $region125: #{tpu_custom_call.1} parent=1 // pred_fallthru
      _
    %202 = sfence
    %v204 = vld [vmem:[%s1] sm:$0xff]
    %v205 = vld [vmem:[%s1 + $0x8] sm:$0xff]
    %v206 = vld [vmem:[%s1 + $0x10] sm:$0xff]
    %v207 = vld [vmem:[%s1 + $0x18] sm:$0xff]
    %v208 = vpack.c.bf16 %v205, %v204
    %v209 = vpack.c.bf16 %v207, %v206
    %v210 = vld [vmem:[%s2] sm:$0xf]
    %v211 = vld [vmem:[%s2 + $0x4] sm:$0xf]
    %v212 = vld [vmem:[%s2 + $0x8] sm:$0xf]
    %v213 = vld [vmem:[%s2 + $0xc] sm:$0xf]
    %v214 = vld [vmem:[#allocation6] sm:$0xf]
    %v215 = vld [vmem:[#allocation6 + $0x4] sm:$0xf]
    %v216 = vld [vmem:[#allocation6 + $0x8] sm:$0xf]
    %v217 = vld [vmem:[#allocation6 + $0xc] sm:$0xf]
    %v218 = vld [vmem:[#allocation7] sm:$0xf]
    %v219 = vld [vmem:[#allocation7 + $0x4] sm:$0xf]
    %v220 = vld [vmem:[#allocation7 + $0x8] sm:$0xf]
    %v221 = vld [vmem:[#allocation7 + $0xc] sm:$0xf]
    %v222 = vld [vmem:[#allocation9] sm:$0x1]
    %v224 = vlaneseq
    %v225 = vshrl.u32 %v224, 7
    %v226 = vsub.s32 0, %v225
    %v227 = vrot.slane %v222, %v226
    %v233 = vunpack.c.l.b16 %v218
    %v234 = vunpack.c.l.b16 %v219
    %v235 = vunpack.c.l.b16 %v220
    %v236 = vunpack.c.l.b16 %v221
    %v237 = vpack.c.b16 %v234, %v233
    %v238 = vpack.c.b16 %v236, %v235
    %vm241 = vcmask 261120
    %v243 = vsel %vm241, %v208, 0
    %v246 = vsel %vm241, %v209, 0
    %248 = vmatprep.subr.bf16.mxu0 0
    %249 = vmatpush1.bf16.msra.mxu0 %v237
    %250 = vmatprep.subr.bf16.mxu0 0
    %251 = vmatpush1.bf16.msra.mxu0 %v238
    %252 = vmatprep.subr.bf16.mxu0 0
    %253 = vmatpush1.bf16.msra.mxu0 0
    %254 = vmatprep.subr.bf16.mxu0 0
    %255 = vmatpush1.bf16.msra.mxu0 0
    %256 = vmatprep.subr.bf16.mxu0 0
    %257 = vmatpush1.bf16.msra.mxu0 0
    %258 = vmatprep.subr.bf16.mxu0 0
    %259 = vmatpush1.bf16.msra.mxu0 0
    %260 = vmatprep.subr.bf16.mxu0 0
    %261 = vmatpush1.bf16.msra.mxu0 0
    %262 = vmatprep.subr.bf16.mxu0 0
    %263 = vmatpush1.bf16.msra.mxu0 0
    %264 = vmatprep.subr.bf16.mxu0 0
    %265 = vmatpush1.bf16.msra.mxu0 0
    %266 = vmatprep.subr.bf16.mxu0 0
    %267 = vmatpush1.bf16.msra.mxu0 0
    %268 = vmatprep.subr.bf16.mxu0 0
    %269 = vmatpush1.bf16.msra.mxu0 0
    %270 = vmatprep.subr.bf16.mxu0 0
    %271 = vmatpush1.bf16.msra.mxu0 0
    %272 = vmatprep.subr.bf16.mxu0 0
    %273 = vmatpush1.bf16.msra.mxu0 0
    %274 = vmatprep.subr.bf16.mxu0 0
    %275 = vmatpush1.bf16.msra.mxu0 0
    %276 = vmatprep.subr.bf16.mxu0 0
    %277 = vmatpush1.bf16.msra.mxu0 0
    %278 = vmatprep.subr.bf16.mxu0 0
    %279 = vmatpush1.bf16.msra.mxu0 0
    %280 = vmatprep.mubr.bf16.mxu0 0
    %281 = vmatmul.mubr.bf16.gmra.mrb[0].mxu0 %v243
    %v282 = vpop.f32.mrb[0].mxu0
    %v283 = vadd.f32 %v227, %v282
    %v284 = vpop.f32.mrb[0].mxu0
    %v285 = vpop.f32.mrb[0].mxu0
    %v286 = vadd.f32 %v227, %v285
    %v287 = vpop.f32.mrb[0].mxu0
    %288 = vmatprep.mubr.bf16.mxu0 0
    %289 = vmatmul.mubr.bf16.gmra.mrb[0].mxu0 %v246
    %v290 = vpop.f32.mrb[0].mxu0
    %v291 = vadd.f32 %v227, %v290
    %v292 = vpop.f32.mrb[0].mxu0
    %v293 = vpop.f32.mrb[0].mxu0
    %v294 = vadd.f32 %v227, %v293
    %v295 = vpop.f32.mrb[0].mxu0
    %296 = vdwg.mxu0
    %v297 = vld [vmem:[#allocation10] sm:$0xf]
    %v298 = vld [vmem:[#allocation10 + $0x4] sm:$0xf]
    %v299 = vld [vmem:[#allocation10 + $0x8] sm:$0xf]
    %v300 = vld [vmem:[#allocation10 + $0xc] sm:$0xf]
    %v301 = vld [vmem:[#allocation12] sm:$0x1]
    %v303 = vlaneseq
    %v304 = vshrl.u32 %v303, 7
    %v305 = vsub.s32 0, %v304
    %v306 = vrot.slane %v301, %v305
    %v312 = vunpack.c.l.b16 %v210
    %v313 = vunpack.c.l.b16 %v211
    %v314 = vunpack.c.l.b16 %v212
    %v315 = vunpack.c.l.b16 %v213
    %v316 = vpack.c.b16 %v313, %v312
    %v317 = vpack.c.b16 %v315, %v314
    %v322 = vunpack.c.l.b16 %v297
    %v323 = vunpack.c.l.b16 %v298
    %v324 = vunpack.c.l.b16 %v299
    %v325 = vunpack.c.l.b16 %v300
    %v326 = vpack.c.b16 %v323, %v322
    %v327 = vpack.c.b16 %v325, %v324
    %v331 = vsel %vm241, %v316, 0
    %v334 = vsel %vm241, %v317, 0
    %336 = vmatprep.subr.bf16.mxu0 0
    %337 = vmatpush1.bf16.msra.mxu0 %v326
    %338 = vmatprep.subr.bf16.mxu0 0
    %339 = vmatpush1.bf16.msra.mxu0 %v327
    %340 = vmatprep.subr.bf16.mxu0 0
    %341 = vmatpush1.bf16.msra.mxu0 0
    %342 = vmatprep.subr.bf16.mxu0 0
    %343 = vmatpush1.bf16.msra.mxu0 0
    %344 = vmatprep.subr.bf16.mxu0 0
    %345 = vmatpush1.bf16.msra.mxu0 0
    %346 = vmatprep.subr.bf16.mxu0 0
    %347 = vmatpush1.bf16.msra.mxu0 0
    %348 = vmatprep.subr.bf16.mxu0 0
    %349 = vmatpush1.bf16.msra.mxu0 0
    %350 = vmatprep.subr.bf16.mxu0 0
    %351 = vmatpush1.bf16.msra.mxu0 0
    %352 = vmatprep.subr.bf16.mxu0 0
    %353 = vmatpush1.bf16.msra.mxu0 0
    %354 = vmatprep.subr.bf16.mxu0 0
    %355 = vmatpush1.bf16.msra.mxu0 0
    %356 = vmatprep.subr.bf16.mxu0 0
    %357 = vmatpush1.bf16.msra.mxu0 0
    %358 = vmatprep.subr.bf16.mxu0 0
    %359 = vmatpush1.bf16.msra.mxu0 0
    %360 = vmatprep.subr.bf16.mxu0 0
    %361 = vmatpush1.bf16.msra.mxu0 0
    %362 = vmatprep.subr.bf16.mxu0 0
    %363 = vmatpush1.bf16.msra.mxu0 0
    %364 = vmatprep.subr.bf16.mxu0 0
    %365 = vmatpush1.bf16.msra.mxu0 0
    %366 = vmatprep.subr.bf16.mxu0 0
    %367 = vmatpush1.bf16.msra.mxu0 0
    %368 = vmatprep.mubr.bf16.mxu0 0
    %369 = vmatmul.mubr.bf16.gmra.mrb[0].mxu0 %v331
    %v370 = vpop.f32.mrb[0].mxu0
    %v371 = vadd.f32 %v306, %v370
    %v372 = vpop.f32.mrb[0].mxu0
    %v373 = vpop.f32.mrb[0].mxu0
    %v374 = vadd.f32 %v306, %v373
    %v375 = vpop.f32.mrb[0].mxu0
    %376 = vmatprep.mubr.bf16.mxu0 0
    %377 = vmatmul.mubr.bf16.gmra.mrb[0].mxu0 %v334
    %v378 = vpop.f32.mrb[0].mxu0
    %v379 = vadd.f32 %v306, %v378
    %v380 = vpop.f32.mrb[0].mxu0
    %v381 = vpop.f32.mrb[0].mxu0
    %v382 = vadd.f32 %v306, %v381
    %v383 = vpop.f32.mrb[0].mxu0
    %384 = vdwg.mxu0
    %v385 = vld [vmem:[#allocation13] sm:$0xf]
    %v386 = vld [vmem:[#allocation13 + $0x4] sm:$0xf]
    %v387 = vld [vmem:[#allocation13 + $0x8] sm:$0xf]
    %v388 = vld [vmem:[#allocation13 + $0xc] sm:$0xf]
    %v389 = vld [vmem:[#allocation15] sm:$0x1]
    %v391 = vlaneseq
    %v392 = vshrl.u32 %v391, 7
    %v393 = vsub.s32 0, %v392
    %v394 = vrot.slane %v389, %v393
    %v400 = vunpack.c.l.b16 %v214
    %v401 = vunpack.c.l.b16 %v215
    %v402 = vunpack.c.l.b16 %v216
    %v403 = vunpack.c.l.b16 %v217
    %v404 = vpack.c.b16 %v401, %v400
    %v405 = vpack.c.b16 %v403, %v402
    %v410 = vunpack.c.l.b16 %v385
    %v411 = vunpack.c.l.b16 %v386
    %v412 = vunpack.c.l.b16 %v387
    %v413 = vunpack.c.l.b16 %v388
    %v414 = vpack.c.b16 %v411, %v410
    %v415 = vpack.c.b16 %v413, %v412
    %v419 = vsel %vm241, %v404, 0
    %v422 = vsel %vm241, %v405, 0
    %424 = vmatprep.subr.bf16.mxu0 0
    %425 = vmatpush1.bf16.msra.mxu0 %v414
    %426 = vmatprep.subr.bf16.mxu0 0
    %427 = vmatpush1.bf16.msra.mxu0 %v415
    %428 = vmatprep.subr.bf16.mxu0 0
    %429 = vmatpush1.bf16.msra.mxu0 0
    %430 = vmatprep.subr.bf16.mxu0 0
    %431 = vmatpush1.bf16.msra.mxu0 0
    %432 = vmatprep.subr.bf16.mxu0 0
    %433 = vmatpush1.bf16.msra.mxu0 0
    %434 = vmatprep.subr.bf16.mxu0 0
    %435 = vmatpush1.bf16.msra.mxu0 0
    %436 = vmatprep.subr.bf16.mxu0 0
    %437 = vmatpush1.bf16.msra.mxu0 0
    %438 = vmatprep.subr.bf16.mxu0 0
    %439 = vmatpush1.bf16.msra.mxu0 0
    %440 = vmatprep.subr.bf16.mxu0 0
    %441 = vmatpush1.bf16.msra.mxu0 0
    %442 = vmatprep.subr.bf16.mxu0 0
    %443 = vmatpush1.bf16.msra.mxu0 0
    %444 = vmatprep.subr.bf16.mxu0 0
    %445 = vmatpush1.bf16.msra.mxu0 0
    %446 = vmatprep.subr.bf16.mxu0 0
    %447 = vmatpush1.bf16.msra.mxu0 0
    %448 = vmatprep.subr.bf16.mxu0 0
    %449 = vmatpush1.bf16.msra.mxu0 0
    %450 = vmatprep.subr.bf16.mxu0 0
    %451 = vmatpush1.bf16.msra.mxu0 0
    %452 = vmatprep.subr.bf16.mxu0 0
    %453 = vmatpush1.bf16.msra.mxu0 0
    %454 = vmatprep.subr.bf16.mxu0 0
    %455 = vmatpush1.bf16.msra.mxu0 0
    %456 = vmatprep.mubr.bf16.mxu0 0
    %457 = vmatmul.mubr.bf16.gmra.mrb[0].mxu0 %v419
    %v458 = vpop.f32.mrb[0].mxu0
    %v459 = vadd.f32 %v394, %v458
    %v460 = vpop.f32.mrb[0].mxu0
    %v461 = vpop.f32.mrb[0].mxu0
    %v462 = vadd.f32 %v394, %v461
    %v463 = vpop.f32.mrb[0].mxu0
    %464 = vmatprep.mubr.bf16.mxu0 0
    %465 = vmatmul.mubr.bf16.gmra.mrb[0].mxu0 %v422
    %v466 = vpop.f32.mrb[0].mxu0
    %v467 = vadd.f32 %v394, %v466
    %v468 = vpop.f32.mrb[0].mxu0
    %v469 = vpop.f32.mrb[0].mxu0
    %v470 = vadd.f32 %v394, %v469
    %v471 = vpop.f32.mrb[0].mxu0
    %472 = vdwg.mxu0
    %v473 = vlaneseq
    %v474 = vshrl.u32 %v473, 7
    %v475 = vlaneseq
    %v476 = vand.u32 %v475, 127
    %vm477 = vcmp.lt.s32.totalorder %v476, %v474
    %v478 = vsel %vm477, 1, 0
    %v479 = vcvt.s32.f32 %v478
    %v480 = vsub.s32 %v476, %v474
    %vm481 = vcmp.lt.s32.totalorder %v480, 0
    %v482 = vsub.s32 0, %v480
    %v483 = vsel %vm481, %v482, %v480
    %v484 = vcvt.s32.f32 %v483
    %vm485 = vcmp.gt.s32.totalorder %v474, %v476
    %v486 = vsel %vm485, 1, 0
    %v487 = vcvt.s32.f32 %v486
    %v488 = vpack.c.bf16 %v283, %v283
    %v489 = vpack.c.bf16 %v286, %v286
    %v490 = vpack.c.bf16 %v291, %v291
    %v491 = vpack.c.bf16 %v294, %v294
    %v492 = vpack.c.bf16 %v371, %v371
    %v493 = vpack.c.bf16 %v374, %v374
    %v494 = vpack.c.bf16 %v379, %v379
    %v495 = vpack.c.bf16 %v382, %v382
    %v496 = vpack.c.bf16 %v459, %v459
    %v497 = vpack.c.bf16 %v462, %v462
    %v498 = vpack.c.bf16 %v467, %v467
    %v499 = vpack.c.bf16 %v470, %v470
    %vm500 = vcmask 64512
    %v502 = vsel %vm500, %v488, 0
    %v505 = vsel %vm500, %v492, 0
    %507 = vmatprep.subr.bf16.mxu0 0
    %508 = vmatpush1.bf16.xpose.msra.mxu0 %v505
    %509 = vmatprep.subr.bf16.mxu0 0
    %510 = vmatpush1.bf16.xpose.msra.mxu0 0
    %511 = vmatprep.subr.bf16.mxu0 0
    %512 = vmatpush1.bf16.xpose.msra.mxu0 0
    %513 = vmatprep.subr.bf16.mxu0 0
    %514 = vmatpush1.bf16.xpose.msra.mxu0 0
    %515 = vmatprep.subr.bf16.mxu0 0
    %516 = vmatpush1.bf16.xpose.msra.mxu0 0
    %517 = vmatprep.subr.bf16.mxu0 0
    %518 = vmatpush1.bf16.xpose.msra.mxu0 0
    %519 = vmatprep.subr.bf16.mxu0 0
    %520 = vmatpush1.bf16.xpose.msra.mxu0 0
    %521 = vmatprep.subr.bf16.mxu0 0
    %522 = vmatpush1.bf16.xpose.msra.mxu0 0
    %523 = vmatprep.subr.bf16.mxu0 0
    %524 = vmatpush1.bf16.xpose.msra.mxu0 0
    %525 = vmatprep.subr.bf16.mxu0 0
    %526 = vmatpush1.bf16.xpose.msra.mxu0 0
    %527 = vmatprep.subr.bf16.mxu0 0
    %528 = vmatpush1.bf16.xpose.msra.mxu0 0
    %529 = vmatprep.subr.bf16.mxu0 0
    %530 = vmatpush1.bf16.xpose.msra.mxu0 0
    %531 = vmatprep.subr.bf16.mxu0 0
    %532 = vmatpush1.bf16.xpose.msra.mxu0 0
    %533 = vmatprep.subr.bf16.mxu0 0
    %534 = vmatpush1.bf16.xpose.msra.mxu0 0
    %535 = vmatprep.subr.bf16.mxu0 0
    %536 = vmatpush1.bf16.xpose.msra.mxu0 0
    %537 = vmatprep.subr.bf16.mxu0 0
    %538 = vmatpush1.bf16.xpose.msra.mxu0 0
    %539 = vmatprep.mubr.bf16.mxu0 0
    %540 = vmatmul.mubr.bf16.gmra.mrb[0].mxu0 %v502
    %v541 = vpop.f32.mrb[0].mxu0
    %v542 = vadd.f32 0.0, %v541
    %v543 = vpop.f32.mrb[0].mxu0
    %v544 = vpop.f32.mrb[0].mxu0
    %v545 = vpop.f32.mrb[0].mxu0
    %546 = vdwg.mxu0
    %v548 = vsel %vm500, %v489, 0
    %v551 = vsel %vm500, %v493, 0
    %553 = vmatprep.subr.bf16.mxu0 0
    %554 = vmatpush1.bf16.xpose.msra.mxu0 %v551
    %555 = vmatprep.subr.bf16.mxu0 0
    %556 = vmatpush1.bf16.xpose.msra.mxu0 0
    %557 = vmatprep.subr.bf16.mxu0 0
    %558 = vmatpush1.bf16.xpose.msra.mxu0 0
    %559 = vmatprep.subr.bf16.mxu0 0
    %560 = vmatpush1.bf16.xpose.msra.mxu0 0
    %561 = vmatprep.subr.bf16.mxu0 0
    %562 = vmatpush1.bf16.xpose.msra.mxu0 0
    %563 = vmatprep.subr.bf16.mxu0 0
    %564 = vmatpush1.bf16.xpose.msra.mxu0 0
    %565 = vmatprep.subr.bf16.mxu0 0
    %566 = vmatpush1.bf16.xpose.msra.mxu0 0
    %567 = vmatprep.subr.bf16.mxu0 0
    %568 = vmatpush1.bf16.xpose.msra.mxu0 0
    %569 = vmatprep.subr.bf16.mxu0 0
    %570 = vmatpush1.bf16.xpose.msra.mxu0 0
    %571 = vmatprep.subr.bf16.mxu0 0
    %572 = vmatpush1.bf16.xpose.msra.mxu0 0
    %573 = vmatprep.subr.bf16.mxu0 0
    %574 = vmatpush1.bf16.xpose.msra.mxu0 0
    %575 = vmatprep.subr.bf16.mxu0 0
    %576 = vmatpush1.bf16.xpose.msra.mxu0 0
    %577 = vmatprep.subr.bf16.mxu0 0
    %578 = vmatpush1.bf16.xpose.msra.mxu0 0
    %579 = vmatprep.subr.bf16.mxu0 0
    %580 = vmatpush1.bf16.xpose.msra.mxu0 0
    %581 = vmatprep.subr.bf16.mxu0 0
    %582 = vmatpush1.bf16.xpose.msra.mxu0 0
    %583 = vmatprep.subr.bf16.mxu0 0
    %584 = vmatpush1.bf16.xpose.msra.mxu0 0
    %585 = vmatprep.mubr.bf16.mxu0 0
    %586 = vmatmul.mubr.bf16.gmra.mrb[0].mxu0 %v548
    %v587 = vpop.f32.mrb[0].mxu0
    %v588 = vadd.f32 0.0, %v587
    %v589 = vpop.f32.mrb[0].mxu0
    %v590 = vpop.f32.mrb[0].mxu0
    %v591 = vpop.f32.mrb[0].mxu0
    %592 = vdwg.mxu0
    %v594 = vsel %vm500, %v490, 0
    %v597 = vsel %vm500, %v494, 0
    %599 = vmatprep.subr.bf16.mxu0 0
    %600 = vmatpush1.bf16.xpose.msra.mxu0 %v597
    %601 = vmatprep.subr.bf16.mxu0 0
    %602 = vmatpush1.bf16.xpose.msra.mxu0 0
    %603 = vmatprep.subr.bf16.mxu0 0
    %604 = vmatpush1.bf16.xpose.msra.mxu0 0
    %605 = vmatprep.subr.bf16.mxu0 0
    %606 = vmatpush1.bf16.xpose.msra.mxu0 0
    %607 = vmatprep.subr.bf16.mxu0 0
    %608 = vmatpush1.bf16.xpose.msra.mxu0 0
    %609 = vmatprep.subr.bf16.mxu0 0
    %610 = vmatpush1.bf16.xpose.msra.mxu0 0
    %611 = vmatprep.subr.bf16.mxu0 0
    %612 = vmatpush1.bf16.xpose.msra.mxu0 0
    %613 = vmatprep.subr.bf16.mxu0 0
    %614 = vmatpush1.bf16.xpose.msra.mxu0 0
    %615 = vmatprep.subr.bf16.mxu0 0
    %616 = vmatpush1.bf16.xpose.msra.mxu0 0
    %617 = vmatprep.subr.bf16.mxu0 0
    %618 = vmatpush1.bf16.xpose.msra.mxu0 0
    %619 = vmatprep.subr.bf16.mxu0 0
    %620 = vmatpush1.bf16.xpose.msra.mxu0 0
    %621 = vmatprep.subr.bf16.mxu0 0
    %622 = vmatpush1.bf16.xpose.msra.mxu0 0
    %623 = vmatprep.subr.bf16.mxu0 0
    %624 = vmatpush1.bf16.xpose.msra.mxu0 0
    %625 = vmatprep.subr.bf16.mxu0 0
    %626 = vmatpush1.bf16.xpose.msra.mxu0 0
    %627 = vmatprep.subr.bf16.mxu0 0
    %628 = vmatpush1.bf16.xpose.msra.mxu0 0
    %629 = vmatprep.subr.bf16.mxu0 0
    %630 = vmatpush1.bf16.xpose.msra.mxu0 0
    %631 = vmatprep.mubr.bf16.mxu0 0
    %632 = vmatmul.mubr.bf16.gmra.mrb[0].mxu0 %v594
    %v633 = vpop.f32.mrb[0].mxu0
    %v634 = vadd.f32 0.0, %v633
    %v635 = vpop.f32.mrb[0].mxu0
    %v636 = vpop.f32.mrb[0].mxu0
    %v637 = vpop.f32.mrb[0].mxu0
    %638 = vdwg.mxu0
    %v640 = vsel %vm500, %v491, 0
    %v643 = vsel %vm500, %v495, 0
    %645 = vmatprep.subr.bf16.mxu0 0
    %646 = vmatpush1.bf16.xpose.msra.mxu0 %v643
    %647 = vmatprep.subr.bf16.mxu0 0
    %648 = vmatpush1.bf16.xpose.msra.mxu0 0
    %649 = vmatprep.subr.bf16.mxu0 0
    %650 = vmatpush1.bf16.xpose.msra.mxu0 0
    %651 = vmatprep.subr.bf16.mxu0 0
    %652 = vmatpush1.bf16.xpose.msra.mxu0 0
    %653 = vmatprep.subr.bf16.mxu0 0
    %654 = vmatpush1.bf16.xpose.msra.mxu0 0
    %655 = vmatprep.subr.bf16.mxu0 0
    %656 = vmatpush1.bf16.xpose.msra.mxu0 0
    %657 = vmatprep.subr.bf16.mxu0 0
    %658 = vmatpush1.bf16.xpose.msra.mxu0 0
    %659 = vmatprep.subr.bf16.mxu0 0
    %660 = vmatpush1.bf16.xpose.msra.mxu0 0
    %661 = vmatprep.subr.bf16.mxu0 0
    %662 = vmatpush1.bf16.xpose.msra.mxu0 0
    %663 = vmatprep.subr.bf16.mxu0 0
    %664 = vmatpush1.bf16.xpose.msra.mxu0 0
    %665 = vmatprep.subr.bf16.mxu0 0
    %666 = vmatpush1.bf16.xpose.msra.mxu0 0
    %667 = vmatprep.subr.bf16.mxu0 0
    %668 = vmatpush1.bf16.xpose.msra.mxu0 0
    %669 = vmatprep.subr.bf16.mxu0 0
    %670 = vmatpush1.bf16.xpose.msra.mxu0 0
    %671 = vmatprep.subr.bf16.mxu0 0
    %672 = vmatpush1.bf16.xpose.msra.mxu0 0
    %673 = vmatprep.subr.bf16.mxu0 0
    %674 = vmatpush1.bf16.xpose.msra.mxu0 0
    %675 = vmatprep.subr.bf16.mxu0 0
    %676 = vmatpush1.bf16.xpose.msra.mxu0 0
    %677 = vmatprep.mubr.bf16.mxu0 0
    %678 = vmatmul.mubr.bf16.gmra.mrb[0].mxu0 %v640
    %v679 = vpop.f32.mrb[0].mxu0
    %v680 = vadd.f32 0.0, %v679
    %v681 = vpop.f32.mrb[0].mxu0
    %v682 = vpop.f32.mrb[0].mxu0
    %v683 = vpop.f32.mrb[0].mxu0
    %684 = vdwg.mxu0
    %v685 = vmul.f32 %v542, 0.35355338
    %v686 = vmul.f32 %v588, 0.35355338
    %v687 = vmul.f32 %v634, 0.35355338
    %v688 = vmul.f32 %v680, 0.35355338
    %vm689 = vcmp.eq.s32.totalorder %v478, 1
    %v690 = vsel %vm689, %v685, -1e+32
    %v691 = vsel %vm689, %v686, -1e+32
    %v692 = vsel %vm689, %v687, -1e+32
    %v693 = vsel %vm689, %v688, -1e+32
    %v694 = vsel %vm500, %v690, -inf
    %695 = vmax.xlane.f32.xlu0 %v694
    %v696 = vpop.xlane.xlu0 %695
    %v697 = vsel %vm500, %v691, -inf
    %698 = vmax.xlane.f32.xlu0 %v697
    %v699 = vpop.xlane.xlu0 %698
    %v700 = vsel %vm500, %v692, -inf
    %701 = vmax.xlane.f32.xlu0 %v700
    %v702 = vpop.xlane.xlu0 %701
    %v703 = vsel %vm500, %v693, -inf
    %704 = vmax.xlane.f32.xlu0 %v703
    %v705 = vpop.xlane.xlu0 %704
    %v706 = vsub.f32 %v690, %v696
    %v707 = vsub.f32 %v691, %v699
    %v708 = vsub.f32 %v692, %v702
    %v709 = vsub.f32 %v693, %v705
    %v710 = vmul.f32 %v706, 1.442695
    %v711 = vpow.pop %v710
    %v712 = vmul.f32 %v707, 1.442695
    %v713 = vpow.pop %v712
    %v714 = vmul.f32 %v708, 1.442695
    %v715 = vpow.pop %v714
    %v716 = vmul.f32 %v709, 1.442695
    %v717 = vpow.pop %v716
    %v718 = vsel %vm500, %v711, 0.0
    %719 = vadd.xlane.f32.xlu0 %v718
    %v720 = vpop.xlane.xlu0 %719
    %v721 = vsel %vm500, %v713, 0.0
    %722 = vadd.xlane.f32.xlu0 %v721
    %v723 = vpop.xlane.xlu0 %722
    %v724 = vsel %vm500, %v715, 0.0
    %725 = vadd.xlane.f32.xlu0 %v724
    %v726 = vpop.xlane.xlu0 %725
    %v727 = vsel %vm500, %v717, 0.0
    %728 = vadd.xlane.f32.xlu0 %v727
    %v729 = vpop.xlane.xlu0 %728
    %v730 = vrcp.pop %v720
    %v731 = vrcp.pop %v723
    %v732 = vrcp.pop %v726
    %v733 = vrcp.pop %v729
    %v734 = vmul.f32 %v711, %v730
    %v735 = vmul.f32 %v713, %v731
    %v736 = vmul.f32 %v715, %v732
    %v737 = vmul.f32 %v717, %v733
    %v738 = vmul.f32 %v734, %v479
    %v739 = vmul.f32 %v735, %v479
    %v740 = vmul.f32 %v736, %v479
    %v741 = vmul.f32 %v737, %v479
    %v743 = vsel %vm500, %v738, 0
    %v746 = vsel %vm500, %v739, 0
    %v749 = vsel %vm500, %v740, 0
    %v752 = vsel %vm500, %v741, 0
    %754 = vmatprep.subr.mxu0 0.0
    %755 = vmatpush1.msra.mxu0 %v487
    %756 = vmatprep.subr.mxu0 0.0
    %757 = vmatpush1.msra.mxu0 0.0
    %758 = vmatprep.subr.mxu0 0.0
    %759 = vmatpush1.msra.mxu0 0.0
    %760 = vmatprep.subr.mxu0 0.0
    %761 = vmatpush1.msra.mxu0 0.0
    %762 = vmatprep.subr.mxu0 0.0
    %763 = vmatpush1.msra.mxu0 0.0
    %764 = vmatprep.subr.mxu0 0.0
    %765 = vmatpush1.msra.mxu0 0.0
    %766 = vmatprep.subr.mxu0 0.0
    %767 = vmatpush1.msra.mxu0 0.0
    %768 = vmatprep.subr.mxu0 0.0
    %769 = vmatpush1.msra.mxu0 0.0
    %770 = vmatprep.subr.mxu0 0.0
    %771 = vmatpush1.msra.mxu0 0.0
    %772 = vmatprep.subr.mxu0 0.0
    %773 = vmatpush1.msra.mxu0 0.0
    %774 = vmatprep.subr.mxu0 0.0
    %775 = vmatpush1.msra.mxu0 0.0
    %776 = vmatprep.subr.mxu0 0.0
    %777 = vmatpush1.msra.mxu0 0.0
    %778 = vmatprep.subr.mxu0 0.0
    %779 = vmatpush1.msra.mxu0 0.0
    %780 = vmatprep.subr.mxu0 0.0
    %781 = vmatpush1.msra.mxu0 0.0
    %782 = vmatprep.subr.mxu0 0.0
    %783 = vmatpush1.msra.mxu0 0.0
    %784 = vmatprep.subr.mxu0 0.0
    %785 = vmatpush1.msra.mxu0 0.0
    %786 = vmatprep.subr.mxu0 0.0
    %787 = vmatpush1.msra.mxu0 0.0
    %788 = vmatprep.subr.mxu0 0.0
    %789 = vmatpush1.msra.mxu0 0.0
    %790 = vmatprep.subr.mxu0 0.0
    %791 = vmatpush1.msra.mxu0 0.0
    %792 = vmatprep.subr.mxu0 0.0
    %793 = vmatpush1.msra.mxu0 0.0
    %794 = vmatprep.subr.mxu0 0.0
    %795 = vmatpush1.msra.mxu0 0.0
    %796 = vmatprep.subr.mxu0 0.0
    %797 = vmatpush1.msra.mxu0 0.0
    %798 = vmatprep.subr.mxu0 0.0
    %799 = vmatpush1.msra.mxu0 0.0
    %800 = vmatprep.subr.mxu0 0.0
    %801 = vmatpush1.msra.mxu0 0.0
    %802 = vmatprep.subr.mxu0 0.0
    %803 = vmatpush1.msra.mxu0 0.0
    %804 = vmatprep.subr.mxu0 0.0
    %805 = vmatpush1.msra.mxu0 0.0
    %806 = vmatprep.subr.mxu0 0.0
    %807 = vmatpush1.msra.mxu0 0.0
    %808 = vmatprep.subr.mxu0 0.0
    %809 = vmatpush1.msra.mxu0 0.0
    %810 = vmatprep.subr.mxu0 0.0
    %811 = vmatpush1.msra.mxu0 0.0
    %812 = vmatprep.subr.mxu0 0.0
    %813 = vmatpush1.msra.mxu0 0.0
    %814 = vmatprep.subr.mxu0 0.0
    %815 = vmatpush1.msra.mxu0 0.0
    %816 = vmatprep.subr.mxu0 0.0
    %817 = vmatpush1.msra.mxu0 0.0
    %818 = vmatprep.mubr.f32.mxu0 0.0
    %819 = vmatmul.mubr.f32.gmra.mrb[0].mxu0 %v743
    %v820 = vpop.f32.mrb[0].mxu0
    %v821 = vadd.f32 0.0, %v820
    %v822 = vpop.f32.mrb[0].mxu0
    %823 = vmatprep.mubr.f32.mxu0 0.0
    %824 = vmatmul.mubr.f32.gmra.mrb[0].mxu0 %v746
    %v825 = vpop.f32.mrb[0].mxu0
    %v826 = vadd.f32 0.0, %v825
    %v827 = vpop.f32.mrb[0].mxu0
    %828 = vmatprep.mubr.f32.mxu0 0.0
    %829 = vmatmul.mubr.f32.gmra.mrb[0].mxu0 %v749
    %v830 = vpop.f32.mrb[0].mxu0
    %v831 = vadd.f32 0.0, %v830
    %v832 = vpop.f32.mrb[0].mxu0
    %833 = vmatprep.mubr.f32.mxu0 0.0
    %834 = vmatmul.mubr.f32.gmra.mrb[0].mxu0 %v752
    %v835 = vpop.f32.mrb[0].mxu0
    %v836 = vadd.f32 0.0, %v835
    %v837 = vpop.f32.mrb[0].mxu0
    %838 = vdwg.mxu0
    %v839 = vmul.f32 %v821, %v484
    %v840 = vmul.f32 %v826, %v484
    %v841 = vmul.f32 %v831, %v484
    %v842 = vmul.f32 %v836, %v484
    %v843 = vmax.f32 %v839, 0.0
    %v844 = vmax.f32 %v840, 0.0
    %v845 = vmax.f32 %v841, 0.0
    %v846 = vmax.f32 %v842, 0.0
    %v847 = vrsqrt.pop %v843
    %v848 = vmul.f32 %v843, %v847
    %vm849 = vcmp.eq.f32.partialorder %v843, inf
    %v850 = vsel %vm849, %v843, %v848
    %vm851 = vcmp.eq.f32.partialorder %v843, 0.0
    %v852 = vand.u32 %v843, 2147483648
    %v853 = vsel %vm851, %v852, %v850
    %v854 = vrsqrt.pop %v844
    %v855 = vmul.f32 %v844, %v854
    %vm856 = vcmp.eq.f32.partialorder %v844, inf
    %v857 = vsel %vm856, %v844, %v855
    %vm858 = vcmp.eq.f32.partialorder %v844, 0.0
    %v859 = vand.u32 %v844, 2147483648
    %v860 = vsel %vm858, %v859, %v857
    %v861 = vrsqrt.pop %v845
    %v862 = vmul.f32 %v845, %v861
    %vm863 = vcmp.eq.f32.partialorder %v845, inf
    %v864 = vsel %vm863, %v845, %v862
    %vm865 = vcmp.eq.f32.partialorder %v845, 0.0
    %v866 = vand.u32 %v845, 2147483648
    %v867 = vsel %vm865, %v866, %v864
    %v868 = vrsqrt.pop %v846
    %v869 = vmul.f32 %v846, %v868
    %vm870 = vcmp.eq.f32.partialorder %v846, inf
    %v871 = vsel %vm870, %v846, %v869
    %vm872 = vcmp.eq.f32.partialorder %v846, 0.0
    %v873 = vand.u32 %v846, 2147483648
    %v874 = vsel %vm872, %v873, %v871
    %s875 = sld [smem:[#allocation2]]
    %v876 = vstv %s875
    %v877 = vmul.f32 %v853, %v876
    %v878 = vmul.f32 %v860, %v876
    %v879 = vmul.f32 %v867, %v876
    %v880 = vmul.f32 %v874, %v876
    %v881 = vmax.f32 %v877, -11.512925
    %v882 = vmax.f32 %v878, -11.512925
    %v883 = vmax.f32 %v879, -11.512925
    %v884 = vmax.f32 %v880, -11.512925
    %v885 = vmin.f32 %v881, 11.512925
    %v886 = vmin.f32 %v882, 11.512925
    %v887 = vmin.f32 %v883, 11.512925
    %v888 = vmin.f32 %v884, 11.512925
    %v889 = vmul.f32 %v885, 1.442695
    %v890 = vpow.pop %v889
    %v891 = vmul.f32 %v886, 1.442695
    %v892 = vpow.pop %v891
    %v893 = vmul.f32 %v887, 1.442695
    %v894 = vpow.pop %v893
    %v895 = vmul.f32 %v888, 1.442695
    %v896 = vpow.pop %v895
    %v897 = vmul.f32 %v685, %v890
    %v898 = vmul.f32 %v686, %v892
    %v899 = vmul.f32 %v687, %v894
    %v900 = vmul.f32 %v688, %v896
    %v901 = vsel %vm689, %v897, -1e+32
    %v902 = vsel %vm689, %v898, -1e+32
    %v903 = vsel %vm689, %v899, -1e+32
    %v904 = vsel %vm689, %v900, -1e+32
    %v905 = vsel %vm500, %v901, -inf
    %906 = vmax.xlane.f32.xlu0 %v905
    %v907 = vpop.xlane.xlu0 %906
    %v908 = vsel %vm500, %v902, -inf
    %909 = vmax.xlane.f32.xlu0 %v908
    %v910 = vpop.xlane.xlu0 %909
    %v911 = vsel %vm500, %v903, -inf
    %912 = vmax.xlane.f32.xlu0 %v911
    %v913 = vpop.xlane.xlu0 %912
    %v914 = vsel %vm500, %v904, -inf
    %915 = vmax.xlane.f32.xlu0 %v914
    %v916 = vpop.xlane.xlu0 %915
    %v917 = vsub.f32 %v901, %v907
    %v918 = vsub.f32 %v902, %v910
    %v919 = vsub.f32 %v903, %v913
    %v920 = vsub.f32 %v904, %v916
    %v921 = vmul.f32 %v917, 1.442695
    %v922 = vpow.pop %v921
    %v923 = vmul.f32 %v918, 1.442695
    %v924 = vpow.pop %v923
    %v925 = vmul.f32 %v919, 1.442695
    %v926 = vpow.pop %v925
    %v927 = vmul.f32 %v920, 1.442695
    %v928 = vpow.pop %v927
    %v929 = vsel %vm500, %v922, 0.0
    %930 = vadd.xlane.f32.xlu0 %v929
    %v931 = vpop.xlane.xlu0 %930
    %v932 = vsel %vm500, %v924, 0.0
    %933 = vadd.xlane.f32.xlu0 %v932
    %v934 = vpop.xlane.xlu0 %933
    %v935 = vsel %vm500, %v926, 0.0
    %936 = vadd.xlane.f32.xlu0 %v935
    %v937 = vpop.xlane.xlu0 %936
    %v938 = vsel %vm500, %v928, 0.0
    %939 = vadd.xlane.f32.xlu0 %v938
    %v940 = vpop.xlane.xlu0 %939
    %v941 = vrcp.pop %v931
    %v942 = vrcp.pop %v934
    %v943 = vrcp.pop %v937
    %v944 = vrcp.pop %v940
    %v945 = vmul.f32 %v922, %v941
    %v946 = vmul.f32 %v924, %v942
    %v947 = vmul.f32 %v926, %v943
    %v948 = vmul.f32 %v928, %v944
    %vm949 = vcmp.eq.s32.totalorder %v474, 0
    %v950 = vsel %vm949, 1, 0
    %vm951 = vcmp.eq.s32.totalorder %v950, 1
    %v952 = vsel %vm951, 0.0, %v945
    %v953 = vsel %vm951, 0.0, %v946
    %v954 = vsel %vm951, 0.0, %v947
    %v955 = vsel %vm951, 0.0, %v948
    %v956 = vpack.c.bf16 %v952, %v952
    %v957 = vpack.c.bf16 %v953, %v953
    %v958 = vpack.c.bf16 %v954, %v954
    %v959 = vpack.c.bf16 %v955, %v955
    %v961 = vsel %vm500, %v956, 0
    %vm963 = vcmask 1043456
    %v965 = vsel %vm963, %v496, 0
    %967 = vmatprep.subr.bf16.mxu0 0
    %968 = vmatpush1.bf16.msra.mxu0 %v965
    %969 = vmatprep.subr.bf16.mxu0 0
    %970 = vmatpush1.bf16.msra.mxu0 0
    %971 = vmatprep.subr.bf16.mxu0 0
    %972 = vmatpush1.bf16.msra.mxu0 0
    %973 = vmatprep.subr.bf16.mxu0 0
    %974 = vmatpush1.bf16.msra.mxu0 0
    %975 = vmatprep.subr.bf16.mxu0 0
    %976 = vmatpush1.bf16.msra.mxu0 0
    %977 = vmatprep.subr.bf16.mxu0 0
    %978 = vmatpush1.bf16.msra.mxu0 0
    %979 = vmatprep.subr.bf16.mxu0 0
    %980 = vmatpush1.bf16.msra.mxu0 0
    %981 = vmatprep.subr.bf16.mxu0 0
    %982 = vmatpush1.bf16.msra.mxu0 0
    %983 = vmatprep.subr.bf16.mxu0 0
    %984 = vmatpush1.bf16.msra.mxu0 0
    %985 = vmatprep.subr.bf16.mxu0 0
    %986 = vmatpush1.bf16.msra.mxu0 0
    %987 = vmatprep.subr.bf16.mxu0 0
    %988 = vmatpush1.bf16.msra.mxu0 0
    %989 = vmatprep.subr.bf16.mxu0 0
    %990 = vmatpush1.bf16.msra.mxu0 0
    %991 = vmatprep.subr.bf16.mxu0 0
    %992 = vmatpush1.bf16.msra.mxu0 0
    %993 = vmatprep.subr.bf16.mxu0 0
    %994 = vmatpush1.bf16.msra.mxu0 0
    %995 = vmatprep.subr.bf16.mxu0 0
    %996 = vmatpush1.bf16.msra.mxu0 0
    %997 = vmatprep.subr.bf16.mxu0 0
    %998 = vmatpush1.bf16.msra.mxu0 0
    %999 = vmatprep.mubr.bf16.mxu0 0
    %1000 = vmatmul.mubr.bf16.gmra.mrb[0].mxu0 %v961
    %v1001 = vpop.f32.mrb[0].mxu0
    %v1002 = vadd.f32 0.0, %v1001
    %v1003 = vpop.f32.mrb[0].mxu0
    %v1004 = vpop.f32.mrb[0].mxu0
    %v1005 = vpop.f32.mrb[0].mxu0
    %1006 = vdwg.mxu0
    %v1008 = vsel %vm500, %v957, 0
    %v1011 = vsel %vm963, %v497, 0
    %1013 = vmatprep.subr.bf16.mxu0 0
    %1014 = vmatpush1.bf16.msra.mxu0 %v1011
    %1015 = vmatprep.subr.bf16.mxu0 0
    %1016 = vmatpush1.bf16.msra.mxu0 0
    %1017 = vmatprep.subr.bf16.mxu0 0
    %1018 = vmatpush1.bf16.msra.mxu0 0
    %1019 = vmatprep.subr.bf16.mxu0 0
    %1020 = vmatpush1.bf16.msra.mxu0 0
    %1021 = vmatprep.subr.bf16.mxu0 0
    %1022 = vmatpush1.bf16.msra.mxu0 0
    %1023 = vmatprep.subr.bf16.mxu0 0
    %1024 = vmatpush1.bf16.msra.mxu0 0
    %1025 = vmatprep.subr.bf16.mxu0 0
    %1026 = vmatpush1.bf16.msra.mxu0 0
    %1027 = vmatprep.subr.bf16.mxu0 0
    %1028 = vmatpush1.bf16.msra.mxu0 0
    %1029 = vmatprep.subr.bf16.mxu0 0
    %1030 = vmatpush1.bf16.msra.mxu0 0
    %1031 = vmatprep.subr.bf16.mxu0 0
    %1032 = vmatpush1.bf16.msra.mxu0 0
    %1033 = vmatprep.subr.bf16.mxu0 0
    %1034 = vmatpush1.bf16.msra.mxu0 0
    %1035 = vmatprep.subr.bf16.mxu0 0
    %1036 = vmatpush1.bf16.msra.mxu0 0
    %1037 = vmatprep.subr.bf16.mxu0 0
    %1038 = vmatpush1.bf16.msra.mxu0 0
    %1039 = vmatprep.subr.bf16.mxu0 0
    %1040 = vmatpush1.bf16.msra.mxu0 0
    %1041 = vmatprep.subr.bf16.mxu0 0
    %1042 = vmatpush1.bf16.msra.mxu0 0
    %1043 = vmatprep.subr.bf16.mxu0 0
    %1044 = vmatpush1.bf16.msra.mxu0 0
    %1045 = vmatprep.mubr.bf16.mxu0 0
    %1046 = vmatmul.mubr.bf16.gmra.mrb[0].mxu0 %v1008
    %v1047 = vpop.f32.mrb[0].mxu0
    %v1048 = vadd.f32 0.0, %v1047
    %v1049 = vpop.f32.mrb[0].mxu0
    %v1050 = vpop.f32.mrb[0].mxu0
    %v1051 = vpop.f32.mrb[0].mxu0
    %1052 = vdwg.mxu0
    %v1054 = vsel %vm500, %v958, 0
    %v1057 = vsel %vm963, %v498, 0
    %1059 = vmatprep.subr.bf16.mxu0 0
    %1060 = vmatpush1.bf16.msra.mxu0 %v1057
    %1061 = vmatprep.subr.bf16.mxu0 0
    %1062 = vmatpush1.bf16.msra.mxu0 0
    %1063 = vmatprep.subr.bf16.mxu0 0
    %1064 = vmatpush1.bf16.msra.mxu0 0
    %1065 = vmatprep.subr.bf16.mxu0 0
    %1066 = vmatpush1.bf16.msra.mxu0 0
    %1067 = vmatprep.subr.bf16.mxu0 0
    %1068 = vmatpush1.bf16.msra.mxu0 0
    %1069 = vmatprep.subr.bf16.mxu0 0
    %1070 = vmatpush1.bf16.msra.mxu0 0
    %1071 = vmatprep.subr.bf16.mxu0 0
    %1072 = vmatpush1.bf16.msra.mxu0 0
    %1073 = vmatprep.subr.bf16.mxu0 0
    %1074 = vmatpush1.bf16.msra.mxu0 0
    %1075 = vmatprep.subr.bf16.mxu0 0
    %1076 = vmatpush1.bf16.msra.mxu0 0
    %1077 = vmatprep.subr.bf16.mxu0 0
    %1078 = vmatpush1.bf16.msra.mxu0 0
    %1079 = vmatprep.subr.bf16.mxu0 0
    %1080 = vmatpush1.bf16.msra.mxu0 0
    %1081 = vmatprep.subr.bf16.mxu0 0
    %1082 = vmatpush1.bf16.msra.mxu0 0
    %1083 = vmatprep.subr.bf16.mxu0 0
    %1084 = vmatpush1.bf16.msra.mxu0 0
    %1085 = vmatprep.subr.bf16.mxu0 0
    %1086 = vmatpush1.bf16.msra.mxu0 0
    %1087 = vmatprep.subr.bf16.mxu0 0
    %1088 = vmatpush1.bf16.msra.mxu0 0
    %1089 = vmatprep.subr.bf16.mxu0 0
    %1090 = vmatpush1.bf16.msra.mxu0 0
    %1091 = vmatprep.mubr.bf16.mxu0 0
    %1092 = vmatmul.mubr.bf16.gmra.mrb[0].mxu0 %v1054
    %v1093 = vpop.f32.mrb[0].mxu0
    %v1094 = vadd.f32 0.0, %v1093
    %v1095 = vpop.f32.mrb[0].mxu0
    %v1096 = vpop.f32.mrb[0].mxu0
    %v1097 = vpop.f32.mrb[0].mxu0
    %1098 = vdwg.mxu0
    %v1100 = vsel %vm500, %v959, 0
    %v1103 = vsel %vm963, %v499, 0
    %1105 = vmatprep.subr.bf16.mxu0 0
    %1106 = vmatpush1.bf16.msra.mxu0 %v1103
    %1107 = vmatprep.subr.bf16.mxu0 0
    %1108 = vmatpush1.bf16.msra.mxu0 0
    %1109 = vmatprep.subr.bf16.mxu0 0
    %1110 = vmatpush1.bf16.msra.mxu0 0
    %1111 = vmatprep.subr.bf16.mxu0 0
    %1112 = vmatpush1.bf16.msra.mxu0 0
    %1113 = vmatprep.subr.bf16.mxu0 0
    %1114 = vmatpush1.bf16.msra.mxu0 0
    %1115 = vmatprep.subr.bf16.mxu0 0
    %1116 = vmatpush1.bf16.msra.mxu0 0
    %1117 = vmatprep.subr.bf16.mxu0 0
    %1118 = vmatpush1.bf16.msra.mxu0 0
    %1119 = vmatprep.subr.bf16.mxu0 0
    %1120 = vmatpush1.bf16.msra.mxu0 0
    %1121 = vmatprep.subr.bf16.mxu0 0
    %1122 = vmatpush1.bf16.msra.mxu0 0
    %1123 = vmatprep.subr.bf16.mxu0 0
    %1124 = vmatpush1.bf16.msra.mxu0 0
    %1125 = vmatprep.subr.bf16.mxu0 0
    %1126 = vmatpush1.bf16.msra.mxu0 0
    %1127 = vmatprep.subr.bf16.mxu0 0
    %1128 = vmatpush1.bf16.msra.mxu0 0
    %1129 = vmatprep.subr.bf16.mxu0 0
    %1130 = vmatpush1.bf16.msra.mxu0 0
    %1131 = vmatprep.subr.bf16.mxu0 0
    %1132 = vmatpush1.bf16.msra.mxu0 0
    %1133 = vmatprep.subr.bf16.mxu0 0
    %1134 = vmatpush1.bf16.msra.mxu0 0
    %1135 = vmatprep.subr.bf16.mxu0 0
    %1136 = vmatpush1.bf16.msra.mxu0 0
    %1137 = vmatprep.mubr.bf16.mxu0 0
    %1138 = vmatmul.mubr.bf16.gmra.mrb[0].mxu0 %v1100
    %v1139 = vpop.f32.mrb[0].mxu0
    %v1140 = vadd.f32 0.0, %v1139
    %v1141 = vpop.f32.mrb[0].mxu0
    %v1142 = vpop.f32.mrb[0].mxu0
    %v1143 = vpop.f32.mrb[0].mxu0
    %1144 = vdwg.mxu0
    %1146 = vrot.lane.b32.xlu0 %v488, 120
    %v1147 = vpop.permute.xlu0 %1146
    %1149 = vrot.lane.b32.xlu0 %v492, 120
    %v1150 = vpop.permute.xlu0 %1149
    %v1152 = vsel %vm500, %v1147, 0
    %v1155 = vsel %vm500, %v1150, 0
    %1157 = vmatprep.subr.bf16.mxu0 0
    %1158 = vmatpush1.bf16.xpose.msra.mxu0 %v1155
    %1159 = vmatprep.subr.bf16.mxu0 0
    %1160 = vmatpush1.bf16.xpose.msra.mxu0 0
    %1161 = vmatprep.subr.bf16.mxu0 0
    %1162 = vmatpush1.bf16.xpose.msra.mxu0 0
    %1163 = vmatprep.subr.bf16.mxu0 0
    %1164 = vmatpush1.bf16.xpose.msra.mxu0 0
    %1165 = vmatprep.subr.bf16.mxu0 0
    %1166 = vmatpush1.bf16.xpose.msra.mxu0 0
    %1167 = vmatprep.subr.bf16.mxu0 0
    %1168 = vmatpush1.bf16.xpose.msra.mxu0 0
    %1169 = vmatprep.subr.bf16.mxu0 0
    %1170 = vmatpush1.bf16.xpose.msra.mxu0 0
    %1171 = vmatprep.subr.bf16.mxu0 0
    %1172 = vmatpush1.bf16.xpose.msra.mxu0 0
    %1173 = vmatprep.subr.bf16.mxu0 0
    %1174 = vmatpush1.bf16.xpose.msra.mxu0 0
    %1175 = vmatprep.subr.bf16.mxu0 0
    %1176 = vmatpush1.bf16.xpose.msra.mxu0 0
    %1177 = vmatprep.subr.bf16.mxu0 0
    %1178 = vmatpush1.bf16.xpose.msra.mxu0 0
    %1179 = vmatprep.subr.bf16.mxu0 0
    %1180 = vmatpush1.bf16.xpose.msra.mxu0 0
    %1181 = vmatprep.subr.bf16.mxu0 0
    %1182 = vmatpush1.bf16.xpose.msra.mxu0 0
    %1183 = vmatprep.subr.bf16.mxu0 0
    %1184 = vmatpush1.bf16.xpose.msra.mxu0 0
    %1185 = vmatprep.subr.bf16.mxu0 0
    %1186 = vmatpush1.bf16.xpose.msra.mxu0 0
    %1187 = vmatprep.subr.bf16.mxu0 0
    %1188 = vmatpush1.bf16.xpose.msra.mxu0 0
    %1189 = vmatprep.mubr.bf16.mxu0 0
    %1190 = vmatmul.mubr.bf16.gmra.mrb[0].mxu0 %v1152
    %v1191 = vpop.f32.mrb[0].mxu0
    %v1192 = vadd.f32 0.0, %v1191
    %v1193 = vpop.f32.mrb[0].mxu0
    %v1194 = vpop.f32.mrb[0].mxu0
    %v1195 = vpop.f32.mrb[0].mxu0
    %1196 = vdwg.mxu0
    %1198 = vrot.lane.b32.xlu0 %v489, 120
    %v1199 = vpop.permute.xlu0 %1198
    %1201 = vrot.lane.b32.xlu0 %v493, 120
    %v1202 = vpop.permute.xlu0 %1201
    %v1204 = vsel %vm500, %v1199, 0
    %v1207 = vsel %vm500, %v1202, 0
    %1209 = vmatprep.subr.bf16.mxu0 0
    %1210 = vmatpush1.bf16.xpose.msra.mxu0 %v1207
    %1211 = vmatprep.subr.bf16.mxu0 0
    %1212 = vmatpush1.bf16.xpose.msra.mxu0 0
    %1213 = vmatprep.subr.bf16.mxu0 0
    %1214 = vmatpush1.bf16.xpose.msra.mxu0 0
    %1215 = vmatprep.subr.bf16.mxu0 0
    %1216 = vmatpush1.bf16.xpose.msra.mxu0 0
    %1217 = vmatprep.subr.bf16.mxu0 0
    %1218 = vmatpush1.bf16.xpose.msra.mxu0 0
    %1219 = vmatprep.subr.bf16.mxu0 0
    %1220 = vmatpush1.bf16.xpose.msra.mxu0 0
    %1221 = vmatprep.subr.bf16.mxu0 0
    %1222 = vmatpush1.bf16.xpose.msra.mxu0 0
    %1223 = vmatprep.subr.bf16.mxu0 0
    %1224 = vmatpush1.bf16.xpose.msra.mxu0 0
    %1225 = vmatprep.subr.bf16.mxu0 0
    %1226 = vmatpush1.bf16.xpose.msra.mxu0 0
    %1227 = vmatprep.subr.bf16.mxu0 0
    %1228 = vmatpush1.bf16.xpose.msra.mxu0 0
    %1229 = vmatprep.subr.bf16.mxu0 0
    %1230 = vmatpush1.bf16.xpose.msra.mxu0 0
    %1231 = vmatprep.subr.bf16.mxu0 0
    %1232 = vmatpush1.bf16.xpose.msra.mxu0 0
    %1233 = vmatprep.subr.bf16.mxu0 0
    %1234 = vmatpush1.bf16.xpose.msra.mxu0 0
    %1235 = vmatprep.subr.bf16.mxu0 0
    %1236 = vmatpush1.bf16.xpose.msra.mxu0 0
    %1237 = vmatprep.subr.bf16.mxu0 0
    %1238 = vmatpush1.bf16.xpose.msra.mxu0 0
    %1239 = vmatprep.subr.bf16.mxu0 0
    %1240 = vmatpush1.bf16.xpose.msra.mxu0 0
    %1241 = vmatprep.mubr.bf16.mxu0 0
    %1242 = vmatmul.mubr.bf16.gmra.mrb[0].mxu0 %v1204
    %v1243 = vpop.f32.mrb[0].mxu0
    %v1244 = vadd.f32 0.0, %v1243
    %v1245 = vpop.f32.mrb[0].mxu0
    %v1246 = vpop.f32.mrb[0].mxu0
    %v1247 = vpop.f32.mrb[0].mxu0
    %1248 = vdwg.mxu0
    %1250 = vrot.lane.b32.xlu0 %v490, 120
    %v1251 = vpop.permute.xlu0 %1250
    %1253 = vrot.lane.b32.xlu0 %v494, 120
    %v1254 = vpop.permute.xlu0 %1253
    %v1256 = vsel %vm500, %v1251, 0
    %v1259 = vsel %vm500, %v1254, 0
    %1261 = vmatprep.subr.bf16.mxu0 0
    %1262 = vmatpush1.bf16.xpose.msra.mxu0 %v1259
    %1263 = vmatprep.subr.bf16.mxu0 0
    %1264 = vmatpush1.bf16.xpose.msra.mxu0 0
    %1265 = vmatprep.subr.bf16.mxu0 0
    %1266 = vmatpush1.bf16.xpose.msra.mxu0 0
    %1267 = vmatprep.subr.bf16.mxu0 0
    %1268 = vmatpush1.bf16.xpose.msra.mxu0 0
    %1269 = vmatprep.subr.bf16.mxu0 0
    %1270 = vmatpush1.bf16.xpose.msra.mxu0 0
    %1271 = vmatprep.subr.bf16.mxu0 0
    %1272 = vmatpush1.bf16.xpose.msra.mxu0 0
    %1273 = vmatprep.subr.bf16.mxu0 0
    %1274 = vmatpush1.bf16.xpose.msra.mxu0 0
    %1275 = vmatprep.subr.bf16.mxu0 0
    %1276 = vmatpush1.bf16.xpose.msra.mxu0 0
    %1277 = vmatprep.subr.bf16.mxu0 0
    %1278 = vmatpush1.bf16.xpose.msra.mxu0 0
    %1279 = vmatprep.subr.bf16.mxu0 0
    %1280 = vmatpush1.bf16.xpose.msra.mxu0 0
    %1281 = vmatprep.subr.bf16.mxu0 0
    %1282 = vmatpush1.bf16.xpose.msra.mxu0 0
    %1283 = vmatprep.subr.bf16.mxu0 0
    %1284 = vmatpush1.bf16.xpose.msra.mxu0 0
    %1285 = vmatprep.subr.bf16.mxu0 0
    %1286 = vmatpush1.bf16.xpose.msra.mxu0 0
    %1287 = vmatprep.subr.bf16.mxu0 0
    %1288 = vmatpush1.bf16.xpose.msra.mxu0 0
    %1289 = vmatprep.subr.bf16.mxu0 0
    %1290 = vmatpush1.bf16.xpose.msra.mxu0 0
    %1291 = vmatprep.subr.bf16.mxu0 0
    %1292 = vmatpush1.bf16.xpose.msra.mxu0 0
    %1293 = vmatprep.mubr.bf16.mxu0 0
    %1294 = vmatmul.mubr.bf16.gmra.mrb[0].mxu0 %v1256
    %v1295 = vpop.f32.mrb[0].mxu0
    %v1296 = vadd.f32 0.0, %v1295
    %v1297 = vpop.f32.mrb[0].mxu0
    %v1298 = vpop.f32.mrb[0].mxu0
    %v1299 = vpop.f32.mrb[0].mxu0
    %1300 = vdwg.mxu0
    %1302 = vrot.lane.b32.xlu0 %v491, 120
    %v1303 = vpop.permute.xlu0 %1302
    %1305 = vrot.lane.b32.xlu0 %v495, 120
    %v1306 = vpop.permute.xlu0 %1305
    %v1308 = vsel %vm500, %v1303, 0
    %v1311 = vsel %vm500, %v1306, 0
    %1313 = vmatprep.subr.bf16.mxu0 0
    %1314 = vmatpush1.bf16.xpose.msra.mxu0 %v1311
    %1315 = vmatprep.subr.bf16.mxu0 0
    %1316 = vmatpush1.bf16.xpose.msra.mxu0 0
    %1317 = vmatprep.subr.bf16.mxu0 0
    %1318 = vmatpush1.bf16.xpose.msra.mxu0 0
    %1319 = vmatprep.subr.bf16.mxu0 0
    %1320 = vmatpush1.bf16.xpose.msra.mxu0 0
    %1321 = vmatprep.subr.bf16.mxu0 0
    %1322 = vmatpush1.bf16.xpose.msra.mxu0 0
    %1323 = vmatprep.subr.bf16.mxu0 0
    %1324 = vmatpush1.bf16.xpose.msra.mxu0 0
    %1325 = vmatprep.subr.bf16.mxu0 0
    %1326 = vmatpush1.bf16.xpose.msra.mxu0 0
    %1327 = vmatprep.subr.bf16.mxu0 0
    %1328 = vmatpush1.bf16.xpose.msra.mxu0 0
    %1329 = vmatprep.subr.bf16.mxu0 0
    %1330 = vmatpush1.bf16.xpose.msra.mxu0 0
    %1331 = vmatprep.subr.bf16.mxu0 0
    %1332 = vmatpush1.bf16.xpose.msra.mxu0 0
    %1333 = vmatprep.subr.bf16.mxu0 0
    %1334 = vmatpush1.bf16.xpose.msra.mxu0 0
    %1335 = vmatprep.subr.bf16.mxu0 0
    %1336 = vmatpush1.bf16.xpose.msra.mxu0 0
    %1337 = vmatprep.subr.bf16.mxu0 0
    %1338 = vmatpush1.bf16.xpose.msra.mxu0 0
    %1339 = vmatprep.subr.bf16.mxu0 0
    %1340 = vmatpush1.bf16.xpose.msra.mxu0 0
    %1341 = vmatprep.subr.bf16.mxu0 0
    %1342 = vmatpush1.bf16.xpose.msra.mxu0 0
    %1343 = vmatprep.subr.bf16.mxu0 0
    %1344 = vmatpush1.bf16.xpose.msra.mxu0 0
    %1345 = vmatprep.mubr.bf16.mxu0 0
    %1346 = vmatmul.mubr.bf16.gmra.mrb[0].mxu0 %v1308
    %v1347 = vpop.f32.mrb[0].mxu0
    %v1348 = vadd.f32 0.0, %v1347
    %v1349 = vpop.f32.mrb[0].mxu0
    %v1350 = vpop.f32.mrb[0].mxu0
    %v1351 = vpop.f32.mrb[0].mxu0
    %1352 = vdwg.mxu0
    %v1353 = vmul.f32 %v1192, 0.35355338
    %v1354 = vmul.f32 %v1244, 0.35355338
    %v1355 = vmul.f32 %v1296, 0.35355338
    %v1356 = vmul.f32 %v1348, 0.35355338
    %v1357 = vsel %vm689, %v1353, -1e+32
    %v1358 = vsel %vm689, %v1354, -1e+32
    %v1359 = vsel %vm689, %v1355, -1e+32
    %v1360 = vsel %vm689, %v1356, -1e+32
    %v1361 = vsel %vm500, %v1357, -inf
    %1362 = vmax.xlane.f32.xlu0 %v1361
    %v1363 = vpop.xlane.xlu0 %1362
    %v1364 = vsel %vm500, %v1358, -inf
    %1365 = vmax.xlane.f32.xlu0 %v1364
    %v1366 = vpop.xlane.xlu0 %1365
    %v1367 = vsel %vm500, %v1359, -inf
    %1368 = vmax.xlane.f32.xlu0 %v1367
    %v1369 = vpop.xlane.xlu0 %1368
    %v1370 = vsel %vm500, %v1360, -inf
    %1371 = vmax.xlane.f32.xlu0 %v1370
    %v1372 = vpop.xlane.xlu0 %1371
    %v1373 = vsub.f32 %v1357, %v1363
    %v1374 = vsub.f32 %v1358, %v1366
    %v1375 = vsub.f32 %v1359, %v1369
    %v1376 = vsub.f32 %v1360, %v1372
    %v1377 = vmul.f32 %v1373, 1.442695
    %v1378 = vpow.pop %v1377
    %v1379 = vmul.f32 %v1374, 1.442695
    %v1380 = vpow.pop %v1379
    %v1381 = vmul.f32 %v1375, 1.442695
    %v1382 = vpow.pop %v1381
    %v1383 = vmul.f32 %v1376, 1.442695
    %v1384 = vpow.pop %v1383
    %v1385 = vsel %vm500, %v1378, 0.0
    %1386 = vadd.xlane.f32.xlu0 %v1385
    %v1387 = vpop.xlane.xlu0 %1386
    %v1388 = vsel %vm500, %v1380, 0.0
    %1389 = vadd.xlane.f32.xlu0 %v1388
    %v1390 = vpop.xlane.xlu0 %1389
    %v1391 = vsel %vm500, %v1382, 0.0
    %1392 = vadd.xlane.f32.xlu0 %v1391
    %v1393 = vpop.xlane.xlu0 %1392
    %v1394 = vsel %vm500, %v1384, 0.0
    %1395 = vadd.xlane.f32.xlu0 %v1394
    %v1396 = vpop.xlane.xlu0 %1395
    %v1397 = vrcp.pop %v1387
    %v1398 = vrcp.pop %v1390
    %v1399 = vrcp.pop %v1393
    %v1400 = vrcp.pop %v1396
    %v1401 = vmul.f32 %v1378, %v1397
    %v1402 = vmul.f32 %v1380, %v1398
    %v1403 = vmul.f32 %v1382, %v1399
    %v1404 = vmul.f32 %v1384, %v1400
    %v1405 = vmul.f32 %v1401, %v479
    %v1406 = vmul.f32 %v1402, %v479
    %v1407 = vmul.f32 %v1403, %v479
    %v1408 = vmul.f32 %v1404, %v479
    %v1410 = vsel %vm500, %v1405, 0
    %v1413 = vsel %vm500, %v1406, 0
    %v1416 = vsel %vm500, %v1407, 0
    %v1419 = vsel %vm500, %v1408, 0
    %1421 = vmatprep.subr.mxu0 0.0
    %1422 = vmatpush1.msra.mxu0 %v487
    %1423 = vmatprep.subr.mxu0 0.0
    %1424 = vmatpush1.msra.mxu0 0.0
    %1425 = vmatprep.subr.mxu0 0.0
    %1426 = vmatpush1.msra.mxu0 0.0
    %1427 = vmatprep.subr.mxu0 0.0
    %1428 = vmatpush1.msra.mxu0 0.0
    %1429 = vmatprep.subr.mxu0 0.0
    %1430 = vmatpush1.msra.mxu0 0.0
    %1431 = vmatprep.subr.mxu0 0.0
    %1432 = vmatpush1.msra.mxu0 0.0
    %1433 = vmatprep.subr.mxu0 0.0
    %1434 = vmatpush1.msra.mxu0 0.0
    %1435 = vmatprep.subr.mxu0 0.0
    %1436 = vmatpush1.msra.mxu0 0.0
    %1437 = vmatprep.subr.mxu0 0.0
    %1438 = vmatpush1.msra.mxu0 0.0
    %1439 = vmatprep.subr.mxu0 0.0
    %1440 = vmatpush1.msra.mxu0 0.0
    %1441 = vmatprep.subr.mxu0 0.0
    %1442 = vmatpush1.msra.mxu0 0.0
    %1443 = vmatprep.subr.mxu0 0.0
    %1444 = vmatpush1.msra.mxu0 0.0
    %1445 = vmatprep.subr.mxu0 0.0
    %1446 = vmatpush1.msra.mxu0 0.0
    %1447 = vmatprep.subr.mxu0 0.0
    %1448 = vmatpush1.msra.mxu0 0.0
    %1449 = vmatprep.subr.mxu0 0.0
    %1450 = vmatpush1.msra.mxu0 0.0
    %1451 = vmatprep.subr.mxu0 0.0
    %1452 = vmatpush1.msra.mxu0 0.0
    %1453 = vmatprep.subr.mxu0 0.0
    %1454 = vmatpush1.msra.mxu0 0.0
    %1455 = vmatprep.subr.mxu0 0.0
    %1456 = vmatpush1.msra.mxu0 0.0
    %1457 = vmatprep.subr.mxu0 0.0
    %1458 = vmatpush1.msra.mxu0 0.0
    %1459 = vmatprep.subr.mxu0 0.0
    %1460 = vmatpush1.msra.mxu0 0.0
    %1461 = vmatprep.subr.mxu0 0.0
    %1462 = vmatpush1.msra.mxu0 0.0
    %1463 = vmatprep.subr.mxu0 0.0
    %1464 = vmatpush1.msra.mxu0 0.0
    %1465 = vmatprep.subr.mxu0 0.0
    %1466 = vmatpush1.msra.mxu0 0.0
    %1467 = vmatprep.subr.mxu0 0.0
    %1468 = vmatpush1.msra.mxu0 0.0
    %1469 = vmatprep.subr.mxu0 0.0
    %1470 = vmatpush1.msra.mxu0 0.0
    %1471 = vmatprep.subr.mxu0 0.0
    %1472 = vmatpush1.msra.mxu0 0.0
    %1473 = vmatprep.subr.mxu0 0.0
    %1474 = vmatpush1.msra.mxu0 0.0
    %1475 = vmatprep.subr.mxu0 0.0
    %1476 = vmatpush1.msra.mxu0 0.0
    %1477 = vmatprep.subr.mxu0 0.0
    %1478 = vmatpush1.msra.mxu0 0.0
    %1479 = vmatprep.subr.mxu0 0.0
    %1480 = vmatpush1.msra.mxu0 0.0
    %1481 = vmatprep.subr.mxu0 0.0
    %1482 = vmatpush1.msra.mxu0 0.0
    %1483 = vmatprep.subr.mxu0 0.0
    %1484 = vmatpush1.msra.mxu0 0.0
    %1485 = vmatprep.mubr.f32.mxu0 0.0
    %1486 = vmatmul.mubr.f32.gmra.mrb[0].mxu0 %v1410
    %v1487 = vpop.f32.mrb[0].mxu0
    %v1488 = vadd.f32 0.0, %v1487
    %v1489 = vpop.f32.mrb[0].mxu0
    %1490 = vmatprep.mubr.f32.mxu0 0.0
    %1491 = vmatmul.mubr.f32.gmra.mrb[0].mxu0 %v1413
    %v1492 = vpop.f32.mrb[0].mxu0
    %v1493 = vadd.f32 0.0, %v1492
    %v1494 = vpop.f32.mrb[0].mxu0
    %1495 = vmatprep.mubr.f32.mxu0 0.0
    %1496 = vmatmul.mubr.f32.gmra.mrb[0].mxu0 %v1416
    %v1497 = vpop.f32.mrb[0].mxu0
    %v1498 = vadd.f32 0.0, %v1497
    %v1499 = vpop.f32.mrb[0].mxu0
    %1500 = vmatprep.mubr.f32.mxu0 0.0
    %1501 = vmatmul.mubr.f32.gmra.mrb[0].mxu0 %v1419
    %v1502 = vpop.f32.mrb[0].mxu0
    %v1503 = vadd.f32 0.0, %v1502
    %v1504 = vpop.f32.mrb[0].mxu0
    %1505 = vdwg.mxu0
    %v1506 = vmul.f32 %v1488, %v484
    %v1507 = vmul.f32 %v1493, %v484
    %v1508 = vmul.f32 %v1498, %v484
    %v1509 = vmul.f32 %v1503, %v484
    %v1510 = vmax.f32 %v1506, 0.0
    %v1511 = vmax.f32 %v1507, 0.0
    %v1512 = vmax.f32 %v1508, 0.0
    %v1513 = vmax.f32 %v1509, 0.0
    %v1514 = vrsqrt.pop %v1510
    %v1515 = vmul.f32 %v1510, %v1514
    %vm1516 = vcmp.eq.f32.partialorder %v1510, inf
    %v1517 = vsel %vm1516, %v1510, %v1515
    %vm1518 = vcmp.eq.f32.partialorder %v1510, 0.0
    %v1519 = vand.u32 %v1510, 2147483648
    %v1520 = vsel %vm1518, %v1519, %v1517
    %v1521 = vrsqrt.pop %v1511
    %v1522 = vmul.f32 %v1511, %v1521
    %vm1523 = vcmp.eq.f32.partialorder %v1511, inf
    %v1524 = vsel %vm1523, %v1511, %v1522
    %vm1525 = vcmp.eq.f32.partialorder %v1511, 0.0
    %v1526 = vand.u32 %v1511, 2147483648
    %v1527 = vsel %vm1525, %v1526, %v1524
    %v1528 = vrsqrt.pop %v1512
    %v1529 = vmul.f32 %v1512, %v1528
    %vm1530 = vcmp.eq.f32.partialorder %v1512, inf
    %v1531 = vsel %vm1530, %v1512, %v1529
    %vm1532 = vcmp.eq.f32.partialorder %v1512, 0.0
    %v1533 = vand.u32 %v1512, 2147483648
    %v1534 = vsel %vm1532, %v1533, %v1531
    %v1535 = vrsqrt.pop %v1513
    %v1536 = vmul.f32 %v1513, %v1535
    %vm1537 = vcmp.eq.f32.partialorder %v1513, inf
    %v1538 = vsel %vm1537, %v1513, %v1536
    %vm1539 = vcmp.eq.f32.partialorder %v1513, 0.0
    %v1540 = vand.u32 %v1513, 2147483648
    %v1541 = vsel %vm1539, %v1540, %v1538
    %s1542 = sld [smem:[#allocation2 + $0x1]]
    %v1543 = vstv %s1542
    %v1544 = vmul.f32 %v1520, %v1543
    %v1545 = vmul.f32 %v1527, %v1543
    %v1546 = vmul.f32 %v1534, %v1543
    %v1547 = vmul.f32 %v1541, %v1543
    %v1548 = vmax.f32 %v1544, -11.512925
    %v1549 = vmax.f32 %v1545, -11.512925
    %v1550 = vmax.f32 %v1546, -11.512925
    %v1551 = vmax.f32 %v1547, -11.512925
    %v1552 = vmin.f32 %v1548, 11.512925
    %v1553 = vmin.f32 %v1549, 11.512925
    %v1554 = vmin.f32 %v1550, 11.512925
    %v1555 = vmin.f32 %v1551, 11.512925
    %v1556 = vmul.f32 %v1552, 1.442695
    %v1557 = vpow.pop %v1556
    %v1558 = vmul.f32 %v1553, 1.442695
    %v1559 = vpow.pop %v1558
    %v1560 = vmul.f32 %v1554, 1.442695
    %v1561 = vpow.pop %v1560
    %v1562 = vmul.f32 %v1555, 1.442695
    %v1563 = vpow.pop %v1562
    %v1564 = vmul.f32 %v1353, %v1557
    %v1565 = vmul.f32 %v1354, %v1559
    %v1566 = vmul.f32 %v1355, %v1561
    %v1567 = vmul.f32 %v1356, %v1563
    %v1568 = vsel %vm689, %v1564, -1e+32
    %v1569 = vsel %vm689, %v1565, -1e+32
    %v1570 = vsel %vm689, %v1566, -1e+32
    %v1571 = vsel %vm689, %v1567, -1e+32
    %v1572 = vsel %vm500, %v1568, -inf
    %1573 = vmax.xlane.f32.xlu0 %v1572
    %v1574 = vpop.xlane.xlu0 %1573
    %v1575 = vsel %vm500, %v1569, -inf
    %1576 = vmax.xlane.f32.xlu0 %v1575
    %v1577 = vpop.xlane.xlu0 %1576
    %v1578 = vsel %vm500, %v1570, -inf
    %1579 = vmax.xlane.f32.xlu0 %v1578
    %v1580 = vpop.xlane.xlu0 %1579
    %v1581 = vsel %vm500, %v1571, -inf
    %1582 = vmax.xlane.f32.xlu0 %v1581
    %v1583 = vpop.xlane.xlu0 %1582
    %v1584 = vsub.f32 %v1568, %v1574
    %v1585 = vsub.f32 %v1569, %v1577
    %v1586 = vsub.f32 %v1570, %v1580
    %v1587 = vsub.f32 %v1571, %v1583
    %v1588 = vmul.f32 %v1584, 1.442695
    %v1589 = vpow.pop %v1588
    %v1590 = vmul.f32 %v1585, 1.442695
    %v1591 = vpow.pop %v1590
    %v1592 = vmul.f32 %v1586, 1.442695
    %v1593 = vpow.pop %v1592
    %v1594 = vmul.f32 %v1587, 1.442695
    %v1595 = vpow.pop %v1594
    %v1596 = vsel %vm500, %v1589, 0.0
    %1597 = vadd.xlane.f32.xlu0 %v1596
    %v1598 = vpop.xlane.xlu0 %1597
    %v1599 = vsel %vm500, %v1591, 0.0
    %1600 = vadd.xlane.f32.xlu0 %v1599
    %v1601 = vpop.xlane.xlu0 %1600
    %v1602 = vsel %vm500, %v1593, 0.0
    %1603 = vadd.xlane.f32.xlu0 %v1602
    %v1604 = vpop.xlane.xlu0 %1603
    %v1605 = vsel %vm500, %v1595, 0.0
    %1606 = vadd.xlane.f32.xlu0 %v1605
    %v1607 = vpop.xlane.xlu0 %1606
    %v1608 = vrcp.pop %v1598
    %v1609 = vrcp.pop %v1601
    %v1610 = vrcp.pop %v1604
    %v1611 = vrcp.pop %v1607
    %v1612 = vmul.f32 %v1589, %v1608
    %v1613 = vmul.f32 %v1591, %v1609
    %v1614 = vmul.f32 %v1593, %v1610
    %v1615 = vmul.f32 %v1595, %v1611
    %v1616 = vsel %vm951, 0.0, %v1612
    %v1617 = vsel %vm951, 0.0, %v1613
    %v1618 = vsel %vm951, 0.0, %v1614
    %v1619 = vsel %vm951, 0.0, %v1615
    %v1620 = vpack.c.bf16 %v1616, %v1616
    %v1621 = vpack.c.bf16 %v1617, %v1617
    %v1622 = vpack.c.bf16 %v1618, %v1618
    %v1623 = vpack.c.bf16 %v1619, %v1619
    %1625 = vrot.lane.b32.xlu0 %v496, 120
    %v1626 = vpop.permute.xlu0 %1625
    %v1628 = vsel %vm500, %v1620, 0
    %v1631 = vsel %vm963, %v1626, 0
    %1633 = vmatprep.subr.bf16.mxu0 0
    %1634 = vmatpush1.bf16.msra.mxu0 %v1631
    %1635 = vmatprep.subr.bf16.mxu0 0
    %1636 = vmatpush1.bf16.msra.mxu0 0
    %1637 = vmatprep.subr.bf16.mxu0 0
    %1638 = vmatpush1.bf16.msra.mxu0 0
    %1639 = vmatprep.subr.bf16.mxu0 0
    %1640 = vmatpush1.bf16.msra.mxu0 0
    %1641 = vmatprep.subr.bf16.mxu0 0
    %1642 = vmatpush1.bf16.msra.mxu0 0
    %1643 = vmatprep.subr.bf16.mxu0 0
    %1644 = vmatpush1.bf16.msra.mxu0 0
    %1645 = vmatprep.subr.bf16.mxu0 0
    %1646 = vmatpush1.bf16.msra.mxu0 0
    %1647 = vmatprep.subr.bf16.mxu0 0
    %1648 = vmatpush1.bf16.msra.mxu0 0
    %1649 = vmatprep.subr.bf16.mxu0 0
    %1650 = vmatpush1.bf16.msra.mxu0 0
    %1651 = vmatprep.subr.bf16.mxu0 0
    %1652 = vmatpush1.bf16.msra.mxu0 0
    %1653 = vmatprep.subr.bf16.mxu0 0
    %1654 = vmatpush1.bf16.msra.mxu0 0
    %1655 = vmatprep.subr.bf16.mxu0 0
    %1656 = vmatpush1.bf16.msra.mxu0 0
    %1657 = vmatprep.subr.bf16.mxu0 0
    %1658 = vmatpush1.bf16.msra.mxu0 0
    %1659 = vmatprep.subr.bf16.mxu0 0
    %1660 = vmatpush1.bf16.msra.mxu0 0
    %1661 = vmatprep.subr.bf16.mxu0 0
    %1662 = vmatpush1.bf16.msra.mxu0 0
    %1663 = vmatprep.subr.bf16.mxu0 0
    %1664 = vmatpush1.bf16.msra.mxu0 0
    %1665 = vmatprep.mubr.bf16.mxu0 0
    %1666 = vmatmul.mubr.bf16.gmra.mrb[0].mxu0 %v1628
    %v1667 = vpop.f32.mrb[0].mxu0
    %v1668 = vadd.f32 0.0, %v1667
    %v1669 = vpop.f32.mrb[0].mxu0
    %v1670 = vpop.f32.mrb[0].mxu0
    %v1671 = vpop.f32.mrb[0].mxu0
    %1672 = vdwg.mxu0
    %1674 = vrot.lane.b32.xlu0 %v497, 120
    %v1675 = vpop.permute.xlu0 %1674
    %v1677 = vsel %vm500, %v1621, 0
    %v1680 = vsel %vm963, %v1675, 0
    %1682 = vmatprep.subr.bf16.mxu0 0
    %1683 = vmatpush1.bf16.msra.mxu0 %v1680
    %1684 = vmatprep.subr.bf16.mxu0 0
    %1685 = vmatpush1.bf16.msra.mxu0 0
    %1686 = vmatprep.subr.bf16.mxu0 0
    %1687 = vmatpush1.bf16.msra.mxu0 0
    %1688 = vmatprep.subr.bf16.mxu0 0
    %1689 = vmatpush1.bf16.msra.mxu0 0
    %1690 = vmatprep.subr.bf16.mxu0 0
    %1691 = vmatpush1.bf16.msra.mxu0 0
    %1692 = vmatprep.subr.bf16.mxu0 0
    %1693 = vmatpush1.bf16.msra.mxu0 0
    %1694 = vmatprep.subr.bf16.mxu0 0
    %1695 = vmatpush1.bf16.msra.mxu0 0
    %1696 = vmatprep.subr.bf16.mxu0 0
    %1697 = vmatpush1.bf16.msra.mxu0 0
    %1698 = vmatprep.subr.bf16.mxu0 0
    %1699 = vmatpush1.bf16.msra.mxu0 0
    %1700 = vmatprep.subr.bf16.mxu0 0
    %1701 = vmatpush1.bf16.msra.mxu0 0
    %1702 = vmatprep.subr.bf16.mxu0 0
    %1703 = vmatpush1.bf16.msra.mxu0 0
    %1704 = vmatprep.subr.bf16.mxu0 0
    %1705 = vmatpush1.bf16.msra.mxu0 0
    %1706 = vmatprep.subr.bf16.mxu0 0
    %1707 = vmatpush1.bf16.msra.mxu0 0
    %1708 = vmatprep.subr.bf16.mxu0 0
    %1709 = vmatpush1.bf16.msra.mxu0 0
    %1710 = vmatprep.subr.bf16.mxu0 0
    %1711 = vmatpush1.bf16.msra.mxu0 0
    %1712 = vmatprep.subr.bf16.mxu0 0
    %1713 = vmatpush1.bf16.msra.mxu0 0
    %1714 = vmatprep.mubr.bf16.mxu0 0
    %1715 = vmatmul.mubr.bf16.gmra.mrb[0].mxu0 %v1677
    %v1716 = vpop.f32.mrb[0].mxu0
    %v1717 = vadd.f32 0.0, %v1716
    %v1718 = vpop.f32.mrb[0].mxu0
    %v1719 = vpop.f32.mrb[0].mxu0
    %v1720 = vpop.f32.mrb[0].mxu0
    %1721 = vdwg.mxu0
    %1723 = vrot.lane.b32.xlu0 %v498, 120
    %v1724 = vpop.permute.xlu0 %1723
    %v1726 = vsel %vm500, %v1622, 0
    %v1729 = vsel %vm963, %v1724, 0
    %1731 = vmatprep.subr.bf16.mxu0 0
    %1732 = vmatpush1.bf16.msra.mxu0 %v1729
    %1733 = vmatprep.subr.bf16.mxu0 0
    %1734 = vmatpush1.bf16.msra.mxu0 0
    %1735 = vmatprep.subr.bf16.mxu0 0
    %1736 = vmatpush1.bf16.msra.mxu0 0
    %1737 = vmatprep.subr.bf16.mxu0 0
    %1738 = vmatpush1.bf16.msra.mxu0 0
    %1739 = vmatprep.subr.bf16.mxu0 0
    %1740 = vmatpush1.bf16.msra.mxu0 0
    %1741 = vmatprep.subr.bf16.mxu0 0
    %1742 = vmatpush1.bf16.msra.mxu0 0
    %1743 = vmatprep.subr.bf16.mxu0 0
    %1744 = vmatpush1.bf16.msra.mxu0 0
    %1745 = vmatprep.subr.bf16.mxu0 0
    %1746 = vmatpush1.bf16.msra.mxu0 0
    %1747 = vmatprep.subr.bf16.mxu0 0
    %1748 = vmatpush1.bf16.msra.mxu0 0
    %1749 = vmatprep.subr.bf16.mxu0 0
    %1750 = vmatpush1.bf16.msra.mxu0 0
    %1751 = vmatprep.subr.bf16.mxu0 0
    %1752 = vmatpush1.bf16.msra.mxu0 0
    %1753 = vmatprep.subr.bf16.mxu0 0
    %1754 = vmatpush1.bf16.msra.mxu0 0
    %1755 = vmatprep.subr.bf16.mxu0 0
    %1756 = vmatpush1.bf16.msra.mxu0 0
    %1757 = vmatprep.subr.bf16.mxu0 0
    %1758 = vmatpush1.bf16.msra.mxu0 0
    %1759 = vmatprep.subr.bf16.mxu0 0
    %1760 = vmatpush1.bf16.msra.mxu0 0
    %1761 = vmatprep.subr.bf16.mxu0 0
    %1762 = vmatpush1.bf16.msra.mxu0 0
    %1763 = vmatprep.mubr.bf16.mxu0 0
    %1764 = vmatmul.mubr.bf16.gmra.mrb[0].mxu0 %v1726
    %v1765 = vpop.f32.mrb[0].mxu0
    %v1766 = vadd.f32 0.0, %v1765
    %v1767 = vpop.f32.mrb[0].mxu0
    %v1768 = vpop.f32.mrb[0].mxu0
    %v1769 = vpop.f32.mrb[0].mxu0
    %1770 = vdwg.mxu0
    %1772 = vrot.lane.b32.xlu0 %v499, 120
    %v1773 = vpop.permute.xlu0 %1772
    %v1775 = vsel %vm500, %v1623, 0
    %v1778 = vsel %vm963, %v1773, 0
    %1780 = vmatprep.subr.bf16.mxu0 0
    %1781 = vmatpush1.bf16.msra.mxu0 %v1778
    %1782 = vmatprep.subr.bf16.mxu0 0
    %1783 = vmatpush1.bf16.msra.mxu0 0
    %1784 = vmatprep.subr.bf16.mxu0 0
    %1785 = vmatpush1.bf16.msra.mxu0 0
    %1786 = vmatprep.subr.bf16.mxu0 0
    %1787 = vmatpush1.bf16.msra.mxu0 0
    %1788 = vmatprep.subr.bf16.mxu0 0
    %1789 = vmatpush1.bf16.msra.mxu0 0
    %1790 = vmatprep.subr.bf16.mxu0 0
    %1791 = vmatpush1.bf16.msra.mxu0 0
    %1792 = vmatprep.subr.bf16.mxu0 0
    %1793 = vmatpush1.bf16.msra.mxu0 0
    %1794 = vmatprep.subr.bf16.mxu0 0
    %1795 = vmatpush1.bf16.msra.mxu0 0
    %1796 = vmatprep.subr.bf16.mxu0 0
    %1797 = vmatpush1.bf16.msra.mxu0 0
    %1798 = vmatprep.subr.bf16.mxu0 0
    %1799 = vmatpush1.bf16.msra.mxu0 0
    %1800 = vmatprep.subr.bf16.mxu0 0
    %1801 = vmatpush1.bf16.msra.mxu0 0
    %1802 = vmatprep.subr.bf16.mxu0 0
    %1803 = vmatpush1.bf16.msra.mxu0 0
    %1804 = vmatprep.subr.bf16.mxu0 0
    %1805 = vmatpush1.bf16.msra.mxu0 0
    %1806 = vmatprep.subr.bf16.mxu0 0
    %1807 = vmatpush1.bf16.msra.mxu0 0
    %1808 = vmatprep.subr.bf16.mxu0 0
    %1809 = vmatpush1.bf16.msra.mxu0 0
    %1810 = vmatprep.subr.bf16.mxu0 0
    %1811 = vmatpush1.bf16.msra.mxu0 0
    %1812 = vmatprep.mubr.bf16.mxu0 0
    %1813 = vmatmul.mubr.bf16.gmra.mrb[0].mxu0 %v1775
    %v1814 = vpop.f32.mrb[0].mxu0
    %v1815 = vadd.f32 0.0, %v1814
    %v1816 = vpop.f32.mrb[0].mxu0
    %v1817 = vpop.f32.mrb[0].mxu0
    %v1818 = vpop.f32.mrb[0].mxu0
    %1819 = vdwg.mxu0
    %1820 = vrot.lane.b32.xlu0 %v488, 112
    %v1821 = vpop.permute.xlu0 %1820
    %1822 = vrot.lane.b32.xlu0 %v492, 112
    %v1823 = vpop.permute.xlu0 %1822
    %v1825 = vsel %vm500, %v1821, 0
    %v1828 = vsel %vm500, %v1823, 0
    %1830 = vmatprep.subr.bf16.mxu0 0
    %1831 = vmatpush1.bf16.xpose.msra.mxu0 %v1828
    %1832 = vmatprep.subr.bf16.mxu0 0
    %1833 = vmatpush1.bf16.xpose.msra.mxu0 0
    %1834 = vmatprep.subr.bf16.mxu0 0
    %1835 = vmatpush1.bf16.xpose.msra.mxu0 0
    %1836 = vmatprep.subr.bf16.mxu0 0
    %1837 = vmatpush1.bf16.xpose.msra.mxu0 0
    %1838 = vmatprep.subr.bf16.mxu0 0
    %1839 = vmatpush1.bf16.xpose.msra.mxu0 0
    %1840 = vmatprep.subr.bf16.mxu0 0
    %1841 = vmatpush1.bf16.xpose.msra.mxu0 0
    %1842 = vmatprep.subr.bf16.mxu0 0
    %1843 = vmatpush1.bf16.xpose.msra.mxu0 0
    %1844 = vmatprep.subr.bf16.mxu0 0
    %1845 = vmatpush1.bf16.xpose.msra.mxu0 0
    %1846 = vmatprep.subr.bf16.mxu0 0
    %1847 = vmatpush1.bf16.xpose.msra.mxu0 0
    %1848 = vmatprep.subr.bf16.mxu0 0
    %1849 = vmatpush1.bf16.xpose.msra.mxu0 0
    %1850 = vmatprep.subr.bf16.mxu0 0
    %1851 = vmatpush1.bf16.xpose.msra.mxu0 0
    %1852 = vmatprep.subr.bf16.mxu0 0
    %1853 = vmatpush1.bf16.xpose.msra.mxu0 0
    %1854 = vmatprep.subr.bf16.mxu0 0
    %1855 = vmatpush1.bf16.xpose.msra.mxu0 0
    %1856 = vmatprep.subr.bf16.mxu0 0
    %1857 = vmatpush1.bf16.xpose.msra.mxu0 0
    %1858 = vmatprep.subr.bf16.mxu0 0
    %1859 = vmatpush1.bf16.xpose.msra.mxu0 0
    %1860 = vmatprep.subr.bf16.mxu0 0
    %1861 = vmatpush1.bf16.xpose.msra.mxu0 0
    %1862 = vmatprep.mubr.bf16.mxu0 0
    %1863 = vmatmul.mubr.bf16.gmra.mrb[0].mxu0 %v1825
    %v1864 = vpop.f32.mrb[0].mxu0
    %v1865 = vadd.f32 0.0, %v1864
    %v1866 = vpop.f32.mrb[0].mxu0
    %v1867 = vpop.f32.mrb[0].mxu0
    %v1868 = vpop.f32.mrb[0].mxu0
    %1869 = vdwg.mxu0
    %1870 = vrot.lane.b32.xlu0 %v489, 112
    %v1871 = vpop.permute.xlu0 %1870
    %1872 = vrot.lane.b32.xlu0 %v493, 112
    %v1873 = vpop.permute.xlu0 %1872
    %v1875 = vsel %vm500, %v1871, 0
    %v1878 = vsel %vm500, %v1873, 0
    %1880 = vmatprep.subr.bf16.mxu0 0
    %1881 = vmatpush1.bf16.xpose.msra.mxu0 %v1878
    %1882 = vmatprep.subr.bf16.mxu0 0
    %1883 = vmatpush1.bf16.xpose.msra.mxu0 0
    %1884 = vmatprep.subr.bf16.mxu0 0
    %1885 = vmatpush1.bf16.xpose.msra.mxu0 0
    %1886 = vmatprep.subr.bf16.mxu0 0
    %1887 = vmatpush1.bf16.xpose.msra.mxu0 0
    %1888 = vmatprep.subr.bf16.mxu0 0
    %1889 = vmatpush1.bf16.xpose.msra.mxu0 0
    %1890 = vmatprep.subr.bf16.mxu0 0
    %1891 = vmatpush1.bf16.xpose.msra.mxu0 0
    %1892 = vmatprep.subr.bf16.mxu0 0
    %1893 = vmatpush1.bf16.xpose.msra.mxu0 0
    %1894 = vmatprep.subr.bf16.mxu0 0
    %1895 = vmatpush1.bf16.xpose.msra.mxu0 0
    %1896 = vmatprep.subr.bf16.mxu0 0
    %1897 = vmatpush1.bf16.xpose.msra.mxu0 0
    %1898 = vmatprep.subr.bf16.mxu0 0
    %1899 = vmatpush1.bf16.xpose.msra.mxu0 0
    %1900 = vmatprep.subr.bf16.mxu0 0
    %1901 = vmatpush1.bf16.xpose.msra.mxu0 0
    %1902 = vmatprep.subr.bf16.mxu0 0
    %1903 = vmatpush1.bf16.xpose.msra.mxu0 0
    %1904 = vmatprep.subr.bf16.mxu0 0
    %1905 = vmatpush1.bf16.xpose.msra.mxu0 0
    %1906 = vmatprep.subr.bf16.mxu0 0
    %1907 = vmatpush1.bf16.xpose.msra.mxu0 0
    %1908 = vmatprep.subr.bf16.mxu0 0
    %1909 = vmatpush1.bf16.xpose.msra.mxu0 0
    %1910 = vmatprep.subr.bf16.mxu0 0
    %1911 = vmatpush1.bf16.xpose.msra.mxu0 0
    %1912 = vmatprep.mubr.bf16.mxu0 0
    %1913 = vmatmul.mubr.bf16.gmra.mrb[0].mxu0 %v1875
    %v1914 = vpop.f32.mrb[0].mxu0
    %v1915 = vadd.f32 0.0, %v1914
    %v1916 = vpop.f32.mrb[0].mxu0
    %v1917 = vpop.f32.mrb[0].mxu0
    %v1918 = vpop.f32.mrb[0].mxu0
    %1919 = vdwg.mxu0
    %1920 = vrot.lane.b32.xlu0 %v490, 112
    %v1921 = vpop.permute.xlu0 %1920
    %1922 = vrot.lane.b32.xlu0 %v494, 112
    %v1923 = vpop.permute.xlu0 %1922
    %v1925 = vsel %vm500, %v1921, 0
    %v1928 = vsel %vm500, %v1923, 0
    %1930 = vmatprep.subr.bf16.mxu0 0
    %1931 = vmatpush1.bf16.xpose.msra.mxu0 %v1928
    %1932 = vmatprep.subr.bf16.mxu0 0
    %1933 = vmatpush1.bf16.xpose.msra.mxu0 0
    %1934 = vmatprep.subr.bf16.mxu0 0
    %1935 = vmatpush1.bf16.xpose.msra.mxu0 0
    %1936 = vmatprep.subr.bf16.mxu0 0
    %1937 = vmatpush1.bf16.xpose.msra.mxu0 0
    %1938 = vmatprep.subr.bf16.mxu0 0
    %1939 = vmatpush1.bf16.xpose.msra.mxu0 0
    %1940 = vmatprep.subr.bf16.mxu0 0
    %1941 = vmatpush1.bf16.xpose.msra.mxu0 0
    %1942 = vmatprep.subr.bf16.mxu0 0
    %1943 = vmatpush1.bf16.xpose.msra.mxu0 0
    %1944 = vmatprep.subr.bf16.mxu0 0
    %1945 = vmatpush1.bf16.xpose.msra.mxu0 0
    %1946 = vmatprep.subr.bf16.mxu0 0
    %1947 = vmatpush1.bf16.xpose.msra.mxu0 0
    %1948 = vmatprep.subr.bf16.mxu0 0
    %1949 = vmatpush1.bf16.xpose.msra.mxu0 0
    %1950 = vmatprep.subr.bf16.mxu0 0
    %1951 = vmatpush1.bf16.xpose.msra.mxu0 0
    %1952 = vmatprep.subr.bf16.mxu0 0
    %1953 = vmatpush1.bf16.xpose.msra.mxu0 0
    %1954 = vmatprep.subr.bf16.mxu0 0
    %1955 = vmatpush1.bf16.xpose.msra.mxu0 0
    %1956 = vmatprep.subr.bf16.mxu0 0
    %1957 = vmatpush1.bf16.xpose.msra.mxu0 0
    %1958 = vmatprep.subr.bf16.mxu0 0
    %1959 = vmatpush1.bf16.xpose.msra.mxu0 0
    %1960 = vmatprep.subr.bf16.mxu0 0
    %1961 = vmatpush1.bf16.xpose.msra.mxu0 0
    %1962 = vmatprep.mubr.bf16.mxu0 0
    %1963 = vmatmul.mubr.bf16.gmra.mrb[0].mxu0 %v1925
    %v1964 = vpop.f32.mrb[0].mxu0
    %v1965 = vadd.f32 0.0, %v1964
    %v1966 = vpop.f32.mrb[0].mxu0
    %v1967 = vpop.f32.mrb[0].mxu0
    %v1968 = vpop.f32.mrb[0].mxu0
    %1969 = vdwg.mxu0
    %1970 = vrot.lane.b32.xlu0 %v491, 112
    %v1971 = vpop.permute.xlu0 %1970
    %1972 = vrot.lane.b32.xlu0 %v495, 112
    %v1973 = vpop.permute.xlu0 %1972
    %v1975 = vsel %vm500, %v1971, 0
    %v1978 = vsel %vm500, %v1973, 0
    %1980 = vmatprep.subr.bf16.mxu0 0
    %1981 = vmatpush1.bf16.xpose.msra.mxu0 %v1978
    %1982 = vmatprep.subr.bf16.mxu0 0
    %1983 = vmatpush1.bf16.xpose.msra.mxu0 0
    %1984 = vmatprep.subr.bf16.mxu0 0
    %1985 = vmatpush1.bf16.xpose.msra.mxu0 0
    %1986 = vmatprep.subr.bf16.mxu0 0
    %1987 = vmatpush1.bf16.xpose.msra.mxu0 0
    %1988 = vmatprep.subr.bf16.mxu0 0
    %1989 = vmatpush1.bf16.xpose.msra.mxu0 0
    %1990 = vmatprep.subr.bf16.mxu0 0
    %1991 = vmatpush1.bf16.xpose.msra.mxu0 0
    %1992 = vmatprep.subr.bf16.mxu0 0
    %1993 = vmatpush1.bf16.xpose.msra.mxu0 0
    %1994 = vmatprep.subr.bf16.mxu0 0
    %1995 = vmatpush1.bf16.xpose.msra.mxu0 0
    %1996 = vmatprep.subr.bf16.mxu0 0
    %1997 = vmatpush1.bf16.xpose.msra.mxu0 0
    %1998 = vmatprep.subr.bf16.mxu0 0
    %1999 = vmatpush1.bf16.xpose.msra.mxu0 0
    %2000 = vmatprep.subr.bf16.mxu0 0
    %2001 = vmatpush1.bf16.xpose.msra.mxu0 0
    %2002 = vmatprep.subr.bf16.mxu0 0
    %2003 = vmatpush1.bf16.xpose.msra.mxu0 0
    %2004 = vmatprep.subr.bf16.mxu0 0
    %2005 = vmatpush1.bf16.xpose.msra.mxu0 0
    %2006 = vmatprep.subr.bf16.mxu0 0
    %2007 = vmatpush1.bf16.xpose.msra.mxu0 0
    %2008 = vmatprep.subr.bf16.mxu0 0
    %2009 = vmatpush1.bf16.xpose.msra.mxu0 0
    %2010 = vmatprep.subr.bf16.mxu0 0
    %2011 = vmatpush1.bf16.xpose.msra.mxu0 0
    %2012 = vmatprep.mubr.bf16.mxu0 0
    %2013 = vmatmul.mubr.bf16.gmra.mrb[0].mxu0 %v1975
    %v2014 = vpop.f32.mrb[0].mxu0
    %v2015 = vadd.f32 0.0, %v2014
    %v2016 = vpop.f32.mrb[0].mxu0
    %v2017 = vpop.f32.mrb[0].mxu0
    %v2018 = vpop.f32.mrb[0].mxu0
    %2019 = vdwg.mxu0
    %v2020 = vmul.f32 %v1865, 0.35355338
    %v2021 = vmul.f32 %v1915, 0.35355338
    %v2022 = vmul.f32 %v1965, 0.35355338
    %v2023 = vmul.f32 %v2015, 0.35355338
    %v2024 = vsel %vm689, %v2020, -1e+32
    %v2025 = vsel %vm689, %v2021, -1e+32
    %v2026 = vsel %vm689, %v2022, -1e+32
    %v2027 = vsel %vm689, %v2023, -1e+32
    %v2028 = vsel %vm500, %v2024, -inf
    %2029 = vmax.xlane.f32.xlu0 %v2028
    %v2030 = vpop.xlane.xlu0 %2029
    %v2031 = vsel %vm500, %v2025, -inf
    %2032 = vmax.xlane.f32.xlu0 %v2031
    %v2033 = vpop.xlane.xlu0 %2032
    %v2034 = vsel %vm500, %v2026, -inf
    %2035 = vmax.xlane.f32.xlu0 %v2034
    %v2036 = vpop.xlane.xlu0 %2035
    %v2037 = vsel %vm500, %v2027, -inf
    %2038 = vmax.xlane.f32.xlu0 %v2037
    %v2039 = vpop.xlane.xlu0 %2038
    %v2040 = vsub.f32 %v2024, %v2030
    %v2041 = vsub.f32 %v2025, %v2033
    %v2042 = vsub.f32 %v2026, %v2036
    %v2043 = vsub.f32 %v2027, %v2039
    %v2044 = vmul.f32 %v2040, 1.442695
    %v2045 = vpow.pop %v2044
    %v2046 = vmul.f32 %v2041, 1.442695
    %v2047 = vpow.pop %v2046
    %v2048 = vmul.f32 %v2042, 1.442695
    %v2049 = vpow.pop %v2048
    %v2050 = vmul.f32 %v2043, 1.442695
    %v2051 = vpow.pop %v2050
    %v2052 = vsel %vm500, %v2045, 0.0
    %2053 = vadd.xlane.f32.xlu0 %v2052
    %v2054 = vpop.xlane.xlu0 %2053
    %v2055 = vsel %vm500, %v2047, 0.0
    %2056 = vadd.xlane.f32.xlu0 %v2055
    %v2057 = vpop.xlane.xlu0 %2056
    %v2058 = vsel %vm500, %v2049, 0.0
    %2059 = vadd.xlane.f32.xlu0 %v2058
    %v2060 = vpop.xlane.xlu0 %2059
    %v2061 = vsel %vm500, %v2051, 0.0
    %2062 = vadd.xlane.f32.xlu0 %v2061
    %v2063 = vpop.xlane.xlu0 %2062
    %v2064 = vrcp.pop %v2054
    %v2065 = vrcp.pop %v2057
    %v2066 = vrcp.pop %v2060
    %v2067 = vrcp.pop %v2063
    %v2068 = vmul.f32 %v2045, %v2064
    %v2069 = vmul.f32 %v2047, %v2065
    %v2070 = vmul.f32 %v2049, %v2066
    %v2071 = vmul.f32 %v2051, %v2067
    %v2072 = vmul.f32 %v2068, %v479
    %v2073 = vmul.f32 %v2069, %v479
    %v2074 = vmul.f32 %v2070, %v479
    %v2075 = vmul.f32 %v2071, %v479
    %v2077 = vsel %vm500, %v2072, 0
    %v2080 = vsel %vm500, %v2073, 0
    %v2083 = vsel %vm500, %v2074, 0
    %v2086 = vsel %vm500, %v2075, 0
    %2088 = vmatprep.subr.mxu0 0.0
    %2089 = vmatpush1.msra.mxu0 %v487
    %2090 = vmatprep.subr.mxu0 0.0
    %2091 = vmatpush1.msra.mxu0 0.0
    %2092 = vmatprep.subr.mxu0 0.0
    %2093 = vmatpush1.msra.mxu0 0.0
    %2094 = vmatprep.subr.mxu0 0.0
    %2095 = vmatpush1.msra.mxu0 0.0
    %2096 = vmatprep.subr.mxu0 0.0
    %2097 = vmatpush1.msra.mxu0 0.0
    %2098 = vmatprep.subr.mxu0 0.0
    %2099 = vmatpush1.msra.mxu0 0.0
    %2100 = vmatprep.subr.mxu0 0.0
    %2101 = vmatpush1.msra.mxu0 0.0
    %2102 = vmatprep.subr.mxu0 0.0
    %2103 = vmatpush1.msra.mxu0 0.0
    %2104 = vmatprep.subr.mxu0 0.0
    %2105 = vmatpush1.msra.mxu0 0.0
    %2106 = vmatprep.subr.mxu0 0.0
    %2107 = vmatpush1.msra.mxu0 0.0
    %2108 = vmatprep.subr.mxu0 0.0
    %2109 = vmatpush1.msra.mxu0 0.0
    %2110 = vmatprep.subr.mxu0 0.0
    %2111 = vmatpush1.msra.mxu0 0.0
    %2112 = vmatprep.subr.mxu0 0.0
    %2113 = vmatpush1.msra.mxu0 0.0
    %2114 = vmatprep.subr.mxu0 0.0
    %2115 = vmatpush1.msra.mxu0 0.0
    %2116 = vmatprep.subr.mxu0 0.0
    %2117 = vmatpush1.msra.mxu0 0.0
    %2118 = vmatprep.subr.mxu0 0.0
    %2119 = vmatpush1.msra.mxu0 0.0
    %2120 = vmatprep.subr.mxu0 0.0
    %2121 = vmatpush1.msra.mxu0 0.0
    %2122 = vmatprep.subr.mxu0 0.0
    %2123 = vmatpush1.msra.mxu0 0.0
    %2124 = vmatprep.subr.mxu0 0.0
    %2125 = vmatpush1.msra.mxu0 0.0
    %2126 = vmatprep.subr.mxu0 0.0
    %2127 = vmatpush1.msra.mxu0 0.0
    %2128 = vmatprep.subr.mxu0 0.0
    %2129 = vmatpush1.msra.mxu0 0.0
    %2130 = vmatprep.subr.mxu0 0.0
    %2131 = vmatpush1.msra.mxu0 0.0
    %2132 = vmatprep.subr.mxu0 0.0
    %2133 = vmatpush1.msra.mxu0 0.0
    %2134 = vmatprep.subr.mxu0 0.0
    %2135 = vmatpush1.msra.mxu0 0.0
    %2136 = vmatprep.subr.mxu0 0.0
    %2137 = vmatpush1.msra.mxu0 0.0
    %2138 = vmatprep.subr.mxu0 0.0
    %2139 = vmatpush1.msra.mxu0 0.0
    %2140 = vmatprep.subr.mxu0 0.0
    %2141 = vmatpush1.msra.mxu0 0.0
    %2142 = vmatprep.subr.mxu0 0.0
    %2143 = vmatpush1.msra.mxu0 0.0
    %2144 = vmatprep.subr.mxu0 0.0
    %2145 = vmatpush1.msra.mxu0 0.0
    %2146 = vmatprep.subr.mxu0 0.0
    %2147 = vmatpush1.msra.mxu0 0.0
    %2148 = vmatprep.subr.mxu0 0.0
    %2149 = vmatpush1.msra.mxu0 0.0
    %2150 = vmatprep.subr.mxu0 0.0
    %2151 = vmatpush1.msra.mxu0 0.0
    %2152 = vmatprep.mubr.f32.mxu0 0.0
    %2153 = vmatmul.mubr.f32.gmra.mrb[0].mxu0 %v2077
    %v2154 = vpop.f32.mrb[0].mxu0
    %v2155 = vadd.f32 0.0, %v2154
    %v2156 = vpop.f32.mrb[0].mxu0
    %2157 = vmatprep.mubr.f32.mxu0 0.0
    %2158 = vmatmul.mubr.f32.gmra.mrb[0].mxu0 %v2080
    %v2159 = vpop.f32.mrb[0].mxu0
    %v2160 = vadd.f32 0.0, %v2159
    %v2161 = vpop.f32.mrb[0].mxu0
    %2162 = vmatprep.mubr.f32.mxu0 0.0
    %2163 = vmatmul.mubr.f32.gmra.mrb[0].mxu0 %v2083
    %v2164 = vpop.f32.mrb[0].mxu0
    %v2165 = vadd.f32 0.0, %v2164
    %v2166 = vpop.f32.mrb[0].mxu0
    %2167 = vmatprep.mubr.f32.mxu0 0.0
    %2168 = vmatmul.mubr.f32.gmra.mrb[0].mxu0 %v2086
    %v2169 = vpop.f32.mrb[0].mxu0
    %v2170 = vadd.f32 0.0, %v2169
    %v2171 = vpop.f32.mrb[0].mxu0
    %2172 = vdwg.mxu0
    %v2173 = vmul.f32 %v2155, %v484
    %v2174 = vmul.f32 %v2160, %v484
    %v2175 = vmul.f32 %v2165, %v484
    %v2176 = vmul.f32 %v2170, %v484
    %v2177 = vmax.f32 %v2173, 0.0
    %v2178 = vmax.f32 %v2174, 0.0
    %v2179 = vmax.f32 %v2175, 0.0
    %v2180 = vmax.f32 %v2176, 0.0
    %v2181 = vrsqrt.pop %v2177
    %v2182 = vmul.f32 %v2177, %v2181
    %vm2183 = vcmp.eq.f32.partialorder %v2177, inf
    %v2184 = vsel %vm2183, %v2177, %v2182
    %vm2185 = vcmp.eq.f32.partialorder %v2177, 0.0
    %v2186 = vand.u32 %v2177, 2147483648
    %v2187 = vsel %vm2185, %v2186, %v2184
    %v2188 = vrsqrt.pop %v2178
    %v2189 = vmul.f32 %v2178, %v2188
    %vm2190 = vcmp.eq.f32.partialorder %v2178, inf
    %v2191 = vsel %vm2190, %v2178, %v2189
    %vm2192 = vcmp.eq.f32.partialorder %v2178, 0.0
    %v2193 = vand.u32 %v2178, 2147483648
    %v2194 = vsel %vm2192, %v2193, %v2191
    %v2195 = vrsqrt.pop %v2179
    %v2196 = vmul.f32 %v2179, %v2195
    %vm2197 = vcmp.eq.f32.partialorder %v2179, inf
    %v2198 = vsel %vm2197, %v2179, %v2196
    %vm2199 = vcmp.eq.f32.partialorder %v2179, 0.0
    %v2200 = vand.u32 %v2179, 2147483648
    %v2201 = vsel %vm2199, %v2200, %v2198
    %v2202 = vrsqrt.pop %v2180
    %v2203 = vmul.f32 %v2180, %v2202
    %vm2204 = vcmp.eq.f32.partialorder %v2180, inf
    %v2205 = vsel %vm2204, %v2180, %v2203
    %vm2206 = vcmp.eq.f32.partialorder %v2180, 0.0
    %v2207 = vand.u32 %v2180, 2147483648
    %v2208 = vsel %vm2206, %v2207, %v2205
    %s2209 = sld [smem:[#allocation2 + $0x2]]
    %v2210 = vstv %s2209
    %v2211 = vmul.f32 %v2187, %v2210
    %v2212 = vmul.f32 %v2194, %v2210
    %v2213 = vmul.f32 %v2201, %v2210
    %v2214 = vmul.f32 %v2208, %v2210
    %v2215 = vmax.f32 %v2211, -11.512925
    %v2216 = vmax.f32 %v2212, -11.512925
    %v2217 = vmax.f32 %v2213, -11.512925
    %v2218 = vmax.f32 %v2214, -11.512925
    %v2219 = vmin.f32 %v2215, 11.512925
    %v2220 = vmin.f32 %v2216, 11.512925
    %v2221 = vmin.f32 %v2217, 11.512925
    %v2222 = vmin.f32 %v2218, 11.512925
    %v2223 = vmul.f32 %v2219, 1.442695
    %v2224 = vpow.pop %v2223
    %v2225 = vmul.f32 %v2220, 1.442695
    %v2226 = vpow.pop %v2225
    %v2227 = vmul.f32 %v2221, 1.442695
    %v2228 = vpow.pop %v2227
    %v2229 = vmul.f32 %v2222, 1.442695
    %v2230 = vpow.pop %v2229
    %v2231 = vmul.f32 %v2020, %v2224
    %v2232 = vmul.f32 %v2021, %v2226
    %v2233 = vmul.f32 %v2022, %v2228
    %v2234 = vmul.f32 %v2023, %v2230
    %v2235 = vsel %vm689, %v2231, -1e+32
    %v2236 = vsel %vm689, %v2232, -1e+32
    %v2237 = vsel %vm689, %v2233, -1e+32
    %v2238 = vsel %vm689, %v2234, -1e+32
    %v2239 = vsel %vm500, %v2235, -inf
    %2240 = vmax.xlane.f32.xlu0 %v2239
    %v2241 = vpop.xlane.xlu0 %2240
    %v2242 = vsel %vm500, %v2236, -inf
    %2243 = vmax.xlane.f32.xlu0 %v2242
    %v2244 = vpop.xlane.xlu0 %2243
    %v2245 = vsel %vm500, %v2237, -inf
    %2246 = vmax.xlane.f32.xlu0 %v2245
    %v2247 = vpop.xlane.xlu0 %2246
    %v2248 = vsel %vm500, %v2238, -inf
    %2249 = vmax.xlane.f32.xlu0 %v2248
    %v2250 = vpop.xlane.xlu0 %2249
    %v2251 = vsub.f32 %v2235, %v2241
    %v2252 = vsub.f32 %v2236, %v2244
    %v2253 = vsub.f32 %v2237, %v2247
    %v2254 = vsub.f32 %v2238, %v2250
    %v2255 = vmul.f32 %v2251, 1.442695
    %v2256 = vpow.pop %v2255
    %v2257 = vmul.f32 %v2252, 1.442695
    %v2258 = vpow.pop %v2257
    %v2259 = vmul.f32 %v2253, 1.442695
    %v2260 = vpow.pop %v2259
    %v2261 = vmul.f32 %v2254, 1.442695
    %v2262 = vpow.pop %v2261
    %v2263 = vsel %vm500, %v2256, 0.0
    %2264 = vadd.xlane.f32.xlu0 %v2263
    %v2265 = vpop.xlane.xlu0 %2264
    %v2266 = vsel %vm500, %v2258, 0.0
    %2267 = vadd.xlane.f32.xlu0 %v2266
    %v2268 = vpop.xlane.xlu0 %2267
    %v2269 = vsel %vm500, %v2260, 0.0
    %2270 = vadd.xlane.f32.xlu0 %v2269
    %v2271 = vpop.xlane.xlu0 %2270
    %v2272 = vsel %vm500, %v2262, 0.0
    %2273 = vadd.xlane.f32.xlu0 %v2272
    %v2274 = vpop.xlane.xlu0 %2273
    %v2275 = vrcp.pop %v2265
    %v2276 = vrcp.pop %v2268
    %v2277 = vrcp.pop %v2271
    %v2278 = vrcp.pop %v2274
    %v2279 = vmul.f32 %v2256, %v2275
    %v2280 = vmul.f32 %v2258, %v2276
    %v2281 = vmul.f32 %v2260, %v2277
    %v2282 = vmul.f32 %v2262, %v2278
    %v2283 = vsel %vm951, 0.0, %v2279
    %v2284 = vsel %vm951, 0.0, %v2280
    %v2285 = vsel %vm951, 0.0, %v2281
    %v2286 = vsel %vm951, 0.0, %v2282
    %v2287 = vpack.c.bf16 %v2283, %v2283
    %v2288 = vpack.c.bf16 %v2284, %v2284
    %v2289 = vpack.c.bf16 %v2285, %v2285
    %v2290 = vpack.c.bf16 %v2286, %v2286
    %2291 = vrot.lane.b32.xlu0 %v496, 112
    %v2292 = vpop.permute.xlu0 %2291
    %v2294 = vsel %vm500, %v2287, 0
    %v2297 = vsel %vm963, %v2292, 0
    %2299 = vmatprep.subr.bf16.mxu0 0
    %2300 = vmatpush1.bf16.msra.mxu0 %v2297
    %2301 = vmatprep.subr.bf16.mxu0 0
    %2302 = vmatpush1.bf16.msra.mxu0 0
    %2303 = vmatprep.subr.bf16.mxu0 0
    %2304 = vmatpush1.bf16.msra.mxu0 0
    %2305 = vmatprep.subr.bf16.mxu0 0
    %2306 = vmatpush1.bf16.msra.mxu0 0
    %2307 = vmatprep.subr.bf16.mxu0 0
    %2308 = vmatpush1.bf16.msra.mxu0 0
    %2309 = vmatprep.subr.bf16.mxu0 0
    %2310 = vmatpush1.bf16.msra.mxu0 0
    %2311 = vmatprep.subr.bf16.mxu0 0
    %2312 = vmatpush1.bf16.msra.mxu0 0
    %2313 = vmatprep.subr.bf16.mxu0 0
    %2314 = vmatpush1.bf16.msra.mxu0 0
    %2315 = vmatprep.subr.bf16.mxu0 0
    %2316 = vmatpush1.bf16.msra.mxu0 0
    %2317 = vmatprep.subr.bf16.mxu0 0
    %2318 = vmatpush1.bf16.msra.mxu0 0
    %2319 = vmatprep.subr.bf16.mxu0 0
    %2320 = vmatpush1.bf16.msra.mxu0 0
    %2321 = vmatprep.subr.bf16.mxu0 0
    %2322 = vmatpush1.bf16.msra.mxu0 0
    %2323 = vmatprep.subr.bf16.mxu0 0
    %2324 = vmatpush1.bf16.msra.mxu0 0
    %2325 = vmatprep.subr.bf16.mxu0 0
    %2326 = vmatpush1.bf16.msra.mxu0 0
    %2327 = vmatprep.subr.bf16.mxu0 0
    %2328 = vmatpush1.bf16.msra.mxu0 0
    %2329 = vmatprep.subr.bf16.mxu0 0
    %2330 = vmatpush1.bf16.msra.mxu0 0
    %2331 = vmatprep.mubr.bf16.mxu0 0
    %2332 = vmatmul.mubr.bf16.gmra.mrb[0].mxu0 %v2294
    %v2333 = vpop.f32.mrb[0].mxu0
    %v2334 = vadd.f32 0.0, %v2333
    %v2335 = vpop.f32.mrb[0].mxu0
    %v2336 = vpop.f32.mrb[0].mxu0
    %v2337 = vpop.f32.mrb[0].mxu0
    %2338 = vdwg.mxu0
    %2339 = vrot.lane.b32.xlu0 %v497, 112
    %v2340 = vpop.permute.xlu0 %2339
    %v2342 = vsel %vm500, %v2288, 0
    %v2345 = vsel %vm963, %v2340, 0
    %2347 = vmatprep.subr.bf16.mxu0 0
    %2348 = vmatpush1.bf16.msra.mxu0 %v2345
    %2349 = vmatprep.subr.bf16.mxu0 0
    %2350 = vmatpush1.bf16.msra.mxu0 0
    %2351 = vmatprep.subr.bf16.mxu0 0
    %2352 = vmatpush1.bf16.msra.mxu0 0
    %2353 = vmatprep.subr.bf16.mxu0 0
    %2354 = vmatpush1.bf16.msra.mxu0 0
    %2355 = vmatprep.subr.bf16.mxu0 0
    %2356 = vmatpush1.bf16.msra.mxu0 0
    %2357 = vmatprep.subr.bf16.mxu0 0
    %2358 = vmatpush1.bf16.msra.mxu0 0
    %2359 = vmatprep.subr.bf16.mxu0 0
    %2360 = vmatpush1.bf16.msra.mxu0 0
    %2361 = vmatprep.subr.bf16.mxu0 0
    %2362 = vmatpush1.bf16.msra.mxu0 0
    %2363 = vmatprep.subr.bf16.mxu0 0
    %2364 = vmatpush1.bf16.msra.mxu0 0
    %2365 = vmatprep.subr.bf16.mxu0 0
    %2366 = vmatpush1.bf16.msra.mxu0 0
    %2367 = vmatprep.subr.bf16.mxu0 0
    %2368 = vmatpush1.bf16.msra.mxu0 0
    %2369 = vmatprep.subr.bf16.mxu0 0
    %2370 = vmatpush1.bf16.msra.mxu0 0
    %2371 = vmatprep.subr.bf16.mxu0 0
    %2372 = vmatpush1.bf16.msra.mxu0 0
    %2373 = vmatprep.subr.bf16.mxu0 0
    %2374 = vmatpush1.bf16.msra.mxu0 0
    %2375 = vmatprep.subr.bf16.mxu0 0
    %2376 = vmatpush1.bf16.msra.mxu0 0
    %2377 = vmatprep.subr.bf16.mxu0 0
    %2378 = vmatpush1.bf16.msra.mxu0 0
    %2379 = vmatprep.mubr.bf16.mxu0 0
    %2380 = vmatmul.mubr.bf16.gmra.mrb[0].mxu0 %v2342
    %v2381 = vpop.f32.mrb[0].mxu0
    %v2382 = vadd.f32 0.0, %v2381
    %v2383 = vpop.f32.mrb[0].mxu0
    %v2384 = vpop.f32.mrb[0].mxu0
    %v2385 = vpop.f32.mrb[0].mxu0
    %2386 = vdwg.mxu0
    %2387 = vrot.lane.b32.xlu0 %v498, 112
    %v2388 = vpop.permute.xlu0 %2387
    %v2390 = vsel %vm500, %v2289, 0
    %v2393 = vsel %vm963, %v2388, 0
    %2395 = vmatprep.subr.bf16.mxu0 0
    %2396 = vmatpush1.bf16.msra.mxu0 %v2393
    %2397 = vmatprep.subr.bf16.mxu0 0
    %2398 = vmatpush1.bf16.msra.mxu0 0
    %2399 = vmatprep.subr.bf16.mxu0 0
    %2400 = vmatpush1.bf16.msra.mxu0 0
    %2401 = vmatprep.subr.bf16.mxu0 0
    %2402 = vmatpush1.bf16.msra.mxu0 0
    %2403 = vmatprep.subr.bf16.mxu0 0
    %2404 = vmatpush1.bf16.msra.mxu0 0
    %2405 = vmatprep.subr.bf16.mxu0 0
    %2406 = vmatpush1.bf16.msra.mxu0 0
    %2407 = vmatprep.subr.bf16.mxu0 0
    %2408 = vmatpush1.bf16.msra.mxu0 0
    %2409 = vmatprep.subr.bf16.mxu0 0
    %2410 = vmatpush1.bf16.msra.mxu0 0
    %2411 = vmatprep.subr.bf16.mxu0 0
    %2412 = vmatpush1.bf16.msra.mxu0 0
    %2413 = vmatprep.subr.bf16.mxu0 0
    %2414 = vmatpush1.bf16.msra.mxu0 0
    %2415 = vmatprep.subr.bf16.mxu0 0
    %2416 = vmatpush1.bf16.msra.mxu0 0
    %2417 = vmatprep.subr.bf16.mxu0 0
    %2418 = vmatpush1.bf16.msra.mxu0 0
    %2419 = vmatprep.subr.bf16.mxu0 0
    %2420 = vmatpush1.bf16.msra.mxu0 0
    %2421 = vmatprep.subr.bf16.mxu0 0
    %2422 = vmatpush1.bf16.msra.mxu0 0
    %2423 = vmatprep.subr.bf16.mxu0 0
    %2424 = vmatpush1.bf16.msra.mxu0 0
    %2425 = vmatprep.subr.bf16.mxu0 0
    %2426 = vmatpush1.bf16.msra.mxu0 0
    %2427 = vmatprep.mubr.bf16.mxu0 0
    %2428 = vmatmul.mubr.bf16.gmra.mrb[0].mxu0 %v2390
    %v2429 = vpop.f32.mrb[0].mxu0
    %v2430 = vadd.f32 0.0, %v2429
    %v2431 = vpop.f32.mrb[0].mxu0
    %v2432 = vpop.f32.mrb[0].mxu0
    %v2433 = vpop.f32.mrb[0].mxu0
    %2434 = vdwg.mxu0
    %2435 = vrot.lane.b32.xlu0 %v499, 112
    %v2436 = vpop.permute.xlu0 %2435
    %v2438 = vsel %vm500, %v2290, 0
    %v2441 = vsel %vm963, %v2436, 0
    %2443 = vmatprep.subr.bf16.mxu0 0
    %2444 = vmatpush1.bf16.msra.mxu0 %v2441
    %2445 = vmatprep.subr.bf16.mxu0 0
    %2446 = vmatpush1.bf16.msra.mxu0 0
    %2447 = vmatprep.subr.bf16.mxu0 0
    %2448 = vmatpush1.bf16.msra.mxu0 0
    %2449 = vmatprep.subr.bf16.mxu0 0
    %2450 = vmatpush1.bf16.msra.mxu0 0
    %2451 = vmatprep.subr.bf16.mxu0 0
    %2452 = vmatpush1.bf16.msra.mxu0 0
    %2453 = vmatprep.subr.bf16.mxu0 0
    %2454 = vmatpush1.bf16.msra.mxu0 0
    %2455 = vmatprep.subr.bf16.mxu0 0
    %2456 = vmatpush1.bf16.msra.mxu0 0
    %2457 = vmatprep.subr.bf16.mxu0 0
    %2458 = vmatpush1.bf16.msra.mxu0 0
    %2459 = vmatprep.subr.bf16.mxu0 0
    %2460 = vmatpush1.bf16.msra.mxu0 0
    %2461 = vmatprep.subr.bf16.mxu0 0
    %2462 = vmatpush1.bf16.msra.mxu0 0
    %2463 = vmatprep.subr.bf16.mxu0 0
    %2464 = vmatpush1.bf16.msra.mxu0 0
    %2465 = vmatprep.subr.bf16.mxu0 0
    %2466 = vmatpush1.bf16.msra.mxu0 0
    %2467 = vmatprep.subr.bf16.mxu0 0
    %2468 = vmatpush1.bf16.msra.mxu0 0
    %2469 = vmatprep.subr.bf16.mxu0 0
    %2470 = vmatpush1.bf16.msra.mxu0 0
    %2471 = vmatprep.subr.bf16.mxu0 0
    %2472 = vmatpush1.bf16.msra.mxu0 0
    %2473 = vmatprep.subr.bf16.mxu0 0
    %2474 = vmatpush1.bf16.msra.mxu0 0
    %2475 = vmatprep.mubr.bf16.mxu0 0
    %2476 = vmatmul.mubr.bf16.gmra.mrb[0].mxu0 %v2438
    %v2477 = vpop.f32.mrb[0].mxu0
    %v2478 = vadd.f32 0.0, %v2477
    %v2479 = vpop.f32.mrb[0].mxu0
    %v2480 = vpop.f32.mrb[0].mxu0
    %v2481 = vpop.f32.mrb[0].mxu0
    %2482 = vdwg.mxu0
    %2483 = vrot.lane.b32.xlu0 %v488, 104
    %v2484 = vpop.permute.xlu0 %2483
    %2485 = vrot.lane.b32.xlu0 %v492, 104
    %v2486 = vpop.permute.xlu0 %2485
    %v2488 = vsel %vm500, %v2484, 0
    %v2491 = vsel %vm500, %v2486, 0
    %2493 = vmatprep.subr.bf16.mxu0 0
    %2494 = vmatpush1.bf16.xpose.msra.mxu0 %v2491
    %2495 = vmatprep.subr.bf16.mxu0 0
    %2496 = vmatpush1.bf16.xpose.msra.mxu0 0
    %2497 = vmatprep.subr.bf16.mxu0 0
    %2498 = vmatpush1.bf16.xpose.msra.mxu0 0
    %2499 = vmatprep.subr.bf16.mxu0 0
    %2500 = vmatpush1.bf16.xpose.msra.mxu0 0
    %2501 = vmatprep.subr.bf16.mxu0 0
    %2502 = vmatpush1.bf16.xpose.msra.mxu0 0
    %2503 = vmatprep.subr.bf16.mxu0 0
    %2504 = vmatpush1.bf16.xpose.msra.mxu0 0
    %2505 = vmatprep.subr.bf16.mxu0 0
    %2506 = vmatpush1.bf16.xpose.msra.mxu0 0
    %2507 = vmatprep.subr.bf16.mxu0 0
    %2508 = vmatpush1.bf16.xpose.msra.mxu0 0
    %2509 = vmatprep.subr.bf16.mxu0 0
    %2510 = vmatpush1.bf16.xpose.msra.mxu0 0
    %2511 = vmatprep.subr.bf16.mxu0 0
    %2512 = vmatpush1.bf16.xpose.msra.mxu0 0
    %2513 = vmatprep.subr.bf16.mxu0 0
    %2514 = vmatpush1.bf16.xpose.msra.mxu0 0
    %2515 = vmatprep.subr.bf16.mxu0 0
    %2516 = vmatpush1.bf16.xpose.msra.mxu0 0
    %2517 = vmatprep.subr.bf16.mxu0 0
    %2518 = vmatpush1.bf16.xpose.msra.mxu0 0
    %2519 = vmatprep.subr.bf16.mxu0 0
    %2520 = vmatpush1.bf16.xpose.msra.mxu0 0
    %2521 = vmatprep.subr.bf16.mxu0 0
    %2522 = vmatpush1.bf16.xpose.msra.mxu0 0
    %2523 = vmatprep.subr.bf16.mxu0 0
    %2524 = vmatpush1.bf16.xpose.msra.mxu0 0
    %2525 = vmatprep.mubr.bf16.mxu0 0
    %2526 = vmatmul.mubr.bf16.gmra.mrb[0].mxu0 %v2488
    %v2527 = vpop.f32.mrb[0].mxu0
    %v2528 = vadd.f32 0.0, %v2527
    %v2529 = vpop.f32.mrb[0].mxu0
    %v2530 = vpop.f32.mrb[0].mxu0
    %v2531 = vpop.f32.mrb[0].mxu0
    %2532 = vdwg.mxu0
    %2533 = vrot.lane.b32.xlu0 %v489, 104
    %v2534 = vpop.permute.xlu0 %2533
    %2535 = vrot.lane.b32.xlu0 %v493, 104
    %v2536 = vpop.permute.xlu0 %2535
    %v2538 = vsel %vm500, %v2534, 0
    %v2541 = vsel %vm500, %v2536, 0
    %2543 = vmatprep.subr.bf16.mxu0 0
    %2544 = vmatpush1.bf16.xpose.msra.mxu0 %v2541
    %2545 = vmatprep.subr.bf16.mxu0 0
    %2546 = vmatpush1.bf16.xpose.msra.mxu0 0
    %2547 = vmatprep.subr.bf16.mxu0 0
    %2548 = vmatpush1.bf16.xpose.msra.mxu0 0
    %2549 = vmatprep.subr.bf16.mxu0 0
    %2550 = vmatpush1.bf16.xpose.msra.mxu0 0
    %2551 = vmatprep.subr.bf16.mxu0 0
    %2552 = vmatpush1.bf16.xpose.msra.mxu0 0
    %2553 = vmatprep.subr.bf16.mxu0 0
    %2554 = vmatpush1.bf16.xpose.msra.mxu0 0
    %2555 = vmatprep.subr.bf16.mxu0 0
    %2556 = vmatpush1.bf16.xpose.msra.mxu0 0
    %2557 = vmatprep.subr.bf16.mxu0 0
    %2558 = vmatpush1.bf16.xpose.msra.mxu0 0
    %2559 = vmatprep.subr.bf16.mxu0 0
    %2560 = vmatpush1.bf16.xpose.msra.mxu0 0
    %2561 = vmatprep.subr.bf16.mxu0 0
    %2562 = vmatpush1.bf16.xpose.msra.mxu0 0
    %2563 = vmatprep.subr.bf16.mxu0 0
    %2564 = vmatpush1.bf16.xpose.msra.mxu0 0
    %2565 = vmatprep.subr.bf16.mxu0 0
    %2566 = vmatpush1.bf16.xpose.msra.mxu0 0
    %2567 = vmatprep.subr.bf16.mxu0 0
    %2568 = vmatpush1.bf16.xpose.msra.mxu0 0
    %2569 = vmatprep.subr.bf16.mxu0 0
    %2570 = vmatpush1.bf16.xpose.msra.mxu0 0
    %2571 = vmatprep.subr.bf16.mxu0 0
    %2572 = vmatpush1.bf16.xpose.msra.mxu0 0
    %2573 = vmatprep.subr.bf16.mxu0 0
    %2574 = vmatpush1.bf16.xpose.msra.mxu0 0
    %2575 = vmatprep.mubr.bf16.mxu0 0
    %2576 = vmatmul.mubr.bf16.gmra.mrb[0].mxu0 %v2538
    %v2577 = vpop.f32.mrb[0].mxu0
    %v2578 = vadd.f32 0.0, %v2577
    %v2579 = vpop.f32.mrb[0].mxu0
    %v2580 = vpop.f32.mrb[0].mxu0
    %v2581 = vpop.f32.mrb[0].mxu0
    %2582 = vdwg.mxu0
    %2583 = vrot.lane.b32.xlu0 %v490, 104
    %v2584 = vpop.permute.xlu0 %2583
    %2585 = vrot.lane.b32.xlu0 %v494, 104
    %v2586 = vpop.permute.xlu0 %2585
    %v2588 = vsel %vm500, %v2584, 0
    %v2591 = vsel %vm500, %v2586, 0
    %2593 = vmatprep.subr.bf16.mxu0 0
    %2594 = vmatpush1.bf16.xpose.msra.mxu0 %v2591
    %2595 = vmatprep.subr.bf16.mxu0 0
    %2596 = vmatpush1.bf16.xpose.msra.mxu0 0
    %2597 = vmatprep.subr.bf16.mxu0 0
    %2598 = vmatpush1.bf16.xpose.msra.mxu0 0
    %2599 = vmatprep.subr.bf16.mxu0 0
    %2600 = vmatpush1.bf16.xpose.msra.mxu0 0
    %2601 = vmatprep.subr.bf16.mxu0 0
    %2602 = vmatpush1.bf16.xpose.msra.mxu0 0
    %2603 = vmatprep.subr.bf16.mxu0 0
    %2604 = vmatpush1.bf16.xpose.msra.mxu0 0
    %2605 = vmatprep.subr.bf16.mxu0 0
    %2606 = vmatpush1.bf16.xpose.msra.mxu0 0
    %2607 = vmatprep.subr.bf16.mxu0 0
    %2608 = vmatpush1.bf16.xpose.msra.mxu0 0
    %2609 = vmatprep.subr.bf16.mxu0 0
    %2610 = vmatpush1.bf16.xpose.msra.mxu0 0
    %2611 = vmatprep.subr.bf16.mxu0 0
    %2612 = vmatpush1.bf16.xpose.msra.mxu0 0
    %2613 = vmatprep.subr.bf16.mxu0 0
    %2614 = vmatpush1.bf16.xpose.msra.mxu0 0
    %2615 = vmatprep.subr.bf16.mxu0 0
    %2616 = vmatpush1.bf16.xpose.msra.mxu0 0
    %2617 = vmatprep.subr.bf16.mxu0 0
    %2618 = vmatpush1.bf16.xpose.msra.mxu0 0
    %2619 = vmatprep.subr.bf16.mxu0 0
    %2620 = vmatpush1.bf16.xpose.msra.mxu0 0
    %2621 = vmatprep.subr.bf16.mxu0 0
    %2622 = vmatpush1.bf16.xpose.msra.mxu0 0
    %2623 = vmatprep.subr.bf16.mxu0 0
    %2624 = vmatpush1.bf16.xpose.msra.mxu0 0
    %2625 = vmatprep.mubr.bf16.mxu0 0
    %2626 = vmatmul.mubr.bf16.gmra.mrb[0].mxu0 %v2588
    %v2627 = vpop.f32.mrb[0].mxu0
    %v2628 = vadd.f32 0.0, %v2627
    %v2629 = vpop.f32.mrb[0].mxu0
    %v2630 = vpop.f32.mrb[0].mxu0
    %v2631 = vpop.f32.mrb[0].mxu0
    %2632 = vdwg.mxu0
    %2633 = vrot.lane.b32.xlu0 %v491, 104
    %v2634 = vpop.permute.xlu0 %2633
    %2635 = vrot.lane.b32.xlu0 %v495, 104
    %v2636 = vpop.permute.xlu0 %2635
    %v2638 = vsel %vm500, %v2634, 0
    %v2641 = vsel %vm500, %v2636, 0
    %2643 = vmatprep.subr.bf16.mxu0 0
    %2644 = vmatpush1.bf16.xpose.msra.mxu0 %v2641
    %2645 = vmatprep.subr.bf16.mxu0 0
    %2646 = vmatpush1.bf16.xpose.msra.mxu0 0
    %2647 = vmatprep.subr.bf16.mxu0 0
    %2648 = vmatpush1.bf16.xpose.msra.mxu0 0
    %2649 = vmatprep.subr.bf16.mxu0 0
    %2650 = vmatpush1.bf16.xpose.msra.mxu0 0
    %2651 = vmatprep.subr.bf16.mxu0 0
    %2652 = vmatpush1.bf16.xpose.msra.mxu0 0
    %2653 = vmatprep.subr.bf16.mxu0 0
    %2654 = vmatpush1.bf16.xpose.msra.mxu0 0
    %2655 = vmatprep.subr.bf16.mxu0 0
    %2656 = vmatpush1.bf16.xpose.msra.mxu0 0
    %2657 = vmatprep.subr.bf16.mxu0 0
    %2658 = vmatpush1.bf16.xpose.msra.mxu0 0
    %2659 = vmatprep.subr.bf16.mxu0 0
    %2660 = vmatpush1.bf16.xpose.msra.mxu0 0
    %2661 = vmatprep.subr.bf16.mxu0 0
    %2662 = vmatpush1.bf16.xpose.msra.mxu0 0
    %2663 = vmatprep.subr.bf16.mxu0 0
    %2664 = vmatpush1.bf16.xpose.msra.mxu0 0
    %2665 = vmatprep.subr.bf16.mxu0 0
    %2666 = vmatpush1.bf16.xpose.msra.mxu0 0
    %2667 = vmatprep.subr.bf16.mxu0 0
    %2668 = vmatpush1.bf16.xpose.msra.mxu0 0
    %2669 = vmatprep.subr.bf16.mxu0 0
    %2670 = vmatpush1.bf16.xpose.msra.mxu0 0
    %2671 = vmatprep.subr.bf16.mxu0 0
    %2672 = vmatpush1.bf16.xpose.msra.mxu0 0
    %2673 = vmatprep.subr.bf16.mxu0 0
    %2674 = vmatpush1.bf16.xpose.msra.mxu0 0
    %2675 = vmatprep.mubr.bf16.mxu0 0
    %2676 = vmatmul.mubr.bf16.gmra.mrb[0].mxu0 %v2638
    %v2677 = vpop.f32.mrb[0].mxu0
    %v2678 = vadd.f32 0.0, %v2677
    %v2679 = vpop.f32.mrb[0].mxu0
    %v2680 = vpop.f32.mrb[0].mxu0
    %v2681 = vpop.f32.mrb[0].mxu0
    %2682 = vdwg.mxu0
    %v2683 = vmul.f32 %v2528, 0.35355338
    %v2684 = vmul.f32 %v2578, 0.35355338
    %v2685 = vmul.f32 %v2628, 0.35355338
    %v2686 = vmul.f32 %v2678, 0.35355338
    %v2687 = vsel %vm689, %v2683, -1e+32
    %v2688 = vsel %vm689, %v2684, -1e+32
    %v2689 = vsel %vm689, %v2685, -1e+32
    %v2690 = vsel %vm689, %v2686, -1e+32
    %v2691 = vsel %vm500, %v2687, -inf
    %2692 = vmax.xlane.f32.xlu0 %v2691
    %v2693 = vpop.xlane.xlu0 %2692
    %v2694 = vsel %vm500, %v2688, -inf
    %2695 = vmax.xlane.f32.xlu0 %v2694
    %v2696 = vpop.xlane.xlu0 %2695
    %v2697 = vsel %vm500, %v2689, -inf
    %2698 = vmax.xlane.f32.xlu0 %v2697
    %v2699 = vpop.xlane.xlu0 %2698
    %v2700 = vsel %vm500, %v2690, -inf
    %2701 = vmax.xlane.f32.xlu0 %v2700
    %v2702 = vpop.xlane.xlu0 %2701
    %v2703 = vsub.f32 %v2687, %v2693
    %v2704 = vsub.f32 %v2688, %v2696
    %v2705 = vsub.f32 %v2689, %v2699
    %v2706 = vsub.f32 %v2690, %v2702
    %v2707 = vmul.f32 %v2703, 1.442695
    %v2708 = vpow.pop %v2707
    %v2709 = vmul.f32 %v2704, 1.442695
    %v2710 = vpow.pop %v2709
    %v2711 = vmul.f32 %v2705, 1.442695
    %v2712 = vpow.pop %v2711
    %v2713 = vmul.f32 %v2706, 1.442695
    %v2714 = vpow.pop %v2713
    %v2715 = vsel %vm500, %v2708, 0.0
    %2716 = vadd.xlane.f32.xlu0 %v2715
    %v2717 = vpop.xlane.xlu0 %2716
    %v2718 = vsel %vm500, %v2710, 0.0
    %2719 = vadd.xlane.f32.xlu0 %v2718
    %v2720 = vpop.xlane.xlu0 %2719
    %v2721 = vsel %vm500, %v2712, 0.0
    %2722 = vadd.xlane.f32.xlu0 %v2721
    %v2723 = vpop.xlane.xlu0 %2722
    %v2724 = vsel %vm500, %v2714, 0.0
    %2725 = vadd.xlane.f32.xlu0 %v2724
    %v2726 = vpop.xlane.xlu0 %2725
    %v2727 = vrcp.pop %v2717
    %v2728 = vrcp.pop %v2720
    %v2729 = vrcp.pop %v2723
    %v2730 = vrcp.pop %v2726
    %v2731 = vmul.f32 %v2708, %v2727
    %v2732 = vmul.f32 %v2710, %v2728
    %v2733 = vmul.f32 %v2712, %v2729
    %v2734 = vmul.f32 %v2714, %v2730
    %v2735 = vmul.f32 %v2731, %v479
    %v2736 = vmul.f32 %v2732, %v479
    %v2737 = vmul.f32 %v2733, %v479
    %v2738 = vmul.f32 %v2734, %v479
    %v2740 = vsel %vm500, %v2735, 0
    %v2743 = vsel %vm500, %v2736, 0
    %v2746 = vsel %vm500, %v2737, 0
    %v2749 = vsel %vm500, %v2738, 0
    %2751 = vmatprep.subr.mxu0 0.0
    %2752 = vmatpush1.msra.mxu0 %v487
    %2753 = vmatprep.subr.mxu0 0.0
    %2754 = vmatpush1.msra.mxu0 0.0
    %2755 = vmatprep.subr.mxu0 0.0
    %2756 = vmatpush1.msra.mxu0 0.0
    %2757 = vmatprep.subr.mxu0 0.0
    %2758 = vmatpush1.msra.mxu0 0.0
    %2759 = vmatprep.subr.mxu0 0.0
    %2760 = vmatpush1.msra.mxu0 0.0
    %2761 = vmatprep.subr.mxu0 0.0
    %2762 = vmatpush1.msra.mxu0 0.0
    %2763 = vmatprep.subr.mxu0 0.0
    %2764 = vmatpush1.msra.mxu0 0.0
    %2765 = vmatprep.subr.mxu0 0.0
    %2766 = vmatpush1.msra.mxu0 0.0
    %2767 = vmatprep.subr.mxu0 0.0
    %2768 = vmatpush1.msra.mxu0 0.0
    %2769 = vmatprep.subr.mxu0 0.0
    %2770 = vmatpush1.msra.mxu0 0.0
    %2771 = vmatprep.subr.mxu0 0.0
    %2772 = vmatpush1.msra.mxu0 0.0
    %2773 = vmatprep.subr.mxu0 0.0
    %2774 = vmatpush1.msra.mxu0 0.0
    %2775 = vmatprep.subr.mxu0 0.0
    %2776 = vmatpush1.msra.mxu0 0.0
    %2777 = vmatprep.subr.mxu0 0.0
    %2778 = vmatpush1.msra.mxu0 0.0
    %2779 = vmatprep.subr.mxu0 0.0
    %2780 = vmatpush1.msra.mxu0 0.0
    %2781 = vmatprep.subr.mxu0 0.0
    %2782 = vmatpush1.msra.mxu0 0.0
    %2783 = vmatprep.subr.mxu0 0.0
    %2784 = vmatpush1.msra.mxu0 0.0
    %2785 = vmatprep.subr.mxu0 0.0
    %2786 = vmatpush1.msra.mxu0 0.0
    %2787 = vmatprep.subr.mxu0 0.0
    %2788 = vmatpush1.msra.mxu0 0.0
    %2789 = vmatprep.subr.mxu0 0.0
    %2790 = vmatpush1.msra.mxu0 0.0
    %2791 = vmatprep.subr.mxu0 0.0
    %2792 = vmatpush1.msra.mxu0 0.0
    %2793 = vmatprep.subr.mxu0 0.0
    %2794 = vmatpush1.msra.mxu0 0.0
    %2795 = vmatprep.subr.mxu0 0.0
    %2796 = vmatpush1.msra.mxu0 0.0
    %2797 = vmatprep.subr.mxu0 0.0
    %2798 = vmatpush1.msra.mxu0 0.0
    %2799 = vmatprep.subr.mxu0 0.0
    %2800 = vmatpush1.msra.mxu0 0.0
    %2801 = vmatprep.subr.mxu0 0.0
    %2802 = vmatpush1.msra.mxu0 0.0
    %2803 = vmatprep.subr.mxu0 0.0
    %2804 = vmatpush1.msra.mxu0 0.0
    %2805 = vmatprep.subr.mxu0 0.0
    %2806 = vmatpush1.msra.mxu0 0.0
    %2807 = vmatprep.subr.mxu0 0.0
    %2808 = vmatpush1.msra.mxu0 0.0
    %2809 = vmatprep.subr.mxu0 0.0
    %2810 = vmatpush1.msra.mxu0 0.0
    %2811 = vmatprep.subr.mxu0 0.0
    %2812 = vmatpush1.msra.mxu0 0.0
    %2813 = vmatprep.subr.mxu0 0.0
    %2814 = vmatpush1.msra.mxu0 0.0
    %2815 = vmatprep.mubr.f32.mxu0 0.0
    %2816 = vmatmul.mubr.f32.gmra.mrb[0].mxu0 %v2740
    %v2817 = vpop.f32.mrb[0].mxu0
    %v2818 = vadd.f32 0.0, %v2817
    %v2819 = vpop.f32.mrb[0].mxu0
    %2820 = vmatprep.mubr.f32.mxu0 0.0
    %2821 = vmatmul.mubr.f32.gmra.mrb[0].mxu0 %v2743
    %v2822 = vpop.f32.mrb[0].mxu0
    %v2823 = vadd.f32 0.0, %v2822
    %v2824 = vpop.f32.mrb[0].mxu0
    %2825 = vmatprep.mubr.f32.mxu0 0.0
    %2826 = vmatmul.mubr.f32.gmra.mrb[0].mxu0 %v2746
    %v2827 = vpop.f32.mrb[0].mxu0
    %v2828 = vadd.f32 0.0, %v2827
    %v2829 = vpop.f32.mrb[0].mxu0
    %2830 = vmatprep.mubr.f32.mxu0 0.0
    %2831 = vmatmul.mubr.f32.gmra.mrb[0].mxu0 %v2749
    %v2832 = vpop.f32.mrb[0].mxu0
    %v2833 = vadd.f32 0.0, %v2832
    %v2834 = vpop.f32.mrb[0].mxu0
    %2835 = vdwg.mxu0
    %v2836 = vmul.f32 %v2818, %v484
    %v2837 = vmul.f32 %v2823, %v484
    %v2838 = vmul.f32 %v2828, %v484
    %v2839 = vmul.f32 %v2833, %v484
    %v2840 = vmax.f32 %v2836, 0.0
    %v2841 = vmax.f32 %v2837, 0.0
    %v2842 = vmax.f32 %v2838, 0.0
    %v2843 = vmax.f32 %v2839, 0.0
    %v2844 = vrsqrt.pop %v2840
    %v2845 = vmul.f32 %v2840, %v2844
    %vm2846 = vcmp.eq.f32.partialorder %v2840, inf
    %v2847 = vsel %vm2846, %v2840, %v2845
    %vm2848 = vcmp.eq.f32.partialorder %v2840, 0.0
    %v2849 = vand.u32 %v2840, 2147483648
    %v2850 = vsel %vm2848, %v2849, %v2847
    %v2851 = vrsqrt.pop %v2841
    %v2852 = vmul.f32 %v2841, %v2851
    %vm2853 = vcmp.eq.f32.partialorder %v2841, inf
    %v2854 = vsel %vm2853, %v2841, %v2852
    %vm2855 = vcmp.eq.f32.partialorder %v2841, 0.0
    %v2856 = vand.u32 %v2841, 2147483648
    %v2857 = vsel %vm2855, %v2856, %v2854
    %v2858 = vrsqrt.pop %v2842
    %v2859 = vmul.f32 %v2842, %v2858
    %vm2860 = vcmp.eq.f32.partialorder %v2842, inf
    %v2861 = vsel %vm2860, %v2842, %v2859
    %vm2862 = vcmp.eq.f32.partialorder %v2842, 0.0
    %v2863 = vand.u32 %v2842, 2147483648
    %v2864 = vsel %vm2862, %v2863, %v2861
    %v2865 = vrsqrt.pop %v2843
    %v2866 = vmul.f32 %v2843, %v2865
    %vm2867 = vcmp.eq.f32.partialorder %v2843, inf
    %v2868 = vsel %vm2867, %v2843, %v2866
    %vm2869 = vcmp.eq.f32.partialorder %v2843, 0.0
    %v2870 = vand.u32 %v2843, 2147483648
    %v2871 = vsel %vm2869, %v2870, %v2868
    %s2872 = sld [smem:[#allocation2 + $0x3]]
    %v2873 = vstv %s2872
    %v2874 = vmul.f32 %v2850, %v2873
    %v2875 = vmul.f32 %v2857, %v2873
    %v2876 = vmul.f32 %v2864, %v2873
    %v2877 = vmul.f32 %v2871, %v2873
    %v2878 = vmax.f32 %v2874, -11.512925
    %v2879 = vmax.f32 %v2875, -11.512925
    %v2880 = vmax.f32 %v2876, -11.512925
    %v2881 = vmax.f32 %v2877, -11.512925
    %v2882 = vmin.f32 %v2878, 11.512925
    %v2883 = vmin.f32 %v2879, 11.512925
    %v2884 = vmin.f32 %v2880, 11.512925
    %v2885 = vmin.f32 %v2881, 11.512925
    %v2886 = vmul.f32 %v2882, 1.442695
    %v2887 = vpow.pop %v2886
    %v2888 = vmul.f32 %v2883, 1.442695
    %v2889 = vpow.pop %v2888
    %v2890 = vmul.f32 %v2884, 1.442695
    %v2891 = vpow.pop %v2890
    %v2892 = vmul.f32 %v2885, 1.442695
    %v2893 = vpow.pop %v2892
    %v2894 = vmul.f32 %v2683, %v2887
    %v2895 = vmul.f32 %v2684, %v2889
    %v2896 = vmul.f32 %v2685, %v2891
    %v2897 = vmul.f32 %v2686, %v2893
    %v2898 = vsel %vm689, %v2894, -1e+32
    %v2899 = vsel %vm689, %v2895, -1e+32
    %v2900 = vsel %vm689, %v2896, -1e+32
    %v2901 = vsel %vm689, %v2897, -1e+32
    %v2902 = vsel %vm500, %v2898, -inf
    %2903 = vmax.xlane.f32.xlu0 %v2902
    %v2904 = vpop.xlane.xlu0 %2903
    %v2905 = vsel %vm500, %v2899, -inf
    %2906 = vmax.xlane.f32.xlu0 %v2905
    %v2907 = vpop.xlane.xlu0 %2906
    %v2908 = vsel %vm500, %v2900, -inf
    %2909 = vmax.xlane.f32.xlu0 %v2908
    %v2910 = vpop.xlane.xlu0 %2909
    %v2911 = vsel %vm500, %v2901, -inf
    %2912 = vmax.xlane.f32.xlu0 %v2911
    %v2913 = vpop.xlane.xlu0 %2912
    %v2914 = vsub.f32 %v2898, %v2904
    %v2915 = vsub.f32 %v2899, %v2907
    %v2916 = vsub.f32 %v2900, %v2910
    %v2917 = vsub.f32 %v2901, %v2913
    %v2918 = vmul.f32 %v2914, 1.442695
    %v2919 = vpow.pop %v2918
    %v2920 = vmul.f32 %v2915, 1.442695
    %v2921 = vpow.pop %v2920
    %v2922 = vmul.f32 %v2916, 1.442695
    %v2923 = vpow.pop %v2922
    %v2924 = vmul.f32 %v2917, 1.442695
    %v2925 = vpow.pop %v2924
    %v2926 = vsel %vm500, %v2919, 0.0
    %2927 = vadd.xlane.f32.xlu0 %v2926
    %v2928 = vpop.xlane.xlu0 %2927
    %v2929 = vsel %vm500, %v2921, 0.0
    %2930 = vadd.xlane.f32.xlu0 %v2929
    %v2931 = vpop.xlane.xlu0 %2930
    %v2932 = vsel %vm500, %v2923, 0.0
    %2933 = vadd.xlane.f32.xlu0 %v2932
    %v2934 = vpop.xlane.xlu0 %2933
    %v2935 = vsel %vm500, %v2925, 0.0
    %2936 = vadd.xlane.f32.xlu0 %v2935
    %v2937 = vpop.xlane.xlu0 %2936
    %v2938 = vrcp.pop %v2928
    %v2939 = vrcp.pop %v2931
    %v2940 = vrcp.pop %v2934
    %v2941 = vrcp.pop %v2937
    %v2942 = vmul.f32 %v2919, %v2938
    %v2943 = vmul.f32 %v2921, %v2939
    %v2944 = vmul.f32 %v2923, %v2940
    %v2945 = vmul.f32 %v2925, %v2941
    %v2946 = vsel %vm951, 0.0, %v2942
    %v2947 = vsel %vm951, 0.0, %v2943
    %v2948 = vsel %vm951, 0.0, %v2944
    %v2949 = vsel %vm951, 0.0, %v2945
    %v2950 = vpack.c.bf16 %v2946, %v2946
    %v2951 = vpack.c.bf16 %v2947, %v2947
    %v2952 = vpack.c.bf16 %v2948, %v2948
    %v2953 = vpack.c.bf16 %v2949, %v2949
    %2954 = vrot.lane.b32.xlu0 %v496, 104
    %v2955 = vpop.permute.xlu0 %2954
    %v2957 = vsel %vm500, %v2950, 0
    %v2960 = vsel %vm963, %v2955, 0
    %2962 = vmatprep.subr.bf16.mxu0 0
    %2963 = vmatpush1.bf16.msra.mxu0 %v2960
    %2964 = vmatprep.subr.bf16.mxu0 0
    %2965 = vmatpush1.bf16.msra.mxu0 0
    %2966 = vmatprep.subr.bf16.mxu0 0
    %2967 = vmatpush1.bf16.msra.mxu0 0
    %2968 = vmatprep.subr.bf16.mxu0 0
    %2969 = vmatpush1.bf16.msra.mxu0 0
    %2970 = vmatprep.subr.bf16.mxu0 0
    %2971 = vmatpush1.bf16.msra.mxu0 0
    %2972 = vmatprep.subr.bf16.mxu0 0
    %2973 = vmatpush1.bf16.msra.mxu0 0
    %2974 = vmatprep.subr.bf16.mxu0 0
    %2975 = vmatpush1.bf16.msra.mxu0 0
    %2976 = vmatprep.subr.bf16.mxu0 0
    %2977 = vmatpush1.bf16.msra.mxu0 0
    %2978 = vmatprep.subr.bf16.mxu0 0
    %2979 = vmatpush1.bf16.msra.mxu0 0
    %2980 = vmatprep.subr.bf16.mxu0 0
    %2981 = vmatpush1.bf16.msra.mxu0 0
    %2982 = vmatprep.subr.bf16.mxu0 0
    %2983 = vmatpush1.bf16.msra.mxu0 0
    %2984 = vmatprep.subr.bf16.mxu0 0
    %2985 = vmatpush1.bf16.msra.mxu0 0
    %2986 = vmatprep.subr.bf16.mxu0 0
    %2987 = vmatpush1.bf16.msra.mxu0 0
    %2988 = vmatprep.subr.bf16.mxu0 0
    %2989 = vmatpush1.bf16.msra.mxu0 0
    %2990 = vmatprep.subr.bf16.mxu0 0
    %2991 = vmatpush1.bf16.msra.mxu0 0
    %2992 = vmatprep.subr.bf16.mxu0 0
    %2993 = vmatpush1.bf16.msra.mxu0 0
    %2994 = vmatprep.mubr.bf16.mxu0 0
    %2995 = vmatmul.mubr.bf16.gmra.mrb[0].mxu0 %v2957
    %v2996 = vpop.f32.mrb[0].mxu0
    %v2997 = vadd.f32 0.0, %v2996
    %v2998 = vpop.f32.mrb[0].mxu0
    %v2999 = vpop.f32.mrb[0].mxu0
    %v3000 = vpop.f32.mrb[0].mxu0
    %3001 = vdwg.mxu0
    %3002 = vrot.lane.b32.xlu0 %v497, 104
    %v3003 = vpop.permute.xlu0 %3002
    %v3005 = vsel %vm500, %v2951, 0
    %v3008 = vsel %vm963, %v3003, 0
    %3010 = vmatprep.subr.bf16.mxu0 0
    %3011 = vmatpush1.bf16.msra.mxu0 %v3008
    %3012 = vmatprep.subr.bf16.mxu0 0
    %3013 = vmatpush1.bf16.msra.mxu0 0
    %3014 = vmatprep.subr.bf16.mxu0 0
    %3015 = vmatpush1.bf16.msra.mxu0 0
    %3016 = vmatprep.subr.bf16.mxu0 0
    %3017 = vmatpush1.bf16.msra.mxu0 0
    %3018 = vmatprep.subr.bf16.mxu0 0
    %3019 = vmatpush1.bf16.msra.mxu0 0
    %3020 = vmatprep.subr.bf16.mxu0 0
    %3021 = vmatpush1.bf16.msra.mxu0 0
    %3022 = vmatprep.subr.bf16.mxu0 0
    %3023 = vmatpush1.bf16.msra.mxu0 0
    %3024 = vmatprep.subr.bf16.mxu0 0
    %3025 = vmatpush1.bf16.msra.mxu0 0
    %3026 = vmatprep.subr.bf16.mxu0 0
    %3027 = vmatpush1.bf16.msra.mxu0 0
    %3028 = vmatprep.subr.bf16.mxu0 0
    %3029 = vmatpush1.bf16.msra.mxu0 0
    %3030 = vmatprep.subr.bf16.mxu0 0
    %3031 = vmatpush1.bf16.msra.mxu0 0
    %3032 = vmatprep.subr.bf16.mxu0 0
    %3033 = vmatpush1.bf16.msra.mxu0 0
    %3034 = vmatprep.subr.bf16.mxu0 0
    %3035 = vmatpush1.bf16.msra.mxu0 0
    %3036 = vmatprep.subr.bf16.mxu0 0
    %3037 = vmatpush1.bf16.msra.mxu0 0
    %3038 = vmatprep.subr.bf16.mxu0 0
    %3039 = vmatpush1.bf16.msra.mxu0 0
    %3040 = vmatprep.subr.bf16.mxu0 0
    %3041 = vmatpush1.bf16.msra.mxu0 0
    %3042 = vmatprep.mubr.bf16.mxu0 0
    %3043 = vmatmul.mubr.bf16.gmra.mrb[0].mxu0 %v3005
    %v3044 = vpop.f32.mrb[0].mxu0
    %v3045 = vadd.f32 0.0, %v3044
    %v3046 = vpop.f32.mrb[0].mxu0
    %v3047 = vpop.f32.mrb[0].mxu0
    %v3048 = vpop.f32.mrb[0].mxu0
    %3049 = vdwg.mxu0
    %3050 = vrot.lane.b32.xlu0 %v498, 104
    %v3051 = vpop.permute.xlu0 %3050
    %v3053 = vsel %vm500, %v2952, 0
    %v3056 = vsel %vm963, %v3051, 0
    %3058 = vmatprep.subr.bf16.mxu0 0
    %3059 = vmatpush1.bf16.msra.mxu0 %v3056
    %3060 = vmatprep.subr.bf16.mxu0 0
    %3061 = vmatpush1.bf16.msra.mxu0 0
    %3062 = vmatprep.subr.bf16.mxu0 0
    %3063 = vmatpush1.bf16.msra.mxu0 0
    %3064 = vmatprep.subr.bf16.mxu0 0
    %3065 = vmatpush1.bf16.msra.mxu0 0
    %3066 = vmatprep.subr.bf16.mxu0 0
    %3067 = vmatpush1.bf16.msra.mxu0 0
    %3068 = vmatprep.subr.bf16.mxu0 0
    %3069 = vmatpush1.bf16.msra.mxu0 0
    %3070 = vmatprep.subr.bf16.mxu0 0
    %3071 = vmatpush1.bf16.msra.mxu0 0
    %3072 = vmatprep.subr.bf16.mxu0 0
    %3073 = vmatpush1.bf16.msra.mxu0 0
    %3074 = vmatprep.subr.bf16.mxu0 0
    %3075 = vmatpush1.bf16.msra.mxu0 0
    %3076 = vmatprep.subr.bf16.mxu0 0
    %3077 = vmatpush1.bf16.msra.mxu0 0
    %3078 = vmatprep.subr.bf16.mxu0 0
    %3079 = vmatpush1.bf16.msra.mxu0 0
    %3080 = vmatprep.subr.bf16.mxu0 0
    %3081 = vmatpush1.bf16.msra.mxu0 0
    %3082 = vmatprep.subr.bf16.mxu0 0
    %3083 = vmatpush1.bf16.msra.mxu0 0
    %3084 = vmatprep.subr.bf16.mxu0 0
    %3085 = vmatpush1.bf16.msra.mxu0 0
    %3086 = vmatprep.subr.bf16.mxu0 0
    %3087 = vmatpush1.bf16.msra.mxu0 0
    %3088 = vmatprep.subr.bf16.mxu0 0
    %3089 = vmatpush1.bf16.msra.mxu0 0
    %3090 = vmatprep.mubr.bf16.mxu0 0
    %3091 = vmatmul.mubr.bf16.gmra.mrb[0].mxu0 %v3053
    %v3092 = vpop.f32.mrb[0].mxu0
    %v3093 = vadd.f32 0.0, %v3092
    %v3094 = vpop.f32.mrb[0].mxu0
    %v3095 = vpop.f32.mrb[0].mxu0
    %v3096 = vpop.f32.mrb[0].mxu0
    %3097 = vdwg.mxu0
    %3098 = vrot.lane.b32.xlu0 %v499, 104
    %v3099 = vpop.permute.xlu0 %3098
    %v3101 = vsel %vm500, %v2953, 0
    %v3104 = vsel %vm963, %v3099, 0
    %3106 = vmatprep.subr.bf16.mxu0 0
    %3107 = vmatpush1.bf16.msra.mxu0 %v3104
    %3108 = vmatprep.subr.bf16.mxu0 0
    %3109 = vmatpush1.bf16.msra.mxu0 0
    %3110 = vmatprep.subr.bf16.mxu0 0
    %3111 = vmatpush1.bf16.msra.mxu0 0
    %3112 = vmatprep.subr.bf16.mxu0 0
    %3113 = vmatpush1.bf16.msra.mxu0 0
    %3114 = vmatprep.subr.bf16.mxu0 0
    %3115 = vmatpush1.bf16.msra.mxu0 0
    %3116 = vmatprep.subr.bf16.mxu0 0
    %3117 = vmatpush1.bf16.msra.mxu0 0
    %3118 = vmatprep.subr.bf16.mxu0 0
    %3119 = vmatpush1.bf16.msra.mxu0 0
    %3120 = vmatprep.subr.bf16.mxu0 0
    %3121 = vmatpush1.bf16.msra.mxu0 0
    %3122 = vmatprep.subr.bf16.mxu0 0
    %3123 = vmatpush1.bf16.msra.mxu0 0
    %3124 = vmatprep.subr.bf16.mxu0 0
    %3125 = vmatpush1.bf16.msra.mxu0 0
    %3126 = vmatprep.subr.bf16.mxu0 0
    %3127 = vmatpush1.bf16.msra.mxu0 0
    %3128 = vmatprep.subr.bf16.mxu0 0
    %3129 = vmatpush1.bf16.msra.mxu0 0
    %3130 = vmatprep.subr.bf16.mxu0 0
    %3131 = vmatpush1.bf16.msra.mxu0 0
    %3132 = vmatprep.subr.bf16.mxu0 0
    %3133 = vmatpush1.bf16.msra.mxu0 0
    %3134 = vmatprep.subr.bf16.mxu0 0
    %3135 = vmatpush1.bf16.msra.mxu0 0
    %3136 = vmatprep.subr.bf16.mxu0 0
    %3137 = vmatpush1.bf16.msra.mxu0 0
    %3138 = vmatprep.mubr.bf16.mxu0 0
    %3139 = vmatmul.mubr.bf16.gmra.mrb[0].mxu0 %v3101
    %v3140 = vpop.f32.mrb[0].mxu0
    %v3141 = vadd.f32 0.0, %v3140
    %v3142 = vpop.f32.mrb[0].mxu0
    %v3143 = vpop.f32.mrb[0].mxu0
    %v3144 = vpop.f32.mrb[0].mxu0
    %3145 = vdwg.mxu0
    %3150 = vrot.lane.b32.xlu0 %v1668, 8
    %v3151 = vpop.permute.xlu0 %3150
    %3152 = vrot.lane.b32.xlu0 %v1717, 8
    %v3153 = vpop.permute.xlu0 %3152
    %3154 = vrot.lane.b32.xlu0 %v1766, 8
    %v3155 = vpop.permute.xlu0 %3154
    %3156 = vrot.lane.b32.xlu0 %v1815, 8
    %v3157 = vpop.permute.xlu0 %3156
    %3166 = vrot.lane.b32.xlu0 %v2334, 16
    %v3167 = vpop.permute.xlu0 %3166
    %3168 = vrot.lane.b32.xlu0 %v2382, 16
    %v3169 = vpop.permute.xlu0 %3168
    %3170 = vrot.lane.b32.xlu0 %v2430, 16
    %v3171 = vpop.permute.xlu0 %3170
    %3172 = vrot.lane.b32.xlu0 %v2478, 16
    %v3173 = vpop.permute.xlu0 %3172
    %3182 = vrot.lane.b32.xlu0 %v2997, 24
    %v3183 = vpop.permute.xlu0 %3182
    %3184 = vrot.lane.b32.xlu0 %v3045, 24
    %v3185 = vpop.permute.xlu0 %3184
    %3186 = vrot.lane.b32.xlu0 %v3093, 24
    %v3187 = vpop.permute.xlu0 %3186
    %3188 = vrot.lane.b32.xlu0 %v3141, 24
    %v3189 = vpop.permute.xlu0 %3188
    %v3194 = vsel %vm500, %v1002, %v3151
    %v3195 = vsel %vm500, %v1048, %v3153
    %v3196 = vsel %vm500, %v1094, %v3155
    %v3197 = vsel %vm500, %v1140, %v3157
    %vm3198 = vcmask 130048
    %v3199 = vsel %vm3198, %v3194, %v3167
    %v3200 = vsel %vm3198, %v3195, %v3169
    %v3201 = vsel %vm3198, %v3196, %v3171
    %v3202 = vsel %vm3198, %v3197, %v3173
    %vm3203 = vcmask 195584
    %v3204 = vsel %vm3203, %v3199, %v3183
    %v3205 = vsel %vm3203, %v3200, %v3185
    %v3206 = vsel %vm3203, %v3201, %v3187
    %v3207 = vsel %vm3203, %v3202, %v3189
    %v3208 = vpack.c.bf16 %v3205, %v3204
    %v3209 = vpack.c.bf16 %v3207, %v3206
    %v3210 = vld [vmem:[#allocation16] sm:$0x1]
    %v3212 = vlaneseq
    %v3213 = vshrl.u32 %v3212, 7
    %v3214 = vsub.s32 0, %v3213
    %v3215 = vrot.slane %v3210, %v3214
    %v3217 = vadd.f32 %v204, %v3215
    %v3218 = vadd.f32 %v205, %v3215
    %v3219 = vadd.f32 %v206, %v3215
    %v3220 = vadd.f32 %v207, %v3215
    %v3221 = vld [vmem:[%s10] sm:$0xf]
    %v3222 = vld [vmem:[%s10 + $0x4] sm:$0xf]
    %v3223 = vld [vmem:[%s10 + $0x8] sm:$0xf]
    %v3224 = vld [vmem:[%s10 + $0xc] sm:$0xf]
    %v3229 = vunpack.c.l.b16 %v3221
    %v3230 = vunpack.c.l.b16 %v3222
    %v3231 = vunpack.c.l.b16 %v3223
    %v3232 = vunpack.c.l.b16 %v3224
    %v3233 = vpack.c.b16 %v3230, %v3229
    %v3234 = vpack.c.b16 %v3232, %v3231
    %v3238 = vsel %vm241, %v3208, 0
    %v3241 = vsel %vm241, %v3209, 0
    %3243 = vmatprep.subr.bf16.mxu0 0
    %3244 = vmatpush1.bf16.msra.mxu0 %v3233
    %3245 = vmatprep.subr.bf16.mxu0 0
    %3246 = vmatpush1.bf16.msra.mxu0 %v3234
    %3247 = vmatprep.subr.bf16.mxu0 0
    %3248 = vmatpush1.bf16.msra.mxu0 0
    %3249 = vmatprep.subr.bf16.mxu0 0
    %3250 = vmatpush1.bf16.msra.mxu0 0
    %3251 = vmatprep.subr.bf16.mxu0 0
    %3252 = vmatpush1.bf16.msra.mxu0 0
    %3253 = vmatprep.subr.bf16.mxu0 0
    %3254 = vmatpush1.bf16.msra.mxu0 0
    %3255 = vmatprep.subr.bf16.mxu0 0
    %3256 = vmatpush1.bf16.msra.mxu0 0
    %3257 = vmatprep.subr.bf16.mxu0 0
    %3258 = vmatpush1.bf16.msra.mxu0 0
    %3259 = vmatprep.subr.bf16.mxu0 0
    %3260 = vmatpush1.bf16.msra.mxu0 0
    %3261 = vmatprep.subr.bf16.mxu0 0
    %3262 = vmatpush1.bf16.msra.mxu0 0
    %3263 = vmatprep.subr.bf16.mxu0 0
    %3264 = vmatpush1.bf16.msra.mxu0 0
    %3265 = vmatprep.subr.bf16.mxu0 0
    %3266 = vmatpush1.bf16.msra.mxu0 0
    %3267 = vmatprep.subr.bf16.mxu0 0
    %3268 = vmatpush1.bf16.msra.mxu0 0
    %3269 = vmatprep.subr.bf16.mxu0 0
    %3270 = vmatpush1.bf16.msra.mxu0 0
    %3271 = vmatprep.subr.bf16.mxu0 0
    %3272 = vmatpush1.bf16.msra.mxu0 0
    %3273 = vmatprep.subr.bf16.mxu0 0
    %3274 = vmatpush1.bf16.msra.mxu0 0
    %3275 = vmatprep.mubr.bf16.mxu0 0
    %3276 = vmatmul.mubr.bf16.gmra.mrb[0].mxu0 %v3238
    %v3277 = vpop.f32.mrb[0].mxu0
    %v3278 = vadd.f32 0.0, %v3277
    %v3279 = vpop.f32.mrb[0].mxu0
    %v3280 = vpop.f32.mrb[0].mxu0
    %v3281 = vadd.f32 0.0, %v3280
    %v3282 = vpop.f32.mrb[0].mxu0
    %3283 = vmatprep.mubr.bf16.mxu0 0
    %3284 = vmatmul.mubr.bf16.gmra.mrb[0].mxu0 %v3241
    %v3285 = vpop.f32.mrb[0].mxu0
    %v3286 = vadd.f32 0.0, %v3285
    %v3287 = vpop.f32.mrb[0].mxu0
    %v3288 = vpop.f32.mrb[0].mxu0
    %v3289 = vadd.f32 0.0, %v3288
    %v3290 = vpop.f32.mrb[0].mxu0
    %3291 = vdwg.mxu0
    %v3292 = vadd.f32 %v3217, %v3278
    %v3293 = vadd.f32 %v3218, %v3281
    %v3294 = vadd.f32 %v3219, %v3286
    %v3295 = vadd.f32 %v3220, %v3289
    %v3296 = vld [vmem:[#allocation18] sm:$0x1]
    %v3297 = vld [vmem:[#allocation19] sm:$0x1]
    %v3298 = vsel %vm241, %v3292, 0.0
    %3299 = vadd.xlane.f32.xlu0 %v3298
    %v3300 = vpop.xlane.xlu0 %3299
    %v3301 = vsel %vm241, %v3293, 0.0
    %3302 = vadd.xlane.f32.xlu0 %v3301
    %v3303 = vpop.xlane.xlu0 %3302
    %v3304 = vsel %vm241, %v3294, 0.0
    %3305 = vadd.xlane.f32.xlu0 %v3304
    %v3306 = vpop.xlane.xlu0 %3305
    %v3307 = vsel %vm241, %v3295, 0.0
    %3308 = vadd.xlane.f32.xlu0 %v3307
    %v3309 = vpop.xlane.xlu0 %3308
    %v3310 = vrcp.pop 32.0
    %v3311 = vmul.f32 %v3300, %v3310
    %v3312 = vmul.f32 %v3303, %v3310
    %v3313 = vmul.f32 %v3306, %v3310
    %v3314 = vmul.f32 %v3309, %v3310
    %v3315 = vsub.f32 %v3292, %v3311
    %v3316 = vsub.f32 %v3293, %v3312
    %v3317 = vsub.f32 %v3294, %v3313
    %v3318 = vsub.f32 %v3295, %v3314
    %v3319 = vmul.f32 %v3315, %v3315
    %v3320 = vmul.f32 %v3316, %v3316
    %v3321 = vmul.f32 %v3317, %v3317
    %v3322 = vmul.f32 %v3318, %v3318
    %v3323 = vsel %vm241, %v3319, 0.0
    %3324 = vadd.xlane.f32.xlu0 %v3323
    %v3325 = vpop.xlane.xlu0 %3324
    %v3326 = vsel %vm241, %v3320, 0.0
    %3327 = vadd.xlane.f32.xlu0 %v3326
    %v3328 = vpop.xlane.xlu0 %3327
    %v3329 = vsel %vm241, %v3321, 0.0
    %3330 = vadd.xlane.f32.xlu0 %v3329
    %v3331 = vpop.xlane.xlu0 %3330
    %v3332 = vsel %vm241, %v3322, 0.0
    %3333 = vadd.xlane.f32.xlu0 %v3332
    %v3334 = vpop.xlane.xlu0 %3333
    %v3335 = vmul.f32 %v3325, %v3310
    %v3336 = vmul.f32 %v3328, %v3310
    %v3337 = vmul.f32 %v3331, %v3310
    %v3338 = vmul.f32 %v3334, %v3310
    %v3339 = vadd.f32 %v3335, 1e-05
    %v3340 = vadd.f32 %v3336, 1e-05
    %v3341 = vadd.f32 %v3337, 1e-05
    %v3342 = vadd.f32 %v3338, 1e-05
    %v3343 = vrsqrt.pop %v3339
    %v3344 = vrsqrt.pop %v3340
    %v3345 = vrsqrt.pop %v3341
    %v3346 = vrsqrt.pop %v3342
    %v3347 = vmul.f32 %v3315, %v3343
    %v3348 = vmul.f32 %v3316, %v3344
    %v3349 = vmul.f32 %v3317, %v3345
    %v3350 = vmul.f32 %v3318, %v3346
    %v3352 = vlaneseq
    %v3353 = vshrl.u32 %v3352, 7
    %v3354 = vsub.s32 0, %v3353
    %v3355 = vrot.slane %v3296, %v3354
    %v3357 = vmul.f32 %v3347, %v3355
    %v3358 = vmul.f32 %v3348, %v3355
    %v3359 = vmul.f32 %v3349, %v3355
    %v3360 = vmul.f32 %v3350, %v3355
    %v3362 = vlaneseq
    %v3363 = vshrl.u32 %v3362, 7
    %v3364 = vsub.s32 0, %v3363
    %v3365 = vrot.slane %v3297, %v3364
    %v3367 = vadd.f32 %v3357, %v3365
    %v3368 = vadd.f32 %v3358, %v3365
    %v3369 = vadd.f32 %v3359, %v3365
    %v3370 = vadd.f32 %v3360, %v3365
    %v3371 = vpack.c.bf16 %v3368, %v3367
    %v3372 = vpack.c.bf16 %v3370, %v3369
    %v3373 = vld [vmem:[%s14] sm:$0xf]
    %v3374 = vld [vmem:[%s14 + $0x4] sm:$0xf]
    %v3375 = vld [vmem:[%s14 + $0x8] sm:$0xf]
    %v3376 = vld [vmem:[%s14 + $0xc] sm:$0xf]
    %v3377 = vld [vmem:[%s15] sm:$0x1]
    %v3379 = vlaneseq
    %v3380 = vshrl.u32 %v3379, 7
    %v3381 = vsub.s32 0, %v3380
    %v3382 = vrot.slane %v3377, %v3381
    %v3388 = vunpack.c.l.b16 %v3373
    %v3389 = vunpack.c.l.b16 %v3374
    %v3390 = vunpack.c.l.b16 %v3375
    %v3391 = vunpack.c.l.b16 %v3376
    %v3392 = vpack.c.b16 %v3389, %v3388
    %v3393 = vpack.c.b16 %v3391, %v3390
    %v3397 = vsel %vm241, %v3371, 0
    %v3400 = vsel %vm241, %v3372, 0
    %3402 = vmatprep.subr.bf16.mxu0 0
    %3403 = vmatpush1.bf16.msra.mxu0 %v3392
    %3404 = vmatprep.subr.bf16.mxu0 0
    %3405 = vmatpush1.bf16.msra.mxu0 %v3393
    %3406 = vmatprep.subr.bf16.mxu0 0
    %3407 = vmatpush1.bf16.msra.mxu0 0
    %3408 = vmatprep.subr.bf16.mxu0 0
    %3409 = vmatpush1.bf16.msra.mxu0 0
    %3410 = vmatprep.subr.bf16.mxu0 0
    %3411 = vmatpush1.bf16.msra.mxu0 0
    %3412 = vmatprep.subr.bf16.mxu0 0
    %3413 = vmatpush1.bf16.msra.mxu0 0
    %3414 = vmatprep.subr.bf16.mxu0 0
    %3415 = vmatpush1.bf16.msra.mxu0 0
    %3416 = vmatprep.subr.bf16.mxu0 0
    %3417 = vmatpush1.bf16.msra.mxu0 0
    %3418 = vmatprep.subr.bf16.mxu0 0
    %3419 = vmatpush1.bf16.msra.mxu0 0
    %3420 = vmatprep.subr.bf16.mxu0 0
    %3421 = vmatpush1.bf16.msra.mxu0 0
    %3422 = vmatprep.subr.bf16.mxu0 0
    %3423 = vmatpush1.bf16.msra.mxu0 0
    %3424 = vmatprep.subr.bf16.mxu0 0
    %3425 = vmatpush1.bf16.msra.mxu0 0
    %3426 = vmatprep.subr.bf16.mxu0 0
    %3427 = vmatpush1.bf16.msra.mxu0 0
    %3428 = vmatprep.subr.bf16.mxu0 0
    %3429 = vmatpush1.bf16.msra.mxu0 0
    %3430 = vmatprep.subr.bf16.mxu0 0
    %3431 = vmatpush1.bf16.msra.mxu0 0
    %3432 = vmatprep.subr.bf16.mxu0 0
    %3433 = vmatpush1.bf16.msra.mxu0 0
    %3434 = vmatprep.mubr.bf16.mxu0 0
    %3435 = vmatmul.mubr.bf16.gmra.mrb[0].mxu0 %v3397
    %v3436 = vpop.f32.mrb[0].mxu0
    %v3437 = vadd.f32 %v3382, %v3436
    %v3438 = vpop.f32.mrb[0].mxu0
    %v3439 = vpop.f32.mrb[0].mxu0
    %v3440 = vadd.f32 %v3382, %v3439
    %v3441 = vpop.f32.mrb[0].mxu0
    %3442 = vmatprep.mubr.bf16.mxu0 0
    %3443 = vmatmul.mubr.bf16.gmra.mrb[0].mxu0 %v3400
    %v3444 = vpop.f32.mrb[0].mxu0
    %v3445 = vadd.f32 %v3382, %v3444
    %v3446 = vpop.f32.mrb[0].mxu0
    %v3447 = vpop.f32.mrb[0].mxu0
    %v3448 = vadd.f32 %v3382, %v3447
    %v3449 = vpop.f32.mrb[0].mxu0
    %3450 = vdwg.mxu0
    %v3451 = vmax.f32 %v3437, 0.0
    %v3452 = vmax.f32 %v3440, 0.0
    %v3453 = vmax.f32 %v3445, 0.0
    %v3454 = vmax.f32 %v3448, 0.0
    %v3455 = vpack.c.bf16 %v3452, %v3451
    %v3456 = vpack.c.bf16 %v3454, %v3453
    %v3457 = vld [vmem:[%s16] sm:$0xf]
    %v3458 = vld [vmem:[%s16 + $0x4] sm:$0xf]
    %v3459 = vld [vmem:[%s16 + $0x8] sm:$0xf]
    %v3460 = vld [vmem:[%s16 + $0xc] sm:$0xf]
    %v3461 = vld [vmem:[%s16 + $0x10] sm:$0xf]
    %v3462 = vld [vmem:[%s16 + $0x14] sm:$0xf]
    %v3463 = vld [vmem:[%s16 + $0x18] sm:$0xf]
    %v3464 = vld [vmem:[%s16 + $0x1c] sm:$0xf]
    %v3465 = vld [vmem:[%s17] sm:$0x1]
    %v3467 = vlaneseq
    %v3468 = vshrl.u32 %v3467, 7
    %v3469 = vsub.s32 0, %v3468
    %v3470 = vrot.slane %v3465, %v3469
    %v3480 = vunpack.c.l.b16 %v3457
    %v3481 = vunpack.c.l.b16 %v3458
    %v3482 = vunpack.c.l.b16 %v3459
    %v3483 = vunpack.c.l.b16 %v3460
    %v3484 = vunpack.c.l.b16 %v3461
    %v3485 = vunpack.c.l.b16 %v3462
    %v3486 = vunpack.c.l.b16 %v3463
    %v3487 = vunpack.c.l.b16 %v3464
    %v3488 = vpack.c.b16 %v3481, %v3480
    %v3489 = vpack.c.b16 %v3483, %v3482
    %v3490 = vpack.c.b16 %v3485, %v3484
    %v3491 = vpack.c.b16 %v3487, %v3486
    %vm3496 = vcmask 523264
    %v3498 = vsel %vm3496, %v3455, 0
    %v3501 = vsel %vm3496, %v3456, 0
    %3503 = vmatprep.subr.bf16.mxu0 0
    %3504 = vmatpush1.bf16.msra.mxu0 %v3488
    %3505 = vmatprep.subr.bf16.mxu0 0
    %3506 = vmatpush1.bf16.msra.mxu0 %v3489
    %3507 = vmatprep.subr.bf16.mxu0 0
    %3508 = vmatpush1.bf16.msra.mxu0 %v3490
    %3509 = vmatprep.subr.bf16.mxu0 0
    %3510 = vmatpush1.bf16.msra.mxu0 %v3491
    %3511 = vmatprep.subr.bf16.mxu0 0
    %3512 = vmatpush1.bf16.msra.mxu0 0
    %3513 = vmatprep.subr.bf16.mxu0 0
    %3514 = vmatpush1.bf16.msra.mxu0 0
    %3515 = vmatprep.subr.bf16.mxu0 0
    %3516 = vmatpush1.bf16.msra.mxu0 0
    %3517 = vmatprep.subr.bf16.mxu0 0
    %3518 = vmatpush1.bf16.msra.mxu0 0
    %3519 = vmatprep.subr.bf16.mxu0 0
    %3520 = vmatpush1.bf16.msra.mxu0 0
    %3521 = vmatprep.subr.bf16.mxu0 0
    %3522 = vmatpush1.bf16.msra.mxu0 0
    %3523 = vmatprep.subr.bf16.mxu0 0
    %3524 = vmatpush1.bf16.msra.mxu0 0
    %3525 = vmatprep.subr.bf16.mxu0 0
    %3526 = vmatpush1.bf16.msra.mxu0 0
    %3527 = vmatprep.subr.bf16.mxu0 0
    %3528 = vmatpush1.bf16.msra.mxu0 0
    %3529 = vmatprep.subr.bf16.mxu0 0
    %3530 = vmatpush1.bf16.msra.mxu0 0
    %3531 = vmatprep.subr.bf16.mxu0 0
    %3532 = vmatpush1.bf16.msra.mxu0 0
    %3533 = vmatprep.subr.bf16.mxu0 0
    %3534 = vmatpush1.bf16.msra.mxu0 0
    %3535 = vmatprep.mubr.bf16.mxu0 0
    %3536 = vmatmul.mubr.bf16.gmra.mrb[0].mxu0 %v3498
    %v3537 = vpop.f32.mrb[0].mxu0
    %v3538 = vadd.f32 %v3470, %v3537
    %v3539 = vpop.f32.mrb[0].mxu0
    %v3540 = vpop.f32.mrb[0].mxu0
    %v3541 = vadd.f32 %v3470, %v3540
    %v3542 = vpop.f32.mrb[0].mxu0
    %3543 = vmatprep.mubr.bf16.mxu0 0
    %3544 = vmatmul.mubr.bf16.gmra.mrb[0].mxu0 %v3501
    %v3545 = vpop.f32.mrb[0].mxu0
    %v3546 = vadd.f32 %v3470, %v3545
    %v3547 = vpop.f32.mrb[0].mxu0
    %v3548 = vpop.f32.mrb[0].mxu0
    %v3549 = vadd.f32 %v3470, %v3548
    %v3550 = vpop.f32.mrb[0].mxu0
    %3551 = vdwg.mxu0
    %v3552 = vadd.f32 %v3367, %v3538
    %v3553 = vadd.f32 %v3368, %v3541
    %v3554 = vadd.f32 %v3369, %v3546
    %v3555 = vadd.f32 %v3370, %v3549
    %v3556 = vld [vmem:[%s18] sm:$0x1]
    %v3557 = vld [vmem:[%s19] sm:$0x1]
    %v3558 = vsel %vm241, %v3552, 0.0
    %3559 = vadd.xlane.f32.xlu0 %v3558
    %v3560 = vpop.xlane.xlu0 %3559
    %v3561 = vsel %vm241, %v3553, 0.0
    %3562 = vadd.xlane.f32.xlu0 %v3561
    %v3563 = vpop.xlane.xlu0 %3562
    %v3564 = vsel %vm241, %v3554, 0.0
    %3565 = vadd.xlane.f32.xlu0 %v3564
    %v3566 = vpop.xlane.xlu0 %3565
    %v3567 = vsel %vm241, %v3555, 0.0
    %3568 = vadd.xlane.f32.xlu0 %v3567
    %v3569 = vpop.xlane.xlu0 %3568
    %v3570 = vmul.f32 %v3560, %v3310
    %v3571 = vmul.f32 %v3563, %v3310
    %v3572 = vmul.f32 %v3566, %v3310
    %v3573 = vmul.f32 %v3569, %v3310
    %v3574 = vsub.f32 %v3552, %v3570
    %v3575 = vsub.f32 %v3553, %v3571
    %v3576 = vsub.f32 %v3554, %v3572
    %v3577 = vsub.f32 %v3555, %v3573
    %v3578 = vmul.f32 %v3574, %v3574
    %v3579 = vmul.f32 %v3575, %v3575
    %v3580 = vmul.f32 %v3576, %v3576
    %v3581 = vmul.f32 %v3577, %v3577
    %v3582 = vsel %vm241, %v3578, 0.0
    %3583 = vadd.xlane.f32.xlu0 %v3582
    %v3584 = vpop.xlane.xlu0 %3583
    %v3585 = vsel %vm241, %v3579, 0.0
    %3586 = vadd.xlane.f32.xlu0 %v3585
    %v3587 = vpop.xlane.xlu0 %3586
    %v3588 = vsel %vm241, %v3580, 0.0
    %3589 = vadd.xlane.f32.xlu0 %v3588
    %v3590 = vpop.xlane.xlu0 %3589
    %v3591 = vsel %vm241, %v3581, 0.0
    %3592 = vadd.xlane.f32.xlu0 %v3591
    %v3593 = vpop.xlane.xlu0 %3592
    %v3594 = vmul.f32 %v3584, %v3310
    %v3595 = vmul.f32 %v3587, %v3310
    %v3596 = vmul.f32 %v3590, %v3310
    %v3597 = vmul.f32 %v3593, %v3310
    %v3598 = vadd.f32 %v3594, 1e-05
    %v3599 = vadd.f32 %v3595, 1e-05
    %v3600 = vadd.f32 %v3596, 1e-05
    %v3601 = vadd.f32 %v3597, 1e-05
    %v3602 = vrsqrt.pop %v3598
    %v3603 = vrsqrt.pop %v3599
    %v3604 = vrsqrt.pop %v3600
    %v3605 = vrsqrt.pop %v3601
    %v3606 = vmul.f32 %v3574, %v3602
    %v3607 = vmul.f32 %v3575, %v3603
    %v3608 = vmul.f32 %v3576, %v3604
    %v3609 = vmul.f32 %v3577, %v3605
    %v3611 = vlaneseq
    %v3612 = vshrl.u32 %v3611, 7
    %v3613 = vsub.s32 0, %v3612
    %v3614 = vrot.slane %v3556, %v3613
    %v3616 = vmul.f32 %v3606, %v3614
    %v3617 = vmul.f32 %v3607, %v3614
    %v3618 = vmul.f32 %v3608, %v3614
    %v3619 = vmul.f32 %v3609, %v3614
    %v3621 = vlaneseq
    %v3622 = vshrl.u32 %v3621, 7
    %v3623 = vsub.s32 0, %v3622
    %v3624 = vrot.slane %v3557, %v3623
    %v3626 = vadd.f32 %v3616, %v3624
    %v3627 = vadd.f32 %v3617, %v3624
    %v3628 = vadd.f32 %v3618, %v3624
    %v3629 = vadd.f32 %v3619, %v3624
    %3630 = vst.msk [vmem:[#allocation21] sm:$0xff] %vm241, %v3626
    %3631 = vst.msk [vmem:[#allocation21 + $0x8] sm:$0xff] %vm241, %v3627
    %3632 = vst.msk [vmem:[#allocation21 + $0x10] sm:$0xff] %vm241, %v3628
    %3633 = vst.msk [vmem:[#allocation21 + $0x18] sm:$0xff] %vm241, %v3629
    // Predicated region
    $region126: #{tpu_custom_call.1} parent=1 // pred_check
      _
    $region127: #{tpu_custom_call.1} parent=1 // pred_check_branch
      %3635 = sbr.rel (0) target = $region129
    $region128: #{tpu_custom_call.1} parent=1 // pred_region
      %s3637 = ssub.s32 512, 512
      %3638 = vsyncadd [#allocation4], %s3637
      %s3639 = sshll.u32 [#allocation21], 4
      %s3640 = int_to_ptr.vmem [resolvable:$true] %s3639
      %3645 = dma.vmem_to_hbm [thread:$0]  %s3640, 512, %s20, [#allocation4], 128, 128, 8
    $region129: #{tpu_custom_call.1} parent=1 // pred_fallthru
      _
    // Predicated region
    $region130: #{tpu_custom_call.1} parent=1 // pred_check
      _
    $region131: #{tpu_custom_call.1} parent=1 // pred_check_branch
      %3647 = sbr.rel (0) target = $region133
    $region132: #{tpu_custom_call.1} parent=1 // pred_region
      %3648 = dma.done [#allocation4], 512
    $region133: #{tpu_custom_call.1} parent=1 // pred_fallthru
      _
    %3649 = vsyncpa [#allocation3], 1
    %3650 = vsyncpa [#allocation8], 1
    %3651 = vsyncpa [#allocation11], 1
    %3652 = vsyncpa [#allocation14], 1
    %3653 = vsyncpa [#allocation17], 1
    %3654 = vsyncpa [#allocation20], 1
    %3655 = vsyncpa [#allocation4], 1
    %3656 = vsyncpa [#allocation5], 1

</llo_original>
